<compile_context>
chip_gen: v7x
topology: tpu7x:2x2x1
jax: 0.10.0
libtpu: 0.0.40
codegen_flags: <defaults>
</compile_context>

<pallas_src>
import jax
import jax.numpy as jnp
from jax import lax
from jax.experimental import pallas as pl
from jax.experimental.pallas import tpu as pltpu


# ----------------------------- Pallas kernels -----------------------------

def _conv_pool_kernel(x_ref, w1_ref, b1_ref, w2_ref, b2_ref, o_ref):
    """Fused conv1+ReLU -> conv2+ReLU -> 2x2 max-pool for one image.

    x_ref : (1, 28, 28, 1) f32      w1_ref: (9, 32)  f32    b1_ref: (1, 32) f32
    w2_ref: (9, 32, 64)   bf16      b2_ref: (1, 64)  f32
    o_ref : (1, 12, 768)  bf16      (row = h2, lane = w2*64 + c)
    """
    x = x_ref[0]                                   # (28, 28, 1)
    w1 = w1_ref[...]                               # (9, 32)
    w2 = w2_ref[...]                               # (9, 32, 64) bf16

    # ---- conv1 (1 -> 32, valid): 9 VPU tap FMAs, channels-last ------------
    h1 = jnp.zeros((26, 26, 32), jnp.float32)
    for ki in range(3):
        for kj in range(3):
            tap = x[ki:ki + 26, kj:kj + 26, :]                     # (26, 26, 1)
            w_tap = w1[ki * 3 + kj:ki * 3 + kj + 1, :].reshape(1, 1, 32)
            h1 = h1 + tap * w_tap                                  # (26, 26, 32)
    h1 = jnp.maximum(h1 + b1_ref[...].reshape(1, 1, 32), 0.0)

    # ---- conv2 (32 -> 64, valid): 9 MXU tap matmuls, bf16 in / f32 acc ----
    acc = jnp.zeros((576, 64), jnp.float32)                        # rows = h*24+w
    for ki in range(3):
        for kj in range(3):
            patch = h1[ki:ki + 24, kj:kj + 24, :].reshape(576, 32)
            acc = acc + jnp.dot(patch.astype(jnp.bfloat16),
                                w2[ki * 3 + kj],
                                preferred_element_type=jnp.float32)
    acc = jnp.maximum(acc + b2_ref[...], 0.0)                      # (576, 64)

    # ---- fused 2x2 / stride-2 max-pool, lane-dense (12, 768) output -------
    y = acc.reshape(12, 2, 24, 64)                 # split H (sublane-tile aligned)
    hp = jnp.maximum(y[:, 0], y[:, 1])             # (12, 24, 64)
    cols = [jnp.maximum(hp[:, 2 * w, :], hp[:, 2 * w + 1, :])      # (12, 64)
            for w in range(12)]
    o_ref[0] = jnp.concatenate(cols, axis=-1).astype(o_ref.dtype)  # (12, 768)


def _mlp_head_kernel(x_ref, w1_ref, b1_ref, w2_ref, b2_ref, o_ref, acc_ref):
    """fc1 (tiled over K, f32 accumulator) + ReLU -> fc2 -> log_softmax.

    x_ref : (tm, tk) bf16   w1_ref: (tk, 128) bf16   b1_ref: (1, 128) f32
    w2_ref: (128, 10) f32   b2_ref: (1, 10)  f32     o_ref : (tm, 10) f32
    acc_ref: VMEM (tm, 128) f32 scratch (fc1 partial sums, resident over K).
    """
    k = pl.program_id(1)

    @pl.when(k == 0)
    def _():
        acc_ref[...] = jnp.zeros_like(acc_ref)

    acc_ref[...] += jnp.dot(x_ref[...], w1_ref[...],
                            preferred_element_type=jnp.float32)

    @pl.when(k == pl.num_programs(1) - 1)
    def _():
        h = jnp.maximum(acc_ref[...] + b1_ref[...], 0.0)           # (tm, 128)
        logits = jnp.dot(h, w2_ref[...],
                         preferred_element_type=jnp.float32) + b2_ref[...]
        m = jnp.max(logits, axis=-1, keepdims=True)
        s = logits - m
        lse = jnp.log(jnp.sum(jnp.exp(s), axis=-1, keepdims=True))
        o_ref[...] = (s - lse).astype(o_ref.dtype)                 # (tm, 10)


# --------------------------- pallas_call wrappers --------------------------

def conv_pool_forward(x_nchw, w1_taps, b1, w2_taps, b2):
    """(B, 1, 28, 28) f32 -> pooled features (B, 12, 768) bf16 (h, w, c order)."""
    B = x_nchw.shape[0]
    x = x_nchw.reshape(B, 28, 28, 1).astype(jnp.float32)   # C=1: free reshape

    flops = B * (2 * 26 * 26 * 32 * 9 + 2 * 576 * 32 * 64 * 9)
    bytes_accessed = B * (28 * 28 * 4 + 12 * 768 * 2) + 9 * 32 * 4 + 9 * 32 * 64 * 2 + 400

    return pl.pallas_call(
        _conv_pool_kernel,
        out_shape=jax.ShapeDtypeStruct((B, 12, 768), jnp.bfloat16),
        grid_spec=pltpu.PrefetchScalarGridSpec(
            num_scalar_prefetch=0,
            grid=(B,),
            in_specs=[
                pl.BlockSpec((1, 28, 28, 1), lambda b: (b, 0, 0, 0)),
                pl.BlockSpec((9, 32), lambda b: (0, 0)),
                pl.BlockSpec((1, 32), lambda b: (0, 0)),
                pl.BlockSpec((9, 32, 64), lambda b: (0, 0, 0)),
                pl.BlockSpec((1, 64), lambda b: (0, 0)),
            ],
            out_specs=pl.BlockSpec((1, 12, 768), lambda b: (b, 0, 0)),
        ),
        compiler_params=pltpu.CompilerParams(
            dimension_semantics=("parallel",)),
        cost_estimate=pl.CostEstimate(flops=flops, transcendentals=0,
                                      bytes_accessed=bytes_accessed),
    )(x, w1_taps, b1.reshape(1, 32), w2_taps, b2.reshape(1, 64))


def _pick_tm(batch):
    for tm in (256, 128, 64, 32, 16, 8):
        if batch % tm == 0:
            return tm
    return batch            # small / odd batch: one M block (== full dim)


def mlp_head_forward(flat, wf1, bf1, wf2, bf2):
    """flat (B, 9216) bf16 -> log-probs (B, 10) f32."""
    B, K = flat.shape
    N1 = wf1.shape[1]                       # 128
    N2 = wf2.shape[1]                       # 10
    tm = _pick_tm(B)
    tk = 1536                               # 9216 = 6 * 1536 (exact K tiling)
    assert K % tk == 0

    flops = B * (2 * K * N1 + 2 * N1 * N2)
    bytes_accessed = B * (K * 2 + N2 * 4) + K * N1 * 2 + N1 * 4 + N1 * N2 * 4 + N2 * 4

    return pl.pallas_call(
        _mlp_head_kernel,
        out_shape=jax.ShapeDtypeStruct((B, N2), jnp.float32),
        grid_spec=pltpu.PrefetchScalarGridSpec(
            num_scalar_prefetch=0,
            grid=(B // tm, K // tk),
            in_specs=[
                pl.BlockSpec((tm, tk), lambda i, k: (i, k)),
                pl.BlockSpec((tk, N1), lambda i, k: (k, 0)),
                pl.BlockSpec((1, N1), lambda i, k: (0, 0)),
                pl.BlockSpec((N1, N2), lambda i, k: (0, 0)),
                pl.BlockSpec((1, N2), lambda i, k: (0, 0)),
            ],
            out_specs=pl.BlockSpec((tm, N2), lambda i, k: (i, 0)),
            scratch_shapes=[pltpu.VMEM((tm, N1), jnp.float32)],
        ),
        compiler_params=pltpu.CompilerParams(
            dimension_semantics=("parallel", "arbitrary")),
        cost_estimate=pl.CostEstimate(flops=flops, transcendentals=B * N2,
                                      bytes_accessed=bytes_accessed),
    )(flat, wf1, bf1.reshape(1, N1), wf2, bf2.reshape(1, N2))


# ------------------------------ parameters ---------------------------------

def init_torch_params(key):
    """Random weights in the PyTorch module's native layouts."""
    ks = jax.random.split(key, 8)

    def init(k, shape, fan_in):
        return jax.random.normal(k, shape, jnp.float32) / jnp.sqrt(fan_in)

    return {
        "conv1_w": init(ks[0], (32, 1, 3, 3), 9),       # (O, C, kH, kW)
        "conv1_b": init(ks[1], (32,), 9),
        "conv2_w": init(ks[2], (64, 32, 3, 3), 288),
        "conv2_b": init(ks[3], (64,), 288),
        "fc1_w": init(ks[4], (128, 9216), 9216),        # (out, in), in = (c, h, w)
        "fc1_b": init(ks[5], (128,), 9216),
        "fc2_w": init(ks[6], (10, 128), 128),
        "fc2_b": init(ks[7], (10,), 128),
    }


def to_kernel_params(p):
    """Re-layout PyTorch-shaped weights into the kernels' tap / matmul layouts."""
    w1 = p["conv1_w"]            # (32, 1, 3, 3)
    w2 = p["conv2_w"]            # (64, 32, 3, 3)
    wf1 = p["fc1_w"]             # (128, 9216), columns ordered (c, h, w)
    return {
        # conv1 taps: [ki*3+kj, c_out]
        "w1": jnp.transpose(w1[:, 0], (1, 2, 0)).reshape(9, 32),
        "b1": p["conv1_b"],
        # conv2 taps: [ki*3+kj, c_in, c_out], bf16 for the MXU
        "w2": jnp.transpose(w2, (2, 3, 1, 0)).reshape(9, 32, 64).astype(jnp.bfloat16),
        "b2": p["conv2_b"],
        # fc1 columns reordered from PyTorch (c,h,w) flatten to this kernel's (h,w,c)
        "wf1": jnp.transpose(wf1.reshape(128, 64, 12, 12),
                             (2, 3, 1, 0)).reshape(9216, 128).astype(jnp.bfloat16),
        "bf1": p["fc1_b"],
        "wf2": p["fc2_w"].T,     # (128, 10) f32
        "bf2": p["fc2_b"],
    }


# ------------------------------- forward -----------------------------------

@jax.jit
def cnn_forward(x, params):
    """x: (B, 1, 28, 28) f32 (NCHW, PyTorch convention) -> log-probs (B, 10)."""
    B = x.shape[0]
    feats = conv_pool_forward(x, params["w1"], params["b1"],
                              params["w2"], params["b2"])      # (B, 12, 768) bf16
    # dropout1 -> identity (eval mode); flatten is free: already (h, w, c) order
    flat = feats.reshape(B, 9216)
    # dropout2 -> identity (eval mode); fc1+ReLU+fc2+log_softmax fused in one kernel
    return mlp_head_forward(flat, params["wf1"], params["bf1"],
                            params["wf2"], params["bf2"])      # (B, 10) f32


def reference_forward(x, p):
    """Plain-JAX (XLA) NCHW reference matching the PyTorch module exactly."""
    y = lax.conv_general_dilated(x, p["conv1_w"], (1, 1), "VALID",
                                 dimension_numbers=("NCHW", "OIHW", "NCHW"))
    y = jax.nn.relu(y + p["conv1_b"].reshape(1, -1, 1, 1))
    y = lax.conv_general_dilated(y, p["conv2_w"], (1, 1), "VALID",
                                 dimension_numbers=("NCHW", "OIHW", "NCHW"))
    y = jax.nn.relu(y + p["conv2_b"].reshape(1, -1, 1, 1))
    y = lax.reduce_window(y, -jnp.inf, lax.max, (1, 1, 2, 2), (1, 1, 2, 2), "VALID")
    y = y.reshape(y.shape[0], -1)                              # (B, 9216) (c,h,w)
    y = jax.nn.relu(y @ p["fc1_w"].T + p["fc1_b"])
    y = y @ p["fc2_w"].T + p["fc2_b"]
    return jax.nn.log_softmax(y, axis=-1)


if __name__ == "__main__":
    key = jax.random.PRNGKey(0)
    k_x, k_p = jax.random.split(key)

    # fc1 expects 9216 = 64*12*12 features, which pins the input to (B, 1, 28, 28)
    x = jax.random.normal(k_x, (2, 1, 28, 28), jnp.float32)
    torch_params = init_torch_params(k_p)
    params = to_kernel_params(torch_params)

    out = cnn_forward(x, params)
    out = jax.block_until_ready(out)

    assert out.shape == (2, 10), out.shape
    assert bool(jnp.all(jnp.isfinite(out)))
    # log_softmax rows should exponentiate-and-sum to ~1
    row_sums = jnp.sum(jnp.exp(out), axis=1)
    assert bool(jnp.all(jnp.abs(row_sums - 1.0) < 1e-4)), row_sums

    # compare against the full-f32 XLA reference (bf16 MXU inputs -> loose atol)
    ref = reference_forward(x, torch_params)
    err = float(jnp.max(jnp.abs(out - ref)))
    assert err < 0.2, f"max |pallas - reference| = {err}"

    print("KERNEL_OK")
</pallas_src>

<mosaic_0001>
module attributes {stable_mosaic.version = 11 : i64} {
  func.func @_conv_pool_kernel(%arg0: i32, %arg1: memref<1x28x28x1xf32, #tpu.memory_space<vmem>>, %arg2: memref<9x32xf32, #tpu.memory_space<vmem>>, %arg3: memref<1x32xf32, #tpu.memory_space<vmem>>, %arg4: memref<9x32x64xbf16, #tpu.memory_space<vmem>>, %arg5: memref<1x64xf32, #tpu.memory_space<vmem>>, %arg6: memref<1x12x768xbf16, #tpu.memory_space<vmem>>) attributes {dimension_semantics = [#tpu.dimension_semantics<parallel>], iteration_bounds = array<i64: 2>, scalar_prefetch = 0 : i64, scratch_operands = 0 : i64, tpu.core_type = #tpu.core_type<tc>, window_params = [{transform_indices = @transform_0, window_bounds = array<i64: 1, 28, 28, 1>}, {pipeline_mode = #tpu.pipeline_mode<synchronous>, transform_indices = @transform_1, window_bounds = array<i64: 9, 32>}, {pipeline_mode = #tpu.pipeline_mode<synchronous>, transform_indices = @transform_2, window_bounds = array<i64: 1, 32>}, {pipeline_mode = #tpu.pipeline_mode<synchronous>, transform_indices = @transform_3, window_bounds = array<i64: 9, 32, 64>}, {pipeline_mode = #tpu.pipeline_mode<synchronous>, transform_indices = @transform_4, window_bounds = array<i64: 1, 64>}, {transform_indices = @transform_5, window_bounds = array<i64: 1, 12, 768>}]} {
    %c0 = arith.constant 0 : index
    %c0_0 = arith.constant 0 : index
    %c0_1 = arith.constant 0 : index
    %c0_2 = arith.constant 0 : index
    %0 = vector.load %arg1[%c0, %c0_0, %c0_1, %c0_2] : memref<1x28x28x1xf32, #tpu.memory_space<vmem>>, vector<1x28x28x1xf32>
    %1 = vector.shape_cast %0 : vector<1x28x28x1xf32> to vector<28x28x1xf32>
    %c0_3 = arith.constant 0 : index
    %c0_4 = arith.constant 0 : index
    %2 = vector.load %arg2[%c0_3, %c0_4] : memref<9x32xf32, #tpu.memory_space<vmem>>, vector<9x32xf32>
    %c0_5 = arith.constant 0 : index
    %c0_6 = arith.constant 0 : index
    %c0_7 = arith.constant 0 : index
    %3 = vector.load %arg4[%c0_5, %c0_6, %c0_7] : memref<9x32x64xbf16, #tpu.memory_space<vmem>>, vector<9x32x64xbf16>
    %cst = arith.constant 0.000000e+00 : f32
    %4 = vector.broadcast %cst : f32 to vector<26x26x32xf32>
    %5 = vector.extract_strided_slice %1 {offsets = [0, 0, 0], sizes = [26, 26, 1], strides = [1, 1, 1]} : vector<28x28x1xf32> to vector<26x26x1xf32>
    %6 = vector.extract_strided_slice %2 {offsets = [0, 0], sizes = [1, 32], strides = [1, 1]} : vector<9x32xf32> to vector<1x32xf32>
    %7 = vector.shape_cast %6 : vector<1x32xf32> to vector<1x1x32xf32>
    %8 = vector.broadcast %5 : vector<26x26x1xf32> to vector<26x26x32xf32>
    %9 = vector.broadcast %7 : vector<1x1x32xf32> to vector<26x26x32xf32>
    %10 = arith.mulf %8, %9 : vector<26x26x32xf32>
    %11 = arith.addf %4, %10 : vector<26x26x32xf32>
    %12 = vector.extract_strided_slice %1 {offsets = [0, 1, 0], sizes = [26, 26, 1], strides = [1, 1, 1]} : vector<28x28x1xf32> to vector<26x26x1xf32>
    %13 = vector.extract_strided_slice %2 {offsets = [1, 0], sizes = [1, 32], strides = [1, 1]} : vector<9x32xf32> to vector<1x32xf32>
    %14 = vector.shape_cast %13 : vector<1x32xf32> to vector<1x1x32xf32>
    %15 = vector.broadcast %12 : vector<26x26x1xf32> to vector<26x26x32xf32>
    %16 = vector.broadcast %14 : vector<1x1x32xf32> to vector<26x26x32xf32>
    %17 = arith.mulf %15, %16 : vector<26x26x32xf32>
    %18 = arith.addf %11, %17 : vector<26x26x32xf32>
    %19 = vector.extract_strided_slice %1 {offsets = [0, 2, 0], sizes = [26, 26, 1], strides = [1, 1, 1]} : vector<28x28x1xf32> to vector<26x26x1xf32>
    %20 = vector.extract_strided_slice %2 {offsets = [2, 0], sizes = [1, 32], strides = [1, 1]} : vector<9x32xf32> to vector<1x32xf32>
    %21 = vector.shape_cast %20 : vector<1x32xf32> to vector<1x1x32xf32>
    %22 = vector.broadcast %19 : vector<26x26x1xf32> to vector<26x26x32xf32>
    %23 = vector.broadcast %21 : vector<1x1x32xf32> to vector<26x26x32xf32>
    %24 = arith.mulf %22, %23 : vector<26x26x32xf32>
    %25 = arith.addf %18, %24 : vector<26x26x32xf32>
    %26 = vector.extract_strided_slice %1 {offsets = [1, 0, 0], sizes = [26, 26, 1], strides = [1, 1, 1]} : vector<28x28x1xf32> to vector<26x26x1xf32>
    %27 = vector.extract_strided_slice %2 {offsets = [3, 0], sizes = [1, 32], strides = [1, 1]} : vector<9x32xf32> to vector<1x32xf32>
    %28 = vector.shape_cast %27 : vector<1x32xf32> to vector<1x1x32xf32>
    %29 = vector.broadcast %26 : vector<26x26x1xf32> to vector<26x26x32xf32>
    %30 = vector.broadcast %28 : vector<1x1x32xf32> to vector<26x26x32xf32>
    %31 = arith.mulf %29, %30 : vector<26x26x32xf32>
    %32 = arith.addf %25, %31 : vector<26x26x32xf32>
    %33 = vector.extract_strided_slice %1 {offsets = [1, 1, 0], sizes = [26, 26, 1], strides = [1, 1, 1]} : vector<28x28x1xf32> to vector<26x26x1xf32>
    %34 = vector.extract_strided_slice %2 {offsets = [4, 0], sizes = [1, 32], strides = [1, 1]} : vector<9x32xf32> to vector<1x32xf32>
    %35 = vector.shape_cast %34 : vector<1x32xf32> to vector<1x1x32xf32>
    %36 = vector.broadcast %33 : vector<26x26x1xf32> to vector<26x26x32xf32>
    %37 = vector.broadcast %35 : vector<1x1x32xf32> to vector<26x26x32xf32>
    %38 = arith.mulf %36, %37 : vector<26x26x32xf32>
    %39 = arith.addf %32, %38 : vector<26x26x32xf32>
    %40 = vector.extract_strided_slice %1 {offsets = [1, 2, 0], sizes = [26, 26, 1], strides = [1, 1, 1]} : vector<28x28x1xf32> to vector<26x26x1xf32>
    %41 = vector.extract_strided_slice %2 {offsets = [5, 0], sizes = [1, 32], strides = [1, 1]} : vector<9x32xf32> to vector<1x32xf32>
    %42 = vector.shape_cast %41 : vector<1x32xf32> to vector<1x1x32xf32>
    %43 = vector.broadcast %40 : vector<26x26x1xf32> to vector<26x26x32xf32>
    %44 = vector.broadcast %42 : vector<1x1x32xf32> to vector<26x26x32xf32>
    %45 = arith.mulf %43, %44 : vector<26x26x32xf32>
    %46 = arith.addf %39, %45 : vector<26x26x32xf32>
    %47 = vector.extract_strided_slice %1 {offsets = [2, 0, 0], sizes = [26, 26, 1], strides = [1, 1, 1]} : vector<28x28x1xf32> to vector<26x26x1xf32>
    %48 = vector.extract_strided_slice %2 {offsets = [6, 0], sizes = [1, 32], strides = [1, 1]} : vector<9x32xf32> to vector<1x32xf32>
    %49 = vector.shape_cast %48 : vector<1x32xf32> to vector<1x1x32xf32>
    %50 = vector.broadcast %47 : vector<26x26x1xf32> to vector<26x26x32xf32>
    %51 = vector.broadcast %49 : vector<1x1x32xf32> to vector<26x26x32xf32>
    %52 = arith.mulf %50, %51 : vector<26x26x32xf32>
    %53 = arith.addf %46, %52 : vector<26x26x32xf32>
    %54 = vector.extract_strided_slice %1 {offsets = [2, 1, 0], sizes = [26, 26, 1], strides = [1, 1, 1]} : vector<28x28x1xf32> to vector<26x26x1xf32>
    %55 = vector.extract_strided_slice %2 {offsets = [7, 0], sizes = [1, 32], strides = [1, 1]} : vector<9x32xf32> to vector<1x32xf32>
    %56 = vector.shape_cast %55 : vector<1x32xf32> to vector<1x1x32xf32>
    %57 = vector.broadcast %54 : vector<26x26x1xf32> to vector<26x26x32xf32>
    %58 = vector.broadcast %56 : vector<1x1x32xf32> to vector<26x26x32xf32>
    %59 = arith.mulf %57, %58 : vector<26x26x32xf32>
    %60 = arith.addf %53, %59 : vector<26x26x32xf32>
    %61 = vector.extract_strided_slice %1 {offsets = [2, 2, 0], sizes = [26, 26, 1], strides = [1, 1, 1]} : vector<28x28x1xf32> to vector<26x26x1xf32>
    %62 = vector.extract_strided_slice %2 {offsets = [8, 0], sizes = [1, 32], strides = [1, 1]} : vector<9x32xf32> to vector<1x32xf32>
    %63 = vector.shape_cast %62 : vector<1x32xf32> to vector<1x1x32xf32>
    %64 = vector.broadcast %61 : vector<26x26x1xf32> to vector<26x26x32xf32>
    %65 = vector.broadcast %63 : vector<1x1x32xf32> to vector<26x26x32xf32>
    %66 = arith.mulf %64, %65 : vector<26x26x32xf32>
    %67 = arith.addf %60, %66 : vector<26x26x32xf32>
    %c0_8 = arith.constant 0 : index
    %c0_9 = arith.constant 0 : index
    %68 = vector.load %arg3[%c0_8, %c0_9] : memref<1x32xf32, #tpu.memory_space<vmem>>, vector<1x32xf32>
    %69 = vector.shape_cast %68 : vector<1x32xf32> to vector<1x1x32xf32>
    %70 = vector.broadcast %69 : vector<1x1x32xf32> to vector<26x26x32xf32>
    %71 = arith.addf %67, %70 : vector<26x26x32xf32>
    %cst_10 = arith.constant 0.000000e+00 : f32
    %72 = vector.broadcast %cst_10 : f32 to vector<26x26x32xf32>
    %73 = arith.maximumf %71, %72 : vector<26x26x32xf32>
    %cst_11 = arith.constant 0.000000e+00 : f32
    %74 = vector.broadcast %cst_11 : f32 to vector<576x64xf32>
    %75 = vector.extract_strided_slice %73 {offsets = [0, 0, 0], sizes = [24, 24, 32], strides = [1, 1, 1]} : vector<26x26x32xf32> to vector<24x24x32xf32>
    %76 = vector.shape_cast %75 : vector<24x24x32xf32> to vector<576x32xf32>
    %77 = arith.truncf %76 : vector<576x32xf32> to vector<576x32xbf16>
    %78 = vector.extract_strided_slice %3 {offsets = [0, 0, 0], sizes = [1, 32, 64], strides = [1, 1, 1]} : vector<9x32x64xbf16> to vector<1x32x64xbf16>
    %79 = vector.shape_cast %78 : vector<1x32x64xbf16> to vector<32x64xbf16>
    %cst_12 = arith.constant dense<0.000000e+00> : vector<576x64xf32>
    %80 = tpu.matmul %77, %79, %cst_12 {dimension_numbers = #tpu.dot_dimension_numbers<[1], [0], [0], [1], [0, 0, 1, 1], [], []>} : vector<576x32xbf16>, vector<32x64xbf16>, vector<576x64xf32> -> vector<576x64xf32>
    %81 = arith.addf %74, %80 : vector<576x64xf32>
    %82 = vector.extract_strided_slice %73 {offsets = [0, 1, 0], sizes = [24, 24, 32], strides = [1, 1, 1]} : vector<26x26x32xf32> to vector<24x24x32xf32>
    %83 = vector.shape_cast %82 : vector<24x24x32xf32> to vector<576x32xf32>
    %84 = arith.truncf %83 : vector<576x32xf32> to vector<576x32xbf16>
    %85 = vector.extract_strided_slice %3 {offsets = [1, 0, 0], sizes = [1, 32, 64], strides = [1, 1, 1]} : vector<9x32x64xbf16> to vector<1x32x64xbf16>
    %86 = vector.shape_cast %85 : vector<1x32x64xbf16> to vector<32x64xbf16>
    %cst_13 = arith.constant dense<0.000000e+00> : vector<576x64xf32>
    %87 = tpu.matmul %84, %86, %cst_13 {dimension_numbers = #tpu.dot_dimension_numbers<[1], [0], [0], [1], [0, 0, 1, 1], [], []>} : vector<576x32xbf16>, vector<32x64xbf16>, vector<576x64xf32> -> vector<576x64xf32>
    %88 = arith.addf %81, %87 : vector<576x64xf32>
    %89 = vector.extract_strided_slice %73 {offsets = [0, 2, 0], sizes = [24, 24, 32], strides = [1, 1, 1]} : vector<26x26x32xf32> to vector<24x24x32xf32>
    %90 = vector.shape_cast %89 : vector<24x24x32xf32> to vector<576x32xf32>
    %91 = arith.truncf %90 : vector<576x32xf32> to vector<576x32xbf16>
    %92 = vector.extract_strided_slice %3 {offsets = [2, 0, 0], sizes = [1, 32, 64], strides = [1, 1, 1]} : vector<9x32x64xbf16> to vector<1x32x64xbf16>
    %93 = vector.shape_cast %92 : vector<1x32x64xbf16> to vector<32x64xbf16>
    %cst_14 = arith.constant dense<0.000000e+00> : vector<576x64xf32>
    %94 = tpu.matmul %91, %93, %cst_14 {dimension_numbers = #tpu.dot_dimension_numbers<[1], [0], [0], [1], [0, 0, 1, 1], [], []>} : vector<576x32xbf16>, vector<32x64xbf16>, vector<576x64xf32> -> vector<576x64xf32>
    %95 = arith.addf %88, %94 : vector<576x64xf32>
    %96 = vector.extract_strided_slice %73 {offsets = [1, 0, 0], sizes = [24, 24, 32], strides = [1, 1, 1]} : vector<26x26x32xf32> to vector<24x24x32xf32>
    %97 = vector.shape_cast %96 : vector<24x24x32xf32> to vector<576x32xf32>
    %98 = arith.truncf %97 : vector<576x32xf32> to vector<576x32xbf16>
    %99 = vector.extract_strided_slice %3 {offsets = [3, 0, 0], sizes = [1, 32, 64], strides = [1, 1, 1]} : vector<9x32x64xbf16> to vector<1x32x64xbf16>
    %100 = vector.shape_cast %99 : vector<1x32x64xbf16> to vector<32x64xbf16>
    %cst_15 = arith.constant dense<0.000000e+00> : vector<576x64xf32>
    %101 = tpu.matmul %98, %100, %cst_15 {dimension_numbers = #tpu.dot_dimension_numbers<[1], [0], [0], [1], [0, 0, 1, 1], [], []>} : vector<576x32xbf16>, vector<32x64xbf16>, vector<576x64xf32> -> vector<576x64xf32>
    %102 = arith.addf %95, %101 : vector<576x64xf32>
    %103 = vector.extract_strided_slice %73 {offsets = [1, 1, 0], sizes = [24, 24, 32], strides = [1, 1, 1]} : vector<26x26x32xf32> to vector<24x24x32xf32>
    %104 = vector.shape_cast %103 : vector<24x24x32xf32> to vector<576x32xf32>
    %105 = arith.truncf %104 : vector<576x32xf32> to vector<576x32xbf16>
    %106 = vector.extract_strided_slice %3 {offsets = [4, 0, 0], sizes = [1, 32, 64], strides = [1, 1, 1]} : vector<9x32x64xbf16> to vector<1x32x64xbf16>
    %107 = vector.shape_cast %106 : vector<1x32x64xbf16> to vector<32x64xbf16>
    %cst_16 = arith.constant dense<0.000000e+00> : vector<576x64xf32>
    %108 = tpu.matmul %105, %107, %cst_16 {dimension_numbers = #tpu.dot_dimension_numbers<[1], [0], [0], [1], [0, 0, 1, 1], [], []>} : vector<576x32xbf16>, vector<32x64xbf16>, vector<576x64xf32> -> vector<576x64xf32>
    %109 = arith.addf %102, %108 : vector<576x64xf32>
    %110 = vector.extract_strided_slice %73 {offsets = [1, 2, 0], sizes = [24, 24, 32], strides = [1, 1, 1]} : vector<26x26x32xf32> to vector<24x24x32xf32>
    %111 = vector.shape_cast %110 : vector<24x24x32xf32> to vector<576x32xf32>
    %112 = arith.truncf %111 : vector<576x32xf32> to vector<576x32xbf16>
    %113 = vector.extract_strided_slice %3 {offsets = [5, 0, 0], sizes = [1, 32, 64], strides = [1, 1, 1]} : vector<9x32x64xbf16> to vector<1x32x64xbf16>
    %114 = vector.shape_cast %113 : vector<1x32x64xbf16> to vector<32x64xbf16>
    %cst_17 = arith.constant dense<0.000000e+00> : vector<576x64xf32>
    %115 = tpu.matmul %112, %114, %cst_17 {dimension_numbers = #tpu.dot_dimension_numbers<[1], [0], [0], [1], [0, 0, 1, 1], [], []>} : vector<576x32xbf16>, vector<32x64xbf16>, vector<576x64xf32> -> vector<576x64xf32>
    %116 = arith.addf %109, %115 : vector<576x64xf32>
    %117 = vector.extract_strided_slice %73 {offsets = [2, 0, 0], sizes = [24, 24, 32], strides = [1, 1, 1]} : vector<26x26x32xf32> to vector<24x24x32xf32>
    %118 = vector.shape_cast %117 : vector<24x24x32xf32> to vector<576x32xf32>
    %119 = arith.truncf %118 : vector<576x32xf32> to vector<576x32xbf16>
    %120 = vector.extract_strided_slice %3 {offsets = [6, 0, 0], sizes = [1, 32, 64], strides = [1, 1, 1]} : vector<9x32x64xbf16> to vector<1x32x64xbf16>
    %121 = vector.shape_cast %120 : vector<1x32x64xbf16> to vector<32x64xbf16>
    %cst_18 = arith.constant dense<0.000000e+00> : vector<576x64xf32>
    %122 = tpu.matmul %119, %121, %cst_18 {dimension_numbers = #tpu.dot_dimension_numbers<[1], [0], [0], [1], [0, 0, 1, 1], [], []>} : vector<576x32xbf16>, vector<32x64xbf16>, vector<576x64xf32> -> vector<576x64xf32>
    %123 = arith.addf %116, %122 : vector<576x64xf32>
    %124 = vector.extract_strided_slice %73 {offsets = [2, 1, 0], sizes = [24, 24, 32], strides = [1, 1, 1]} : vector<26x26x32xf32> to vector<24x24x32xf32>
    %125 = vector.shape_cast %124 : vector<24x24x32xf32> to vector<576x32xf32>
    %126 = arith.truncf %125 : vector<576x32xf32> to vector<576x32xbf16>
    %127 = vector.extract_strided_slice %3 {offsets = [7, 0, 0], sizes = [1, 32, 64], strides = [1, 1, 1]} : vector<9x32x64xbf16> to vector<1x32x64xbf16>
    %128 = vector.shape_cast %127 : vector<1x32x64xbf16> to vector<32x64xbf16>
    %cst_19 = arith.constant dense<0.000000e+00> : vector<576x64xf32>
    %129 = tpu.matmul %126, %128, %cst_19 {dimension_numbers = #tpu.dot_dimension_numbers<[1], [0], [0], [1], [0, 0, 1, 1], [], []>} : vector<576x32xbf16>, vector<32x64xbf16>, vector<576x64xf32> -> vector<576x64xf32>
    %130 = arith.addf %123, %129 : vector<576x64xf32>
    %131 = vector.extract_strided_slice %73 {offsets = [2, 2, 0], sizes = [24, 24, 32], strides = [1, 1, 1]} : vector<26x26x32xf32> to vector<24x24x32xf32>
    %132 = vector.shape_cast %131 : vector<24x24x32xf32> to vector<576x32xf32>
    %133 = arith.truncf %132 : vector<576x32xf32> to vector<576x32xbf16>
    %134 = vector.extract_strided_slice %3 {offsets = [8, 0, 0], sizes = [1, 32, 64], strides = [1, 1, 1]} : vector<9x32x64xbf16> to vector<1x32x64xbf16>
    %135 = vector.shape_cast %134 : vector<1x32x64xbf16> to vector<32x64xbf16>
    %cst_20 = arith.constant dense<0.000000e+00> : vector<576x64xf32>
    %136 = tpu.matmul %133, %135, %cst_20 {dimension_numbers = #tpu.dot_dimension_numbers<[1], [0], [0], [1], [0, 0, 1, 1], [], []>} : vector<576x32xbf16>, vector<32x64xbf16>, vector<576x64xf32> -> vector<576x64xf32>
    %137 = arith.addf %130, %136 : vector<576x64xf32>
    %c0_21 = arith.constant 0 : index
    %c0_22 = arith.constant 0 : index
    %138 = vector.load %arg5[%c0_21, %c0_22] : memref<1x64xf32, #tpu.memory_space<vmem>>, vector<1x64xf32>
    %139 = vector.broadcast %138 : vector<1x64xf32> to vector<576x64xf32>
    %140 = arith.addf %137, %139 : vector<576x64xf32>
    %cst_23 = arith.constant 0.000000e+00 : f32
    %141 = vector.broadcast %cst_23 : f32 to vector<576x64xf32>
    %142 = arith.maximumf %140, %141 : vector<576x64xf32>
    %143 = vector.shape_cast %142 : vector<576x64xf32> to vector<12x2x24x64xf32>
    %144 = vector.extract_strided_slice %143 {offsets = [0, 0, 0, 0], sizes = [12, 1, 24, 64], strides = [1, 1, 1, 1]} : vector<12x2x24x64xf32> to vector<12x1x24x64xf32>
    %145 = vector.shape_cast %144 : vector<12x1x24x64xf32> to vector<12x24x64xf32>
    %146 = vector.extract_strided_slice %143 {offsets = [0, 1, 0, 0], sizes = [12, 1, 24, 64], strides = [1, 1, 1, 1]} : vector<12x2x24x64xf32> to vector<12x1x24x64xf32>
    %147 = vector.shape_cast %146 : vector<12x1x24x64xf32> to vector<12x24x64xf32>
    %148 = arith.maximumf %145, %147 : vector<12x24x64xf32>
    %149 = vector.extract_strided_slice %148 {offsets = [0, 0, 0], sizes = [12, 1, 64], strides = [1, 1, 1]} : vector<12x24x64xf32> to vector<12x1x64xf32>
    %150 = vector.shape_cast %149 : vector<12x1x64xf32> to vector<12x64xf32>
    %151 = vector.extract_strided_slice %148 {offsets = [0, 1, 0], sizes = [12, 1, 64], strides = [1, 1, 1]} : vector<12x24x64xf32> to vector<12x1x64xf32>
    %152 = vector.shape_cast %151 : vector<12x1x64xf32> to vector<12x64xf32>
    %153 = arith.maximumf %150, %152 : vector<12x64xf32>
    %154 = vector.extract_strided_slice %148 {offsets = [0, 2, 0], sizes = [12, 1, 64], strides = [1, 1, 1]} : vector<12x24x64xf32> to vector<12x1x64xf32>
    %155 = vector.shape_cast %154 : vector<12x1x64xf32> to vector<12x64xf32>
    %156 = vector.extract_strided_slice %148 {offsets = [0, 3, 0], sizes = [12, 1, 64], strides = [1, 1, 1]} : vector<12x24x64xf32> to vector<12x1x64xf32>
    %157 = vector.shape_cast %156 : vector<12x1x64xf32> to vector<12x64xf32>
    %158 = arith.maximumf %155, %157 : vector<12x64xf32>
    %159 = vector.extract_strided_slice %148 {offsets = [0, 4, 0], sizes = [12, 1, 64], strides = [1, 1, 1]} : vector<12x24x64xf32> to vector<12x1x64xf32>
    %160 = vector.shape_cast %159 : vector<12x1x64xf32> to vector<12x64xf32>
    %161 = vector.extract_strided_slice %148 {offsets = [0, 5, 0], sizes = [12, 1, 64], strides = [1, 1, 1]} : vector<12x24x64xf32> to vector<12x1x64xf32>
    %162 = vector.shape_cast %161 : vector<12x1x64xf32> to vector<12x64xf32>
    %163 = arith.maximumf %160, %162 : vector<12x64xf32>
    %164 = vector.extract_strided_slice %148 {offsets = [0, 6, 0], sizes = [12, 1, 64], strides = [1, 1, 1]} : vector<12x24x64xf32> to vector<12x1x64xf32>
    %165 = vector.shape_cast %164 : vector<12x1x64xf32> to vector<12x64xf32>
    %166 = vector.extract_strided_slice %148 {offsets = [0, 7, 0], sizes = [12, 1, 64], strides = [1, 1, 1]} : vector<12x24x64xf32> to vector<12x1x64xf32>
    %167 = vector.shape_cast %166 : vector<12x1x64xf32> to vector<12x64xf32>
    %168 = arith.maximumf %165, %167 : vector<12x64xf32>
    %169 = vector.extract_strided_slice %148 {offsets = [0, 8, 0], sizes = [12, 1, 64], strides = [1, 1, 1]} : vector<12x24x64xf32> to vector<12x1x64xf32>
    %170 = vector.shape_cast %169 : vector<12x1x64xf32> to vector<12x64xf32>
    %171 = vector.extract_strided_slice %148 {offsets = [0, 9, 0], sizes = [12, 1, 64], strides = [1, 1, 1]} : vector<12x24x64xf32> to vector<12x1x64xf32>
    %172 = vector.shape_cast %171 : vector<12x1x64xf32> to vector<12x64xf32>
    %173 = arith.maximumf %170, %172 : vector<12x64xf32>
    %174 = vector.extract_strided_slice %148 {offsets = [0, 10, 0], sizes = [12, 1, 64], strides = [1, 1, 1]} : vector<12x24x64xf32> to vector<12x1x64xf32>
    %175 = vector.shape_cast %174 : vector<12x1x64xf32> to vector<12x64xf32>
    %176 = vector.extract_strided_slice %148 {offsets = [0, 11, 0], sizes = [12, 1, 64], strides = [1, 1, 1]} : vector<12x24x64xf32> to vector<12x1x64xf32>
    %177 = vector.shape_cast %176 : vector<12x1x64xf32> to vector<12x64xf32>
    %178 = arith.maximumf %175, %177 : vector<12x64xf32>
    %179 = vector.extract_strided_slice %148 {offsets = [0, 12, 0], sizes = [12, 1, 64], strides = [1, 1, 1]} : vector<12x24x64xf32> to vector<12x1x64xf32>
    %180 = vector.shape_cast %179 : vector<12x1x64xf32> to vector<12x64xf32>
    %181 = vector.extract_strided_slice %148 {offsets = [0, 13, 0], sizes = [12, 1, 64], strides = [1, 1, 1]} : vector<12x24x64xf32> to vector<12x1x64xf32>
    %182 = vector.shape_cast %181 : vector<12x1x64xf32> to vector<12x64xf32>
    %183 = arith.maximumf %180, %182 : vector<12x64xf32>
    %184 = vector.extract_strided_slice %148 {offsets = [0, 14, 0], sizes = [12, 1, 64], strides = [1, 1, 1]} : vector<12x24x64xf32> to vector<12x1x64xf32>
    %185 = vector.shape_cast %184 : vector<12x1x64xf32> to vector<12x64xf32>
    %186 = vector.extract_strided_slice %148 {offsets = [0, 15, 0], sizes = [12, 1, 64], strides = [1, 1, 1]} : vector<12x24x64xf32> to vector<12x1x64xf32>
    %187 = vector.shape_cast %186 : vector<12x1x64xf32> to vector<12x64xf32>
    %188 = arith.maximumf %185, %187 : vector<12x64xf32>
    %189 = vector.extract_strided_slice %148 {offsets = [0, 16, 0], sizes = [12, 1, 64], strides = [1, 1, 1]} : vector<12x24x64xf32> to vector<12x1x64xf32>
    %190 = vector.shape_cast %189 : vector<12x1x64xf32> to vector<12x64xf32>
    %191 = vector.extract_strided_slice %148 {offsets = [0, 17, 0], sizes = [12, 1, 64], strides = [1, 1, 1]} : vector<12x24x64xf32> to vector<12x1x64xf32>
    %192 = vector.shape_cast %191 : vector<12x1x64xf32> to vector<12x64xf32>
    %193 = arith.maximumf %190, %192 : vector<12x64xf32>
    %194 = vector.extract_strided_slice %148 {offsets = [0, 18, 0], sizes = [12, 1, 64], strides = [1, 1, 1]} : vector<12x24x64xf32> to vector<12x1x64xf32>
    %195 = vector.shape_cast %194 : vector<12x1x64xf32> to vector<12x64xf32>
    %196 = vector.extract_strided_slice %148 {offsets = [0, 19, 0], sizes = [12, 1, 64], strides = [1, 1, 1]} : vector<12x24x64xf32> to vector<12x1x64xf32>
    %197 = vector.shape_cast %196 : vector<12x1x64xf32> to vector<12x64xf32>
    %198 = arith.maximumf %195, %197 : vector<12x64xf32>
    %199 = vector.extract_strided_slice %148 {offsets = [0, 20, 0], sizes = [12, 1, 64], strides = [1, 1, 1]} : vector<12x24x64xf32> to vector<12x1x64xf32>
    %200 = vector.shape_cast %199 : vector<12x1x64xf32> to vector<12x64xf32>
    %201 = vector.extract_strided_slice %148 {offsets = [0, 21, 0], sizes = [12, 1, 64], strides = [1, 1, 1]} : vector<12x24x64xf32> to vector<12x1x64xf32>
    %202 = vector.shape_cast %201 : vector<12x1x64xf32> to vector<12x64xf32>
    %203 = arith.maximumf %200, %202 : vector<12x64xf32>
    %204 = vector.extract_strided_slice %148 {offsets = [0, 22, 0], sizes = [12, 1, 64], strides = [1, 1, 1]} : vector<12x24x64xf32> to vector<12x1x64xf32>
    %205 = vector.shape_cast %204 : vector<12x1x64xf32> to vector<12x64xf32>
    %206 = vector.extract_strided_slice %148 {offsets = [0, 23, 0], sizes = [12, 1, 64], strides = [1, 1, 1]} : vector<12x24x64xf32> to vector<12x1x64xf32>
    %207 = vector.shape_cast %206 : vector<12x1x64xf32> to vector<12x64xf32>
    %208 = arith.maximumf %205, %207 : vector<12x64xf32>
    %209 = tpu.concatenate %153, %158, %163, %168, %173, %178, %183, %188, %193, %198, %203, %208 in 1 : vector<12x64xf32>, vector<12x64xf32>, vector<12x64xf32>, vector<12x64xf32>, vector<12x64xf32>, vector<12x64xf32>, vector<12x64xf32>, vector<12x64xf32>, vector<12x64xf32>, vector<12x64xf32>, vector<12x64xf32>, vector<12x64xf32> -> vector<12x768xf32>
    %210 = arith.truncf %209 : vector<12x768xf32> to vector<12x768xbf16>
    %c0_24 = arith.constant 0 : index
    %c0_25 = arith.constant 0 : index
    %c0_26 = arith.constant 0 : index
    %211 = vector.load %arg6[%c0_24, %c0_25, %c0_26] : memref<1x12x768xbf16, #tpu.memory_space<vmem>>, vector<1x12x768xbf16>
    %212 = vector.shape_cast %211 : vector<1x12x768xbf16> to vector<12x768xbf16>
    %213 = vector.shape_cast %210 : vector<12x768xbf16> to vector<1x12x768xbf16>
    tpu.vector_store %arg6[%c0_24, %c0_25, %c0_26], %213 {strides = array<i32>} : memref<1x12x768xbf16, #tpu.memory_space<vmem>>, vector<1x12x768xbf16>,
    return
  }
  func.func @transform_0(%arg0: i32) -> (i32, i32, i32, i32) {
    %c0_i32 = arith.constant 0 : i32
    %c0_i32_0 = arith.constant 0 : i32
    %c0_i32_1 = arith.constant 0 : i32
    %c0_i32_2 = arith.constant 0 : i32
    return %arg0, %c0_i32, %c0_i32_0, %c0_i32_1 : i32, i32, i32, i32
  }
  func.func @transform_1(%arg0: i32) -> (i32, i32) {
    %c0_i32 = arith.constant 0 : i32
    %c0_i32_0 = arith.constant 0 : i32
    %c0_i32_1 = arith.constant 0 : i32
    return %c0_i32, %c0_i32_0 : i32, i32
  }
  func.func @transform_2(%arg0: i32) -> (i32, i32) {
    %c0_i32 = arith.constant 0 : i32
    %c0_i32_0 = arith.constant 0 : i32
    %c0_i32_1 = arith.constant 0 : i32
    return %c0_i32, %c0_i32_0 : i32, i32
  }
  func.func @transform_3(%arg0: i32) -> (i32, i32, i32) {
    %c0_i32 = arith.constant 0 : i32
    %c0_i32_0 = arith.constant 0 : i32
    %c0_i32_1 = arith.constant 0 : i32
    %c0_i32_2 = arith.constant 0 : i32
    return %c0_i32, %c0_i32_0, %c0_i32_1 : i32, i32, i32
  }
  func.func @transform_4(%arg0: i32) -> (i32, i32) {
    %c0_i32 = arith.constant 0 : i32
    %c0_i32_0 = arith.constant 0 : i32
    %c0_i32_1 = arith.constant 0 : i32
    return %c0_i32, %c0_i32_0 : i32, i32
  }
  func.func @transform_5(%arg0: i32) -> (i32, i32, i32) {
    %c0_i32 = arith.constant 0 : i32
    %c0_i32_0 = arith.constant 0 : i32
    %c0_i32_1 = arith.constant 0 : i32
    return %arg0, %c0_i32, %c0_i32_0 : i32, i32, i32
  }
}

module attributes {stable_mosaic.version = 11 : i64} {
  func.func @_mlp_head_kernel(%arg0: i32, %arg1: i32, %arg2: memref<2x1536xbf16, #tpu.memory_space<vmem>>, %arg3: memref<1536x128xbf16, #tpu.memory_space<vmem>>, %arg4: memref<1x128xf32, #tpu.memory_space<vmem>>, %arg5: memref<128x10xf32, #tpu.memory_space<vmem>>, %arg6: memref<1x10xf32, #tpu.memory_space<vmem>>, %arg7: memref<2x10xf32, #tpu.memory_space<vmem>>, %arg8: memref<2x128xf32, #tpu.memory_space<vmem>>) attributes {dimension_semantics = [#tpu.dimension_semantics<parallel>, #tpu.dimension_semantics<arbitrary>], iteration_bounds = array<i64: 1, 6>, scalar_prefetch = 0 : i64, scratch_operands = 1 : i64, tpu.core_type = #tpu.core_type<tc>, window_params = [{transform_indices = @transform_0, window_bounds = array<i64: 2, 1536>}, {transform_indices = @transform_1, window_bounds = array<i64: 1536, 128>}, {pipeline_mode = #tpu.pipeline_mode<synchronous>, transform_indices = @transform_2, window_bounds = array<i64: 1, 128>}, {pipeline_mode = #tpu.pipeline_mode<synchronous>, transform_indices = @transform_3, window_bounds = array<i64: 128, 10>}, {pipeline_mode = #tpu.pipeline_mode<synchronous>, transform_indices = @transform_4, window_bounds = array<i64: 1, 10>}, {transform_indices = @transform_5, window_bounds = array<i64: 2, 10>}]} {
    %c0_i32 = arith.constant 0 : i32
    %0 = arith.cmpi eq, %arg1, %c0_i32 : i32
    %1 = arith.extui %0 : i1 to i32
    %c0_i32_0 = arith.constant 0 : i32
    %2 = arith.cmpi ne, %1, %c0_i32_0 : i32
    scf.if %2 {
      %cst_9 = arith.constant 0.000000e+00 : f32
      %12 = vector.broadcast %cst_9 : f32 to vector<2x128xf32>
      %c0_10 = arith.constant 0 : index
      %c0_11 = arith.constant 0 : index
      %13 = vector.load %arg8[%c0_10, %c0_11] : memref<2x128xf32, #tpu.memory_space<vmem>>, vector<2x128xf32>
      tpu.vector_store %arg8[%c0_10, %c0_11], %12 {strides = array<i32>} : memref<2x128xf32, #tpu.memory_space<vmem>>, vector<2x128xf32>,
    } else {
    }
    %c0 = arith.constant 0 : index
    %c0_1 = arith.constant 0 : index
    %3 = vector.load %arg8[%c0, %c0_1] : memref<2x128xf32, #tpu.memory_space<vmem>>, vector<2x128xf32>
    %c0_2 = arith.constant 0 : index
    %c0_3 = arith.constant 0 : index
    %4 = vector.load %arg2[%c0_2, %c0_3] : memref<2x1536xbf16, #tpu.memory_space<vmem>>, vector<2x1536xbf16>
    %c0_4 = arith.constant 0 : index
    %c0_5 = arith.constant 0 : index
    %5 = vector.load %arg3[%c0_4, %c0_5] : memref<1536x128xbf16, #tpu.memory_space<vmem>>, vector<1536x128xbf16>
    %cst = arith.constant dense<0.000000e+00> : vector<2x128xf32>
    %6 = tpu.matmul %4, %5, %cst {dimension_numbers = #tpu.dot_dimension_numbers<[1], [0], [0], [1], [0, 0, 1, 1], [], []>} : vector<2x1536xbf16>, vector<1536x128xbf16>, vector<2x128xf32> -> vector<2x128xf32>
    %7 = arith.addf %3, %6 : vector<2x128xf32>
    %c0_6 = arith.constant 0 : index
    %c0_7 = arith.constant 0 : index
    %8 = vector.load %arg8[%c0_6, %c0_7] : memref<2x128xf32, #tpu.memory_space<vmem>>, vector<2x128xf32>
    tpu.vector_store %arg8[%c0_6, %c0_7], %7 {strides = array<i32>} : memref<2x128xf32, #tpu.memory_space<vmem>>, vector<2x128xf32>,
    %c5_i32 = arith.constant 5 : i32
    %9 = arith.cmpi eq, %arg1, %c5_i32 : i32
    %10 = arith.extui %9 : i1 to i32
    %c0_i32_8 = arith.constant 0 : i32
    %11 = arith.cmpi ne, %10, %c0_i32_8 : i32
    scf.if %11 {
      %c0_9 = arith.constant 0 : index
      %c0_10 = arith.constant 0 : index
      %12 = vector.load %arg8[%c0_9, %c0_10] : memref<2x128xf32, #tpu.memory_space<vmem>>, vector<2x128xf32>
      %c0_11 = arith.constant 0 : index
      %c0_12 = arith.constant 0 : index
      %13 = vector.load %arg4[%c0_11, %c0_12] : memref<1x128xf32, #tpu.memory_space<vmem>>, vector<1x128xf32>
      %14 = vector.broadcast %13 : vector<1x128xf32> to vector<2x128xf32>
      %15 = arith.addf %12, %14 : vector<2x128xf32>
      %cst_13 = arith.constant 0.000000e+00 : f32
      %16 = vector.broadcast %cst_13 : f32 to vector<2x128xf32>
      %17 = arith.maximumf %15, %16 : vector<2x128xf32>
      %c0_14 = arith.constant 0 : index
      %c0_15 = arith.constant 0 : index
      %18 = vector.load %arg5[%c0_14, %c0_15] : memref<128x10xf32, #tpu.memory_space<vmem>>, vector<128x10xf32>
      %cst_16 = arith.constant dense<0.000000e+00> : vector<2x10xf32>
      %19 = tpu.matmul %17, %18, %cst_16 {dimension_numbers = #tpu.dot_dimension_numbers<[1], [0], [0], [1], [0, 0, 1, 1], [], []>} : vector<2x128xf32>, vector<128x10xf32>, vector<2x10xf32> -> vector<2x10xf32>
      %c0_17 = arith.constant 0 : index
      %c0_18 = arith.constant 0 : index
      %20 = vector.load %arg6[%c0_17, %c0_18] : memref<1x10xf32, #tpu.memory_space<vmem>>, vector<1x10xf32>
      %21 = vector.broadcast %20 : vector<1x10xf32> to vector<2x10xf32>
      %22 = arith.addf %19, %21 : vector<2x10xf32>
      %cst_19 = arith.constant dense<0xFF800000> : vector<2xf32>
      %23 = vector.multi_reduction <maximumf>, %22, %cst_19 [1] : vector<2x10xf32> to vector<2xf32>
      %24 = vector.shape_cast %23 : vector<2xf32> to vector<2x1xf32>
      %25 = vector.broadcast %24 : vector<2x1xf32> to vector<2x10xf32>
      %26 = arith.subf %22, %25 : vector<2x10xf32>
      %27 = math.exp %26 : vector<2x10xf32>
      %cst_20 = arith.constant dense<0.000000e+00> : vector<2xf32>
      %28 = vector.multi_reduction <add>, %27, %cst_20 [1] : vector<2x10xf32> to vector<2xf32>
      %29 = vector.shape_cast %28 : vector<2xf32> to vector<2x1xf32>
      %30 = math.log %29 : vector<2x1xf32>
      %31 = vector.broadcast %30 : vector<2x1xf32> to vector<2x10xf32>
      %32 = arith.subf %26, %31 : vector<2x10xf32>
      %c0_21 = arith.constant 0 : index
      %c0_22 = arith.constant 0 : index
      %33 = vector.load %arg7[%c0_21, %c0_22] : memref<2x10xf32, #tpu.memory_space<vmem>>, vector<2x10xf32>
      tpu.vector_store %arg7[%c0_21, %c0_22], %32 {strides = array<i32>} : memref<2x10xf32, #tpu.memory_space<vmem>>, vector<2x10xf32>,
    } else {
    }
    return
  }
  func.func @transform_0(%arg0: i32, %arg1: i32) -> (i32, i32) {
    %c0_i32 = arith.constant 0 : i32
    return %arg0, %arg1 : i32, i32
  }
  func.func @transform_1(%arg0: i32, %arg1: i32) -> (i32, i32) {
    %c0_i32 = arith.constant 0 : i32
    %c0_i32_0 = arith.constant 0 : i32
    return %arg1, %c0_i32 : i32, i32
  }
  func.func @transform_2(%arg0: i32, %arg1: i32) -> (i32, i32) {
    %c0_i32 = arith.constant 0 : i32
    %c0_i32_0 = arith.constant 0 : i32
    %c0_i32_1 = arith.constant 0 : i32
    return %c0_i32, %c0_i32_0 : i32, i32
  }
  func.func @transform_3(%arg0: i32, %arg1: i32) -> (i32, i32) {
    %c0_i32 = arith.constant 0 : i32
    %c0_i32_0 = arith.constant 0 : i32
    %c0_i32_1 = arith.constant 0 : i32
    return %c0_i32, %c0_i32_0 : i32, i32
  }
  func.func @transform_4(%arg0: i32, %arg1: i32) -> (i32, i32) {
    %c0_i32 = arith.constant 0 : i32
    %c0_i32_0 = arith.constant 0 : i32
    %c0_i32_1 = arith.constant 0 : i32
    return %c0_i32, %c0_i32_0 : i32, i32
  }
  func.func @transform_5(%arg0: i32, %arg1: i32) -> (i32, i32) {
    %c0_i32 = arith.constant 0 : i32
    %c0_i32_0 = arith.constant 0 : i32
    return %arg0, %c0_i32 : i32, i32
  }
}

</mosaic_0001>

<llo_original>
// kernel: cnn_forward.3
$region0: #{cnn_forward.3}
  #allocation0 [shape = 'u32[]', space=smem, size = 0x4, offset = 0x4, fixed_abs, tag = 'smem constant byte address 0x4 - core index']
  #allocation1 [shape = 'u32[144,128]{1,0:T(1,128)}', space=vmem, size = 0x12000, scoped, tag = 'internal scratch']
  #allocation2 [shape = 'f32[2,128]{1,0:T(2,128)}', space=vmem, size = 0x400, scoped, tag = 'scratch operand']
  %s0 = inlined_call_operand.vmem [shape: bf16[2,9216], index: 0, kind: input, shape index: {}]
  %s1 = inlined_call_operand.hbm [shape: bf16[9216,128], index: 1, kind: input, shape index: {}]
  %s2 = inlined_call_operand.hbm [shape: f32[1,128], index: 2, kind: input, shape index: {}]
  %s3 = inlined_call_operand.vmem [shape: f32[128,10], index: 3, kind: input, shape index: {}]
  %s4 = inlined_call_operand.hbm [shape: f32[1,10], index: 4, kind: input, shape index: {}]
  %s5 = inlined_call_operand.hbm [shape: f32[2,10], index: 5, kind: output, shape index: {}]
  %s6 = sld [smem:[#allocation0]]
  $region73: #{cnn_forward.3} parent=0
    _
  %s8 = ssub.s32 1, %s6
  %s9 = scalar_select 0, %s8, %s6
  $region1: #{cnn_forward.3} parent=0
    #allocation3 [shape = 'u8[786432]{0}', space=vmem, size = 0xc0000, scoped, tag = 'input window, operand 1']
    #allocation4 [shape = 's32[2]{0}', space=sflag, size = 0x8, scoped, tag = 'scoped memory for cnn_forward.3']
    #allocation5 [shape = 's32[2]{0}', space=sflag, size = 0x8, scoped, tag = 'scoped memory for cnn_forward.3']
    #allocation6 [shape = 'u8[512]{0}', space=vmem, size = 0x400, scoped, tag = 'input window, operand 2, single buffered']
    #allocation7 [shape = 's32[1]{0}', space=sflag, size = 0x4, scoped, tag = 'scoped memory for cnn_forward.3']
    #allocation8 [shape = 'u8[512]{0}', space=vmem, size = 0x400, scoped, tag = 'input window, operand 4, single buffered']
    #allocation9 [shape = 'u8[1024]{0}', space=vmem, size = 0x400, scoped, tag = 'output window, operand 0, single buffered']
    %10 = vsyncpa [#allocation4], 0
    %s11 = scalar_lea.sflag [#allocation4], 1
    %12 = vsyncpa %s11, 0
    %13 = vsyncpa [#allocation7], 0
    %14 = vsyncpa [#allocation5], 0
    loop: start=0, step=1, limit=8
    $region2: #{cnn_forward.3} parent=1 // loop_pre_header
      _
    $region3: #{cnn_forward.3} parent=1 // loop_header
      %s16 = sphi 0, %s20
      %p17 = scmp.ge.s32.totalorder %s16, 8
      %s23 = sphi 0, %s35
      %s24 = sphi 0, %s31
      %s25 = sphi 0, %s23
      %s26 = sphi 0, %s24
      %s27 = sphi 0, %s25
      %s28 = sphi 0, %s26
      %s40 = sphi 0, %s42
      %s43 = sphi 0, %s40
      %s44 = sphi 0, %s43
      %s60 = sphi 0, %s44
      %s66 = sphi 0, %s68
      %s69 = sphi 0, %s66
      %s70 = sphi 0, %s69
      %s86 = sphi 0, %s70
      %s90 = sphi 0, %s90
      %s92 = sphi 0, %s90
      %s93 = sphi 0, %s92
      %s107 = sphi 0, %s93
      %s111 = sphi 0, %s111
      %s113 = sphi 0, %s111
      %s114 = sphi 0, %s113
      %s128 = sphi 0, %s114
      %s132 = sphi 0, %s132
      %s134 = sphi 0, %s132
      %s135 = sphi 0, %s134
      %s149 = sphi 0, %s135
      %s155 = sphi 0, %s157
      %s158 = sphi 0, %s155
      %s159 = sphi 0, %s158
      %s175 = sphi 0, %s159
    $region4: #{cnn_forward.3} parent=1 // loop_header_branch
      %19 = sbr.rel (%p17) target = $region8
    $region5: #{cnn_forward.3} parent=1 // loop_body
      %s21 = ssub.s32 %s16, 1
      %s22 = ssub.s32 %s16, 2
      %s29 = sadd.s32 1, %s24
      %p30 = scmp.ge.s32.totalorder %s29, 6
      %s31 = scalar_select %p30, 0, %s29
      %s32 = sadd.s32 1, %s23
      %s33 = scalar_select %p30, %s32, %s23
      %p34 = scmp.ge.s32.totalorder %s33, 1
      %s35 = scalar_select %p34, 0, %s33
      %s36 = ssub.s32 %s23, %s35
      %s37 = ssub.s32 %s24, %s31
      %s38 = sor.u32 %s36, %s37
      %p39 = scmp.eq.s32.totalorder %s38, 0
      %s41 = sadd.s32 %s40, 1
      %s42 = scalar_select %p39, %s40, %s41
      %p45 = pneg %p39
      %p46 = scmp.eq.s32.totalorder %s16, 5
      %p47 = por %p45, %p46
      %p48 = scmp.ne.s32.totalorder %s40, %s43
      %p49 = scmp.eq.s32.totalorder %s16, 0
      %p50 = por %p48, %p49
      %p51 = scmp.ne.s32.totalorder %s40, %s43
      %p52 = scmp.eq.s32.totalorder %s21, 5
      %p53 = por %p51, %p52
      %p54 = scmp.ne.s32.totalorder %s43, %s44
      %p55 = scmp.eq.s32.totalorder %s21, 0
      %p56 = por %p54, %p55
      %p57 = scmp.ne.s32.totalorder %s43, %s44
      %p58 = scmp.eq.s32.totalorder %s22, 5
      %p59 = por %p57, %p58
      %p61 = scmp.ne.s32.totalorder %s44, %s60
      %p62 = scmp.eq.s32.totalorder %s22, 0
      %p63 = por %p61, %p62
      %s64 = ssub.s32 %s24, %s31
      %p65 = scmp.eq.s32.totalorder %s64, 0
      %s67 = sadd.s32 %s66, 1
      %s68 = scalar_select %p65, %s66, %s67
      %p71 = pneg %p65
      %p72 = scmp.eq.s32.totalorder %s16, 5
      %p73 = por %p71, %p72
      %p74 = scmp.ne.s32.totalorder %s66, %s69
      %p75 = scmp.eq.s32.totalorder %s16, 0
      %p76 = por %p74, %p75
      %p77 = scmp.ne.s32.totalorder %s66, %s69
      %p78 = scmp.eq.s32.totalorder %s21, 5
      %p79 = por %p77, %p78
      %p80 = scmp.ne.s32.totalorder %s69, %s70
      %p81 = scmp.eq.s32.totalorder %s21, 0
      %p82 = por %p80, %p81
      %p83 = scmp.ne.s32.totalorder %s69, %s70
      %p84 = scmp.eq.s32.totalorder %s22, 5
      %p85 = por %p83, %p84
      %p87 = scmp.ne.s32.totalorder %s70, %s86
      %p88 = scmp.eq.s32.totalorder %s22, 0
      %p89 = por %p87, %p88
      %s91 = sadd.s32 %s90, 1
      %p94 = scmp.eq.s32.totalorder %s16, 5
      %p95 = scmp.ne.s32.totalorder %s90, %s92
      %p96 = scmp.eq.s32.totalorder %s16, 0
      %p97 = por %p95, %p96
      %p98 = scmp.ne.s32.totalorder %s90, %s92
      %p99 = scmp.eq.s32.totalorder %s21, 5
      %p100 = por %p98, %p99
      %p101 = scmp.ne.s32.totalorder %s92, %s93
      %p102 = scmp.eq.s32.totalorder %s21, 0
      %p103 = por %p101, %p102
      %p104 = scmp.ne.s32.totalorder %s92, %s93
      %p105 = scmp.eq.s32.totalorder %s22, 5
      %p106 = por %p104, %p105
      %p108 = scmp.ne.s32.totalorder %s93, %s107
      %p109 = scmp.eq.s32.totalorder %s22, 0
      %p110 = por %p108, %p109
      %s112 = sadd.s32 %s111, 1
      %p115 = scmp.eq.s32.totalorder %s16, 5
      %p116 = scmp.ne.s32.totalorder %s111, %s113
      %p117 = scmp.eq.s32.totalorder %s16, 0
      %p118 = por %p116, %p117
      %p119 = scmp.ne.s32.totalorder %s111, %s113
      %p120 = scmp.eq.s32.totalorder %s21, 5
      %p121 = por %p119, %p120
      %p122 = scmp.ne.s32.totalorder %s113, %s114
      %p123 = scmp.eq.s32.totalorder %s21, 0
      %p124 = por %p122, %p123
      %p125 = scmp.ne.s32.totalorder %s113, %s114
      %p126 = scmp.eq.s32.totalorder %s22, 5
      %p127 = por %p125, %p126
      %p129 = scmp.ne.s32.totalorder %s114, %s128
      %p130 = scmp.eq.s32.totalorder %s22, 0
      %p131 = por %p129, %p130
      %s133 = sadd.s32 %s132, 1
      %p136 = scmp.eq.s32.totalorder %s16, 5
      %p137 = scmp.ne.s32.totalorder %s132, %s134
      %p138 = scmp.eq.s32.totalorder %s16, 0
      %p139 = por %p137, %p138
      %p140 = scmp.ne.s32.totalorder %s132, %s134
      %p141 = scmp.eq.s32.totalorder %s21, 5
      %p142 = por %p140, %p141
      %p143 = scmp.ne.s32.totalorder %s134, %s135
      %p144 = scmp.eq.s32.totalorder %s21, 0
      %p145 = por %p143, %p144
      %p146 = scmp.ne.s32.totalorder %s134, %s135
      %p147 = scmp.eq.s32.totalorder %s22, 5
      %p148 = por %p146, %p147
      %p150 = scmp.ne.s32.totalorder %s135, %s149
      %p151 = scmp.eq.s32.totalorder %s22, 0
      %p152 = por %p150, %p151
      %s153 = ssub.s32 %s23, %s35
      %p154 = scmp.eq.s32.totalorder %s153, 0
      %s156 = sadd.s32 %s155, 1
      %s157 = scalar_select %p154, %s155, %s156
      %p160 = pneg %p154
      %p161 = scmp.eq.s32.totalorder %s16, 5
      %p162 = por %p160, %p161
      %p163 = scmp.ne.s32.totalorder %s155, %s158
      %p164 = scmp.eq.s32.totalorder %s16, 0
      %p165 = por %p163, %p164
      %p166 = scmp.ne.s32.totalorder %s155, %s158
      %p167 = scmp.eq.s32.totalorder %s21, 5
      %p168 = por %p166, %p167
      %p169 = scmp.ne.s32.totalorder %s158, %s159
      %p170 = scmp.eq.s32.totalorder %s21, 0
      %p171 = por %p169, %p170
      %p172 = scmp.ne.s32.totalorder %s158, %s159
      %p173 = scmp.eq.s32.totalorder %s22, 5
      %p174 = por %p172, %p173
      %p176 = scmp.ne.s32.totalorder %s159, %s175
      %p177 = scmp.eq.s32.totalorder %s22, 0
      %p178 = por %p176, %p177
      %p179 = scmp.le.s32.totalorder 1, %s16
      %p180 = scmp.lt.s32.totalorder %s16, 7
      %p181 = pnand %p179, %p180
      %p182 = pneg %p181
      // Predicated region
      $region9: #{cnn_forward.3} parent=5 // pred_check
        _
      $region10: #{cnn_forward.3} parent=5 // pred_check_branch
        %184 = sbr.rel (%p181) target = $region12
      $region11: #{cnn_forward.3} parent=5 // pred_region
        %s185 = ssub.s32 %s16, 1
        // Predicated region
        $region13: #{cnn_forward.3} parent=11 // pred_check
          %p186 = pneg %p103
        $region14: #{cnn_forward.3} parent=11 // pred_check_branch
          %188 = sbr.rel (%p186) target = $region16
        $region15: #{cnn_forward.3} parent=11 // pred_region
          %s190 = ssub.s32 16, 16
          %191 = vsyncadd [#allocation7], %s190
          %s193 = sshll.u32 [#allocation6], 4
          %s194 = int_to_ptr.vmem [resolvable:$true] %s193
          %196 = dma.hbm_to_vmem [thread:$0]  %s2, 16, %s194, [#allocation7]
        $region16: #{cnn_forward.3} parent=11 // pred_fallthru
          _
        // Predicated region
        $region17: #{cnn_forward.3} parent=11 // pred_check
          %p197 = pneg %p124
        $region18: #{cnn_forward.3} parent=11 // pred_check_branch
          %199 = sbr.rel (%p197) target = $region20
        $region19: #{cnn_forward.3} parent=11 // pred_region
          _
        $region20: #{cnn_forward.3} parent=11 // pred_fallthru
          _
        // Predicated region
        $region21: #{cnn_forward.3} parent=11 // pred_check
          %p200 = pneg %p145
        $region22: #{cnn_forward.3} parent=11 // pred_check_branch
          %202 = sbr.rel (%p200) target = $region24
        $region23: #{cnn_forward.3} parent=11 // pred_region
          %s204 = ssub.s32 16, 16
          %205 = vsyncadd [#allocation7], %s204
          %s207 = sshll.u32 [#allocation8], 4
          %s208 = int_to_ptr.vmem [resolvable:$true] %s207
          %210 = dma.hbm_to_vmem [thread:$0]  %s4, 16, %s208, [#allocation7]
        $region24: #{cnn_forward.3} parent=11 // pred_fallthru
          _
      $region12: #{cnn_forward.3} parent=5 // pred_fallthru
        _
      %p211 = scmp.lt.s32.totalorder %s16, 6
      // Predicated region
      $region25: #{cnn_forward.3} parent=5 // pred_check
        %p212 = pneg %p211
      $region26: #{cnn_forward.3} parent=5 // pred_check_branch
        %214 = sbr.rel (%p212) target = $region28
      $region27: #{cnn_forward.3} parent=5 // pred_region
        // Predicated region
        $region29: #{cnn_forward.3} parent=27 // pred_check
          %p215 = pneg %p50
        $region30: #{cnn_forward.3} parent=27 // pred_check_branch
          %217 = sbr.rel (%p215) target = $region32
        $region31: #{cnn_forward.3} parent=27 // pred_region
          %s218 = smul.u32 12, %s24
          %p219 = scmp.lt.s32.totalorder %s23, 0
          %s220 = scalar_select %p219, %s23, 0
          %p221 = scmp.lt.s32.totalorder %s218, 71
          %s222 = scalar_select %p221, %s218, 71
          %s223 = smul.addr %s220, 72
          %s224 = sadd.s32 %s222, %s223
          %s225 = scalar_lea.vmem %s0, %s224
          %s226 = smul.u32 12, %s24
        $region32: #{cnn_forward.3} parent=27 // pred_fallthru
          _
        // Predicated region
        $region33: #{cnn_forward.3} parent=27 // pred_check
          %p227 = pneg %p76
        $region34: #{cnn_forward.3} parent=27 // pred_check_branch
          %229 = sbr.rel (%p227) target = $region36
        $region35: #{cnn_forward.3} parent=27 // pred_region
          %s230 = sand.u32 %s66, 1
          %s231 = scalar_lea.sflag [#allocation4], %s230
          %s232 = sand.u32 %s66, 1
          %s233 = smul.addr %s232, 768
          %s234 = scalar_lea.vmem [#allocation3], %s233
          %s235 = smul.u32 192, %s24
          %s237 = ssub.s32 12288, 12288
          %238 = vsyncadd %s231, %s237
          %s239 = smul.addr %s235, 64
          %s240 = scalar_lea.hbm %s1, %s239
          %s241 = sshll.u32 %s234, 4
          %s242 = int_to_ptr.vmem [resolvable:$true] %s241
          %247 = dma.hbm_to_vmem [thread:$0]  %s240, 12288, %s242, %s231, 64, 64, 4
        $region36: #{cnn_forward.3} parent=27 // pred_fallthru
          _
      $region28: #{cnn_forward.3} parent=5 // pred_fallthru
        _
      %p248 = scmp.le.s32.totalorder 1, %s16
      %p249 = scmp.lt.s32.totalorder %s16, 7
      %p250 = pnand %p248, %p249
      %p251 = pneg %p250
      // Predicated region
      $region37: #{cnn_forward.3} parent=5 // pred_check
        _
      $region38: #{cnn_forward.3} parent=5 // pred_check_branch
        %253 = sbr.rel (%p250) target = $region40
      $region39: #{cnn_forward.3} parent=5 // pred_region
        %s254 = ssub.s32 %s16, 1
        %s255 = sand.u32 %s69, 1
        %s256 = scalar_lea.sflag [#allocation4], %s255
        %s257 = sand.u32 %s69, 1
        %s258 = smul.addr %s257, 768
        %s259 = scalar_lea.vmem [#allocation3], %s258
        // Predicated region
        $region41: #{cnn_forward.3} parent=39 // pred_check
          %p260 = pneg %p82
        $region42: #{cnn_forward.3} parent=39 // pred_check_branch
          %262 = sbr.rel (%p260) target = $region44
        $region43: #{cnn_forward.3} parent=39 // pred_region
          %263 = dma.done %s256, 12288
        $region44: #{cnn_forward.3} parent=39 // pred_fallthru
          _
        // Predicated region
        $region45: #{cnn_forward.3} parent=39 // pred_check
          %p264 = pneg %p103
        $region46: #{cnn_forward.3} parent=39 // pred_check_branch
          %266 = sbr.rel (%p264) target = $region48
        $region47: #{cnn_forward.3} parent=39 // pred_region
          %267 = dma.done [#allocation7], 16
        $region48: #{cnn_forward.3} parent=39 // pred_fallthru
          _
        // Predicated region
        $region49: #{cnn_forward.3} parent=39 // pred_check
          %p268 = pneg %p145
        $region50: #{cnn_forward.3} parent=39 // pred_check_branch
          %270 = sbr.rel (%p268) target = $region52
        $region51: #{cnn_forward.3} parent=39 // pred_region
          %271 = dma.done [#allocation7], 16
        $region52: #{cnn_forward.3} parent=39 // pred_fallthru
          _
        %s272 = smul.u32 12, %s26
        %p273 = scmp.lt.s32.totalorder %s25, 0
        %s274 = scalar_select %p273, %s25, 0
        %p275 = scmp.lt.s32.totalorder %s272, 71
        %s276 = scalar_select %p275, %s272, 71
        %s277 = smul.addr %s274, 72
        %s278 = sadd.s32 %s276, %s277
        %s279 = scalar_lea.vmem %s0, %s278
        %p280 = pneg %p56
        %p281 = pneg %p53
        %s282 = sand.u32 %s69, 1
        %s283 = scalar_lea.sflag [#allocation4], %s282
        %s284 = sand.u32 %s69, 1
        %s285 = smul.addr %s284, 768
        %s286 = scalar_lea.vmem [#allocation3], %s285
        %p287 = pneg %p82
        %p288 = pneg %p79
        %p289 = pneg %p103
        %p290 = pneg %p100
        %p291 = pneg %p124
        %p292 = pneg %p121
        %p293 = pneg %p145
        %p294 = pneg %p142
        %p295 = pneg %p171
        %p296 = pneg %p168
        %s297 = smul.u32 12, %s26
        %p298 = scmp.lt.s32.totalorder %s25, 0
        %s299 = scalar_select %p298, %s25, 0
        %p300 = scmp.lt.s32.totalorder %s297, 71
        %s301 = scalar_select %p300, %s297, 71
        %s302 = smul.addr %s299, 72
        %s303 = sadd.s32 %s301, %s302
        %s304 = scalar_lea.vmem %s0, %s303
        %s305 = smul.u32 12, %s26
        %s306 = smul.u32 192, %s26
        %p308 = scmp.eq.s32.totalorder %s26, 0
        // Predicated region
        $region53: #{cnn_forward.3} parent=39 // pred_check
          %p309 = pneg %p308
        $region54: #{cnn_forward.3} parent=39 // pred_check_branch
          %311 = sbr.rel (%p309) target = $region56
        $region55: #{cnn_forward.3} parent=39 // pred_region
          %312 = vst [vmem:[#allocation2] sm:$0x3] 0.0
        $region56: #{cnn_forward.3} parent=39 // pred_fallthru
          _
        %v313 = vld [vmem:[#allocation2] sm:$0x3]
        %v314 = vld [vmem:[%s304] sm:$0xff]
        %v315 = vld [vmem:[%s304 + $0x8] sm:$0xf]
        %v316 = vld [vmem:[%s259] sm:$0xf]
        %v317 = vld [vmem:[%s259 + $0x4] sm:$0xf]
        %v318 = vld [vmem:[%s259 + $0x8] sm:$0xf]
        %v319 = vld [vmem:[%s259 + $0xc] sm:$0xf]
        %v320 = vld [vmem:[%s259 + $0x10] sm:$0xf]
        %v321 = vld [vmem:[%s259 + $0x14] sm:$0xf]
        %v322 = vld [vmem:[%s259 + $0x18] sm:$0xf]
        %v323 = vld [vmem:[%s259 + $0x1c] sm:$0xf]
        %v324 = vld [vmem:[%s259 + $0x20] sm:$0xf]
        %v325 = vld [vmem:[%s259 + $0x24] sm:$0xf]
        %v326 = vld [vmem:[%s259 + $0x28] sm:$0xf]
        %v327 = vld [vmem:[%s259 + $0x2c] sm:$0xf]
        %v328 = vld [vmem:[%s259 + $0x30] sm:$0xf]
        %v329 = vld [vmem:[%s259 + $0x34] sm:$0xf]
        %v330 = vld [vmem:[%s259 + $0x38] sm:$0xf]
        %v331 = vld [vmem:[%s259 + $0x3c] sm:$0xf]
        %v332 = vld [vmem:[%s259 + $0x40] sm:$0xf]
        %v333 = vld [vmem:[%s259 + $0x44] sm:$0xf]
        %v334 = vld [vmem:[%s259 + $0x48] sm:$0xf]
        %v335 = vld [vmem:[%s259 + $0x4c] sm:$0xf]
        %v336 = vld [vmem:[%s259 + $0x50] sm:$0xf]
        %v337 = vld [vmem:[%s259 + $0x54] sm:$0xf]
        %v338 = vld [vmem:[%s259 + $0x58] sm:$0xf]
        %v339 = vld [vmem:[%s259 + $0x5c] sm:$0xf]
        %v340 = vld [vmem:[%s259 + $0x60] sm:$0xf]
        %v341 = vld [vmem:[%s259 + $0x64] sm:$0xf]
        %v342 = vld [vmem:[%s259 + $0x68] sm:$0xf]
        %v343 = vld [vmem:[%s259 + $0x6c] sm:$0xf]
        %v344 = vld [vmem:[%s259 + $0x70] sm:$0xf]
        %v345 = vld [vmem:[%s259 + $0x74] sm:$0xf]
        %v346 = vld [vmem:[%s259 + $0x78] sm:$0xf]
        %v347 = vld [vmem:[%s259 + $0x7c] sm:$0xf]
        %v348 = vld [vmem:[%s259 + $0x80] sm:$0xf]
        %v349 = vld [vmem:[%s259 + $0x84] sm:$0xf]
        %v350 = vld [vmem:[%s259 + $0x88] sm:$0xf]
        %v351 = vld [vmem:[%s259 + $0x8c] sm:$0xf]
        %v352 = vld [vmem:[%s259 + $0x90] sm:$0xf]
        %v353 = vld [vmem:[%s259 + $0x94] sm:$0xf]
        %v354 = vld [vmem:[%s259 + $0x98] sm:$0xf]
        %v355 = vld [vmem:[%s259 + $0x9c] sm:$0xf]
        %v356 = vld [vmem:[%s259 + $0xa0] sm:$0xf]
        %v357 = vld [vmem:[%s259 + $0xa4] sm:$0xf]
        %v358 = vld [vmem:[%s259 + $0xa8] sm:$0xf]
        %v359 = vld [vmem:[%s259 + $0xac] sm:$0xf]
        %v360 = vld [vmem:[%s259 + $0xb0] sm:$0xf]
        %v361 = vld [vmem:[%s259 + $0xb4] sm:$0xf]
        %v362 = vld [vmem:[%s259 + $0xb8] sm:$0xf]
        %v363 = vld [vmem:[%s259 + $0xbc] sm:$0xf]
        %v364 = vld [vmem:[%s259 + $0xc0] sm:$0xf]
        %v365 = vld [vmem:[%s259 + $0xc4] sm:$0xf]
        %v366 = vld [vmem:[%s259 + $0xc8] sm:$0xf]
        %v367 = vld [vmem:[%s259 + $0xcc] sm:$0xf]
        %v368 = vld [vmem:[%s259 + $0xd0] sm:$0xf]
        %v369 = vld [vmem:[%s259 + $0xd4] sm:$0xf]
        %v370 = vld [vmem:[%s259 + $0xd8] sm:$0xf]
        %v371 = vld [vmem:[%s259 + $0xdc] sm:$0xf]
        %v372 = vld [vmem:[%s259 + $0xe0] sm:$0xf]
        %v373 = vld [vmem:[%s259 + $0xe4] sm:$0xf]
        %v374 = vld [vmem:[%s259 + $0xe8] sm:$0xf]
        %v375 = vld [vmem:[%s259 + $0xec] sm:$0xf]
        %v376 = vld [vmem:[%s259 + $0xf0] sm:$0xf]
        %v377 = vld [vmem:[%s259 + $0xf4] sm:$0xf]
        %v378 = vld [vmem:[%s259 + $0xf8] sm:$0xf]
        %v379 = vld [vmem:[%s259 + $0xfc] sm:$0xf]
        %v380 = vld [vmem:[%s259 + $0x100] sm:$0xf]
        %v381 = vld [vmem:[%s259 + $0x104] sm:$0xf]
        %v382 = vld [vmem:[%s259 + $0x108] sm:$0xf]
        %v383 = vld [vmem:[%s259 + $0x10c] sm:$0xf]
        %v384 = vld [vmem:[%s259 + $0x110] sm:$0xf]
        %v385 = vld [vmem:[%s259 + $0x114] sm:$0xf]
        %v386 = vld [vmem:[%s259 + $0x118] sm:$0xf]
        %v387 = vld [vmem:[%s259 + $0x11c] sm:$0xf]
        %v388 = vld [vmem:[%s259 + $0x120] sm:$0xf]
        %v389 = vld [vmem:[%s259 + $0x124] sm:$0xf]
        %v390 = vld [vmem:[%s259 + $0x128] sm:$0xf]
        %v391 = vld [vmem:[%s259 + $0x12c] sm:$0xf]
        %v392 = vld [vmem:[%s259 + $0x130] sm:$0xf]
        %v393 = vld [vmem:[%s259 + $0x134] sm:$0xf]
        %v394 = vld [vmem:[%s259 + $0x138] sm:$0xf]
        %v395 = vld [vmem:[%s259 + $0x13c] sm:$0xf]
        %v396 = vld [vmem:[%s259 + $0x140] sm:$0xf]
        %v397 = vld [vmem:[%s259 + $0x144] sm:$0xf]
        %v398 = vld [vmem:[%s259 + $0x148] sm:$0xf]
        %v399 = vld [vmem:[%s259 + $0x14c] sm:$0xf]
        %v400 = vld [vmem:[%s259 + $0x150] sm:$0xf]
        %v401 = vld [vmem:[%s259 + $0x154] sm:$0xf]
        %v402 = vld [vmem:[%s259 + $0x158] sm:$0xf]
        %v403 = vld [vmem:[%s259 + $0x15c] sm:$0xf]
        %v404 = vld [vmem:[%s259 + $0x160] sm:$0xf]
        %v405 = vld [vmem:[%s259 + $0x164] sm:$0xf]
        %v406 = vld [vmem:[%s259 + $0x168] sm:$0xf]
        %v407 = vld [vmem:[%s259 + $0x16c] sm:$0xf]
        %v408 = vld [vmem:[%s259 + $0x170] sm:$0xf]
        %v409 = vld [vmem:[%s259 + $0x174] sm:$0xf]
        %v410 = vld [vmem:[%s259 + $0x178] sm:$0xf]
        %v411 = vld [vmem:[%s259 + $0x17c] sm:$0xf]
        %v412 = vld [vmem:[%s259 + $0x180] sm:$0xf]
        %v413 = vld [vmem:[%s259 + $0x184] sm:$0xf]
        %v414 = vld [vmem:[%s259 + $0x188] sm:$0xf]
        %v415 = vld [vmem:[%s259 + $0x18c] sm:$0xf]
        %v416 = vld [vmem:[%s259 + $0x190] sm:$0xf]
        %v417 = vld [vmem:[%s259 + $0x194] sm:$0xf]
        %v418 = vld [vmem:[%s259 + $0x198] sm:$0xf]
        %v419 = vld [vmem:[%s259 + $0x19c] sm:$0xf]
        %v420 = vld [vmem:[%s259 + $0x1a0] sm:$0xf]
        %v421 = vld [vmem:[%s259 + $0x1a4] sm:$0xf]
        %v422 = vld [vmem:[%s259 + $0x1a8] sm:$0xf]
        %v423 = vld [vmem:[%s259 + $0x1ac] sm:$0xf]
        %v424 = vld [vmem:[%s259 + $0x1b0] sm:$0xf]
        %v425 = vld [vmem:[%s259 + $0x1b4] sm:$0xf]
        %v426 = vld [vmem:[%s259 + $0x1b8] sm:$0xf]
        %v427 = vld [vmem:[%s259 + $0x1bc] sm:$0xf]
        %v428 = vld [vmem:[%s259 + $0x1c0] sm:$0xf]
        %v429 = vld [vmem:[%s259 + $0x1c4] sm:$0xf]
        %v430 = vld [vmem:[%s259 + $0x1c8] sm:$0xf]
        %v431 = vld [vmem:[%s259 + $0x1cc] sm:$0xf]
        %v432 = vld [vmem:[%s259 + $0x1d0] sm:$0xf]
        %v433 = vld [vmem:[%s259 + $0x1d4] sm:$0xf]
        %v434 = vld [vmem:[%s259 + $0x1d8] sm:$0xf]
        %v435 = vld [vmem:[%s259 + $0x1dc] sm:$0xf]
        %v436 = vld [vmem:[%s259 + $0x1e0] sm:$0xf]
        %v437 = vld [vmem:[%s259 + $0x1e4] sm:$0xf]
        %v438 = vld [vmem:[%s259 + $0x1e8] sm:$0xf]
        %v439 = vld [vmem:[%s259 + $0x1ec] sm:$0xf]
        %v440 = vld [vmem:[%s259 + $0x1f0] sm:$0xf]
        %v441 = vld [vmem:[%s259 + $0x1f4] sm:$0xf]
        %v442 = vld [vmem:[%s259 + $0x1f8] sm:$0xf]
        %v443 = vld [vmem:[%s259 + $0x1fc] sm:$0xf]
        %v444 = vld [vmem:[%s259 + $0x200] sm:$0xf]
        %v445 = vld [vmem:[%s259 + $0x204] sm:$0xf]
        %v446 = vld [vmem:[%s259 + $0x208] sm:$0xf]
        %v447 = vld [vmem:[%s259 + $0x20c] sm:$0xf]
        %v448 = vld [vmem:[%s259 + $0x210] sm:$0xf]
        %v449 = vld [vmem:[%s259 + $0x214] sm:$0xf]
        %v450 = vld [vmem:[%s259 + $0x218] sm:$0xf]
        %v451 = vld [vmem:[%s259 + $0x21c] sm:$0xf]
        %v452 = vld [vmem:[%s259 + $0x220] sm:$0xf]
        %v453 = vld [vmem:[%s259 + $0x224] sm:$0xf]
        %v454 = vld [vmem:[%s259 + $0x228] sm:$0xf]
        %v455 = vld [vmem:[%s259 + $0x22c] sm:$0xf]
        %v456 = vld [vmem:[%s259 + $0x230] sm:$0xf]
        %v457 = vld [vmem:[%s259 + $0x234] sm:$0xf]
        %v458 = vld [vmem:[%s259 + $0x238] sm:$0xf]
        %v459 = vld [vmem:[%s259 + $0x23c] sm:$0xf]
        %v460 = vld [vmem:[%s259 + $0x240] sm:$0xf]
        %v461 = vld [vmem:[%s259 + $0x244] sm:$0xf]
        %v462 = vld [vmem:[%s259 + $0x248] sm:$0xf]
        %v463 = vld [vmem:[%s259 + $0x24c] sm:$0xf]
        %v464 = vld [vmem:[%s259 + $0x250] sm:$0xf]
        %v465 = vld [vmem:[%s259 + $0x254] sm:$0xf]
        %v466 = vld [vmem:[%s259 + $0x258] sm:$0xf]
        %v467 = vld [vmem:[%s259 + $0x25c] sm:$0xf]
        %v468 = vld [vmem:[%s259 + $0x260] sm:$0xf]
        %v469 = vld [vmem:[%s259 + $0x264] sm:$0xf]
        %v470 = vld [vmem:[%s259 + $0x268] sm:$0xf]
        %v471 = vld [vmem:[%s259 + $0x26c] sm:$0xf]
        %v472 = vld [vmem:[%s259 + $0x270] sm:$0xf]
        %v473 = vld [vmem:[%s259 + $0x274] sm:$0xf]
        %v474 = vld [vmem:[%s259 + $0x278] sm:$0xf]
        %v475 = vld [vmem:[%s259 + $0x27c] sm:$0xf]
        %v476 = vld [vmem:[%s259 + $0x280] sm:$0xf]
        %v477 = vld [vmem:[%s259 + $0x284] sm:$0xf]
        %v478 = vld [vmem:[%s259 + $0x288] sm:$0xf]
        %v479 = vld [vmem:[%s259 + $0x28c] sm:$0xf]
        %v480 = vld [vmem:[%s259 + $0x290] sm:$0xf]
        %v481 = vld [vmem:[%s259 + $0x294] sm:$0xf]
        %v482 = vld [vmem:[%s259 + $0x298] sm:$0xf]
        %v483 = vld [vmem:[%s259 + $0x29c] sm:$0xf]
        %v484 = vld [vmem:[%s259 + $0x2a0] sm:$0xf]
        %v485 = vld [vmem:[%s259 + $0x2a4] sm:$0xf]
        %v486 = vld [vmem:[%s259 + $0x2a8] sm:$0xf]
        %v487 = vld [vmem:[%s259 + $0x2ac] sm:$0xf]
        %v488 = vld [vmem:[%s259 + $0x2b0] sm:$0xf]
        %v489 = vld [vmem:[%s259 + $0x2b4] sm:$0xf]
        %v490 = vld [vmem:[%s259 + $0x2b8] sm:$0xf]
        %v491 = vld [vmem:[%s259 + $0x2bc] sm:$0xf]
        %v492 = vld [vmem:[%s259 + $0x2c0] sm:$0xf]
        %v493 = vld [vmem:[%s259 + $0x2c4] sm:$0xf]
        %v494 = vld [vmem:[%s259 + $0x2c8] sm:$0xf]
        %v495 = vld [vmem:[%s259 + $0x2cc] sm:$0xf]
        %v496 = vld [vmem:[%s259 + $0x2d0] sm:$0xf]
        %v497 = vld [vmem:[%s259 + $0x2d4] sm:$0xf]
        %v498 = vld [vmem:[%s259 + $0x2d8] sm:$0xf]
        %v499 = vld [vmem:[%s259 + $0x2dc] sm:$0xf]
        %v500 = vld [vmem:[%s259 + $0x2e0] sm:$0xf]
        %v501 = vld [vmem:[%s259 + $0x2e4] sm:$0xf]
        %v502 = vld [vmem:[%s259 + $0x2e8] sm:$0xf]
        %v503 = vld [vmem:[%s259 + $0x2ec] sm:$0xf]
        %v504 = vld [vmem:[%s259 + $0x2f0] sm:$0xf]
        %v505 = vld [vmem:[%s259 + $0x2f4] sm:$0xf]
        %v506 = vld [vmem:[%s259 + $0x2f8] sm:$0xf]
        %v507 = vld [vmem:[%s259 + $0x2fc] sm:$0xf]
        %v510 = vcombine.high %v314, %v314
        %v512 = vunpack.c.l.s4 1966171168
        %v513 = vunpack.c.0.s8 %v512
        %v514 = vlaneseq
        %v515 = vshrl.u32 %v514, 7
        %v516 = vsub.s32 %v513, %v515
        %v517 = vrot.slane %v314, %v516
        %v519 = vunpack.c.l.s4 1966171168
        %v520 = vunpack.c.0.s8 %v519
        %v521 = vlaneseq
        %v522 = vshrl.u32 %v521, 7
        %v523 = vsub.s32 %v520, %v522
        %v524 = vrot.slane %v510, %v523
        %v525 = vcombine.high %v517, %v517
        %v526 = vcombine.high %v524, %v524
        %v528 = vunpack.c.l.s4 1966171168
        %v529 = vunpack.c.0.s8 %v528
        %v530 = vlaneseq
        %v531 = vshrl.u32 %v530, 7
        %v532 = vsub.s32 %v529, %v531
        %v533 = vrot.slane %v517, %v532
        %v535 = vunpack.c.l.s4 1966171168
        %v536 = vunpack.c.0.s8 %v535
        %v537 = vlaneseq
        %v538 = vshrl.u32 %v537, 7
        %v539 = vsub.s32 %v536, %v538
        %v540 = vrot.slane %v524, %v539
        %v542 = vunpack.c.l.s4 1966171168
        %v543 = vunpack.c.0.s8 %v542
        %v544 = vlaneseq
        %v545 = vshrl.u32 %v544, 7
        %v546 = vsub.s32 %v543, %v545
        %v547 = vrot.slane %v525, %v546
        %v549 = vunpack.c.l.s4 1966171168
        %v550 = vunpack.c.0.s8 %v549
        %v551 = vlaneseq
        %v552 = vshrl.u32 %v551, 7
        %v553 = vsub.s32 %v550, %v552
        %v554 = vrot.slane %v526, %v553
        %v555 = vcombine.high %v533, %v533
        %v556 = vcombine.high %v540, %v540
        %v557 = vcombine.high %v547, %v547
        %v558 = vcombine.high %v554, %v554
        %v560 = vunpack.c.l.s4 1966171168
        %v561 = vunpack.c.0.s8 %v560
        %v562 = vlaneseq
        %v563 = vshrl.u32 %v562, 7
        %v564 = vsub.s32 %v561, %v563
        %v565 = vrot.slane %v315, %v564
        %v566 = vcombine.high %v565, %v565
        %v568 = vunpack.c.l.s4 1966171168
        %v569 = vunpack.c.0.s8 %v568
        %v570 = vlaneseq
        %v571 = vshrl.u32 %v570, 7
        %v572 = vsub.s32 %v569, %v571
        %v573 = vrot.slane %v565, %v572
        %v575 = vunpack.c.l.s4 1966171168
        %v576 = vunpack.c.0.s8 %v575
        %v577 = vlaneseq
        %v578 = vshrl.u32 %v577, 7
        %v579 = vsub.s32 %v576, %v578
        %v580 = vrot.slane %v566, %v579
        %v581 = vcombine.high %v573, %v573
        %v582 = vcombine.high %v580, %v580
        %v787 = vunpack.c.l.b16 %v316
        %v788 = vunpack.c.l.b16 %v317
        %v789 = vunpack.c.l.b16 %v318
        %v790 = vunpack.c.l.b16 %v319
        %v791 = vunpack.c.l.b16 %v320
        %v792 = vunpack.c.l.b16 %v321
        %v793 = vunpack.c.l.b16 %v322
        %v794 = vunpack.c.l.b16 %v323
        %v795 = vunpack.c.l.b16 %v324
        %v796 = vunpack.c.l.b16 %v325
        %v797 = vunpack.c.l.b16 %v326
        %v798 = vunpack.c.l.b16 %v327
        %v799 = vunpack.c.l.b16 %v328
        %v800 = vunpack.c.l.b16 %v329
        %v801 = vunpack.c.l.b16 %v330
        %v802 = vunpack.c.l.b16 %v331
        %v803 = vunpack.c.l.b16 %v332
        %v804 = vunpack.c.l.b16 %v333
        %v805 = vunpack.c.l.b16 %v334
        %v806 = vunpack.c.l.b16 %v335
        %v807 = vunpack.c.l.b16 %v336
        %v808 = vunpack.c.l.b16 %v337
        %v809 = vunpack.c.l.b16 %v338
        %v810 = vunpack.c.l.b16 %v339
        %v811 = vunpack.c.l.b16 %v340
        %v812 = vunpack.c.l.b16 %v341
        %v813 = vunpack.c.l.b16 %v342
        %v814 = vunpack.c.l.b16 %v343
        %v815 = vunpack.c.l.b16 %v344
        %v816 = vunpack.c.l.b16 %v345
        %v817 = vunpack.c.l.b16 %v346
        %v818 = vunpack.c.l.b16 %v347
        %v819 = vunpack.c.l.b16 %v348
        %v820 = vunpack.c.l.b16 %v349
        %v821 = vunpack.c.l.b16 %v350
        %v822 = vunpack.c.l.b16 %v351
        %v823 = vunpack.c.l.b16 %v352
        %v824 = vunpack.c.l.b16 %v353
        %v825 = vunpack.c.l.b16 %v354
        %v826 = vunpack.c.l.b16 %v355
        %v827 = vunpack.c.l.b16 %v356
        %v828 = vunpack.c.l.b16 %v357
        %v829 = vunpack.c.l.b16 %v358
        %v830 = vunpack.c.l.b16 %v359
        %v831 = vunpack.c.l.b16 %v360
        %v832 = vunpack.c.l.b16 %v361
        %v833 = vunpack.c.l.b16 %v362
        %v834 = vunpack.c.l.b16 %v363
        %v835 = vunpack.c.l.b16 %v364
        %v836 = vunpack.c.l.b16 %v365
        %v837 = vunpack.c.l.b16 %v366
        %v838 = vunpack.c.l.b16 %v367
        %v839 = vunpack.c.l.b16 %v368
        %v840 = vunpack.c.l.b16 %v369
        %v841 = vunpack.c.l.b16 %v370
        %v842 = vunpack.c.l.b16 %v371
        %v843 = vunpack.c.l.b16 %v372
        %v844 = vunpack.c.l.b16 %v373
        %v845 = vunpack.c.l.b16 %v374
        %v846 = vunpack.c.l.b16 %v375
        %v847 = vunpack.c.l.b16 %v376
        %v848 = vunpack.c.l.b16 %v377
        %v849 = vunpack.c.l.b16 %v378
        %v850 = vunpack.c.l.b16 %v379
        %v851 = vunpack.c.l.b16 %v380
        %v852 = vunpack.c.l.b16 %v381
        %v853 = vunpack.c.l.b16 %v382
        %v854 = vunpack.c.l.b16 %v383
        %v855 = vunpack.c.l.b16 %v384
        %v856 = vunpack.c.l.b16 %v385
        %v857 = vunpack.c.l.b16 %v386
        %v858 = vunpack.c.l.b16 %v387
        %v859 = vunpack.c.l.b16 %v388
        %v860 = vunpack.c.l.b16 %v389
        %v861 = vunpack.c.l.b16 %v390
        %v862 = vunpack.c.l.b16 %v391
        %v863 = vunpack.c.l.b16 %v392
        %v864 = vunpack.c.l.b16 %v393
        %v865 = vunpack.c.l.b16 %v394
        %v866 = vunpack.c.l.b16 %v395
        %v867 = vunpack.c.l.b16 %v396
        %v868 = vunpack.c.l.b16 %v397
        %v869 = vunpack.c.l.b16 %v398
        %v870 = vunpack.c.l.b16 %v399
        %v871 = vunpack.c.l.b16 %v400
        %v872 = vunpack.c.l.b16 %v401
        %v873 = vunpack.c.l.b16 %v402
        %v874 = vunpack.c.l.b16 %v403
        %v875 = vunpack.c.l.b16 %v404
        %v876 = vunpack.c.l.b16 %v405
        %v877 = vunpack.c.l.b16 %v406
        %v878 = vunpack.c.l.b16 %v407
        %v879 = vunpack.c.l.b16 %v408
        %v880 = vunpack.c.l.b16 %v409
        %v881 = vunpack.c.l.b16 %v410
        %v882 = vunpack.c.l.b16 %v411
        %v883 = vunpack.c.l.b16 %v412
        %v884 = vunpack.c.l.b16 %v413
        %v885 = vunpack.c.l.b16 %v414
        %v886 = vunpack.c.l.b16 %v415
        %v887 = vunpack.c.l.b16 %v416
        %v888 = vunpack.c.l.b16 %v417
        %v889 = vunpack.c.l.b16 %v418
        %v890 = vunpack.c.l.b16 %v419
        %v891 = vunpack.c.l.b16 %v420
        %v892 = vunpack.c.l.b16 %v421
        %v893 = vunpack.c.l.b16 %v422
        %v894 = vunpack.c.l.b16 %v423
        %v895 = vunpack.c.l.b16 %v424
        %v896 = vunpack.c.l.b16 %v425
        %v897 = vunpack.c.l.b16 %v426
        %v898 = vunpack.c.l.b16 %v427
        %v899 = vunpack.c.l.b16 %v428
        %v900 = vunpack.c.l.b16 %v429
        %v901 = vunpack.c.l.b16 %v430
        %v902 = vunpack.c.l.b16 %v431
        %v903 = vunpack.c.l.b16 %v432
        %v904 = vunpack.c.l.b16 %v433
        %v905 = vunpack.c.l.b16 %v434
        %v906 = vunpack.c.l.b16 %v435
        %v907 = vunpack.c.l.b16 %v436
        %v908 = vunpack.c.l.b16 %v437
        %v909 = vunpack.c.l.b16 %v438
        %v910 = vunpack.c.l.b16 %v439
        %v911 = vunpack.c.l.b16 %v440
        %v912 = vunpack.c.l.b16 %v441
        %v913 = vunpack.c.l.b16 %v442
        %v914 = vunpack.c.l.b16 %v443
        %v915 = vunpack.c.l.b16 %v444
        %v916 = vunpack.c.l.b16 %v445
        %v917 = vunpack.c.l.b16 %v446
        %v918 = vunpack.c.l.b16 %v447
        %v919 = vunpack.c.l.b16 %v448
        %v920 = vunpack.c.l.b16 %v449
        %v921 = vunpack.c.l.b16 %v450
        %v922 = vunpack.c.l.b16 %v451
        %v923 = vunpack.c.l.b16 %v452
        %v924 = vunpack.c.l.b16 %v453
        %v925 = vunpack.c.l.b16 %v454
        %v926 = vunpack.c.l.b16 %v455
        %v927 = vunpack.c.l.b16 %v456
        %v928 = vunpack.c.l.b16 %v457
        %v929 = vunpack.c.l.b16 %v458
        %v930 = vunpack.c.l.b16 %v459
        %v931 = vunpack.c.l.b16 %v460
        %v932 = vunpack.c.l.b16 %v461
        %v933 = vunpack.c.l.b16 %v462
        %v934 = vunpack.c.l.b16 %v463
        %v935 = vunpack.c.l.b16 %v464
        %v936 = vunpack.c.l.b16 %v465
        %v937 = vunpack.c.l.b16 %v466
        %v938 = vunpack.c.l.b16 %v467
        %v939 = vunpack.c.l.b16 %v468
        %v940 = vunpack.c.l.b16 %v469
        %v941 = vunpack.c.l.b16 %v470
        %v942 = vunpack.c.l.b16 %v471
        %v943 = vunpack.c.l.b16 %v472
        %v944 = vunpack.c.l.b16 %v473
        %v945 = vunpack.c.l.b16 %v474
        %v946 = vunpack.c.l.b16 %v475
        %v947 = vunpack.c.l.b16 %v476
        %v948 = vunpack.c.l.b16 %v477
        %v949 = vunpack.c.l.b16 %v478
        %v950 = vunpack.c.l.b16 %v479
        %v951 = vunpack.c.l.b16 %v480
        %v952 = vunpack.c.l.b16 %v481
        %v953 = vunpack.c.l.b16 %v482
        %v954 = vunpack.c.l.b16 %v483
        %v955 = vunpack.c.l.b16 %v484
        %v956 = vunpack.c.l.b16 %v485
        %v957 = vunpack.c.l.b16 %v486
        %v958 = vunpack.c.l.b16 %v487
        %v959 = vunpack.c.l.b16 %v488
        %v960 = vunpack.c.l.b16 %v489
        %v961 = vunpack.c.l.b16 %v490
        %v962 = vunpack.c.l.b16 %v491
        %v963 = vunpack.c.l.b16 %v492
        %v964 = vunpack.c.l.b16 %v493
        %v965 = vunpack.c.l.b16 %v494
        %v966 = vunpack.c.l.b16 %v495
        %v967 = vunpack.c.l.b16 %v496
        %v968 = vunpack.c.l.b16 %v497
        %v969 = vunpack.c.l.b16 %v498
        %v970 = vunpack.c.l.b16 %v499
        %v971 = vunpack.c.l.b16 %v500
        %v972 = vunpack.c.l.b16 %v501
        %v973 = vunpack.c.l.b16 %v502
        %v974 = vunpack.c.l.b16 %v503
        %v975 = vunpack.c.l.b16 %v504
        %v976 = vunpack.c.l.b16 %v505
        %v977 = vunpack.c.l.b16 %v506
        %v978 = vunpack.c.l.b16 %v507
        %v979 = vpack.c.b16 %v788, %v787
        %v980 = vpack.c.b16 %v790, %v789
        %v981 = vpack.c.b16 %v792, %v791
        %v982 = vpack.c.b16 %v794, %v793
        %v983 = vpack.c.b16 %v796, %v795
        %v984 = vpack.c.b16 %v798, %v797
        %v985 = vpack.c.b16 %v800, %v799
        %v986 = vpack.c.b16 %v802, %v801
        %v987 = vpack.c.b16 %v804, %v803
        %v988 = vpack.c.b16 %v806, %v805
        %v989 = vpack.c.b16 %v808, %v807
        %v990 = vpack.c.b16 %v810, %v809
        %v991 = vpack.c.b16 %v812, %v811
        %v992 = vpack.c.b16 %v814, %v813
        %v993 = vpack.c.b16 %v816, %v815
        %v994 = vpack.c.b16 %v818, %v817
        %v995 = vpack.c.b16 %v820, %v819
        %v996 = vpack.c.b16 %v822, %v821
        %v997 = vpack.c.b16 %v824, %v823
        %v998 = vpack.c.b16 %v826, %v825
        %v999 = vpack.c.b16 %v828, %v827
        %v1000 = vpack.c.b16 %v830, %v829
        %v1001 = vpack.c.b16 %v832, %v831
        %v1002 = vpack.c.b16 %v834, %v833
        %v1003 = vpack.c.b16 %v836, %v835
        %v1004 = vpack.c.b16 %v838, %v837
        %v1005 = vpack.c.b16 %v840, %v839
        %v1006 = vpack.c.b16 %v842, %v841
        %v1007 = vpack.c.b16 %v844, %v843
        %v1008 = vpack.c.b16 %v846, %v845
        %v1009 = vpack.c.b16 %v848, %v847
        %v1010 = vpack.c.b16 %v850, %v849
        %v1011 = vpack.c.b16 %v852, %v851
        %v1012 = vpack.c.b16 %v854, %v853
        %v1013 = vpack.c.b16 %v856, %v855
        %v1014 = vpack.c.b16 %v858, %v857
        %v1015 = vpack.c.b16 %v860, %v859
        %v1016 = vpack.c.b16 %v862, %v861
        %v1017 = vpack.c.b16 %v864, %v863
        %v1018 = vpack.c.b16 %v866, %v865
        %v1019 = vpack.c.b16 %v868, %v867
        %v1020 = vpack.c.b16 %v870, %v869
        %v1021 = vpack.c.b16 %v872, %v871
        %v1022 = vpack.c.b16 %v874, %v873
        %v1023 = vpack.c.b16 %v876, %v875
        %v1024 = vpack.c.b16 %v878, %v877
        %v1025 = vpack.c.b16 %v880, %v879
        %v1026 = vpack.c.b16 %v882, %v881
        %v1027 = vpack.c.b16 %v884, %v883
        %v1028 = vpack.c.b16 %v886, %v885
        %v1029 = vpack.c.b16 %v888, %v887
        %v1030 = vpack.c.b16 %v890, %v889
        %v1031 = vpack.c.b16 %v892, %v891
        %v1032 = vpack.c.b16 %v894, %v893
        %v1033 = vpack.c.b16 %v896, %v895
        %v1034 = vpack.c.b16 %v898, %v897
        %v1035 = vpack.c.b16 %v900, %v899
        %v1036 = vpack.c.b16 %v902, %v901
        %v1037 = vpack.c.b16 %v904, %v903
        %v1038 = vpack.c.b16 %v906, %v905
        %v1039 = vpack.c.b16 %v908, %v907
        %v1040 = vpack.c.b16 %v910, %v909
        %v1041 = vpack.c.b16 %v912, %v911
        %v1042 = vpack.c.b16 %v914, %v913
        %v1043 = vpack.c.b16 %v916, %v915
        %v1044 = vpack.c.b16 %v918, %v917
        %v1045 = vpack.c.b16 %v920, %v919
        %v1046 = vpack.c.b16 %v922, %v921
        %v1047 = vpack.c.b16 %v924, %v923
        %v1048 = vpack.c.b16 %v926, %v925
        %v1049 = vpack.c.b16 %v928, %v927
        %v1050 = vpack.c.b16 %v930, %v929
        %v1051 = vpack.c.b16 %v932, %v931
        %v1052 = vpack.c.b16 %v934, %v933
        %v1053 = vpack.c.b16 %v936, %v935
        %v1054 = vpack.c.b16 %v938, %v937
        %v1055 = vpack.c.b16 %v940, %v939
        %v1056 = vpack.c.b16 %v942, %v941
        %v1057 = vpack.c.b16 %v944, %v943
        %v1058 = vpack.c.b16 %v946, %v945
        %v1059 = vpack.c.b16 %v948, %v947
        %v1060 = vpack.c.b16 %v950, %v949
        %v1061 = vpack.c.b16 %v952, %v951
        %v1062 = vpack.c.b16 %v954, %v953
        %v1063 = vpack.c.b16 %v956, %v955
        %v1064 = vpack.c.b16 %v958, %v957
        %v1065 = vpack.c.b16 %v960, %v959
        %v1066 = vpack.c.b16 %v962, %v961
        %v1067 = vpack.c.b16 %v964, %v963
        %v1068 = vpack.c.b16 %v966, %v965
        %v1069 = vpack.c.b16 %v968, %v967
        %v1070 = vpack.c.b16 %v970, %v969
        %v1071 = vpack.c.b16 %v972, %v971
        %v1072 = vpack.c.b16 %v974, %v973
        %v1073 = vpack.c.b16 %v976, %v975
        %v1074 = vpack.c.b16 %v978, %v977
        %1171 = vmatprep.subr.bf16.mxu0 0
        %1172 = vmatpush1.bf16.msra.mxu0 %v979
        %1173 = vmatprep.subr.bf16.mxu0 0
        %1174 = vmatpush1.bf16.msra.mxu0 %v980
        %1175 = vmatprep.subr.bf16.mxu0 0
        %1176 = vmatpush1.bf16.msra.mxu0 %v981
        %1177 = vmatprep.subr.bf16.mxu0 0
        %1178 = vmatpush1.bf16.msra.mxu0 %v982
        %1179 = vmatprep.subr.bf16.mxu0 0
        %1180 = vmatpush1.bf16.msra.mxu0 %v983
        %1181 = vmatprep.subr.bf16.mxu0 0
        %1182 = vmatpush1.bf16.msra.mxu0 %v984
        %1183 = vmatprep.subr.bf16.mxu0 0
        %1184 = vmatpush1.bf16.msra.mxu0 %v985
        %1185 = vmatprep.subr.bf16.mxu0 0
        %1186 = vmatpush1.bf16.msra.mxu0 %v986
        %1187 = vmatprep.subr.bf16.mxu0 0
        %1188 = vmatpush1.bf16.msra.mxu0 %v987
        %1189 = vmatprep.subr.bf16.mxu0 0
        %1190 = vmatpush1.bf16.msra.mxu0 %v988
        %1191 = vmatprep.subr.bf16.mxu0 0
        %1192 = vmatpush1.bf16.msra.mxu0 %v989
        %1193 = vmatprep.subr.bf16.mxu0 0
        %1194 = vmatpush1.bf16.msra.mxu0 %v990
        %1195 = vmatprep.subr.bf16.mxu0 0
        %1196 = vmatpush1.bf16.msra.mxu0 %v991
        %1197 = vmatprep.subr.bf16.mxu0 0
        %1198 = vmatpush1.bf16.msra.mxu0 %v992
        %1199 = vmatprep.subr.bf16.mxu0 0
        %1200 = vmatpush1.bf16.msra.mxu0 %v993
        %1201 = vmatprep.subr.bf16.mxu0 0
        %1202 = vmatpush1.bf16.msra.mxu0 %v994
        %1203 = vmatprep.mubr.bf16.mxu0 %v547
        %1204 = vmatmul.mubr.bf16.gmra.mrb[0].mxu0 %v533
        %v1205 = vpop.f32.mrb[0].mxu0
        %v1206 = vadd.f32 0.0, %v1205
        %v1207 = vpop.f32.mrb[0].mxu0
        %v1208 = vpop.f32.mrb[0].mxu0
        %v1209 = vpop.f32.mrb[0].mxu0
        %1210 = vdwg.mxu0
        %1211 = vmatprep.subr.bf16.mxu0 0
        %1212 = vmatpush1.bf16.msra.mxu0 %v995
        %1213 = vmatprep.subr.bf16.mxu0 0
        %1214 = vmatpush1.bf16.msra.mxu0 %v996
        %1215 = vmatprep.subr.bf16.mxu0 0
        %1216 = vmatpush1.bf16.msra.mxu0 %v997
        %1217 = vmatprep.subr.bf16.mxu0 0
        %1218 = vmatpush1.bf16.msra.mxu0 %v998
        %1219 = vmatprep.subr.bf16.mxu0 0
        %1220 = vmatpush1.bf16.msra.mxu0 %v999
        %1221 = vmatprep.subr.bf16.mxu0 0
        %1222 = vmatpush1.bf16.msra.mxu0 %v1000
        %1223 = vmatprep.subr.bf16.mxu0 0
        %1224 = vmatpush1.bf16.msra.mxu0 %v1001
        %1225 = vmatprep.subr.bf16.mxu0 0
        %1226 = vmatpush1.bf16.msra.mxu0 %v1002
        %1227 = vmatprep.subr.bf16.mxu0 0
        %1228 = vmatpush1.bf16.msra.mxu0 %v1003
        %1229 = vmatprep.subr.bf16.mxu0 0
        %1230 = vmatpush1.bf16.msra.mxu0 %v1004
        %1231 = vmatprep.subr.bf16.mxu0 0
        %1232 = vmatpush1.bf16.msra.mxu0 %v1005
        %1233 = vmatprep.subr.bf16.mxu0 0
        %1234 = vmatpush1.bf16.msra.mxu0 %v1006
        %1235 = vmatprep.subr.bf16.mxu0 0
        %1236 = vmatpush1.bf16.msra.mxu0 %v1007
        %1237 = vmatprep.subr.bf16.mxu0 0
        %1238 = vmatpush1.bf16.msra.mxu0 %v1008
        %1239 = vmatprep.subr.bf16.mxu0 0
        %1240 = vmatpush1.bf16.msra.mxu0 %v1009
        %1241 = vmatprep.subr.bf16.mxu0 0
        %1242 = vmatpush1.bf16.msra.mxu0 %v1010
        %1243 = vmatprep.mubr.bf16.mxu0 %v557
        %1244 = vmatmul.mubr.bf16.gmra.mrb[0].mxu0 %v555
        %v1245 = vpop.f32.mrb[0].mxu0
        %v1246 = vadd.f32 %v1206, %v1245
        %v1247 = vpop.f32.mrb[0].mxu0
        %v1248 = vpop.f32.mrb[0].mxu0
        %v1249 = vpop.f32.mrb[0].mxu0
        %1250 = vdwg.mxu0
        %1251 = vmatprep.subr.bf16.mxu0 0
        %1252 = vmatpush1.bf16.msra.mxu0 %v1011
        %1253 = vmatprep.subr.bf16.mxu0 0
        %1254 = vmatpush1.bf16.msra.mxu0 %v1012
        %1255 = vmatprep.subr.bf16.mxu0 0
        %1256 = vmatpush1.bf16.msra.mxu0 %v1013
        %1257 = vmatprep.subr.bf16.mxu0 0
        %1258 = vmatpush1.bf16.msra.mxu0 %v1014
        %1259 = vmatprep.subr.bf16.mxu0 0
        %1260 = vmatpush1.bf16.msra.mxu0 %v1015
        %1261 = vmatprep.subr.bf16.mxu0 0
        %1262 = vmatpush1.bf16.msra.mxu0 %v1016
        %1263 = vmatprep.subr.bf16.mxu0 0
        %1264 = vmatpush1.bf16.msra.mxu0 %v1017
        %1265 = vmatprep.subr.bf16.mxu0 0
        %1266 = vmatpush1.bf16.msra.mxu0 %v1018
        %1267 = vmatprep.subr.bf16.mxu0 0
        %1268 = vmatpush1.bf16.msra.mxu0 %v1019
        %1269 = vmatprep.subr.bf16.mxu0 0
        %1270 = vmatpush1.bf16.msra.mxu0 %v1020
        %1271 = vmatprep.subr.bf16.mxu0 0
        %1272 = vmatpush1.bf16.msra.mxu0 %v1021
        %1273 = vmatprep.subr.bf16.mxu0 0
        %1274 = vmatpush1.bf16.msra.mxu0 %v1022
        %1275 = vmatprep.subr.bf16.mxu0 0
        %1276 = vmatpush1.bf16.msra.mxu0 %v1023
        %1277 = vmatprep.subr.bf16.mxu0 0
        %1278 = vmatpush1.bf16.msra.mxu0 %v1024
        %1279 = vmatprep.subr.bf16.mxu0 0
        %1280 = vmatpush1.bf16.msra.mxu0 %v1025
        %1281 = vmatprep.subr.bf16.mxu0 0
        %1282 = vmatpush1.bf16.msra.mxu0 %v1026
        %1283 = vmatprep.mubr.bf16.mxu0 %v554
        %1284 = vmatmul.mubr.bf16.gmra.mrb[0].mxu0 %v540
        %v1285 = vpop.f32.mrb[0].mxu0
        %v1286 = vadd.f32 %v1246, %v1285
        %v1287 = vpop.f32.mrb[0].mxu0
        %v1288 = vpop.f32.mrb[0].mxu0
        %v1289 = vpop.f32.mrb[0].mxu0
        %1290 = vdwg.mxu0
        %1291 = vmatprep.subr.bf16.mxu0 0
        %1292 = vmatpush1.bf16.msra.mxu0 %v1027
        %1293 = vmatprep.subr.bf16.mxu0 0
        %1294 = vmatpush1.bf16.msra.mxu0 %v1028
        %1295 = vmatprep.subr.bf16.mxu0 0
        %1296 = vmatpush1.bf16.msra.mxu0 %v1029
        %1297 = vmatprep.subr.bf16.mxu0 0
        %1298 = vmatpush1.bf16.msra.mxu0 %v1030
        %1299 = vmatprep.subr.bf16.mxu0 0
        %1300 = vmatpush1.bf16.msra.mxu0 %v1031
        %1301 = vmatprep.subr.bf16.mxu0 0
        %1302 = vmatpush1.bf16.msra.mxu0 %v1032
        %1303 = vmatprep.subr.bf16.mxu0 0
        %1304 = vmatpush1.bf16.msra.mxu0 %v1033
        %1305 = vmatprep.subr.bf16.mxu0 0
        %1306 = vmatpush1.bf16.msra.mxu0 %v1034
        %1307 = vmatprep.subr.bf16.mxu0 0
        %1308 = vmatpush1.bf16.msra.mxu0 %v1035
        %1309 = vmatprep.subr.bf16.mxu0 0
        %1310 = vmatpush1.bf16.msra.mxu0 %v1036
        %1311 = vmatprep.subr.bf16.mxu0 0
        %1312 = vmatpush1.bf16.msra.mxu0 %v1037
        %1313 = vmatprep.subr.bf16.mxu0 0
        %1314 = vmatpush1.bf16.msra.mxu0 %v1038
        %1315 = vmatprep.subr.bf16.mxu0 0
        %1316 = vmatpush1.bf16.msra.mxu0 %v1039
        %1317 = vmatprep.subr.bf16.mxu0 0
        %1318 = vmatpush1.bf16.msra.mxu0 %v1040
        %1319 = vmatprep.subr.bf16.mxu0 0
        %1320 = vmatpush1.bf16.msra.mxu0 %v1041
        %1321 = vmatprep.subr.bf16.mxu0 0
        %1322 = vmatpush1.bf16.msra.mxu0 %v1042
        %1323 = vmatprep.mubr.bf16.mxu0 %v558
        %1324 = vmatmul.mubr.bf16.gmra.mrb[0].mxu0 %v556
        %v1325 = vpop.f32.mrb[0].mxu0
        %v1326 = vadd.f32 %v1286, %v1325
        %v1327 = vpop.f32.mrb[0].mxu0
        %v1328 = vpop.f32.mrb[0].mxu0
        %v1329 = vpop.f32.mrb[0].mxu0
        %1330 = vdwg.mxu0
        %1331 = vmatprep.subr.bf16.mxu0 0
        %1332 = vmatpush1.bf16.msra.mxu0 %v1043
        %1333 = vmatprep.subr.bf16.mxu0 0
        %1334 = vmatpush1.bf16.msra.mxu0 %v1044
        %1335 = vmatprep.subr.bf16.mxu0 0
        %1336 = vmatpush1.bf16.msra.mxu0 %v1045
        %1337 = vmatprep.subr.bf16.mxu0 0
        %1338 = vmatpush1.bf16.msra.mxu0 %v1046
        %1339 = vmatprep.subr.bf16.mxu0 0
        %1340 = vmatpush1.bf16.msra.mxu0 %v1047
        %1341 = vmatprep.subr.bf16.mxu0 0
        %1342 = vmatpush1.bf16.msra.mxu0 %v1048
        %1343 = vmatprep.subr.bf16.mxu0 0
        %1344 = vmatpush1.bf16.msra.mxu0 %v1049
        %1345 = vmatprep.subr.bf16.mxu0 0
        %1346 = vmatpush1.bf16.msra.mxu0 %v1050
        %1347 = vmatprep.subr.bf16.mxu0 0
        %1348 = vmatpush1.bf16.msra.mxu0 %v1051
        %1349 = vmatprep.subr.bf16.mxu0 0
        %1350 = vmatpush1.bf16.msra.mxu0 %v1052
        %1351 = vmatprep.subr.bf16.mxu0 0
        %1352 = vmatpush1.bf16.msra.mxu0 %v1053
        %1353 = vmatprep.subr.bf16.mxu0 0
        %1354 = vmatpush1.bf16.msra.mxu0 %v1054
        %1355 = vmatprep.subr.bf16.mxu0 0
        %1356 = vmatpush1.bf16.msra.mxu0 %v1055
        %1357 = vmatprep.subr.bf16.mxu0 0
        %1358 = vmatpush1.bf16.msra.mxu0 %v1056
        %1359 = vmatprep.subr.bf16.mxu0 0
        %1360 = vmatpush1.bf16.msra.mxu0 %v1057
        %1361 = vmatprep.subr.bf16.mxu0 0
        %1362 = vmatpush1.bf16.msra.mxu0 %v1058
        %1363 = vmatprep.mubr.bf16.mxu0 %v580
        %1364 = vmatmul.mubr.bf16.gmra.mrb[0].mxu0 %v573
        %v1365 = vpop.f32.mrb[0].mxu0
        %v1366 = vadd.f32 %v1326, %v1365
        %v1367 = vpop.f32.mrb[0].mxu0
        %v1368 = vpop.f32.mrb[0].mxu0
        %v1369 = vpop.f32.mrb[0].mxu0
        %1370 = vdwg.mxu0
        %1371 = vmatprep.subr.bf16.mxu0 0
        %1372 = vmatpush1.bf16.msra.mxu0 %v1059
        %1373 = vmatprep.subr.bf16.mxu0 0
        %1374 = vmatpush1.bf16.msra.mxu0 %v1060
        %1375 = vmatprep.subr.bf16.mxu0 0
        %1376 = vmatpush1.bf16.msra.mxu0 %v1061
        %1377 = vmatprep.subr.bf16.mxu0 0
        %1378 = vmatpush1.bf16.msra.mxu0 %v1062
        %1379 = vmatprep.subr.bf16.mxu0 0
        %1380 = vmatpush1.bf16.msra.mxu0 %v1063
        %1381 = vmatprep.subr.bf16.mxu0 0
        %1382 = vmatpush1.bf16.msra.mxu0 %v1064
        %1383 = vmatprep.subr.bf16.mxu0 0
        %1384 = vmatpush1.bf16.msra.mxu0 %v1065
        %1385 = vmatprep.subr.bf16.mxu0 0
        %1386 = vmatpush1.bf16.msra.mxu0 %v1066
        %1387 = vmatprep.subr.bf16.mxu0 0
        %1388 = vmatpush1.bf16.msra.mxu0 %v1067
        %1389 = vmatprep.subr.bf16.mxu0 0
        %1390 = vmatpush1.bf16.msra.mxu0 %v1068
        %1391 = vmatprep.subr.bf16.mxu0 0
        %1392 = vmatpush1.bf16.msra.mxu0 %v1069
        %1393 = vmatprep.subr.bf16.mxu0 0
        %1394 = vmatpush1.bf16.msra.mxu0 %v1070
        %1395 = vmatprep.subr.bf16.mxu0 0
        %1396 = vmatpush1.bf16.msra.mxu0 %v1071
        %1397 = vmatprep.subr.bf16.mxu0 0
        %1398 = vmatpush1.bf16.msra.mxu0 %v1072
        %1399 = vmatprep.subr.bf16.mxu0 0
        %1400 = vmatpush1.bf16.msra.mxu0 %v1073
        %1401 = vmatprep.subr.bf16.mxu0 0
        %1402 = vmatpush1.bf16.msra.mxu0 %v1074
        %1403 = vmatprep.mubr.bf16.mxu0 %v582
        %1404 = vmatmul.mubr.bf16.gmra.mrb[0].mxu0 %v581
        %v1405 = vpop.f32.mrb[0].mxu0
        %v1406 = vadd.f32 %v1366, %v1405
        %v1407 = vpop.f32.mrb[0].mxu0
        %v1408 = vpop.f32.mrb[0].mxu0
        %v1409 = vpop.f32.mrb[0].mxu0
        %1410 = vdwg.mxu0
        %v1411 = vadd.f32 %v313, %v1406
        %1412 = vst [vmem:[#allocation2] sm:$0x3] %v1411
        %p1413 = scmp.eq.s32.totalorder %s26, 5
        // Predicated region
        $region57: #{cnn_forward.3} parent=39 // pred_check
          %p1414 = pneg %p1413
        $region58: #{cnn_forward.3} parent=39 // pred_check_branch
          %1416 = sbr.rel (%p1414) target = $region60
        $region59: #{cnn_forward.3} parent=39 // pred_region
          %v1417 = vld [vmem:[#allocation2] sm:$0x3]
          %v1418 = vld [vmem:[#allocation6] sm:$0x1]
          %v1420 = vlaneseq
          %v1421 = vshrl.u32 %v1420, 7
          %v1422 = vsub.s32 0, %v1421
          %v1423 = vrot.slane %v1418, %v1422
          %v1425 = vadd.f32 %v1417, %v1423
          %v1426 = vmax.f32 %v1425, 0.0
          %v1427 = vld [vmem:[%s3] sm:$0xff]
          %v1428 = vld [vmem:[%s3 + $0x8] sm:$0xff]
          %v1429 = vld [vmem:[%s3 + $0x10] sm:$0xff]
          %v1430 = vld [vmem:[%s3 + $0x18] sm:$0xff]
          %v1431 = vld [vmem:[%s3 + $0x20] sm:$0xff]
          %v1432 = vld [vmem:[%s3 + $0x28] sm:$0xff]
          %v1433 = vld [vmem:[%s3 + $0x30] sm:$0xff]
          %v1434 = vld [vmem:[%s3 + $0x38] sm:$0xff]
          %v1435 = vld [vmem:[%s3 + $0x40] sm:$0xff]
          %v1436 = vld [vmem:[%s3 + $0x48] sm:$0xff]
          %v1437 = vld [vmem:[%s3 + $0x50] sm:$0xff]
          %v1438 = vld [vmem:[%s3 + $0x58] sm:$0xff]
          %v1439 = vld [vmem:[%s3 + $0x60] sm:$0xff]
          %v1440 = vld [vmem:[%s3 + $0x68] sm:$0xff]
          %v1441 = vld [vmem:[%s3 + $0x70] sm:$0xff]
          %v1442 = vld [vmem:[%s3 + $0x78] sm:$0xff]
          %v1443 = vld [vmem:[#allocation8] sm:$0x1]
          %v1445 = vlaneseq
          %v1446 = vshrl.u32 %v1445, 7
          %v1447 = vsub.s32 0, %v1446
          %v1448 = vrot.slane %v1443, %v1447
          %1450 = vmatprep.subr.mxu0 0.0
          %1451 = vmatpush1.msra.mxu0 %v1427
          %1452 = vmatprep.subr.mxu0 0.0
          %1453 = vmatpush1.msra.mxu0 %v1428
          %1454 = vmatprep.subr.mxu0 0.0
          %1455 = vmatpush1.msra.mxu0 %v1429
          %1456 = vmatprep.subr.mxu0 0.0
          %1457 = vmatpush1.msra.mxu0 %v1430
          %1458 = vmatprep.subr.mxu0 0.0
          %1459 = vmatpush1.msra.mxu0 %v1431
          %1460 = vmatprep.subr.mxu0 0.0
          %1461 = vmatpush1.msra.mxu0 %v1432
          %1462 = vmatprep.subr.mxu0 0.0
          %1463 = vmatpush1.msra.mxu0 %v1433
          %1464 = vmatprep.subr.mxu0 0.0
          %1465 = vmatpush1.msra.mxu0 %v1434
          %1466 = vmatprep.subr.mxu0 0.0
          %1467 = vmatpush1.msra.mxu0 %v1435
          %1468 = vmatprep.subr.mxu0 0.0
          %1469 = vmatpush1.msra.mxu0 %v1436
          %1470 = vmatprep.subr.mxu0 0.0
          %1471 = vmatpush1.msra.mxu0 %v1437
          %1472 = vmatprep.subr.mxu0 0.0
          %1473 = vmatpush1.msra.mxu0 %v1438
          %1474 = vmatprep.subr.mxu0 0.0
          %1475 = vmatpush1.msra.mxu0 %v1439
          %1476 = vmatprep.subr.mxu0 0.0
          %1477 = vmatpush1.msra.mxu0 %v1440
          %1478 = vmatprep.subr.mxu0 0.0
          %1479 = vmatpush1.msra.mxu0 %v1441
          %1480 = vmatprep.subr.mxu0 0.0
          %1481 = vmatpush1.msra.mxu0 %v1442
          %1482 = vmatprep.subr.mxu0 0.0
          %1483 = vmatpush1.msra.mxu0 0.0
          %1484 = vmatprep.subr.mxu0 0.0
          %1485 = vmatpush1.msra.mxu0 0.0
          %1486 = vmatprep.subr.mxu0 0.0
          %1487 = vmatpush1.msra.mxu0 0.0
          %1488 = vmatprep.subr.mxu0 0.0
          %1489 = vmatpush1.msra.mxu0 0.0
          %1490 = vmatprep.subr.mxu0 0.0
          %1491 = vmatpush1.msra.mxu0 0.0
          %1492 = vmatprep.subr.mxu0 0.0
          %1493 = vmatpush1.msra.mxu0 0.0
          %1494 = vmatprep.subr.mxu0 0.0
          %1495 = vmatpush1.msra.mxu0 0.0
          %1496 = vmatprep.subr.mxu0 0.0
          %1497 = vmatpush1.msra.mxu0 0.0
          %1498 = vmatprep.subr.mxu0 0.0
          %1499 = vmatpush1.msra.mxu0 0.0
          %1500 = vmatprep.subr.mxu0 0.0
          %1501 = vmatpush1.msra.mxu0 0.0
          %1502 = vmatprep.subr.mxu0 0.0
          %1503 = vmatpush1.msra.mxu0 0.0
          %1504 = vmatprep.subr.mxu0 0.0
          %1505 = vmatpush1.msra.mxu0 0.0
          %1506 = vmatprep.subr.mxu0 0.0
          %1507 = vmatpush1.msra.mxu0 0.0
          %1508 = vmatprep.subr.mxu0 0.0
          %1509 = vmatpush1.msra.mxu0 0.0
          %1510 = vmatprep.subr.mxu0 0.0
          %1511 = vmatpush1.msra.mxu0 0.0
          %1512 = vmatprep.subr.mxu0 0.0
          %1513 = vmatpush1.msra.mxu0 0.0
          %1514 = vmatprep.mubr.f32.mxu0 0.0
          %1515 = vmatmul.mubr.f32.gmra.mrb[0].mxu0 %v1426
          %v1516 = vpop.f32.mrb[0].mxu0
          %v1517 = vadd.f32 %v1448, %v1516
          %v1518 = vpop.f32.mrb[0].mxu0
          %1519 = vdwg.mxu0
          %vm1520 = vcmask 74752
          %v1521 = vsel %vm1520, %v1517, -inf
          %1522 = vmax.xlane.f32.xlu0 %v1521
          %v1523 = vpop.xlane.xlu0 %1522
          %v1524 = vsub.f32 %v1517, %v1523
          %v1525 = vmul.f32 %v1524, 1.442695
          %v1526 = vpow.pop %v1525
          %v1527 = vsel %vm1520, %v1526, 0.0
          %1528 = vadd.xlane.f32.xlu0 %v1527
          %v1529 = vpop.xlane.xlu0 %1528
          %v1530 = vlog2.pop %v1529
          %v1531 = vmul.f32 %v1530, 0.6931472
          %v1532 = vsub.f32 %v1524, %v1531
          %1533 = vst.msk [vmem:[#allocation9] sm:$0x3] %vm1520, %v1532
        $region60: #{cnn_forward.3} parent=39 // pred_fallthru
          _
        // Predicated region
        $region61: #{cnn_forward.3} parent=39 // pred_check
          %p1534 = pneg %p168
        $region62: #{cnn_forward.3} parent=39 // pred_check_branch
          %1536 = sbr.rel (%p1534) target = $region64
        $region63: #{cnn_forward.3} parent=39 // pred_region
          %s1538 = ssub.s32 32, 32
          %1539 = vsyncadd [#allocation5], %s1538
          %s1540 = smul.addr %s25, 32
          %s1541 = scalar_lea.hbm %s5, %s1540
          %s1543 = sshll.u32 [#allocation9], 4
          %s1544 = int_to_ptr.vmem [resolvable:$true] %s1543
          %1546 = dma.vmem_to_hbm [thread:$0]  %s1544, 32, %s1541, [#allocation5]
        $region64: #{cnn_forward.3} parent=39 // pred_fallthru
          _
        // Predicated region
        $region65: #{cnn_forward.3} parent=39 // pred_check
          %p1547 = pneg %p168
        $region66: #{cnn_forward.3} parent=39 // pred_check_branch
          %1549 = sbr.rel (%p1547) target = $region68
        $region67: #{cnn_forward.3} parent=39 // pred_region
          %1550 = dma.done [#allocation5], 32
        $region68: #{cnn_forward.3} parent=39 // pred_fallthru
          _
      $region40: #{cnn_forward.3} parent=5 // pred_fallthru
        _
      %p1551 = scmp.le.s32.totalorder 2, %s16
      // Predicated region
      $region69: #{cnn_forward.3} parent=5 // pred_check
        %p1552 = pneg %p1551
      $region70: #{cnn_forward.3} parent=5 // pred_check_branch
        %1554 = sbr.rel (%p1552) target = $region72
      $region71: #{cnn_forward.3} parent=5 // pred_region
        %s1555 = ssub.s32 %s16, 2
      $region72: #{cnn_forward.3} parent=5 // pred_fallthru
        _
    $region6: #{cnn_forward.3} parent=1 // loop_footer
      %s20 = sadd.s32 1, %s16
    $region7: #{cnn_forward.3} parent=1 // loop_footer_branch
      %15 = sbr.rel target = $region3
    $region8: #{cnn_forward.3} parent=1 // loop_exit
      _
    %1556 = vsyncpa [#allocation4], 1
    %s1557 = scalar_lea.sflag [#allocation4], 1
    %1558 = vsyncpa %s1557, 1
    %1559 = vsyncpa [#allocation7], 1
    %1560 = vsyncpa [#allocation5], 1
    %s1561 = scalar_lea.sflag [#allocation5], 1
    %1562 = vsyncpa %s1561, 1

// kernel: cnn_forward.2
$region0: #{cnn_forward.2}
  #allocation0 [shape = 'u32[]', space=smem, size = 0x4, offset = 0x4, fixed_abs, tag = 'smem constant byte address 0x4 - core index']
  #allocation1 [shape = 'u32[144,128]{1,0:T(1,128)}', space=vmem, size = 0x12000, scoped, tag = 'internal scratch']
  %s0 = inlined_call_operand.vmem [shape: f32[2,28,28,1], index: 0, kind: input, shape index: {}]
  %s1 = inlined_call_operand.hbm [shape: f32[9,32], index: 1, kind: input, shape index: {}]
  %s2 = inlined_call_operand.hbm [shape: f32[1,32], index: 2, kind: input, shape index: {}]
  %s3 = inlined_call_operand.hbm [shape: bf16[9,32,64], index: 3, kind: input, shape index: {}]
  %s4 = inlined_call_operand.hbm [shape: f32[1,64], index: 4, kind: input, shape index: {}]
  %s5 = inlined_call_operand.vmem [shape: bf16[2,12,768], index: 5, kind: output, shape index: {}]
  %s6 = sld [smem:[#allocation0]]
  $region69: #{cnn_forward.2} parent=0
    _
  %s8 = ssub.s32 1, %s6
  %s9 = scalar_select 0, %s8, %s6
  $region1: #{cnn_forward.2} parent=0
    #allocation2 [shape = 'u8[8192]{0}', space=vmem, size = 0x2000, scoped, tag = 'input window, operand 1, single buffered']
    #allocation3 [shape = 's32[2]{0}', space=sflag, size = 0x8, scoped, tag = 'scoped memory for cnn_forward.2']
    #allocation4 [shape = 'u8[512]{0}', space=vmem, size = 0x400, scoped, tag = 'input window, operand 2, single buffered']
    #allocation5 [shape = 's32[1]{0}', space=sflag, size = 0x4, scoped, tag = 'scoped memory for cnn_forward.2']
    #allocation6 [shape = 'u8[73728]{0}', space=vmem, size = 0x12000, scoped, tag = 'input window, operand 3, single buffered']
    #allocation7 [shape = 'u8[512]{0}', space=vmem, size = 0x400, scoped, tag = 'input window, operand 4, single buffered']
    #allocation8 [shape = 's32[1]{0}', space=sflag, size = 0x4, scoped, tag = 'scoped memory for cnn_forward.2']
    %10 = vsyncpa [#allocation3], 0
    %11 = vsyncpa [#allocation5], 0
    %12 = vsyncpa [#allocation8], 0
    loop: start=0, step=1, limit=4
    $region2: #{cnn_forward.2} parent=1 // loop_pre_header
      _
    $region3: #{cnn_forward.2} parent=1 // loop_header
      %s14 = sphi 0, %s18
      %p15 = scmp.ge.s32.totalorder %s14, 4
      %s24 = sphi 0, %s26
      %s27 = sphi 0, %s24
      %s28 = sphi 0, %s27
      %s44 = sphi 0, %s28
      %s48 = sphi 0, %s48
      %s50 = sphi 0, %s48
      %s51 = sphi 0, %s50
      %s65 = sphi 0, %s51
      %s69 = sphi 0, %s69
      %s71 = sphi 0, %s69
      %s72 = sphi 0, %s71
      %s86 = sphi 0, %s72
      %s90 = sphi 0, %s90
      %s92 = sphi 0, %s90
      %s93 = sphi 0, %s92
      %s107 = sphi 0, %s93
      %s111 = sphi 0, %s111
      %s113 = sphi 0, %s111
      %s114 = sphi 0, %s113
      %s128 = sphi 0, %s114
      %s134 = sphi 0, %s136
      %s137 = sphi 0, %s134
      %s138 = sphi 0, %s137
      %s154 = sphi 0, %s138
    $region4: #{cnn_forward.2} parent=1 // loop_header_branch
      %17 = sbr.rel (%p15) target = $region8
    $region5: #{cnn_forward.2} parent=1 // loop_body
      %s19 = ssub.s32 %s14, 1
      %s20 = ssub.s32 %s14, 2
      %s21 = sadd.s32 %s14, 1
      %s22 = ssub.s32 %s14, %s21
      %p23 = scmp.eq.s32.totalorder %s22, 0
      %s25 = sadd.s32 %s24, 1
      %s26 = scalar_select %p23, %s24, %s25
      %p29 = pneg %p23
      %p30 = scmp.eq.s32.totalorder %s14, 1
      %p31 = por %p29, %p30
      %p32 = scmp.ne.s32.totalorder %s24, %s27
      %p33 = scmp.eq.s32.totalorder %s14, 0
      %p34 = por %p32, %p33
      %p35 = scmp.ne.s32.totalorder %s24, %s27
      %p36 = scmp.eq.s32.totalorder %s19, 1
      %p37 = por %p35, %p36
      %p38 = scmp.ne.s32.totalorder %s27, %s28
      %p39 = scmp.eq.s32.totalorder %s19, 0
      %p40 = por %p38, %p39
      %p41 = scmp.ne.s32.totalorder %s27, %s28
      %p42 = scmp.eq.s32.totalorder %s20, 1
      %p43 = por %p41, %p42
      %p45 = scmp.ne.s32.totalorder %s28, %s44
      %p46 = scmp.eq.s32.totalorder %s20, 0
      %p47 = por %p45, %p46
      %s49 = sadd.s32 %s48, 1
      %p52 = scmp.eq.s32.totalorder %s14, 1
      %p53 = scmp.ne.s32.totalorder %s48, %s50
      %p54 = scmp.eq.s32.totalorder %s14, 0
      %p55 = por %p53, %p54
      %p56 = scmp.ne.s32.totalorder %s48, %s50
      %p57 = scmp.eq.s32.totalorder %s19, 1
      %p58 = por %p56, %p57
      %p59 = scmp.ne.s32.totalorder %s50, %s51
      %p60 = scmp.eq.s32.totalorder %s19, 0
      %p61 = por %p59, %p60
      %p62 = scmp.ne.s32.totalorder %s50, %s51
      %p63 = scmp.eq.s32.totalorder %s20, 1
      %p64 = por %p62, %p63
      %p66 = scmp.ne.s32.totalorder %s51, %s65
      %p67 = scmp.eq.s32.totalorder %s20, 0
      %p68 = por %p66, %p67
      %s70 = sadd.s32 %s69, 1
      %p73 = scmp.eq.s32.totalorder %s14, 1
      %p74 = scmp.ne.s32.totalorder %s69, %s71
      %p75 = scmp.eq.s32.totalorder %s14, 0
      %p76 = por %p74, %p75
      %p77 = scmp.ne.s32.totalorder %s69, %s71
      %p78 = scmp.eq.s32.totalorder %s19, 1
      %p79 = por %p77, %p78
      %p80 = scmp.ne.s32.totalorder %s71, %s72
      %p81 = scmp.eq.s32.totalorder %s19, 0
      %p82 = por %p80, %p81
      %p83 = scmp.ne.s32.totalorder %s71, %s72
      %p84 = scmp.eq.s32.totalorder %s20, 1
      %p85 = por %p83, %p84
      %p87 = scmp.ne.s32.totalorder %s72, %s86
      %p88 = scmp.eq.s32.totalorder %s20, 0
      %p89 = por %p87, %p88
      %s91 = sadd.s32 %s90, 1
      %p94 = scmp.eq.s32.totalorder %s14, 1
      %p95 = scmp.ne.s32.totalorder %s90, %s92
      %p96 = scmp.eq.s32.totalorder %s14, 0
      %p97 = por %p95, %p96
      %p98 = scmp.ne.s32.totalorder %s90, %s92
      %p99 = scmp.eq.s32.totalorder %s19, 1
      %p100 = por %p98, %p99
      %p101 = scmp.ne.s32.totalorder %s92, %s93
      %p102 = scmp.eq.s32.totalorder %s19, 0
      %p103 = por %p101, %p102
      %p104 = scmp.ne.s32.totalorder %s92, %s93
      %p105 = scmp.eq.s32.totalorder %s20, 1
      %p106 = por %p104, %p105
      %p108 = scmp.ne.s32.totalorder %s93, %s107
      %p109 = scmp.eq.s32.totalorder %s20, 0
      %p110 = por %p108, %p109
      %s112 = sadd.s32 %s111, 1
      %p115 = scmp.eq.s32.totalorder %s14, 1
      %p116 = scmp.ne.s32.totalorder %s111, %s113
      %p117 = scmp.eq.s32.totalorder %s14, 0
      %p118 = por %p116, %p117
      %p119 = scmp.ne.s32.totalorder %s111, %s113
      %p120 = scmp.eq.s32.totalorder %s19, 1
      %p121 = por %p119, %p120
      %p122 = scmp.ne.s32.totalorder %s113, %s114
      %p123 = scmp.eq.s32.totalorder %s19, 0
      %p124 = por %p122, %p123
      %p125 = scmp.ne.s32.totalorder %s113, %s114
      %p126 = scmp.eq.s32.totalorder %s20, 1
      %p127 = por %p125, %p126
      %p129 = scmp.ne.s32.totalorder %s114, %s128
      %p130 = scmp.eq.s32.totalorder %s20, 0
      %p131 = por %p129, %p130
      %s132 = ssub.s32 %s14, %s21
      %p133 = scmp.eq.s32.totalorder %s132, 0
      %s135 = sadd.s32 %s134, 1
      %s136 = scalar_select %p133, %s134, %s135
      %p139 = pneg %p133
      %p140 = scmp.eq.s32.totalorder %s14, 1
      %p141 = por %p139, %p140
      %p142 = scmp.ne.s32.totalorder %s134, %s137
      %p143 = scmp.eq.s32.totalorder %s14, 0
      %p144 = por %p142, %p143
      %p145 = scmp.ne.s32.totalorder %s134, %s137
      %p146 = scmp.eq.s32.totalorder %s19, 1
      %p147 = por %p145, %p146
      %p148 = scmp.ne.s32.totalorder %s137, %s138
      %p149 = scmp.eq.s32.totalorder %s19, 0
      %p150 = por %p148, %p149
      %p151 = scmp.ne.s32.totalorder %s137, %s138
      %p152 = scmp.eq.s32.totalorder %s20, 1
      %p153 = por %p151, %p152
      %p155 = scmp.ne.s32.totalorder %s138, %s154
      %p156 = scmp.eq.s32.totalorder %s20, 0
      %p157 = por %p155, %p156
      %p158 = scmp.le.s32.totalorder 1, %s14
      %p159 = scmp.lt.s32.totalorder %s14, 3
      %p160 = pnand %p158, %p159
      %p161 = pneg %p160
      // Predicated region
      $region9: #{cnn_forward.2} parent=5 // pred_check
        _
      $region10: #{cnn_forward.2} parent=5 // pred_check_branch
        %163 = sbr.rel (%p160) target = $region12
      $region11: #{cnn_forward.2} parent=5 // pred_region
        %s164 = ssub.s32 %s14, 1
        // Predicated region
        $region13: #{cnn_forward.2} parent=11 // pred_check
          %p165 = pneg %p61
        $region14: #{cnn_forward.2} parent=11 // pred_check_branch
          %167 = sbr.rel (%p165) target = $region16
        $region15: #{cnn_forward.2} parent=11 // pred_region
          %s169 = ssub.s32 256, 256
          %170 = vsyncadd [#allocation3], %s169
          %s171 = sshll.u32 [#allocation2], 4
          %s172 = int_to_ptr.vmem [resolvable:$true] %s171
          %177 = dma.hbm_to_vmem [thread:$0]  %s1, 256, %s172, [#allocation3], 128, 128, 8
        $region16: #{cnn_forward.2} parent=11 // pred_fallthru
          _
        // Predicated region
        $region17: #{cnn_forward.2} parent=11 // pred_check
          %p178 = pneg %p82
        $region18: #{cnn_forward.2} parent=11 // pred_check_branch
          %180 = sbr.rel (%p178) target = $region20
        $region19: #{cnn_forward.2} parent=11 // pred_region
          %s182 = ssub.s32 16, 16
          %183 = vsyncadd [#allocation5], %s182
          %s185 = sshll.u32 [#allocation4], 4
          %s186 = int_to_ptr.vmem [resolvable:$true] %s185
          %188 = dma.hbm_to_vmem [thread:$0]  %s2, 16, %s186, [#allocation5]
        $region20: #{cnn_forward.2} parent=11 // pred_fallthru
          _
        // Predicated region
        $region21: #{cnn_forward.2} parent=11 // pred_check
          %p189 = pneg %p103
        $region22: #{cnn_forward.2} parent=11 // pred_check_branch
          %191 = sbr.rel (%p189) target = $region24
        $region23: #{cnn_forward.2} parent=11 // pred_region
          %s193 = ssub.s32 2304, 2304
          %194 = vsyncadd [#allocation5], %s193
          %s195 = sshll.u32 [#allocation6], 4
          %s196 = int_to_ptr.vmem [resolvable:$true] %s195
          %201 = dma.hbm_to_vmem [thread:$0]  %s3, 2304, %s196, [#allocation5], 64, 64, 4
        $region24: #{cnn_forward.2} parent=11 // pred_fallthru
          _
        // Predicated region
        $region25: #{cnn_forward.2} parent=11 // pred_check
          %p202 = pneg %p124
        $region26: #{cnn_forward.2} parent=11 // pred_check_branch
          %204 = sbr.rel (%p202) target = $region28
        $region27: #{cnn_forward.2} parent=11 // pred_region
          %s206 = ssub.s32 16, 16
          %207 = vsyncadd [#allocation8], %s206
          %s209 = sshll.u32 [#allocation7], 4
          %s210 = int_to_ptr.vmem [resolvable:$true] %s209
          %212 = dma.hbm_to_vmem [thread:$0]  %s4, 16, %s210, [#allocation8]
        $region28: #{cnn_forward.2} parent=11 // pred_fallthru
          _
      $region12: #{cnn_forward.2} parent=5 // pred_fallthru
        _
      %p213 = scmp.lt.s32.totalorder %s14, 2
      // Predicated region
      $region29: #{cnn_forward.2} parent=5 // pred_check
        %p214 = pneg %p213
      $region30: #{cnn_forward.2} parent=5 // pred_check_branch
        %216 = sbr.rel (%p214) target = $region32
      $region31: #{cnn_forward.2} parent=5 // pred_region
        // Predicated region
        $region33: #{cnn_forward.2} parent=31 // pred_check
          %p217 = pneg %p34
        $region34: #{cnn_forward.2} parent=31 // pred_check_branch
          %219 = sbr.rel (%p217) target = $region36
        $region35: #{cnn_forward.2} parent=31 // pred_region
          %p220 = scmp.lt.s32.totalorder %s14, 1
          %s221 = scalar_select %p220, %s14, 1
          %s222 = smul.addr %s221, 112
          %s223 = smul.addr %s222, 8
          %s224 = scalar_lea.vmem %s0, %s223
        $region36: #{cnn_forward.2} parent=31 // pred_fallthru
          _
      $region32: #{cnn_forward.2} parent=5 // pred_fallthru
        _
      %p225 = scmp.le.s32.totalorder 1, %s14
      %p226 = scmp.lt.s32.totalorder %s14, 3
      %p227 = pnand %p225, %p226
      %p228 = pneg %p227
      // Predicated region
      $region37: #{cnn_forward.2} parent=5 // pred_check
        _
      $region38: #{cnn_forward.2} parent=5 // pred_check_branch
        %230 = sbr.rel (%p227) target = $region40
      $region39: #{cnn_forward.2} parent=5 // pred_region
        %s231 = ssub.s32 %s14, 1
        // Predicated region
        $region41: #{cnn_forward.2} parent=39 // pred_check
          %p232 = pneg %p61
        $region42: #{cnn_forward.2} parent=39 // pred_check_branch
          %234 = sbr.rel (%p232) target = $region44
        $region43: #{cnn_forward.2} parent=39 // pred_region
          %235 = dma.done [#allocation3], 256
        $region44: #{cnn_forward.2} parent=39 // pred_fallthru
          _
        // Predicated region
        $region45: #{cnn_forward.2} parent=39 // pred_check
          %p236 = pneg %p82
        $region46: #{cnn_forward.2} parent=39 // pred_check_branch
          %238 = sbr.rel (%p236) target = $region48
        $region47: #{cnn_forward.2} parent=39 // pred_region
          %239 = dma.done [#allocation5], 16
        $region48: #{cnn_forward.2} parent=39 // pred_fallthru
          _
        // Predicated region
        $region49: #{cnn_forward.2} parent=39 // pred_check
          %p240 = pneg %p103
        $region50: #{cnn_forward.2} parent=39 // pred_check_branch
          %242 = sbr.rel (%p240) target = $region52
        $region51: #{cnn_forward.2} parent=39 // pred_region
          %243 = dma.done [#allocation5], 2304
        $region52: #{cnn_forward.2} parent=39 // pred_fallthru
          _
        // Predicated region
        $region53: #{cnn_forward.2} parent=39 // pred_check
          %p244 = pneg %p124
        $region54: #{cnn_forward.2} parent=39 // pred_check_branch
          %246 = sbr.rel (%p244) target = $region56
        $region55: #{cnn_forward.2} parent=39 // pred_region
          %247 = dma.done [#allocation8], 16
        $region56: #{cnn_forward.2} parent=39 // pred_fallthru
          _
        %p248 = scmp.lt.s32.totalorder %s19, 1
        %s249 = scalar_select %p248, %s19, 1
        %s250 = smul.addr %s249, 112
        %s251 = smul.addr %s250, 8
        %s252 = scalar_lea.vmem %s0, %s251
        %p253 = pneg %p40
        %p254 = pneg %p37
        %p255 = pneg %p61
        %p256 = pneg %p58
        %p257 = pneg %p82
        %p258 = pneg %p79
        %p259 = pneg %p103
        %p260 = pneg %p100
        %p261 = pneg %p124
        %p262 = pneg %p121
        %p263 = pneg %p150
        %p264 = pneg %p147
        %p265 = scmp.lt.s32.totalorder %s19, 1
        %s266 = scalar_select %p265, %s19, 1
        %s267 = smul.addr %s266, 12
        %s268 = smul.addr %s267, 4
        %s269 = scalar_lea.vmem %s5, %s268
        %p270 = scmp.lt.s32.totalorder %s19, 1
        %s271 = scalar_select %p270, %s19, 1
        %s272 = smul.addr %s271, 112
        %s273 = smul.addr %s272, 8
        %s274 = scalar_lea.vmem %s0, %s273
        %p275 = scmp.lt.s32.totalorder %s19, 1
        %s276 = scalar_select %p275, %s19, 1
        %s277 = smul.addr %s276, 12
        %s278 = smul.addr %s277, 4
        %s279 = scalar_lea.vmem %s5, %s278
        %v281 = vld [vmem:[%s274] sm:$0xff]
        %v282 = vld [vmem:[%s274 + $0x8] sm:$0xff]
        %v283 = vld [vmem:[%s274 + $0x10] sm:$0xff]
        %v284 = vld [vmem:[%s274 + $0x18] sm:$0xf]
        %v285 = vld [vmem:[%s274 + $0x20] sm:$0xff]
        %v286 = vld [vmem:[%s274 + $0x28] sm:$0xff]
        %v287 = vld [vmem:[%s274 + $0x30] sm:$0xff]
        %v288 = vld [vmem:[%s274 + $0x38] sm:$0xf]
        %v289 = vld [vmem:[%s274 + $0x40] sm:$0xff]
        %v290 = vld [vmem:[%s274 + $0x48] sm:$0xff]
        %v291 = vld [vmem:[%s274 + $0x50] sm:$0xff]
        %v292 = vld [vmem:[%s274 + $0x58] sm:$0xf]
        %v293 = vld [vmem:[%s274 + $0x60] sm:$0xff]
        %v294 = vld [vmem:[%s274 + $0x68] sm:$0xff]
        %v295 = vld [vmem:[%s274 + $0x70] sm:$0xff]
        %v296 = vld [vmem:[%s274 + $0x78] sm:$0xf]
        %v297 = vld [vmem:[%s274 + $0x80] sm:$0xff]
        %v298 = vld [vmem:[%s274 + $0x88] sm:$0xff]
        %v299 = vld [vmem:[%s274 + $0x90] sm:$0xff]
        %v300 = vld [vmem:[%s274 + $0x98] sm:$0xf]
        %v301 = vld [vmem:[%s274 + $0xa0] sm:$0xff]
        %v302 = vld [vmem:[%s274 + $0xa8] sm:$0xff]
        %v303 = vld [vmem:[%s274 + $0xb0] sm:$0xff]
        %v304 = vld [vmem:[%s274 + $0xb8] sm:$0xf]
        %v305 = vld [vmem:[%s274 + $0xc0] sm:$0xff]
        %v306 = vld [vmem:[%s274 + $0xc8] sm:$0xff]
        %v307 = vld [vmem:[%s274 + $0xd0] sm:$0xff]
        %v308 = vld [vmem:[%s274 + $0xd8] sm:$0xf]
        %v309 = vld [vmem:[%s274 + $0xe0] sm:$0xff]
        %v310 = vld [vmem:[%s274 + $0xe8] sm:$0xff]
        %v311 = vld [vmem:[%s274 + $0xf0] sm:$0xff]
        %v312 = vld [vmem:[%s274 + $0xf8] sm:$0xf]
        %v313 = vld [vmem:[%s274 + $0x100] sm:$0xff]
        %v314 = vld [vmem:[%s274 + $0x108] sm:$0xff]
        %v315 = vld [vmem:[%s274 + $0x110] sm:$0xff]
        %v316 = vld [vmem:[%s274 + $0x118] sm:$0xf]
        %v317 = vld [vmem:[%s274 + $0x120] sm:$0xff]
        %v318 = vld [vmem:[%s274 + $0x128] sm:$0xff]
        %v319 = vld [vmem:[%s274 + $0x130] sm:$0xff]
        %v320 = vld [vmem:[%s274 + $0x138] sm:$0xf]
        %v321 = vld [vmem:[%s274 + $0x140] sm:$0xff]
        %v322 = vld [vmem:[%s274 + $0x148] sm:$0xff]
        %v323 = vld [vmem:[%s274 + $0x150] sm:$0xff]
        %v324 = vld [vmem:[%s274 + $0x158] sm:$0xf]
        %v325 = vld [vmem:[%s274 + $0x160] sm:$0xff]
        %v326 = vld [vmem:[%s274 + $0x168] sm:$0xff]
        %v327 = vld [vmem:[%s274 + $0x170] sm:$0xff]
        %v328 = vld [vmem:[%s274 + $0x178] sm:$0xf]
        %v329 = vld [vmem:[%s274 + $0x180] sm:$0xff]
        %v330 = vld [vmem:[%s274 + $0x188] sm:$0xff]
        %v331 = vld [vmem:[%s274 + $0x190] sm:$0xff]
        %v332 = vld [vmem:[%s274 + $0x198] sm:$0xf]
        %v333 = vld [vmem:[%s274 + $0x1a0] sm:$0xff]
        %v334 = vld [vmem:[%s274 + $0x1a8] sm:$0xff]
        %v335 = vld [vmem:[%s274 + $0x1b0] sm:$0xff]
        %v336 = vld [vmem:[%s274 + $0x1b8] sm:$0xf]
        %v337 = vld [vmem:[%s274 + $0x1c0] sm:$0xff]
        %v338 = vld [vmem:[%s274 + $0x1c8] sm:$0xff]
        %v339 = vld [vmem:[%s274 + $0x1d0] sm:$0xff]
        %v340 = vld [vmem:[%s274 + $0x1d8] sm:$0xf]
        %v341 = vld [vmem:[%s274 + $0x1e0] sm:$0xff]
        %v342 = vld [vmem:[%s274 + $0x1e8] sm:$0xff]
        %v343 = vld [vmem:[%s274 + $0x1f0] sm:$0xff]
        %v344 = vld [vmem:[%s274 + $0x1f8] sm:$0xf]
        %v345 = vld [vmem:[%s274 + $0x200] sm:$0xff]
        %v346 = vld [vmem:[%s274 + $0x208] sm:$0xff]
        %v347 = vld [vmem:[%s274 + $0x210] sm:$0xff]
        %v348 = vld [vmem:[%s274 + $0x218] sm:$0xf]
        %v349 = vld [vmem:[%s274 + $0x220] sm:$0xff]
        %v350 = vld [vmem:[%s274 + $0x228] sm:$0xff]
        %v351 = vld [vmem:[%s274 + $0x230] sm:$0xff]
        %v352 = vld [vmem:[%s274 + $0x238] sm:$0xf]
        %v353 = vld [vmem:[%s274 + $0x240] sm:$0xff]
        %v354 = vld [vmem:[%s274 + $0x248] sm:$0xff]
        %v355 = vld [vmem:[%s274 + $0x250] sm:$0xff]
        %v356 = vld [vmem:[%s274 + $0x258] sm:$0xf]
        %v357 = vld [vmem:[%s274 + $0x260] sm:$0xff]
        %v358 = vld [vmem:[%s274 + $0x268] sm:$0xff]
        %v359 = vld [vmem:[%s274 + $0x270] sm:$0xff]
        %v360 = vld [vmem:[%s274 + $0x278] sm:$0xf]
        %v361 = vld [vmem:[%s274 + $0x280] sm:$0xff]
        %v362 = vld [vmem:[%s274 + $0x288] sm:$0xff]
        %v363 = vld [vmem:[%s274 + $0x290] sm:$0xff]
        %v364 = vld [vmem:[%s274 + $0x298] sm:$0xf]
        %v365 = vld [vmem:[%s274 + $0x2a0] sm:$0xff]
        %v366 = vld [vmem:[%s274 + $0x2a8] sm:$0xff]
        %v367 = vld [vmem:[%s274 + $0x2b0] sm:$0xff]
        %v368 = vld [vmem:[%s274 + $0x2b8] sm:$0xf]
        %v369 = vld [vmem:[%s274 + $0x2c0] sm:$0xff]
        %v370 = vld [vmem:[%s274 + $0x2c8] sm:$0xff]
        %v371 = vld [vmem:[%s274 + $0x2d0] sm:$0xff]
        %v372 = vld [vmem:[%s274 + $0x2d8] sm:$0xf]
        %v373 = vld [vmem:[%s274 + $0x2e0] sm:$0xff]
        %v374 = vld [vmem:[%s274 + $0x2e8] sm:$0xff]
        %v375 = vld [vmem:[%s274 + $0x2f0] sm:$0xff]
        %v376 = vld [vmem:[%s274 + $0x2f8] sm:$0xf]
        %v377 = vld [vmem:[%s274 + $0x300] sm:$0xff]
        %v378 = vld [vmem:[%s274 + $0x308] sm:$0xff]
        %v379 = vld [vmem:[%s274 + $0x310] sm:$0xff]
        %v380 = vld [vmem:[%s274 + $0x318] sm:$0xf]
        %v381 = vld [vmem:[%s274 + $0x320] sm:$0xff]
        %v382 = vld [vmem:[%s274 + $0x328] sm:$0xff]
        %v383 = vld [vmem:[%s274 + $0x330] sm:$0xff]
        %v384 = vld [vmem:[%s274 + $0x338] sm:$0xf]
        %v385 = vld [vmem:[%s274 + $0x340] sm:$0xff]
        %v386 = vld [vmem:[%s274 + $0x348] sm:$0xff]
        %v387 = vld [vmem:[%s274 + $0x350] sm:$0xff]
        %v388 = vld [vmem:[%s274 + $0x358] sm:$0xf]
        %v389 = vld [vmem:[%s274 + $0x360] sm:$0xff]
        %v390 = vld [vmem:[%s274 + $0x368] sm:$0xff]
        %v391 = vld [vmem:[%s274 + $0x370] sm:$0xff]
        %v392 = vld [vmem:[%s274 + $0x378] sm:$0xf]
        %v393 = vld [vmem:[#allocation2] sm:$0xff]
        %v394 = vld [vmem:[#allocation2 + $0x8] sm:$0x1]
        %v395 = vld [vmem:[#allocation6] sm:$0xf]
        %v396 = vld [vmem:[#allocation6 + $0x4] sm:$0xf]
        %v397 = vld [vmem:[#allocation6 + $0x8] sm:$0xf]
        %v398 = vld [vmem:[#allocation6 + $0xc] sm:$0xf]
        %v399 = vld [vmem:[#allocation6 + $0x10] sm:$0xf]
        %v400 = vld [vmem:[#allocation6 + $0x14] sm:$0xf]
        %v401 = vld [vmem:[#allocation6 + $0x18] sm:$0xf]
        %v402 = vld [vmem:[#allocation6 + $0x1c] sm:$0xf]
        %v403 = vld [vmem:[#allocation6 + $0x20] sm:$0xf]
        %v404 = vld [vmem:[#allocation6 + $0x24] sm:$0xf]
        %v405 = vld [vmem:[#allocation6 + $0x28] sm:$0xf]
        %v406 = vld [vmem:[#allocation6 + $0x2c] sm:$0xf]
        %v407 = vld [vmem:[#allocation6 + $0x30] sm:$0xf]
        %v408 = vld [vmem:[#allocation6 + $0x34] sm:$0xf]
        %v409 = vld [vmem:[#allocation6 + $0x38] sm:$0xf]
        %v410 = vld [vmem:[#allocation6 + $0x3c] sm:$0xf]
        %v411 = vld [vmem:[#allocation6 + $0x40] sm:$0xf]
        %v412 = vld [vmem:[#allocation6 + $0x44] sm:$0xf]
        %v413 = vld [vmem:[#allocation6 + $0x48] sm:$0xf]
        %v414 = vld [vmem:[#allocation6 + $0x4c] sm:$0xf]
        %v415 = vld [vmem:[#allocation6 + $0x50] sm:$0xf]
        %v416 = vld [vmem:[#allocation6 + $0x54] sm:$0xf]
        %v417 = vld [vmem:[#allocation6 + $0x58] sm:$0xf]
        %v418 = vld [vmem:[#allocation6 + $0x5c] sm:$0xf]
        %v419 = vld [vmem:[#allocation6 + $0x60] sm:$0xf]
        %v420 = vld [vmem:[#allocation6 + $0x64] sm:$0xf]
        %v421 = vld [vmem:[#allocation6 + $0x68] sm:$0xf]
        %v422 = vld [vmem:[#allocation6 + $0x6c] sm:$0xf]
        %v423 = vld [vmem:[#allocation6 + $0x70] sm:$0xf]
        %v424 = vld [vmem:[#allocation6 + $0x74] sm:$0xf]
        %v425 = vld [vmem:[#allocation6 + $0x78] sm:$0xf]
        %v426 = vld [vmem:[#allocation6 + $0x7c] sm:$0xf]
        %v427 = vld [vmem:[#allocation6 + $0x80] sm:$0xf]
        %v428 = vld [vmem:[#allocation6 + $0x84] sm:$0xf]
        %v429 = vld [vmem:[#allocation6 + $0x88] sm:$0xf]
        %v430 = vld [vmem:[#allocation6 + $0x8c] sm:$0xf]
        %432 = vset.pattern.permute.xlu0 0
        %433 = vperm.xlu0 %432, %v281
        %v434 = vpop.permute.xlu0 %433
        %437 = vset.pattern.permute.xlu0 0
        %438 = vperm.xlu0 %437, %v282
        %v439 = vpop.permute.xlu0 %438
        %442 = vset.pattern.permute.xlu0 0
        %443 = vperm.xlu0 %442, %v283
        %v444 = vpop.permute.xlu0 %443
        %447 = vset.pattern.permute.xlu0 0
        %448 = vperm.xlu0 %447, %v284
        %v449 = vpop.permute.xlu0 %448
        %452 = vset.pattern.permute.xlu0 0
        %453 = vperm.xlu0 %452, %v285
        %v454 = vpop.permute.xlu0 %453
        %457 = vset.pattern.permute.xlu0 0
        %458 = vperm.xlu0 %457, %v286
        %v459 = vpop.permute.xlu0 %458
        %462 = vset.pattern.permute.xlu0 0
        %463 = vperm.xlu0 %462, %v287
        %v464 = vpop.permute.xlu0 %463
        %467 = vset.pattern.permute.xlu0 0
        %468 = vperm.xlu0 %467, %v288
        %v469 = vpop.permute.xlu0 %468
        %472 = vset.pattern.permute.xlu0 0
        %473 = vperm.xlu0 %472, %v289
        %v474 = vpop.permute.xlu0 %473
        %477 = vset.pattern.permute.xlu0 0
        %478 = vperm.xlu0 %477, %v290
        %v479 = vpop.permute.xlu0 %478
        %482 = vset.pattern.permute.xlu0 0
        %483 = vperm.xlu0 %482, %v291
        %v484 = vpop.permute.xlu0 %483
        %487 = vset.pattern.permute.xlu0 0
        %488 = vperm.xlu0 %487, %v292
        %v489 = vpop.permute.xlu0 %488
        %492 = vset.pattern.permute.xlu0 0
        %493 = vperm.xlu0 %492, %v293
        %v494 = vpop.permute.xlu0 %493
        %497 = vset.pattern.permute.xlu0 0
        %498 = vperm.xlu0 %497, %v294
        %v499 = vpop.permute.xlu0 %498
        %502 = vset.pattern.permute.xlu0 0
        %503 = vperm.xlu0 %502, %v295
        %v504 = vpop.permute.xlu0 %503
        %507 = vset.pattern.permute.xlu0 0
        %508 = vperm.xlu0 %507, %v296
        %v509 = vpop.permute.xlu0 %508
        %512 = vset.pattern.permute.xlu0 0
        %513 = vperm.xlu0 %512, %v297
        %v514 = vpop.permute.xlu0 %513
        %517 = vset.pattern.permute.xlu0 0
        %518 = vperm.xlu0 %517, %v298
        %v519 = vpop.permute.xlu0 %518
        %522 = vset.pattern.permute.xlu0 0
        %523 = vperm.xlu0 %522, %v299
        %v524 = vpop.permute.xlu0 %523
        %527 = vset.pattern.permute.xlu0 0
        %528 = vperm.xlu0 %527, %v300
        %v529 = vpop.permute.xlu0 %528
        %532 = vset.pattern.permute.xlu0 0
        %533 = vperm.xlu0 %532, %v301
        %v534 = vpop.permute.xlu0 %533
        %537 = vset.pattern.permute.xlu0 0
        %538 = vperm.xlu0 %537, %v302
        %v539 = vpop.permute.xlu0 %538
        %542 = vset.pattern.permute.xlu0 0
        %543 = vperm.xlu0 %542, %v303
        %v544 = vpop.permute.xlu0 %543
        %547 = vset.pattern.permute.xlu0 0
        %548 = vperm.xlu0 %547, %v304
        %v549 = vpop.permute.xlu0 %548
        %552 = vset.pattern.permute.xlu0 0
        %553 = vperm.xlu0 %552, %v305
        %v554 = vpop.permute.xlu0 %553
        %557 = vset.pattern.permute.xlu0 0
        %558 = vperm.xlu0 %557, %v306
        %v559 = vpop.permute.xlu0 %558
        %562 = vset.pattern.permute.xlu0 0
        %563 = vperm.xlu0 %562, %v307
        %v564 = vpop.permute.xlu0 %563
        %567 = vset.pattern.permute.xlu0 0
        %568 = vperm.xlu0 %567, %v308
        %v569 = vpop.permute.xlu0 %568
        %572 = vset.pattern.permute.xlu0 0
        %573 = vperm.xlu0 %572, %v309
        %v574 = vpop.permute.xlu0 %573
        %577 = vset.pattern.permute.xlu0 0
        %578 = vperm.xlu0 %577, %v310
        %v579 = vpop.permute.xlu0 %578
        %582 = vset.pattern.permute.xlu0 0
        %583 = vperm.xlu0 %582, %v311
        %v584 = vpop.permute.xlu0 %583
        %587 = vset.pattern.permute.xlu0 0
        %588 = vperm.xlu0 %587, %v312
        %v589 = vpop.permute.xlu0 %588
        %592 = vset.pattern.permute.xlu0 0
        %593 = vperm.xlu0 %592, %v313
        %v594 = vpop.permute.xlu0 %593
        %597 = vset.pattern.permute.xlu0 0
        %598 = vperm.xlu0 %597, %v314
        %v599 = vpop.permute.xlu0 %598
        %602 = vset.pattern.permute.xlu0 0
        %603 = vperm.xlu0 %602, %v315
        %v604 = vpop.permute.xlu0 %603
        %607 = vset.pattern.permute.xlu0 0
        %608 = vperm.xlu0 %607, %v316
        %v609 = vpop.permute.xlu0 %608
        %612 = vset.pattern.permute.xlu0 0
        %613 = vperm.xlu0 %612, %v317
        %v614 = vpop.permute.xlu0 %613
        %617 = vset.pattern.permute.xlu0 0
        %618 = vperm.xlu0 %617, %v318
        %v619 = vpop.permute.xlu0 %618
        %622 = vset.pattern.permute.xlu0 0
        %623 = vperm.xlu0 %622, %v319
        %v624 = vpop.permute.xlu0 %623
        %627 = vset.pattern.permute.xlu0 0
        %628 = vperm.xlu0 %627, %v320
        %v629 = vpop.permute.xlu0 %628
        %632 = vset.pattern.permute.xlu0 0
        %633 = vperm.xlu0 %632, %v321
        %v634 = vpop.permute.xlu0 %633
        %637 = vset.pattern.permute.xlu0 0
        %638 = vperm.xlu0 %637, %v322
        %v639 = vpop.permute.xlu0 %638
        %642 = vset.pattern.permute.xlu0 0
        %643 = vperm.xlu0 %642, %v323
        %v644 = vpop.permute.xlu0 %643
        %647 = vset.pattern.permute.xlu0 0
        %648 = vperm.xlu0 %647, %v324
        %v649 = vpop.permute.xlu0 %648
        %652 = vset.pattern.permute.xlu0 0
        %653 = vperm.xlu0 %652, %v325
        %v654 = vpop.permute.xlu0 %653
        %657 = vset.pattern.permute.xlu0 0
        %658 = vperm.xlu0 %657, %v326
        %v659 = vpop.permute.xlu0 %658
        %662 = vset.pattern.permute.xlu0 0
        %663 = vperm.xlu0 %662, %v327
        %v664 = vpop.permute.xlu0 %663
        %667 = vset.pattern.permute.xlu0 0
        %668 = vperm.xlu0 %667, %v328
        %v669 = vpop.permute.xlu0 %668
        %672 = vset.pattern.permute.xlu0 0
        %673 = vperm.xlu0 %672, %v329
        %v674 = vpop.permute.xlu0 %673
        %677 = vset.pattern.permute.xlu0 0
        %678 = vperm.xlu0 %677, %v330
        %v679 = vpop.permute.xlu0 %678
        %682 = vset.pattern.permute.xlu0 0
        %683 = vperm.xlu0 %682, %v331
        %v684 = vpop.permute.xlu0 %683
        %687 = vset.pattern.permute.xlu0 0
        %688 = vperm.xlu0 %687, %v332
        %v689 = vpop.permute.xlu0 %688
        %692 = vset.pattern.permute.xlu0 0
        %693 = vperm.xlu0 %692, %v333
        %v694 = vpop.permute.xlu0 %693
        %697 = vset.pattern.permute.xlu0 0
        %698 = vperm.xlu0 %697, %v334
        %v699 = vpop.permute.xlu0 %698
        %702 = vset.pattern.permute.xlu0 0
        %703 = vperm.xlu0 %702, %v335
        %v704 = vpop.permute.xlu0 %703
        %707 = vset.pattern.permute.xlu0 0
        %708 = vperm.xlu0 %707, %v336
        %v709 = vpop.permute.xlu0 %708
        %712 = vset.pattern.permute.xlu0 0
        %713 = vperm.xlu0 %712, %v337
        %v714 = vpop.permute.xlu0 %713
        %717 = vset.pattern.permute.xlu0 0
        %718 = vperm.xlu0 %717, %v338
        %v719 = vpop.permute.xlu0 %718
        %722 = vset.pattern.permute.xlu0 0
        %723 = vperm.xlu0 %722, %v339
        %v724 = vpop.permute.xlu0 %723
        %727 = vset.pattern.permute.xlu0 0
        %728 = vperm.xlu0 %727, %v340
        %v729 = vpop.permute.xlu0 %728
        %732 = vset.pattern.permute.xlu0 0
        %733 = vperm.xlu0 %732, %v341
        %v734 = vpop.permute.xlu0 %733
        %737 = vset.pattern.permute.xlu0 0
        %738 = vperm.xlu0 %737, %v342
        %v739 = vpop.permute.xlu0 %738
        %742 = vset.pattern.permute.xlu0 0
        %743 = vperm.xlu0 %742, %v343
        %v744 = vpop.permute.xlu0 %743
        %747 = vset.pattern.permute.xlu0 0
        %748 = vperm.xlu0 %747, %v344
        %v749 = vpop.permute.xlu0 %748
        %752 = vset.pattern.permute.xlu0 0
        %753 = vperm.xlu0 %752, %v345
        %v754 = vpop.permute.xlu0 %753
        %757 = vset.pattern.permute.xlu0 0
        %758 = vperm.xlu0 %757, %v346
        %v759 = vpop.permute.xlu0 %758
        %762 = vset.pattern.permute.xlu0 0
        %763 = vperm.xlu0 %762, %v347
        %v764 = vpop.permute.xlu0 %763
        %767 = vset.pattern.permute.xlu0 0
        %768 = vperm.xlu0 %767, %v348
        %v769 = vpop.permute.xlu0 %768
        %772 = vset.pattern.permute.xlu0 0
        %773 = vperm.xlu0 %772, %v349
        %v774 = vpop.permute.xlu0 %773
        %777 = vset.pattern.permute.xlu0 0
        %778 = vperm.xlu0 %777, %v350
        %v779 = vpop.permute.xlu0 %778
        %782 = vset.pattern.permute.xlu0 0
        %783 = vperm.xlu0 %782, %v351
        %v784 = vpop.permute.xlu0 %783
        %787 = vset.pattern.permute.xlu0 0
        %788 = vperm.xlu0 %787, %v352
        %v789 = vpop.permute.xlu0 %788
        %792 = vset.pattern.permute.xlu0 0
        %793 = vperm.xlu0 %792, %v353
        %v794 = vpop.permute.xlu0 %793
        %797 = vset.pattern.permute.xlu0 0
        %798 = vperm.xlu0 %797, %v354
        %v799 = vpop.permute.xlu0 %798
        %802 = vset.pattern.permute.xlu0 0
        %803 = vperm.xlu0 %802, %v355
        %v804 = vpop.permute.xlu0 %803
        %807 = vset.pattern.permute.xlu0 0
        %808 = vperm.xlu0 %807, %v356
        %v809 = vpop.permute.xlu0 %808
        %812 = vset.pattern.permute.xlu0 0
        %813 = vperm.xlu0 %812, %v357
        %v814 = vpop.permute.xlu0 %813
        %817 = vset.pattern.permute.xlu0 0
        %818 = vperm.xlu0 %817, %v358
        %v819 = vpop.permute.xlu0 %818
        %822 = vset.pattern.permute.xlu0 0
        %823 = vperm.xlu0 %822, %v359
        %v824 = vpop.permute.xlu0 %823
        %827 = vset.pattern.permute.xlu0 0
        %828 = vperm.xlu0 %827, %v360
        %v829 = vpop.permute.xlu0 %828
        %832 = vset.pattern.permute.xlu0 0
        %833 = vperm.xlu0 %832, %v361
        %v834 = vpop.permute.xlu0 %833
        %837 = vset.pattern.permute.xlu0 0
        %838 = vperm.xlu0 %837, %v362
        %v839 = vpop.permute.xlu0 %838
        %842 = vset.pattern.permute.xlu0 0
        %843 = vperm.xlu0 %842, %v363
        %v844 = vpop.permute.xlu0 %843
        %847 = vset.pattern.permute.xlu0 0
        %848 = vperm.xlu0 %847, %v364
        %v849 = vpop.permute.xlu0 %848
        %852 = vset.pattern.permute.xlu0 0
        %853 = vperm.xlu0 %852, %v365
        %v854 = vpop.permute.xlu0 %853
        %857 = vset.pattern.permute.xlu0 0
        %858 = vperm.xlu0 %857, %v366
        %v859 = vpop.permute.xlu0 %858
        %862 = vset.pattern.permute.xlu0 0
        %863 = vperm.xlu0 %862, %v367
        %v864 = vpop.permute.xlu0 %863
        %867 = vset.pattern.permute.xlu0 0
        %868 = vperm.xlu0 %867, %v368
        %v869 = vpop.permute.xlu0 %868
        %872 = vset.pattern.permute.xlu0 0
        %873 = vperm.xlu0 %872, %v369
        %v874 = vpop.permute.xlu0 %873
        %877 = vset.pattern.permute.xlu0 0
        %878 = vperm.xlu0 %877, %v370
        %v879 = vpop.permute.xlu0 %878
        %882 = vset.pattern.permute.xlu0 0
        %883 = vperm.xlu0 %882, %v371
        %v884 = vpop.permute.xlu0 %883
        %887 = vset.pattern.permute.xlu0 0
        %888 = vperm.xlu0 %887, %v372
        %v889 = vpop.permute.xlu0 %888
        %892 = vset.pattern.permute.xlu0 0
        %893 = vperm.xlu0 %892, %v373
        %v894 = vpop.permute.xlu0 %893
        %897 = vset.pattern.permute.xlu0 0
        %898 = vperm.xlu0 %897, %v374
        %v899 = vpop.permute.xlu0 %898
        %902 = vset.pattern.permute.xlu0 0
        %903 = vperm.xlu0 %902, %v375
        %v904 = vpop.permute.xlu0 %903
        %907 = vset.pattern.permute.xlu0 0
        %908 = vperm.xlu0 %907, %v376
        %v909 = vpop.permute.xlu0 %908
        %912 = vset.pattern.permute.xlu0 0
        %913 = vperm.xlu0 %912, %v377
        %v914 = vpop.permute.xlu0 %913
        %917 = vset.pattern.permute.xlu0 0
        %918 = vperm.xlu0 %917, %v378
        %v919 = vpop.permute.xlu0 %918
        %922 = vset.pattern.permute.xlu0 0
        %923 = vperm.xlu0 %922, %v379
        %v924 = vpop.permute.xlu0 %923
        %927 = vset.pattern.permute.xlu0 0
        %928 = vperm.xlu0 %927, %v380
        %v929 = vpop.permute.xlu0 %928
        %932 = vset.pattern.permute.xlu0 0
        %933 = vperm.xlu0 %932, %v381
        %v934 = vpop.permute.xlu0 %933
        %937 = vset.pattern.permute.xlu0 0
        %938 = vperm.xlu0 %937, %v382
        %v939 = vpop.permute.xlu0 %938
        %942 = vset.pattern.permute.xlu0 0
        %943 = vperm.xlu0 %942, %v383
        %v944 = vpop.permute.xlu0 %943
        %947 = vset.pattern.permute.xlu0 0
        %948 = vperm.xlu0 %947, %v384
        %v949 = vpop.permute.xlu0 %948
        %v951 = vlaneseq
        %v952 = vshrl.u32 %v951, 7
        %v953 = vsub.s32 0, %v952
        %v954 = vrot.slane %v393, %v953
        %v955 = vmul.f32 %v434, %v954
        %v956 = vmul.f32 %v439, %v954
        %v957 = vmul.f32 %v444, %v954
        %v958 = vmul.f32 %v449, %v954
        %v959 = vmul.f32 %v454, %v954
        %v960 = vmul.f32 %v459, %v954
        %v961 = vmul.f32 %v464, %v954
        %v962 = vmul.f32 %v469, %v954
        %v963 = vmul.f32 %v474, %v954
        %v964 = vmul.f32 %v479, %v954
        %v965 = vmul.f32 %v484, %v954
        %v966 = vmul.f32 %v489, %v954
        %v967 = vmul.f32 %v494, %v954
        %v968 = vmul.f32 %v499, %v954
        %v969 = vmul.f32 %v504, %v954
        %v970 = vmul.f32 %v509, %v954
        %v971 = vmul.f32 %v514, %v954
        %v972 = vmul.f32 %v519, %v954
        %v973 = vmul.f32 %v524, %v954
        %v974 = vmul.f32 %v529, %v954
        %v975 = vmul.f32 %v534, %v954
        %v976 = vmul.f32 %v539, %v954
        %v977 = vmul.f32 %v544, %v954
        %v978 = vmul.f32 %v549, %v954
        %v979 = vmul.f32 %v554, %v954
        %v980 = vmul.f32 %v559, %v954
        %v981 = vmul.f32 %v564, %v954
        %v982 = vmul.f32 %v569, %v954
        %v983 = vmul.f32 %v574, %v954
        %v984 = vmul.f32 %v579, %v954
        %v985 = vmul.f32 %v584, %v954
        %v986 = vmul.f32 %v589, %v954
        %v987 = vmul.f32 %v594, %v954
        %v988 = vmul.f32 %v599, %v954
        %v989 = vmul.f32 %v604, %v954
        %v990 = vmul.f32 %v609, %v954
        %v991 = vmul.f32 %v614, %v954
        %v992 = vmul.f32 %v619, %v954
        %v993 = vmul.f32 %v624, %v954
        %v994 = vmul.f32 %v629, %v954
        %v995 = vmul.f32 %v634, %v954
        %v996 = vmul.f32 %v639, %v954
        %v997 = vmul.f32 %v644, %v954
        %v998 = vmul.f32 %v649, %v954
        %v999 = vmul.f32 %v654, %v954
        %v1000 = vmul.f32 %v659, %v954
        %v1001 = vmul.f32 %v664, %v954
        %v1002 = vmul.f32 %v669, %v954
        %v1003 = vmul.f32 %v674, %v954
        %v1004 = vmul.f32 %v679, %v954
        %v1005 = vmul.f32 %v684, %v954
        %v1006 = vmul.f32 %v689, %v954
        %v1007 = vmul.f32 %v694, %v954
        %v1008 = vmul.f32 %v699, %v954
        %v1009 = vmul.f32 %v704, %v954
        %v1010 = vmul.f32 %v709, %v954
        %v1011 = vmul.f32 %v714, %v954
        %v1012 = vmul.f32 %v719, %v954
        %v1013 = vmul.f32 %v724, %v954
        %v1014 = vmul.f32 %v729, %v954
        %v1015 = vmul.f32 %v734, %v954
        %v1016 = vmul.f32 %v739, %v954
        %v1017 = vmul.f32 %v744, %v954
        %v1018 = vmul.f32 %v749, %v954
        %v1019 = vmul.f32 %v754, %v954
        %v1020 = vmul.f32 %v759, %v954
        %v1021 = vmul.f32 %v764, %v954
        %v1022 = vmul.f32 %v769, %v954
        %v1023 = vmul.f32 %v774, %v954
        %v1024 = vmul.f32 %v779, %v954
        %v1025 = vmul.f32 %v784, %v954
        %v1026 = vmul.f32 %v789, %v954
        %v1027 = vmul.f32 %v794, %v954
        %v1028 = vmul.f32 %v799, %v954
        %v1029 = vmul.f32 %v804, %v954
        %v1030 = vmul.f32 %v809, %v954
        %v1031 = vmul.f32 %v814, %v954
        %v1032 = vmul.f32 %v819, %v954
        %v1033 = vmul.f32 %v824, %v954
        %v1034 = vmul.f32 %v829, %v954
        %v1035 = vmul.f32 %v834, %v954
        %v1036 = vmul.f32 %v839, %v954
        %v1037 = vmul.f32 %v844, %v954
        %v1038 = vmul.f32 %v849, %v954
        %v1039 = vmul.f32 %v854, %v954
        %v1040 = vmul.f32 %v859, %v954
        %v1041 = vmul.f32 %v864, %v954
        %v1042 = vmul.f32 %v869, %v954
        %v1043 = vmul.f32 %v874, %v954
        %v1044 = vmul.f32 %v879, %v954
        %v1045 = vmul.f32 %v884, %v954
        %v1046 = vmul.f32 %v889, %v954
        %v1047 = vmul.f32 %v894, %v954
        %v1048 = vmul.f32 %v899, %v954
        %v1049 = vmul.f32 %v904, %v954
        %v1050 = vmul.f32 %v909, %v954
        %v1051 = vmul.f32 %v914, %v954
        %v1052 = vmul.f32 %v919, %v954
        %v1053 = vmul.f32 %v924, %v954
        %v1054 = vmul.f32 %v929, %v954
        %v1055 = vmul.f32 %v934, %v954
        %v1056 = vmul.f32 %v939, %v954
        %v1057 = vmul.f32 %v944, %v954
        %v1058 = vmul.f32 %v949, %v954
        %v1059 = vadd.f32 %v955, 0.0
        %v1060 = vadd.f32 %v956, 0.0
        %v1061 = vadd.f32 %v957, 0.0
        %v1062 = vadd.f32 %v958, 0.0
        %v1063 = vadd.f32 %v959, 0.0
        %v1064 = vadd.f32 %v960, 0.0
        %v1065 = vadd.f32 %v961, 0.0
        %v1066 = vadd.f32 %v962, 0.0
        %v1067 = vadd.f32 %v963, 0.0
        %v1068 = vadd.f32 %v964, 0.0
        %v1069 = vadd.f32 %v965, 0.0
        %v1070 = vadd.f32 %v966, 0.0
        %v1071 = vadd.f32 %v967, 0.0
        %v1072 = vadd.f32 %v968, 0.0
        %v1073 = vadd.f32 %v969, 0.0
        %v1074 = vadd.f32 %v970, 0.0
        %v1075 = vadd.f32 %v971, 0.0
        %v1076 = vadd.f32 %v972, 0.0
        %v1077 = vadd.f32 %v973, 0.0
        %v1078 = vadd.f32 %v974, 0.0
        %v1079 = vadd.f32 %v975, 0.0
        %v1080 = vadd.f32 %v976, 0.0
        %v1081 = vadd.f32 %v977, 0.0
        %v1082 = vadd.f32 %v978, 0.0
        %v1083 = vadd.f32 %v979, 0.0
        %v1084 = vadd.f32 %v980, 0.0
        %v1085 = vadd.f32 %v981, 0.0
        %v1086 = vadd.f32 %v982, 0.0
        %v1087 = vadd.f32 %v983, 0.0
        %v1088 = vadd.f32 %v984, 0.0
        %v1089 = vadd.f32 %v985, 0.0
        %v1090 = vadd.f32 %v986, 0.0
        %v1091 = vadd.f32 %v987, 0.0
        %v1092 = vadd.f32 %v988, 0.0
        %v1093 = vadd.f32 %v989, 0.0
        %v1094 = vadd.f32 %v990, 0.0
        %v1095 = vadd.f32 %v991, 0.0
        %v1096 = vadd.f32 %v992, 0.0
        %v1097 = vadd.f32 %v993, 0.0
        %v1098 = vadd.f32 %v994, 0.0
        %v1099 = vadd.f32 %v995, 0.0
        %v1100 = vadd.f32 %v996, 0.0
        %v1101 = vadd.f32 %v997, 0.0
        %v1102 = vadd.f32 %v998, 0.0
        %v1103 = vadd.f32 %v999, 0.0
        %v1104 = vadd.f32 %v1000, 0.0
        %v1105 = vadd.f32 %v1001, 0.0
        %v1106 = vadd.f32 %v1002, 0.0
        %v1107 = vadd.f32 %v1003, 0.0
        %v1108 = vadd.f32 %v1004, 0.0
        %v1109 = vadd.f32 %v1005, 0.0
        %v1110 = vadd.f32 %v1006, 0.0
        %v1111 = vadd.f32 %v1007, 0.0
        %v1112 = vadd.f32 %v1008, 0.0
        %v1113 = vadd.f32 %v1009, 0.0
        %v1114 = vadd.f32 %v1010, 0.0
        %v1115 = vadd.f32 %v1011, 0.0
        %v1116 = vadd.f32 %v1012, 0.0
        %v1117 = vadd.f32 %v1013, 0.0
        %v1118 = vadd.f32 %v1014, 0.0
        %v1119 = vadd.f32 %v1015, 0.0
        %v1120 = vadd.f32 %v1016, 0.0
        %v1121 = vadd.f32 %v1017, 0.0
        %v1122 = vadd.f32 %v1018, 0.0
        %v1123 = vadd.f32 %v1019, 0.0
        %v1124 = vadd.f32 %v1020, 0.0
        %v1125 = vadd.f32 %v1021, 0.0
        %v1126 = vadd.f32 %v1022, 0.0
        %v1127 = vadd.f32 %v1023, 0.0
        %v1128 = vadd.f32 %v1024, 0.0
        %v1129 = vadd.f32 %v1025, 0.0
        %v1130 = vadd.f32 %v1026, 0.0
        %v1131 = vadd.f32 %v1027, 0.0
        %v1132 = vadd.f32 %v1028, 0.0
        %v1133 = vadd.f32 %v1029, 0.0
        %v1134 = vadd.f32 %v1030, 0.0
        %v1135 = vadd.f32 %v1031, 0.0
        %v1136 = vadd.f32 %v1032, 0.0
        %v1137 = vadd.f32 %v1033, 0.0
        %v1138 = vadd.f32 %v1034, 0.0
        %v1139 = vadd.f32 %v1035, 0.0
        %v1140 = vadd.f32 %v1036, 0.0
        %v1141 = vadd.f32 %v1037, 0.0
        %v1142 = vadd.f32 %v1038, 0.0
        %v1143 = vadd.f32 %v1039, 0.0
        %v1144 = vadd.f32 %v1040, 0.0
        %v1145 = vadd.f32 %v1041, 0.0
        %v1146 = vadd.f32 %v1042, 0.0
        %v1147 = vadd.f32 %v1043, 0.0
        %v1148 = vadd.f32 %v1044, 0.0
        %v1149 = vadd.f32 %v1045, 0.0
        %v1150 = vadd.f32 %v1046, 0.0
        %v1151 = vadd.f32 %v1047, 0.0
        %v1152 = vadd.f32 %v1048, 0.0
        %v1153 = vadd.f32 %v1049, 0.0
        %v1154 = vadd.f32 %v1050, 0.0
        %v1155 = vadd.f32 %v1051, 0.0
        %v1156 = vadd.f32 %v1052, 0.0
        %v1157 = vadd.f32 %v1053, 0.0
        %v1158 = vadd.f32 %v1054, 0.0
        %v1159 = vadd.f32 %v1055, 0.0
        %v1160 = vadd.f32 %v1056, 0.0
        %v1161 = vadd.f32 %v1057, 0.0
        %v1162 = vadd.f32 %v1058, 0.0
        %v1163 = vlaneseq
        %v1164 = vshrl.u32 %v1163, 7
        %v1165 = vsub.s32 1, %v1164
        %v1166 = vrot.slane %v393, %v1165
        %v1167 = vmul.f32 %v434, %v1166
        %v1168 = vmul.f32 %v439, %v1166
        %v1169 = vmul.f32 %v444, %v1166
        %v1170 = vmul.f32 %v449, %v1166
        %v1171 = vmul.f32 %v454, %v1166
        %v1172 = vmul.f32 %v459, %v1166
        %v1173 = vmul.f32 %v464, %v1166
        %v1174 = vmul.f32 %v469, %v1166
        %v1175 = vmul.f32 %v474, %v1166
        %v1176 = vmul.f32 %v479, %v1166
        %v1177 = vmul.f32 %v484, %v1166
        %v1178 = vmul.f32 %v489, %v1166
        %v1179 = vmul.f32 %v494, %v1166
        %v1180 = vmul.f32 %v499, %v1166
        %v1181 = vmul.f32 %v504, %v1166
        %v1182 = vmul.f32 %v509, %v1166
        %v1183 = vmul.f32 %v514, %v1166
        %v1184 = vmul.f32 %v519, %v1166
        %v1185 = vmul.f32 %v524, %v1166
        %v1186 = vmul.f32 %v529, %v1166
        %v1187 = vmul.f32 %v534, %v1166
        %v1188 = vmul.f32 %v539, %v1166
        %v1189 = vmul.f32 %v544, %v1166
        %v1190 = vmul.f32 %v549, %v1166
        %v1191 = vmul.f32 %v554, %v1166
        %v1192 = vmul.f32 %v559, %v1166
        %v1193 = vmul.f32 %v564, %v1166
        %v1194 = vmul.f32 %v569, %v1166
        %v1195 = vmul.f32 %v574, %v1166
        %v1196 = vmul.f32 %v579, %v1166
        %v1197 = vmul.f32 %v584, %v1166
        %v1198 = vmul.f32 %v589, %v1166
        %v1199 = vmul.f32 %v594, %v1166
        %v1200 = vmul.f32 %v599, %v1166
        %v1201 = vmul.f32 %v604, %v1166
        %v1202 = vmul.f32 %v609, %v1166
        %v1203 = vmul.f32 %v614, %v1166
        %v1204 = vmul.f32 %v619, %v1166
        %v1205 = vmul.f32 %v624, %v1166
        %v1206 = vmul.f32 %v629, %v1166
        %v1207 = vmul.f32 %v634, %v1166
        %v1208 = vmul.f32 %v639, %v1166
        %v1209 = vmul.f32 %v644, %v1166
        %v1210 = vmul.f32 %v649, %v1166
        %v1211 = vmul.f32 %v654, %v1166
        %v1212 = vmul.f32 %v659, %v1166
        %v1213 = vmul.f32 %v664, %v1166
        %v1214 = vmul.f32 %v669, %v1166
        %v1215 = vmul.f32 %v674, %v1166
        %v1216 = vmul.f32 %v679, %v1166
        %v1217 = vmul.f32 %v684, %v1166
        %v1218 = vmul.f32 %v689, %v1166
        %v1219 = vmul.f32 %v694, %v1166
        %v1220 = vmul.f32 %v699, %v1166
        %v1221 = vmul.f32 %v704, %v1166
        %v1222 = vmul.f32 %v709, %v1166
        %v1223 = vmul.f32 %v714, %v1166
        %v1224 = vmul.f32 %v719, %v1166
        %v1225 = vmul.f32 %v724, %v1166
        %v1226 = vmul.f32 %v729, %v1166
        %v1227 = vmul.f32 %v734, %v1166
        %v1228 = vmul.f32 %v739, %v1166
        %v1229 = vmul.f32 %v744, %v1166
        %v1230 = vmul.f32 %v749, %v1166
        %v1231 = vmul.f32 %v754, %v1166
        %v1232 = vmul.f32 %v759, %v1166
        %v1233 = vmul.f32 %v764, %v1166
        %v1234 = vmul.f32 %v769, %v1166
        %v1235 = vmul.f32 %v774, %v1166
        %v1236 = vmul.f32 %v779, %v1166
        %v1237 = vmul.f32 %v784, %v1166
        %v1238 = vmul.f32 %v789, %v1166
        %v1239 = vmul.f32 %v794, %v1166
        %v1240 = vmul.f32 %v799, %v1166
        %v1241 = vmul.f32 %v804, %v1166
        %v1242 = vmul.f32 %v809, %v1166
        %v1243 = vmul.f32 %v814, %v1166
        %v1244 = vmul.f32 %v819, %v1166
        %v1245 = vmul.f32 %v824, %v1166
        %v1246 = vmul.f32 %v829, %v1166
        %v1247 = vmul.f32 %v834, %v1166
        %v1248 = vmul.f32 %v839, %v1166
        %v1249 = vmul.f32 %v844, %v1166
        %v1250 = vmul.f32 %v849, %v1166
        %v1251 = vmul.f32 %v854, %v1166
        %v1252 = vmul.f32 %v859, %v1166
        %v1253 = vmul.f32 %v864, %v1166
        %v1254 = vmul.f32 %v869, %v1166
        %v1255 = vmul.f32 %v874, %v1166
        %v1256 = vmul.f32 %v879, %v1166
        %v1257 = vmul.f32 %v884, %v1166
        %v1258 = vmul.f32 %v889, %v1166
        %v1259 = vmul.f32 %v894, %v1166
        %v1260 = vmul.f32 %v899, %v1166
        %v1261 = vmul.f32 %v904, %v1166
        %v1262 = vmul.f32 %v909, %v1166
        %v1263 = vmul.f32 %v914, %v1166
        %v1264 = vmul.f32 %v919, %v1166
        %v1265 = vmul.f32 %v924, %v1166
        %v1266 = vmul.f32 %v929, %v1166
        %v1267 = vmul.f32 %v934, %v1166
        %v1268 = vmul.f32 %v939, %v1166
        %v1269 = vmul.f32 %v944, %v1166
        %v1270 = vmul.f32 %v949, %v1166
        %vm1375 = vcmask 1046528
        %v1376 = vrot.slane %v1167, 1
        %v1377 = vrot.slane %v1168, 1
        %v1378 = vsel %vm1375, %v1376, %v1377
        %v1379 = vrot.slane %v1169, 1
        %v1380 = vsel %vm1375, %v1377, %v1379
        %v1381 = vrot.slane %v1170, 1
        %v1382 = vsel %vm1375, %v1379, %v1381
        %v1383 = vrot.slane %v1171, 1
        %v1384 = vrot.slane %v1172, 1
        %v1385 = vsel %vm1375, %v1383, %v1384
        %v1386 = vrot.slane %v1173, 1
        %v1387 = vsel %vm1375, %v1384, %v1386
        %v1388 = vrot.slane %v1174, 1
        %v1389 = vsel %vm1375, %v1386, %v1388
        %v1390 = vrot.slane %v1175, 1
        %v1391 = vrot.slane %v1176, 1
        %v1392 = vsel %vm1375, %v1390, %v1391
        %v1393 = vrot.slane %v1177, 1
        %v1394 = vsel %vm1375, %v1391, %v1393
        %v1395 = vrot.slane %v1178, 1
        %v1396 = vsel %vm1375, %v1393, %v1395
        %v1397 = vrot.slane %v1179, 1
        %v1398 = vrot.slane %v1180, 1
        %v1399 = vsel %vm1375, %v1397, %v1398
        %v1400 = vrot.slane %v1181, 1
        %v1401 = vsel %vm1375, %v1398, %v1400
        %v1402 = vrot.slane %v1182, 1
        %v1403 = vsel %vm1375, %v1400, %v1402
        %v1404 = vrot.slane %v1183, 1
        %v1405 = vrot.slane %v1184, 1
        %v1406 = vsel %vm1375, %v1404, %v1405
        %v1407 = vrot.slane %v1185, 1
        %v1408 = vsel %vm1375, %v1405, %v1407
        %v1409 = vrot.slane %v1186, 1
        %v1410 = vsel %vm1375, %v1407, %v1409
        %v1411 = vrot.slane %v1187, 1
        %v1412 = vrot.slane %v1188, 1
        %v1413 = vsel %vm1375, %v1411, %v1412
        %v1414 = vrot.slane %v1189, 1
        %v1415 = vsel %vm1375, %v1412, %v1414
        %v1416 = vrot.slane %v1190, 1
        %v1417 = vsel %vm1375, %v1414, %v1416
        %v1418 = vrot.slane %v1191, 1
        %v1419 = vrot.slane %v1192, 1
        %v1420 = vsel %vm1375, %v1418, %v1419
        %v1421 = vrot.slane %v1193, 1
        %v1422 = vsel %vm1375, %v1419, %v1421
        %v1423 = vrot.slane %v1194, 1
        %v1424 = vsel %vm1375, %v1421, %v1423
        %v1425 = vrot.slane %v1195, 1
        %v1426 = vrot.slane %v1196, 1
        %v1427 = vsel %vm1375, %v1425, %v1426
        %v1428 = vrot.slane %v1197, 1
        %v1429 = vsel %vm1375, %v1426, %v1428
        %v1430 = vrot.slane %v1198, 1
        %v1431 = vsel %vm1375, %v1428, %v1430
        %v1432 = vrot.slane %v1199, 1
        %v1433 = vrot.slane %v1200, 1
        %v1434 = vsel %vm1375, %v1432, %v1433
        %v1435 = vrot.slane %v1201, 1
        %v1436 = vsel %vm1375, %v1433, %v1435
        %v1437 = vrot.slane %v1202, 1
        %v1438 = vsel %vm1375, %v1435, %v1437
        %v1439 = vrot.slane %v1203, 1
        %v1440 = vrot.slane %v1204, 1
        %v1441 = vsel %vm1375, %v1439, %v1440
        %v1442 = vrot.slane %v1205, 1
        %v1443 = vsel %vm1375, %v1440, %v1442
        %v1444 = vrot.slane %v1206, 1
        %v1445 = vsel %vm1375, %v1442, %v1444
        %v1446 = vrot.slane %v1207, 1
        %v1447 = vrot.slane %v1208, 1
        %v1448 = vsel %vm1375, %v1446, %v1447
        %v1449 = vrot.slane %v1209, 1
        %v1450 = vsel %vm1375, %v1447, %v1449
        %v1451 = vrot.slane %v1210, 1
        %v1452 = vsel %vm1375, %v1449, %v1451
        %v1453 = vrot.slane %v1211, 1
        %v1454 = vrot.slane %v1212, 1
        %v1455 = vsel %vm1375, %v1453, %v1454
        %v1456 = vrot.slane %v1213, 1
        %v1457 = vsel %vm1375, %v1454, %v1456
        %v1458 = vrot.slane %v1214, 1
        %v1459 = vsel %vm1375, %v1456, %v1458
        %v1460 = vrot.slane %v1215, 1
        %v1461 = vrot.slane %v1216, 1
        %v1462 = vsel %vm1375, %v1460, %v1461
        %v1463 = vrot.slane %v1217, 1
        %v1464 = vsel %vm1375, %v1461, %v1463
        %v1465 = vrot.slane %v1218, 1
        %v1466 = vsel %vm1375, %v1463, %v1465
        %v1467 = vrot.slane %v1219, 1
        %v1468 = vrot.slane %v1220, 1
        %v1469 = vsel %vm1375, %v1467, %v1468
        %v1470 = vrot.slane %v1221, 1
        %v1471 = vsel %vm1375, %v1468, %v1470
        %v1472 = vrot.slane %v1222, 1
        %v1473 = vsel %vm1375, %v1470, %v1472
        %v1474 = vrot.slane %v1223, 1
        %v1475 = vrot.slane %v1224, 1
        %v1476 = vsel %vm1375, %v1474, %v1475
        %v1477 = vrot.slane %v1225, 1
        %v1478 = vsel %vm1375, %v1475, %v1477
        %v1479 = vrot.slane %v1226, 1
        %v1480 = vsel %vm1375, %v1477, %v1479
        %v1481 = vrot.slane %v1227, 1
        %v1482 = vrot.slane %v1228, 1
        %v1483 = vsel %vm1375, %v1481, %v1482
        %v1484 = vrot.slane %v1229, 1
        %v1485 = vsel %vm1375, %v1482, %v1484
        %v1486 = vrot.slane %v1230, 1
        %v1487 = vsel %vm1375, %v1484, %v1486
        %v1488 = vrot.slane %v1231, 1
        %v1489 = vrot.slane %v1232, 1
        %v1490 = vsel %vm1375, %v1488, %v1489
        %v1491 = vrot.slane %v1233, 1
        %v1492 = vsel %vm1375, %v1489, %v1491
        %v1493 = vrot.slane %v1234, 1
        %v1494 = vsel %vm1375, %v1491, %v1493
        %v1495 = vrot.slane %v1235, 1
        %v1496 = vrot.slane %v1236, 1
        %v1497 = vsel %vm1375, %v1495, %v1496
        %v1498 = vrot.slane %v1237, 1
        %v1499 = vsel %vm1375, %v1496, %v1498
        %v1500 = vrot.slane %v1238, 1
        %v1501 = vsel %vm1375, %v1498, %v1500
        %v1502 = vrot.slane %v1239, 1
        %v1503 = vrot.slane %v1240, 1
        %v1504 = vsel %vm1375, %v1502, %v1503
        %v1505 = vrot.slane %v1241, 1
        %v1506 = vsel %vm1375, %v1503, %v1505
        %v1507 = vrot.slane %v1242, 1
        %v1508 = vsel %vm1375, %v1505, %v1507
        %v1509 = vrot.slane %v1243, 1
        %v1510 = vrot.slane %v1244, 1
        %v1511 = vsel %vm1375, %v1509, %v1510
        %v1512 = vrot.slane %v1245, 1
        %v1513 = vsel %vm1375, %v1510, %v1512
        %v1514 = vrot.slane %v1246, 1
        %v1515 = vsel %vm1375, %v1512, %v1514
        %v1516 = vrot.slane %v1247, 1
        %v1517 = vrot.slane %v1248, 1
        %v1518 = vsel %vm1375, %v1516, %v1517
        %v1519 = vrot.slane %v1249, 1
        %v1520 = vsel %vm1375, %v1517, %v1519
        %v1521 = vrot.slane %v1250, 1
        %v1522 = vsel %vm1375, %v1519, %v1521
        %v1523 = vrot.slane %v1251, 1
        %v1524 = vrot.slane %v1252, 1
        %v1525 = vsel %vm1375, %v1523, %v1524
        %v1526 = vrot.slane %v1253, 1
        %v1527 = vsel %vm1375, %v1524, %v1526
        %v1528 = vrot.slane %v1254, 1
        %v1529 = vsel %vm1375, %v1526, %v1528
        %v1530 = vrot.slane %v1255, 1
        %v1531 = vrot.slane %v1256, 1
        %v1532 = vsel %vm1375, %v1530, %v1531
        %v1533 = vrot.slane %v1257, 1
        %v1534 = vsel %vm1375, %v1531, %v1533
        %v1535 = vrot.slane %v1258, 1
        %v1536 = vsel %vm1375, %v1533, %v1535
        %v1537 = vrot.slane %v1259, 1
        %v1538 = vrot.slane %v1260, 1
        %v1539 = vsel %vm1375, %v1537, %v1538
        %v1540 = vrot.slane %v1261, 1
        %v1541 = vsel %vm1375, %v1538, %v1540
        %v1542 = vrot.slane %v1262, 1
        %v1543 = vsel %vm1375, %v1540, %v1542
        %v1544 = vrot.slane %v1263, 1
        %v1545 = vrot.slane %v1264, 1
        %v1546 = vsel %vm1375, %v1544, %v1545
        %v1547 = vrot.slane %v1265, 1
        %v1548 = vsel %vm1375, %v1545, %v1547
        %v1549 = vrot.slane %v1266, 1
        %v1550 = vsel %vm1375, %v1547, %v1549
        %v1551 = vrot.slane %v1267, 1
        %v1552 = vrot.slane %v1268, 1
        %v1553 = vsel %vm1375, %v1551, %v1552
        %v1554 = vrot.slane %v1269, 1
        %v1555 = vsel %vm1375, %v1552, %v1554
        %v1556 = vrot.slane %v1270, 1
        %v1557 = vsel %vm1375, %v1554, %v1556
        %v1662 = vadd.f32 %v1059, %v1378
        %v1663 = vadd.f32 %v1060, %v1380
        %v1664 = vadd.f32 %v1061, %v1382
        %v1665 = vadd.f32 %v1062, %v1381
        %v1666 = vadd.f32 %v1063, %v1385
        %v1667 = vadd.f32 %v1064, %v1387
        %v1668 = vadd.f32 %v1065, %v1389
        %v1669 = vadd.f32 %v1066, %v1388
        %v1670 = vadd.f32 %v1067, %v1392
        %v1671 = vadd.f32 %v1068, %v1394
        %v1672 = vadd.f32 %v1069, %v1396
        %v1673 = vadd.f32 %v1070, %v1395
        %v1674 = vadd.f32 %v1071, %v1399
        %v1675 = vadd.f32 %v1072, %v1401
        %v1676 = vadd.f32 %v1073, %v1403
        %v1677 = vadd.f32 %v1074, %v1402
        %v1678 = vadd.f32 %v1075, %v1406
        %v1679 = vadd.f32 %v1076, %v1408
        %v1680 = vadd.f32 %v1077, %v1410
        %v1681 = vadd.f32 %v1078, %v1409
        %v1682 = vadd.f32 %v1079, %v1413
        %v1683 = vadd.f32 %v1080, %v1415
        %v1684 = vadd.f32 %v1081, %v1417
        %v1685 = vadd.f32 %v1082, %v1416
        %v1686 = vadd.f32 %v1083, %v1420
        %v1687 = vadd.f32 %v1084, %v1422
        %v1688 = vadd.f32 %v1085, %v1424
        %v1689 = vadd.f32 %v1086, %v1423
        %v1690 = vadd.f32 %v1087, %v1427
        %v1691 = vadd.f32 %v1088, %v1429
        %v1692 = vadd.f32 %v1089, %v1431
        %v1693 = vadd.f32 %v1090, %v1430
        %v1694 = vadd.f32 %v1091, %v1434
        %v1695 = vadd.f32 %v1092, %v1436
        %v1696 = vadd.f32 %v1093, %v1438
        %v1697 = vadd.f32 %v1094, %v1437
        %v1698 = vadd.f32 %v1095, %v1441
        %v1699 = vadd.f32 %v1096, %v1443
        %v1700 = vadd.f32 %v1097, %v1445
        %v1701 = vadd.f32 %v1098, %v1444
        %v1702 = vadd.f32 %v1099, %v1448
        %v1703 = vadd.f32 %v1100, %v1450
        %v1704 = vadd.f32 %v1101, %v1452
        %v1705 = vadd.f32 %v1102, %v1451
        %v1706 = vadd.f32 %v1103, %v1455
        %v1707 = vadd.f32 %v1104, %v1457
        %v1708 = vadd.f32 %v1105, %v1459
        %v1709 = vadd.f32 %v1106, %v1458
        %v1710 = vadd.f32 %v1107, %v1462
        %v1711 = vadd.f32 %v1108, %v1464
        %v1712 = vadd.f32 %v1109, %v1466
        %v1713 = vadd.f32 %v1110, %v1465
        %v1714 = vadd.f32 %v1111, %v1469
        %v1715 = vadd.f32 %v1112, %v1471
        %v1716 = vadd.f32 %v1113, %v1473
        %v1717 = vadd.f32 %v1114, %v1472
        %v1718 = vadd.f32 %v1115, %v1476
        %v1719 = vadd.f32 %v1116, %v1478
        %v1720 = vadd.f32 %v1117, %v1480
        %v1721 = vadd.f32 %v1118, %v1479
        %v1722 = vadd.f32 %v1119, %v1483
        %v1723 = vadd.f32 %v1120, %v1485
        %v1724 = vadd.f32 %v1121, %v1487
        %v1725 = vadd.f32 %v1122, %v1486
        %v1726 = vadd.f32 %v1123, %v1490
        %v1727 = vadd.f32 %v1124, %v1492
        %v1728 = vadd.f32 %v1125, %v1494
        %v1729 = vadd.f32 %v1126, %v1493
        %v1730 = vadd.f32 %v1127, %v1497
        %v1731 = vadd.f32 %v1128, %v1499
        %v1732 = vadd.f32 %v1129, %v1501
        %v1733 = vadd.f32 %v1130, %v1500
        %v1734 = vadd.f32 %v1131, %v1504
        %v1735 = vadd.f32 %v1132, %v1506
        %v1736 = vadd.f32 %v1133, %v1508
        %v1737 = vadd.f32 %v1134, %v1507
        %v1738 = vadd.f32 %v1135, %v1511
        %v1739 = vadd.f32 %v1136, %v1513
        %v1740 = vadd.f32 %v1137, %v1515
        %v1741 = vadd.f32 %v1138, %v1514
        %v1742 = vadd.f32 %v1139, %v1518
        %v1743 = vadd.f32 %v1140, %v1520
        %v1744 = vadd.f32 %v1141, %v1522
        %v1745 = vadd.f32 %v1142, %v1521
        %v1746 = vadd.f32 %v1143, %v1525
        %v1747 = vadd.f32 %v1144, %v1527
        %v1748 = vadd.f32 %v1145, %v1529
        %v1749 = vadd.f32 %v1146, %v1528
        %v1750 = vadd.f32 %v1147, %v1532
        %v1751 = vadd.f32 %v1148, %v1534
        %v1752 = vadd.f32 %v1149, %v1536
        %v1753 = vadd.f32 %v1150, %v1535
        %v1754 = vadd.f32 %v1151, %v1539
        %v1755 = vadd.f32 %v1152, %v1541
        %v1756 = vadd.f32 %v1153, %v1543
        %v1757 = vadd.f32 %v1154, %v1542
        %v1758 = vadd.f32 %v1155, %v1546
        %v1759 = vadd.f32 %v1156, %v1548
        %v1760 = vadd.f32 %v1157, %v1550
        %v1761 = vadd.f32 %v1158, %v1549
        %v1762 = vadd.f32 %v1159, %v1553
        %v1763 = vadd.f32 %v1160, %v1555
        %v1764 = vadd.f32 %v1161, %v1557
        %v1765 = vadd.f32 %v1162, %v1556
        %v1766 = vlaneseq
        %v1767 = vshrl.u32 %v1766, 7
        %v1768 = vsub.s32 2, %v1767
        %v1769 = vrot.slane %v393, %v1768
        %v1770 = vmul.f32 %v434, %v1769
        %v1771 = vmul.f32 %v439, %v1769
        %v1772 = vmul.f32 %v444, %v1769
        %v1773 = vmul.f32 %v449, %v1769
        %v1774 = vmul.f32 %v454, %v1769
        %v1775 = vmul.f32 %v459, %v1769
        %v1776 = vmul.f32 %v464, %v1769
        %v1777 = vmul.f32 %v469, %v1769
        %v1778 = vmul.f32 %v474, %v1769
        %v1779 = vmul.f32 %v479, %v1769
        %v1780 = vmul.f32 %v484, %v1769
        %v1781 = vmul.f32 %v489, %v1769
        %v1782 = vmul.f32 %v494, %v1769
        %v1783 = vmul.f32 %v499, %v1769
        %v1784 = vmul.f32 %v504, %v1769
        %v1785 = vmul.f32 %v509, %v1769
        %v1786 = vmul.f32 %v514, %v1769
        %v1787 = vmul.f32 %v519, %v1769
        %v1788 = vmul.f32 %v524, %v1769
        %v1789 = vmul.f32 %v529, %v1769
        %v1790 = vmul.f32 %v534, %v1769
        %v1791 = vmul.f32 %v539, %v1769
        %v1792 = vmul.f32 %v544, %v1769
        %v1793 = vmul.f32 %v549, %v1769
        %v1794 = vmul.f32 %v554, %v1769
        %v1795 = vmul.f32 %v559, %v1769
        %v1796 = vmul.f32 %v564, %v1769
        %v1797 = vmul.f32 %v569, %v1769
        %v1798 = vmul.f32 %v574, %v1769
        %v1799 = vmul.f32 %v579, %v1769
        %v1800 = vmul.f32 %v584, %v1769
        %v1801 = vmul.f32 %v589, %v1769
        %v1802 = vmul.f32 %v594, %v1769
        %v1803 = vmul.f32 %v599, %v1769
        %v1804 = vmul.f32 %v604, %v1769
        %v1805 = vmul.f32 %v609, %v1769
        %v1806 = vmul.f32 %v614, %v1769
        %v1807 = vmul.f32 %v619, %v1769
        %v1808 = vmul.f32 %v624, %v1769
        %v1809 = vmul.f32 %v629, %v1769
        %v1810 = vmul.f32 %v634, %v1769
        %v1811 = vmul.f32 %v639, %v1769
        %v1812 = vmul.f32 %v644, %v1769
        %v1813 = vmul.f32 %v649, %v1769
        %v1814 = vmul.f32 %v654, %v1769
        %v1815 = vmul.f32 %v659, %v1769
        %v1816 = vmul.f32 %v664, %v1769
        %v1817 = vmul.f32 %v669, %v1769
        %v1818 = vmul.f32 %v674, %v1769
        %v1819 = vmul.f32 %v679, %v1769
        %v1820 = vmul.f32 %v684, %v1769
        %v1821 = vmul.f32 %v689, %v1769
        %v1822 = vmul.f32 %v694, %v1769
        %v1823 = vmul.f32 %v699, %v1769
        %v1824 = vmul.f32 %v704, %v1769
        %v1825 = vmul.f32 %v709, %v1769
        %v1826 = vmul.f32 %v714, %v1769
        %v1827 = vmul.f32 %v719, %v1769
        %v1828 = vmul.f32 %v724, %v1769
        %v1829 = vmul.f32 %v729, %v1769
        %v1830 = vmul.f32 %v734, %v1769
        %v1831 = vmul.f32 %v739, %v1769
        %v1832 = vmul.f32 %v744, %v1769
        %v1833 = vmul.f32 %v749, %v1769
        %v1834 = vmul.f32 %v754, %v1769
        %v1835 = vmul.f32 %v759, %v1769
        %v1836 = vmul.f32 %v764, %v1769
        %v1837 = vmul.f32 %v769, %v1769
        %v1838 = vmul.f32 %v774, %v1769
        %v1839 = vmul.f32 %v779, %v1769
        %v1840 = vmul.f32 %v784, %v1769
        %v1841 = vmul.f32 %v789, %v1769
        %v1842 = vmul.f32 %v794, %v1769
        %v1843 = vmul.f32 %v799, %v1769
        %v1844 = vmul.f32 %v804, %v1769
        %v1845 = vmul.f32 %v809, %v1769
        %v1846 = vmul.f32 %v814, %v1769
        %v1847 = vmul.f32 %v819, %v1769
        %v1848 = vmul.f32 %v824, %v1769
        %v1849 = vmul.f32 %v829, %v1769
        %v1850 = vmul.f32 %v834, %v1769
        %v1851 = vmul.f32 %v839, %v1769
        %v1852 = vmul.f32 %v844, %v1769
        %v1853 = vmul.f32 %v849, %v1769
        %v1854 = vmul.f32 %v854, %v1769
        %v1855 = vmul.f32 %v859, %v1769
        %v1856 = vmul.f32 %v864, %v1769
        %v1857 = vmul.f32 %v869, %v1769
        %v1858 = vmul.f32 %v874, %v1769
        %v1859 = vmul.f32 %v879, %v1769
        %v1860 = vmul.f32 %v884, %v1769
        %v1861 = vmul.f32 %v889, %v1769
        %v1862 = vmul.f32 %v894, %v1769
        %v1863 = vmul.f32 %v899, %v1769
        %v1864 = vmul.f32 %v904, %v1769
        %v1865 = vmul.f32 %v909, %v1769
        %v1866 = vmul.f32 %v914, %v1769
        %v1867 = vmul.f32 %v919, %v1769
        %v1868 = vmul.f32 %v924, %v1769
        %v1869 = vmul.f32 %v929, %v1769
        %v1870 = vmul.f32 %v934, %v1769
        %v1871 = vmul.f32 %v939, %v1769
        %v1872 = vmul.f32 %v944, %v1769
        %v1873 = vmul.f32 %v949, %v1769
        %vm1978 = vcmask 1045504
        %v1979 = vrot.slane %v1770, 2
        %v1980 = vrot.slane %v1771, 2
        %v1981 = vsel %vm1978, %v1979, %v1980
        %v1982 = vrot.slane %v1772, 2
        %v1983 = vsel %vm1978, %v1980, %v1982
        %v1984 = vrot.slane %v1773, 2
        %v1985 = vsel %vm1978, %v1982, %v1984
        %v1986 = vrot.slane %v1774, 2
        %v1987 = vrot.slane %v1775, 2
        %v1988 = vsel %vm1978, %v1986, %v1987
        %v1989 = vrot.slane %v1776, 2
        %v1990 = vsel %vm1978, %v1987, %v1989
        %v1991 = vrot.slane %v1777, 2
        %v1992 = vsel %vm1978, %v1989, %v1991
        %v1993 = vrot.slane %v1778, 2
        %v1994 = vrot.slane %v1779, 2
        %v1995 = vsel %vm1978, %v1993, %v1994
        %v1996 = vrot.slane %v1780, 2
        %v1997 = vsel %vm1978, %v1994, %v1996
        %v1998 = vrot.slane %v1781, 2
        %v1999 = vsel %vm1978, %v1996, %v1998
        %v2000 = vrot.slane %v1782, 2
        %v2001 = vrot.slane %v1783, 2
        %v2002 = vsel %vm1978, %v2000, %v2001
        %v2003 = vrot.slane %v1784, 2
        %v2004 = vsel %vm1978, %v2001, %v2003
        %v2005 = vrot.slane %v1785, 2
        %v2006 = vsel %vm1978, %v2003, %v2005
        %v2007 = vrot.slane %v1786, 2
        %v2008 = vrot.slane %v1787, 2
        %v2009 = vsel %vm1978, %v2007, %v2008
        %v2010 = vrot.slane %v1788, 2
        %v2011 = vsel %vm1978, %v2008, %v2010
        %v2012 = vrot.slane %v1789, 2
        %v2013 = vsel %vm1978, %v2010, %v2012
        %v2014 = vrot.slane %v1790, 2
        %v2015 = vrot.slane %v1791, 2
        %v2016 = vsel %vm1978, %v2014, %v2015
        %v2017 = vrot.slane %v1792, 2
        %v2018 = vsel %vm1978, %v2015, %v2017
        %v2019 = vrot.slane %v1793, 2
        %v2020 = vsel %vm1978, %v2017, %v2019
        %v2021 = vrot.slane %v1794, 2
        %v2022 = vrot.slane %v1795, 2
        %v2023 = vsel %vm1978, %v2021, %v2022
        %v2024 = vrot.slane %v1796, 2
        %v2025 = vsel %vm1978, %v2022, %v2024
        %v2026 = vrot.slane %v1797, 2
        %v2027 = vsel %vm1978, %v2024, %v2026
        %v2028 = vrot.slane %v1798, 2
        %v2029 = vrot.slane %v1799, 2
        %v2030 = vsel %vm1978, %v2028, %v2029
        %v2031 = vrot.slane %v1800, 2
        %v2032 = vsel %vm1978, %v2029, %v2031
        %v2033 = vrot.slane %v1801, 2
        %v2034 = vsel %vm1978, %v2031, %v2033
        %v2035 = vrot.slane %v1802, 2
        %v2036 = vrot.slane %v1803, 2
        %v2037 = vsel %vm1978, %v2035, %v2036
        %v2038 = vrot.slane %v1804, 2
        %v2039 = vsel %vm1978, %v2036, %v2038
        %v2040 = vrot.slane %v1805, 2
        %v2041 = vsel %vm1978, %v2038, %v2040
        %v2042 = vrot.slane %v1806, 2
        %v2043 = vrot.slane %v1807, 2
        %v2044 = vsel %vm1978, %v2042, %v2043
        %v2045 = vrot.slane %v1808, 2
        %v2046 = vsel %vm1978, %v2043, %v2045
        %v2047 = vrot.slane %v1809, 2
        %v2048 = vsel %vm1978, %v2045, %v2047
        %v2049 = vrot.slane %v1810, 2
        %v2050 = vrot.slane %v1811, 2
        %v2051 = vsel %vm1978, %v2049, %v2050
        %v2052 = vrot.slane %v1812, 2
        %v2053 = vsel %vm1978, %v2050, %v2052
        %v2054 = vrot.slane %v1813, 2
        %v2055 = vsel %vm1978, %v2052, %v2054
        %v2056 = vrot.slane %v1814, 2
        %v2057 = vrot.slane %v1815, 2
        %v2058 = vsel %vm1978, %v2056, %v2057
        %v2059 = vrot.slane %v1816, 2
        %v2060 = vsel %vm1978, %v2057, %v2059
        %v2061 = vrot.slane %v1817, 2
        %v2062 = vsel %vm1978, %v2059, %v2061
        %v2063 = vrot.slane %v1818, 2
        %v2064 = vrot.slane %v1819, 2
        %v2065 = vsel %vm1978, %v2063, %v2064
        %v2066 = vrot.slane %v1820, 2
        %v2067 = vsel %vm1978, %v2064, %v2066
        %v2068 = vrot.slane %v1821, 2
        %v2069 = vsel %vm1978, %v2066, %v2068
        %v2070 = vrot.slane %v1822, 2
        %v2071 = vrot.slane %v1823, 2
        %v2072 = vsel %vm1978, %v2070, %v2071
        %v2073 = vrot.slane %v1824, 2
        %v2074 = vsel %vm1978, %v2071, %v2073
        %v2075 = vrot.slane %v1825, 2
        %v2076 = vsel %vm1978, %v2073, %v2075
        %v2077 = vrot.slane %v1826, 2
        %v2078 = vrot.slane %v1827, 2
        %v2079 = vsel %vm1978, %v2077, %v2078
        %v2080 = vrot.slane %v1828, 2
        %v2081 = vsel %vm1978, %v2078, %v2080
        %v2082 = vrot.slane %v1829, 2
        %v2083 = vsel %vm1978, %v2080, %v2082
        %v2084 = vrot.slane %v1830, 2
        %v2085 = vrot.slane %v1831, 2
        %v2086 = vsel %vm1978, %v2084, %v2085
        %v2087 = vrot.slane %v1832, 2
        %v2088 = vsel %vm1978, %v2085, %v2087
        %v2089 = vrot.slane %v1833, 2
        %v2090 = vsel %vm1978, %v2087, %v2089
        %v2091 = vrot.slane %v1834, 2
        %v2092 = vrot.slane %v1835, 2
        %v2093 = vsel %vm1978, %v2091, %v2092
        %v2094 = vrot.slane %v1836, 2
        %v2095 = vsel %vm1978, %v2092, %v2094
        %v2096 = vrot.slane %v1837, 2
        %v2097 = vsel %vm1978, %v2094, %v2096
        %v2098 = vrot.slane %v1838, 2
        %v2099 = vrot.slane %v1839, 2
        %v2100 = vsel %vm1978, %v2098, %v2099
        %v2101 = vrot.slane %v1840, 2
        %v2102 = vsel %vm1978, %v2099, %v2101
        %v2103 = vrot.slane %v1841, 2
        %v2104 = vsel %vm1978, %v2101, %v2103
        %v2105 = vrot.slane %v1842, 2
        %v2106 = vrot.slane %v1843, 2
        %v2107 = vsel %vm1978, %v2105, %v2106
        %v2108 = vrot.slane %v1844, 2
        %v2109 = vsel %vm1978, %v2106, %v2108
        %v2110 = vrot.slane %v1845, 2
        %v2111 = vsel %vm1978, %v2108, %v2110
        %v2112 = vrot.slane %v1846, 2
        %v2113 = vrot.slane %v1847, 2
        %v2114 = vsel %vm1978, %v2112, %v2113
        %v2115 = vrot.slane %v1848, 2
        %v2116 = vsel %vm1978, %v2113, %v2115
        %v2117 = vrot.slane %v1849, 2
        %v2118 = vsel %vm1978, %v2115, %v2117
        %v2119 = vrot.slane %v1850, 2
        %v2120 = vrot.slane %v1851, 2
        %v2121 = vsel %vm1978, %v2119, %v2120
        %v2122 = vrot.slane %v1852, 2
        %v2123 = vsel %vm1978, %v2120, %v2122
        %v2124 = vrot.slane %v1853, 2
        %v2125 = vsel %vm1978, %v2122, %v2124
        %v2126 = vrot.slane %v1854, 2
        %v2127 = vrot.slane %v1855, 2
        %v2128 = vsel %vm1978, %v2126, %v2127
        %v2129 = vrot.slane %v1856, 2
        %v2130 = vsel %vm1978, %v2127, %v2129
        %v2131 = vrot.slane %v1857, 2
        %v2132 = vsel %vm1978, %v2129, %v2131
        %v2133 = vrot.slane %v1858, 2
        %v2134 = vrot.slane %v1859, 2
        %v2135 = vsel %vm1978, %v2133, %v2134
        %v2136 = vrot.slane %v1860, 2
        %v2137 = vsel %vm1978, %v2134, %v2136
        %v2138 = vrot.slane %v1861, 2
        %v2139 = vsel %vm1978, %v2136, %v2138
        %v2140 = vrot.slane %v1862, 2
        %v2141 = vrot.slane %v1863, 2
        %v2142 = vsel %vm1978, %v2140, %v2141
        %v2143 = vrot.slane %v1864, 2
        %v2144 = vsel %vm1978, %v2141, %v2143
        %v2145 = vrot.slane %v1865, 2
        %v2146 = vsel %vm1978, %v2143, %v2145
        %v2147 = vrot.slane %v1866, 2
        %v2148 = vrot.slane %v1867, 2
        %v2149 = vsel %vm1978, %v2147, %v2148
        %v2150 = vrot.slane %v1868, 2
        %v2151 = vsel %vm1978, %v2148, %v2150
        %v2152 = vrot.slane %v1869, 2
        %v2153 = vsel %vm1978, %v2150, %v2152
        %v2154 = vrot.slane %v1870, 2
        %v2155 = vrot.slane %v1871, 2
        %v2156 = vsel %vm1978, %v2154, %v2155
        %v2157 = vrot.slane %v1872, 2
        %v2158 = vsel %vm1978, %v2155, %v2157
        %v2159 = vrot.slane %v1873, 2
        %v2160 = vsel %vm1978, %v2157, %v2159
        %v2265 = vadd.f32 %v1662, %v1981
        %v2266 = vadd.f32 %v1663, %v1983
        %v2267 = vadd.f32 %v1664, %v1985
        %v2268 = vadd.f32 %v1665, %v1984
        %v2269 = vadd.f32 %v1666, %v1988
        %v2270 = vadd.f32 %v1667, %v1990
        %v2271 = vadd.f32 %v1668, %v1992
        %v2272 = vadd.f32 %v1669, %v1991
        %v2273 = vadd.f32 %v1670, %v1995
        %v2274 = vadd.f32 %v1671, %v1997
        %v2275 = vadd.f32 %v1672, %v1999
        %v2276 = vadd.f32 %v1673, %v1998
        %v2277 = vadd.f32 %v1674, %v2002
        %v2278 = vadd.f32 %v1675, %v2004
        %v2279 = vadd.f32 %v1676, %v2006
        %v2280 = vadd.f32 %v1677, %v2005
        %v2281 = vadd.f32 %v1678, %v2009
        %v2282 = vadd.f32 %v1679, %v2011
        %v2283 = vadd.f32 %v1680, %v2013
        %v2284 = vadd.f32 %v1681, %v2012
        %v2285 = vadd.f32 %v1682, %v2016
        %v2286 = vadd.f32 %v1683, %v2018
        %v2287 = vadd.f32 %v1684, %v2020
        %v2288 = vadd.f32 %v1685, %v2019
        %v2289 = vadd.f32 %v1686, %v2023
        %v2290 = vadd.f32 %v1687, %v2025
        %v2291 = vadd.f32 %v1688, %v2027
        %v2292 = vadd.f32 %v1689, %v2026
        %v2293 = vadd.f32 %v1690, %v2030
        %v2294 = vadd.f32 %v1691, %v2032
        %v2295 = vadd.f32 %v1692, %v2034
        %v2296 = vadd.f32 %v1693, %v2033
        %v2297 = vadd.f32 %v1694, %v2037
        %v2298 = vadd.f32 %v1695, %v2039
        %v2299 = vadd.f32 %v1696, %v2041
        %v2300 = vadd.f32 %v1697, %v2040
        %v2301 = vadd.f32 %v1698, %v2044
        %v2302 = vadd.f32 %v1699, %v2046
        %v2303 = vadd.f32 %v1700, %v2048
        %v2304 = vadd.f32 %v1701, %v2047
        %v2305 = vadd.f32 %v1702, %v2051
        %v2306 = vadd.f32 %v1703, %v2053
        %v2307 = vadd.f32 %v1704, %v2055
        %v2308 = vadd.f32 %v1705, %v2054
        %v2309 = vadd.f32 %v1706, %v2058
        %v2310 = vadd.f32 %v1707, %v2060
        %v2311 = vadd.f32 %v1708, %v2062
        %v2312 = vadd.f32 %v1709, %v2061
        %v2313 = vadd.f32 %v1710, %v2065
        %v2314 = vadd.f32 %v1711, %v2067
        %v2315 = vadd.f32 %v1712, %v2069
        %v2316 = vadd.f32 %v1713, %v2068
        %v2317 = vadd.f32 %v1714, %v2072
        %v2318 = vadd.f32 %v1715, %v2074
        %v2319 = vadd.f32 %v1716, %v2076
        %v2320 = vadd.f32 %v1717, %v2075
        %v2321 = vadd.f32 %v1718, %v2079
        %v2322 = vadd.f32 %v1719, %v2081
        %v2323 = vadd.f32 %v1720, %v2083
        %v2324 = vadd.f32 %v1721, %v2082
        %v2325 = vadd.f32 %v1722, %v2086
        %v2326 = vadd.f32 %v1723, %v2088
        %v2327 = vadd.f32 %v1724, %v2090
        %v2328 = vadd.f32 %v1725, %v2089
        %v2329 = vadd.f32 %v1726, %v2093
        %v2330 = vadd.f32 %v1727, %v2095
        %v2331 = vadd.f32 %v1728, %v2097
        %v2332 = vadd.f32 %v1729, %v2096
        %v2333 = vadd.f32 %v1730, %v2100
        %v2334 = vadd.f32 %v1731, %v2102
        %v2335 = vadd.f32 %v1732, %v2104
        %v2336 = vadd.f32 %v1733, %v2103
        %v2337 = vadd.f32 %v1734, %v2107
        %v2338 = vadd.f32 %v1735, %v2109
        %v2339 = vadd.f32 %v1736, %v2111
        %v2340 = vadd.f32 %v1737, %v2110
        %v2341 = vadd.f32 %v1738, %v2114
        %v2342 = vadd.f32 %v1739, %v2116
        %v2343 = vadd.f32 %v1740, %v2118
        %v2344 = vadd.f32 %v1741, %v2117
        %v2345 = vadd.f32 %v1742, %v2121
        %v2346 = vadd.f32 %v1743, %v2123
        %v2347 = vadd.f32 %v1744, %v2125
        %v2348 = vadd.f32 %v1745, %v2124
        %v2349 = vadd.f32 %v1746, %v2128
        %v2350 = vadd.f32 %v1747, %v2130
        %v2351 = vadd.f32 %v1748, %v2132
        %v2352 = vadd.f32 %v1749, %v2131
        %v2353 = vadd.f32 %v1750, %v2135
        %v2354 = vadd.f32 %v1751, %v2137
        %v2355 = vadd.f32 %v1752, %v2139
        %v2356 = vadd.f32 %v1753, %v2138
        %v2357 = vadd.f32 %v1754, %v2142
        %v2358 = vadd.f32 %v1755, %v2144
        %v2359 = vadd.f32 %v1756, %v2146
        %v2360 = vadd.f32 %v1757, %v2145
        %v2361 = vadd.f32 %v1758, %v2149
        %v2362 = vadd.f32 %v1759, %v2151
        %v2363 = vadd.f32 %v1760, %v2153
        %v2364 = vadd.f32 %v1761, %v2152
        %v2365 = vadd.f32 %v1762, %v2156
        %v2366 = vadd.f32 %v1763, %v2158
        %v2367 = vadd.f32 %v1764, %v2160
        %v2368 = vadd.f32 %v1765, %v2159
        %2370 = vset.pattern.permute.xlu0 0
        %2371 = vperm.xlu0 %2370, %v385
        %v2372 = vpop.permute.xlu0 %2371
        %2375 = vset.pattern.permute.xlu0 0
        %2376 = vperm.xlu0 %2375, %v386
        %v2377 = vpop.permute.xlu0 %2376
        %2380 = vset.pattern.permute.xlu0 0
        %2381 = vperm.xlu0 %2380, %v387
        %v2382 = vpop.permute.xlu0 %2381
        %2385 = vset.pattern.permute.xlu0 0
        %2386 = vperm.xlu0 %2385, %v388
        %v2387 = vpop.permute.xlu0 %2386
        %v2389 = vlaneseq
        %v2390 = vshrl.u32 %v2389, 7
        %v2391 = vsub.s32 3, %v2390
        %v2392 = vrot.slane %v393, %v2391
        %v2393 = vmul.f32 %v454, %v2392
        %v2394 = vmul.f32 %v459, %v2392
        %v2395 = vmul.f32 %v464, %v2392
        %v2396 = vmul.f32 %v469, %v2392
        %v2397 = vmul.f32 %v474, %v2392
        %v2398 = vmul.f32 %v479, %v2392
        %v2399 = vmul.f32 %v484, %v2392
        %v2400 = vmul.f32 %v489, %v2392
        %v2401 = vmul.f32 %v494, %v2392
        %v2402 = vmul.f32 %v499, %v2392
        %v2403 = vmul.f32 %v504, %v2392
        %v2404 = vmul.f32 %v509, %v2392
        %v2405 = vmul.f32 %v514, %v2392
        %v2406 = vmul.f32 %v519, %v2392
        %v2407 = vmul.f32 %v524, %v2392
        %v2408 = vmul.f32 %v529, %v2392
        %v2409 = vmul.f32 %v534, %v2392
        %v2410 = vmul.f32 %v539, %v2392
        %v2411 = vmul.f32 %v544, %v2392
        %v2412 = vmul.f32 %v549, %v2392
        %v2413 = vmul.f32 %v554, %v2392
        %v2414 = vmul.f32 %v559, %v2392
        %v2415 = vmul.f32 %v564, %v2392
        %v2416 = vmul.f32 %v569, %v2392
        %v2417 = vmul.f32 %v574, %v2392
        %v2418 = vmul.f32 %v579, %v2392
        %v2419 = vmul.f32 %v584, %v2392
        %v2420 = vmul.f32 %v589, %v2392
        %v2421 = vmul.f32 %v594, %v2392
        %v2422 = vmul.f32 %v599, %v2392
        %v2423 = vmul.f32 %v604, %v2392
        %v2424 = vmul.f32 %v609, %v2392
        %v2425 = vmul.f32 %v614, %v2392
        %v2426 = vmul.f32 %v619, %v2392
        %v2427 = vmul.f32 %v624, %v2392
        %v2428 = vmul.f32 %v629, %v2392
        %v2429 = vmul.f32 %v634, %v2392
        %v2430 = vmul.f32 %v639, %v2392
        %v2431 = vmul.f32 %v644, %v2392
        %v2432 = vmul.f32 %v649, %v2392
        %v2433 = vmul.f32 %v654, %v2392
        %v2434 = vmul.f32 %v659, %v2392
        %v2435 = vmul.f32 %v664, %v2392
        %v2436 = vmul.f32 %v669, %v2392
        %v2437 = vmul.f32 %v674, %v2392
        %v2438 = vmul.f32 %v679, %v2392
        %v2439 = vmul.f32 %v684, %v2392
        %v2440 = vmul.f32 %v689, %v2392
        %v2441 = vmul.f32 %v694, %v2392
        %v2442 = vmul.f32 %v699, %v2392
        %v2443 = vmul.f32 %v704, %v2392
        %v2444 = vmul.f32 %v709, %v2392
        %v2445 = vmul.f32 %v714, %v2392
        %v2446 = vmul.f32 %v719, %v2392
        %v2447 = vmul.f32 %v724, %v2392
        %v2448 = vmul.f32 %v729, %v2392
        %v2449 = vmul.f32 %v734, %v2392
        %v2450 = vmul.f32 %v739, %v2392
        %v2451 = vmul.f32 %v744, %v2392
        %v2452 = vmul.f32 %v749, %v2392
        %v2453 = vmul.f32 %v754, %v2392
        %v2454 = vmul.f32 %v759, %v2392
        %v2455 = vmul.f32 %v764, %v2392
        %v2456 = vmul.f32 %v769, %v2392
        %v2457 = vmul.f32 %v774, %v2392
        %v2458 = vmul.f32 %v779, %v2392
        %v2459 = vmul.f32 %v784, %v2392
        %v2460 = vmul.f32 %v789, %v2392
        %v2461 = vmul.f32 %v794, %v2392
        %v2462 = vmul.f32 %v799, %v2392
        %v2463 = vmul.f32 %v804, %v2392
        %v2464 = vmul.f32 %v809, %v2392
        %v2465 = vmul.f32 %v814, %v2392
        %v2466 = vmul.f32 %v819, %v2392
        %v2467 = vmul.f32 %v824, %v2392
        %v2468 = vmul.f32 %v829, %v2392
        %v2469 = vmul.f32 %v834, %v2392
        %v2470 = vmul.f32 %v839, %v2392
        %v2471 = vmul.f32 %v844, %v2392
        %v2472 = vmul.f32 %v849, %v2392
        %v2473 = vmul.f32 %v854, %v2392
        %v2474 = vmul.f32 %v859, %v2392
        %v2475 = vmul.f32 %v864, %v2392
        %v2476 = vmul.f32 %v869, %v2392
        %v2477 = vmul.f32 %v874, %v2392
        %v2478 = vmul.f32 %v879, %v2392
        %v2479 = vmul.f32 %v884, %v2392
        %v2480 = vmul.f32 %v889, %v2392
        %v2481 = vmul.f32 %v894, %v2392
        %v2482 = vmul.f32 %v899, %v2392
        %v2483 = vmul.f32 %v904, %v2392
        %v2484 = vmul.f32 %v909, %v2392
        %v2485 = vmul.f32 %v914, %v2392
        %v2486 = vmul.f32 %v919, %v2392
        %v2487 = vmul.f32 %v924, %v2392
        %v2488 = vmul.f32 %v929, %v2392
        %v2489 = vmul.f32 %v934, %v2392
        %v2490 = vmul.f32 %v939, %v2392
        %v2491 = vmul.f32 %v944, %v2392
        %v2492 = vmul.f32 %v949, %v2392
        %v2493 = vmul.f32 %v2372, %v2392
        %v2494 = vmul.f32 %v2377, %v2392
        %v2495 = vmul.f32 %v2382, %v2392
        %v2496 = vmul.f32 %v2387, %v2392
        %v2497 = vadd.f32 %v2265, %v2393
        %v2498 = vadd.f32 %v2266, %v2394
        %v2499 = vadd.f32 %v2267, %v2395
        %v2500 = vadd.f32 %v2268, %v2396
        %v2501 = vadd.f32 %v2269, %v2397
        %v2502 = vadd.f32 %v2270, %v2398
        %v2503 = vadd.f32 %v2271, %v2399
        %v2504 = vadd.f32 %v2272, %v2400
        %v2505 = vadd.f32 %v2273, %v2401
        %v2506 = vadd.f32 %v2274, %v2402
        %v2507 = vadd.f32 %v2275, %v2403
        %v2508 = vadd.f32 %v2276, %v2404
        %v2509 = vadd.f32 %v2277, %v2405
        %v2510 = vadd.f32 %v2278, %v2406
        %v2511 = vadd.f32 %v2279, %v2407
        %v2512 = vadd.f32 %v2280, %v2408
        %v2513 = vadd.f32 %v2281, %v2409
        %v2514 = vadd.f32 %v2282, %v2410
        %v2515 = vadd.f32 %v2283, %v2411
        %v2516 = vadd.f32 %v2284, %v2412
        %v2517 = vadd.f32 %v2285, %v2413
        %v2518 = vadd.f32 %v2286, %v2414
        %v2519 = vadd.f32 %v2287, %v2415
        %v2520 = vadd.f32 %v2288, %v2416
        %v2521 = vadd.f32 %v2289, %v2417
        %v2522 = vadd.f32 %v2290, %v2418
        %v2523 = vadd.f32 %v2291, %v2419
        %v2524 = vadd.f32 %v2292, %v2420
        %v2525 = vadd.f32 %v2293, %v2421
        %v2526 = vadd.f32 %v2294, %v2422
        %v2527 = vadd.f32 %v2295, %v2423
        %v2528 = vadd.f32 %v2296, %v2424
        %v2529 = vadd.f32 %v2297, %v2425
        %v2530 = vadd.f32 %v2298, %v2426
        %v2531 = vadd.f32 %v2299, %v2427
        %v2532 = vadd.f32 %v2300, %v2428
        %v2533 = vadd.f32 %v2301, %v2429
        %v2534 = vadd.f32 %v2302, %v2430
        %v2535 = vadd.f32 %v2303, %v2431
        %v2536 = vadd.f32 %v2304, %v2432
        %v2537 = vadd.f32 %v2305, %v2433
        %v2538 = vadd.f32 %v2306, %v2434
        %v2539 = vadd.f32 %v2307, %v2435
        %v2540 = vadd.f32 %v2308, %v2436
        %v2541 = vadd.f32 %v2309, %v2437
        %v2542 = vadd.f32 %v2310, %v2438
        %v2543 = vadd.f32 %v2311, %v2439
        %v2544 = vadd.f32 %v2312, %v2440
        %v2545 = vadd.f32 %v2313, %v2441
        %v2546 = vadd.f32 %v2314, %v2442
        %v2547 = vadd.f32 %v2315, %v2443
        %v2548 = vadd.f32 %v2316, %v2444
        %v2549 = vadd.f32 %v2317, %v2445
        %v2550 = vadd.f32 %v2318, %v2446
        %v2551 = vadd.f32 %v2319, %v2447
        %v2552 = vadd.f32 %v2320, %v2448
        %v2553 = vadd.f32 %v2321, %v2449
        %v2554 = vadd.f32 %v2322, %v2450
        %v2555 = vadd.f32 %v2323, %v2451
        %v2556 = vadd.f32 %v2324, %v2452
        %v2557 = vadd.f32 %v2325, %v2453
        %v2558 = vadd.f32 %v2326, %v2454
        %v2559 = vadd.f32 %v2327, %v2455
        %v2560 = vadd.f32 %v2328, %v2456
        %v2561 = vadd.f32 %v2329, %v2457
        %v2562 = vadd.f32 %v2330, %v2458
        %v2563 = vadd.f32 %v2331, %v2459
        %v2564 = vadd.f32 %v2332, %v2460
        %v2565 = vadd.f32 %v2333, %v2461
        %v2566 = vadd.f32 %v2334, %v2462
        %v2567 = vadd.f32 %v2335, %v2463
        %v2568 = vadd.f32 %v2336, %v2464
        %v2569 = vadd.f32 %v2337, %v2465
        %v2570 = vadd.f32 %v2338, %v2466
        %v2571 = vadd.f32 %v2339, %v2467
        %v2572 = vadd.f32 %v2340, %v2468
        %v2573 = vadd.f32 %v2341, %v2469
        %v2574 = vadd.f32 %v2342, %v2470
        %v2575 = vadd.f32 %v2343, %v2471
        %v2576 = vadd.f32 %v2344, %v2472
        %v2577 = vadd.f32 %v2345, %v2473
        %v2578 = vadd.f32 %v2346, %v2474
        %v2579 = vadd.f32 %v2347, %v2475
        %v2580 = vadd.f32 %v2348, %v2476
        %v2581 = vadd.f32 %v2349, %v2477
        %v2582 = vadd.f32 %v2350, %v2478
        %v2583 = vadd.f32 %v2351, %v2479
        %v2584 = vadd.f32 %v2352, %v2480
        %v2585 = vadd.f32 %v2353, %v2481
        %v2586 = vadd.f32 %v2354, %v2482
        %v2587 = vadd.f32 %v2355, %v2483
        %v2588 = vadd.f32 %v2356, %v2484
        %v2589 = vadd.f32 %v2357, %v2485
        %v2590 = vadd.f32 %v2358, %v2486
        %v2591 = vadd.f32 %v2359, %v2487
        %v2592 = vadd.f32 %v2360, %v2488
        %v2593 = vadd.f32 %v2361, %v2489
        %v2594 = vadd.f32 %v2362, %v2490
        %v2595 = vadd.f32 %v2363, %v2491
        %v2596 = vadd.f32 %v2364, %v2492
        %v2597 = vadd.f32 %v2365, %v2493
        %v2598 = vadd.f32 %v2366, %v2494
        %v2599 = vadd.f32 %v2367, %v2495
        %v2600 = vadd.f32 %v2368, %v2496
        %v2601 = vlaneseq
        %v2602 = vshrl.u32 %v2601, 7
        %v2603 = vsub.s32 4, %v2602
        %v2604 = vrot.slane %v393, %v2603
        %v2605 = vmul.f32 %v454, %v2604
        %v2606 = vmul.f32 %v459, %v2604
        %v2607 = vmul.f32 %v464, %v2604
        %v2608 = vmul.f32 %v469, %v2604
        %v2609 = vmul.f32 %v474, %v2604
        %v2610 = vmul.f32 %v479, %v2604
        %v2611 = vmul.f32 %v484, %v2604
        %v2612 = vmul.f32 %v489, %v2604
        %v2613 = vmul.f32 %v494, %v2604
        %v2614 = vmul.f32 %v499, %v2604
        %v2615 = vmul.f32 %v504, %v2604
        %v2616 = vmul.f32 %v509, %v2604
        %v2617 = vmul.f32 %v514, %v2604
        %v2618 = vmul.f32 %v519, %v2604
        %v2619 = vmul.f32 %v524, %v2604
        %v2620 = vmul.f32 %v529, %v2604
        %v2621 = vmul.f32 %v534, %v2604
        %v2622 = vmul.f32 %v539, %v2604
        %v2623 = vmul.f32 %v544, %v2604
        %v2624 = vmul.f32 %v549, %v2604
        %v2625 = vmul.f32 %v554, %v2604
        %v2626 = vmul.f32 %v559, %v2604
        %v2627 = vmul.f32 %v564, %v2604
        %v2628 = vmul.f32 %v569, %v2604
        %v2629 = vmul.f32 %v574, %v2604
        %v2630 = vmul.f32 %v579, %v2604
        %v2631 = vmul.f32 %v584, %v2604
        %v2632 = vmul.f32 %v589, %v2604
        %v2633 = vmul.f32 %v594, %v2604
        %v2634 = vmul.f32 %v599, %v2604
        %v2635 = vmul.f32 %v604, %v2604
        %v2636 = vmul.f32 %v609, %v2604
        %v2637 = vmul.f32 %v614, %v2604
        %v2638 = vmul.f32 %v619, %v2604
        %v2639 = vmul.f32 %v624, %v2604
        %v2640 = vmul.f32 %v629, %v2604
        %v2641 = vmul.f32 %v634, %v2604
        %v2642 = vmul.f32 %v639, %v2604
        %v2643 = vmul.f32 %v644, %v2604
        %v2644 = vmul.f32 %v649, %v2604
        %v2645 = vmul.f32 %v654, %v2604
        %v2646 = vmul.f32 %v659, %v2604
        %v2647 = vmul.f32 %v664, %v2604
        %v2648 = vmul.f32 %v669, %v2604
        %v2649 = vmul.f32 %v674, %v2604
        %v2650 = vmul.f32 %v679, %v2604
        %v2651 = vmul.f32 %v684, %v2604
        %v2652 = vmul.f32 %v689, %v2604
        %v2653 = vmul.f32 %v694, %v2604
        %v2654 = vmul.f32 %v699, %v2604
        %v2655 = vmul.f32 %v704, %v2604
        %v2656 = vmul.f32 %v709, %v2604
        %v2657 = vmul.f32 %v714, %v2604
        %v2658 = vmul.f32 %v719, %v2604
        %v2659 = vmul.f32 %v724, %v2604
        %v2660 = vmul.f32 %v729, %v2604
        %v2661 = vmul.f32 %v734, %v2604
        %v2662 = vmul.f32 %v739, %v2604
        %v2663 = vmul.f32 %v744, %v2604
        %v2664 = vmul.f32 %v749, %v2604
        %v2665 = vmul.f32 %v754, %v2604
        %v2666 = vmul.f32 %v759, %v2604
        %v2667 = vmul.f32 %v764, %v2604
        %v2668 = vmul.f32 %v769, %v2604
        %v2669 = vmul.f32 %v774, %v2604
        %v2670 = vmul.f32 %v779, %v2604
        %v2671 = vmul.f32 %v784, %v2604
        %v2672 = vmul.f32 %v789, %v2604
        %v2673 = vmul.f32 %v794, %v2604
        %v2674 = vmul.f32 %v799, %v2604
        %v2675 = vmul.f32 %v804, %v2604
        %v2676 = vmul.f32 %v809, %v2604
        %v2677 = vmul.f32 %v814, %v2604
        %v2678 = vmul.f32 %v819, %v2604
        %v2679 = vmul.f32 %v824, %v2604
        %v2680 = vmul.f32 %v829, %v2604
        %v2681 = vmul.f32 %v834, %v2604
        %v2682 = vmul.f32 %v839, %v2604
        %v2683 = vmul.f32 %v844, %v2604
        %v2684 = vmul.f32 %v849, %v2604
        %v2685 = vmul.f32 %v854, %v2604
        %v2686 = vmul.f32 %v859, %v2604
        %v2687 = vmul.f32 %v864, %v2604
        %v2688 = vmul.f32 %v869, %v2604
        %v2689 = vmul.f32 %v874, %v2604
        %v2690 = vmul.f32 %v879, %v2604
        %v2691 = vmul.f32 %v884, %v2604
        %v2692 = vmul.f32 %v889, %v2604
        %v2693 = vmul.f32 %v894, %v2604
        %v2694 = vmul.f32 %v899, %v2604
        %v2695 = vmul.f32 %v904, %v2604
        %v2696 = vmul.f32 %v909, %v2604
        %v2697 = vmul.f32 %v914, %v2604
        %v2698 = vmul.f32 %v919, %v2604
        %v2699 = vmul.f32 %v924, %v2604
        %v2700 = vmul.f32 %v929, %v2604
        %v2701 = vmul.f32 %v934, %v2604
        %v2702 = vmul.f32 %v939, %v2604
        %v2703 = vmul.f32 %v944, %v2604
        %v2704 = vmul.f32 %v949, %v2604
        %v2705 = vmul.f32 %v2372, %v2604
        %v2706 = vmul.f32 %v2377, %v2604
        %v2707 = vmul.f32 %v2382, %v2604
        %v2708 = vmul.f32 %v2387, %v2604
        %v2813 = vrot.slane %v2605, 1
        %v2814 = vrot.slane %v2606, 1
        %v2815 = vsel %vm1375, %v2813, %v2814
        %v2816 = vrot.slane %v2607, 1
        %v2817 = vsel %vm1375, %v2814, %v2816
        %v2818 = vrot.slane %v2608, 1
        %v2819 = vsel %vm1375, %v2816, %v2818
        %v2820 = vrot.slane %v2609, 1
        %v2821 = vrot.slane %v2610, 1
        %v2822 = vsel %vm1375, %v2820, %v2821
        %v2823 = vrot.slane %v2611, 1
        %v2824 = vsel %vm1375, %v2821, %v2823
        %v2825 = vrot.slane %v2612, 1
        %v2826 = vsel %vm1375, %v2823, %v2825
        %v2827 = vrot.slane %v2613, 1
        %v2828 = vrot.slane %v2614, 1
        %v2829 = vsel %vm1375, %v2827, %v2828
        %v2830 = vrot.slane %v2615, 1
        %v2831 = vsel %vm1375, %v2828, %v2830
        %v2832 = vrot.slane %v2616, 1
        %v2833 = vsel %vm1375, %v2830, %v2832
        %v2834 = vrot.slane %v2617, 1
        %v2835 = vrot.slane %v2618, 1
        %v2836 = vsel %vm1375, %v2834, %v2835
        %v2837 = vrot.slane %v2619, 1
        %v2838 = vsel %vm1375, %v2835, %v2837
        %v2839 = vrot.slane %v2620, 1
        %v2840 = vsel %vm1375, %v2837, %v2839
        %v2841 = vrot.slane %v2621, 1
        %v2842 = vrot.slane %v2622, 1
        %v2843 = vsel %vm1375, %v2841, %v2842
        %v2844 = vrot.slane %v2623, 1
        %v2845 = vsel %vm1375, %v2842, %v2844
        %v2846 = vrot.slane %v2624, 1
        %v2847 = vsel %vm1375, %v2844, %v2846
        %v2848 = vrot.slane %v2625, 1
        %v2849 = vrot.slane %v2626, 1
        %v2850 = vsel %vm1375, %v2848, %v2849
        %v2851 = vrot.slane %v2627, 1
        %v2852 = vsel %vm1375, %v2849, %v2851
        %v2853 = vrot.slane %v2628, 1
        %v2854 = vsel %vm1375, %v2851, %v2853
        %v2855 = vrot.slane %v2629, 1
        %v2856 = vrot.slane %v2630, 1
        %v2857 = vsel %vm1375, %v2855, %v2856
        %v2858 = vrot.slane %v2631, 1
        %v2859 = vsel %vm1375, %v2856, %v2858
        %v2860 = vrot.slane %v2632, 1
        %v2861 = vsel %vm1375, %v2858, %v2860
        %v2862 = vrot.slane %v2633, 1
        %v2863 = vrot.slane %v2634, 1
        %v2864 = vsel %vm1375, %v2862, %v2863
        %v2865 = vrot.slane %v2635, 1
        %v2866 = vsel %vm1375, %v2863, %v2865
        %v2867 = vrot.slane %v2636, 1
        %v2868 = vsel %vm1375, %v2865, %v2867
        %v2869 = vrot.slane %v2637, 1
        %v2870 = vrot.slane %v2638, 1
        %v2871 = vsel %vm1375, %v2869, %v2870
        %v2872 = vrot.slane %v2639, 1
        %v2873 = vsel %vm1375, %v2870, %v2872
        %v2874 = vrot.slane %v2640, 1
        %v2875 = vsel %vm1375, %v2872, %v2874
        %v2876 = vrot.slane %v2641, 1
        %v2877 = vrot.slane %v2642, 1
        %v2878 = vsel %vm1375, %v2876, %v2877
        %v2879 = vrot.slane %v2643, 1
        %v2880 = vsel %vm1375, %v2877, %v2879
        %v2881 = vrot.slane %v2644, 1
        %v2882 = vsel %vm1375, %v2879, %v2881
        %v2883 = vrot.slane %v2645, 1
        %v2884 = vrot.slane %v2646, 1
        %v2885 = vsel %vm1375, %v2883, %v2884
        %v2886 = vrot.slane %v2647, 1
        %v2887 = vsel %vm1375, %v2884, %v2886
        %v2888 = vrot.slane %v2648, 1
        %v2889 = vsel %vm1375, %v2886, %v2888
        %v2890 = vrot.slane %v2649, 1
        %v2891 = vrot.slane %v2650, 1
        %v2892 = vsel %vm1375, %v2890, %v2891
        %v2893 = vrot.slane %v2651, 1
        %v2894 = vsel %vm1375, %v2891, %v2893
        %v2895 = vrot.slane %v2652, 1
        %v2896 = vsel %vm1375, %v2893, %v2895
        %v2897 = vrot.slane %v2653, 1
        %v2898 = vrot.slane %v2654, 1
        %v2899 = vsel %vm1375, %v2897, %v2898
        %v2900 = vrot.slane %v2655, 1
        %v2901 = vsel %vm1375, %v2898, %v2900
        %v2902 = vrot.slane %v2656, 1
        %v2903 = vsel %vm1375, %v2900, %v2902
        %v2904 = vrot.slane %v2657, 1
        %v2905 = vrot.slane %v2658, 1
        %v2906 = vsel %vm1375, %v2904, %v2905
        %v2907 = vrot.slane %v2659, 1
        %v2908 = vsel %vm1375, %v2905, %v2907
        %v2909 = vrot.slane %v2660, 1
        %v2910 = vsel %vm1375, %v2907, %v2909
        %v2911 = vrot.slane %v2661, 1
        %v2912 = vrot.slane %v2662, 1
        %v2913 = vsel %vm1375, %v2911, %v2912
        %v2914 = vrot.slane %v2663, 1
        %v2915 = vsel %vm1375, %v2912, %v2914
        %v2916 = vrot.slane %v2664, 1
        %v2917 = vsel %vm1375, %v2914, %v2916
        %v2918 = vrot.slane %v2665, 1
        %v2919 = vrot.slane %v2666, 1
        %v2920 = vsel %vm1375, %v2918, %v2919
        %v2921 = vrot.slane %v2667, 1
        %v2922 = vsel %vm1375, %v2919, %v2921
        %v2923 = vrot.slane %v2668, 1
        %v2924 = vsel %vm1375, %v2921, %v2923
        %v2925 = vrot.slane %v2669, 1
        %v2926 = vrot.slane %v2670, 1
        %v2927 = vsel %vm1375, %v2925, %v2926
        %v2928 = vrot.slane %v2671, 1
        %v2929 = vsel %vm1375, %v2926, %v2928
        %v2930 = vrot.slane %v2672, 1
        %v2931 = vsel %vm1375, %v2928, %v2930
        %v2932 = vrot.slane %v2673, 1
        %v2933 = vrot.slane %v2674, 1
        %v2934 = vsel %vm1375, %v2932, %v2933
        %v2935 = vrot.slane %v2675, 1
        %v2936 = vsel %vm1375, %v2933, %v2935
        %v2937 = vrot.slane %v2676, 1
        %v2938 = vsel %vm1375, %v2935, %v2937
        %v2939 = vrot.slane %v2677, 1
        %v2940 = vrot.slane %v2678, 1
        %v2941 = vsel %vm1375, %v2939, %v2940
        %v2942 = vrot.slane %v2679, 1
        %v2943 = vsel %vm1375, %v2940, %v2942
        %v2944 = vrot.slane %v2680, 1
        %v2945 = vsel %vm1375, %v2942, %v2944
        %v2946 = vrot.slane %v2681, 1
        %v2947 = vrot.slane %v2682, 1
        %v2948 = vsel %vm1375, %v2946, %v2947
        %v2949 = vrot.slane %v2683, 1
        %v2950 = vsel %vm1375, %v2947, %v2949
        %v2951 = vrot.slane %v2684, 1
        %v2952 = vsel %vm1375, %v2949, %v2951
        %v2953 = vrot.slane %v2685, 1
        %v2954 = vrot.slane %v2686, 1
        %v2955 = vsel %vm1375, %v2953, %v2954
        %v2956 = vrot.slane %v2687, 1
        %v2957 = vsel %vm1375, %v2954, %v2956
        %v2958 = vrot.slane %v2688, 1
        %v2959 = vsel %vm1375, %v2956, %v2958
        %v2960 = vrot.slane %v2689, 1
        %v2961 = vrot.slane %v2690, 1
        %v2962 = vsel %vm1375, %v2960, %v2961
        %v2963 = vrot.slane %v2691, 1
        %v2964 = vsel %vm1375, %v2961, %v2963
        %v2965 = vrot.slane %v2692, 1
        %v2966 = vsel %vm1375, %v2963, %v2965
        %v2967 = vrot.slane %v2693, 1
        %v2968 = vrot.slane %v2694, 1
        %v2969 = vsel %vm1375, %v2967, %v2968
        %v2970 = vrot.slane %v2695, 1
        %v2971 = vsel %vm1375, %v2968, %v2970
        %v2972 = vrot.slane %v2696, 1
        %v2973 = vsel %vm1375, %v2970, %v2972
        %v2974 = vrot.slane %v2697, 1
        %v2975 = vrot.slane %v2698, 1
        %v2976 = vsel %vm1375, %v2974, %v2975
        %v2977 = vrot.slane %v2699, 1
        %v2978 = vsel %vm1375, %v2975, %v2977
        %v2979 = vrot.slane %v2700, 1
        %v2980 = vsel %vm1375, %v2977, %v2979
        %v2981 = vrot.slane %v2701, 1
        %v2982 = vrot.slane %v2702, 1
        %v2983 = vsel %vm1375, %v2981, %v2982
        %v2984 = vrot.slane %v2703, 1
        %v2985 = vsel %vm1375, %v2982, %v2984
        %v2986 = vrot.slane %v2704, 1
        %v2987 = vsel %vm1375, %v2984, %v2986
        %v2988 = vrot.slane %v2705, 1
        %v2989 = vrot.slane %v2706, 1
        %v2990 = vsel %vm1375, %v2988, %v2989
        %v2991 = vrot.slane %v2707, 1
        %v2992 = vsel %vm1375, %v2989, %v2991
        %v2993 = vrot.slane %v2708, 1
        %v2994 = vsel %vm1375, %v2991, %v2993
        %v3099 = vadd.f32 %v2497, %v2815
        %v3100 = vadd.f32 %v2498, %v2817
        %v3101 = vadd.f32 %v2499, %v2819
        %v3102 = vadd.f32 %v2500, %v2818
        %v3103 = vadd.f32 %v2501, %v2822
        %v3104 = vadd.f32 %v2502, %v2824
        %v3105 = vadd.f32 %v2503, %v2826
        %v3106 = vadd.f32 %v2504, %v2825
        %v3107 = vadd.f32 %v2505, %v2829
        %v3108 = vadd.f32 %v2506, %v2831
        %v3109 = vadd.f32 %v2507, %v2833
        %v3110 = vadd.f32 %v2508, %v2832
        %v3111 = vadd.f32 %v2509, %v2836
        %v3112 = vadd.f32 %v2510, %v2838
        %v3113 = vadd.f32 %v2511, %v2840
        %v3114 = vadd.f32 %v2512, %v2839
        %v3115 = vadd.f32 %v2513, %v2843
        %v3116 = vadd.f32 %v2514, %v2845
        %v3117 = vadd.f32 %v2515, %v2847
        %v3118 = vadd.f32 %v2516, %v2846
        %v3119 = vadd.f32 %v2517, %v2850
        %v3120 = vadd.f32 %v2518, %v2852
        %v3121 = vadd.f32 %v2519, %v2854
        %v3122 = vadd.f32 %v2520, %v2853
        %v3123 = vadd.f32 %v2521, %v2857
        %v3124 = vadd.f32 %v2522, %v2859
        %v3125 = vadd.f32 %v2523, %v2861
        %v3126 = vadd.f32 %v2524, %v2860
        %v3127 = vadd.f32 %v2525, %v2864
        %v3128 = vadd.f32 %v2526, %v2866
        %v3129 = vadd.f32 %v2527, %v2868
        %v3130 = vadd.f32 %v2528, %v2867
        %v3131 = vadd.f32 %v2529, %v2871
        %v3132 = vadd.f32 %v2530, %v2873
        %v3133 = vadd.f32 %v2531, %v2875
        %v3134 = vadd.f32 %v2532, %v2874
        %v3135 = vadd.f32 %v2533, %v2878
        %v3136 = vadd.f32 %v2534, %v2880
        %v3137 = vadd.f32 %v2535, %v2882
        %v3138 = vadd.f32 %v2536, %v2881
        %v3139 = vadd.f32 %v2537, %v2885
        %v3140 = vadd.f32 %v2538, %v2887
        %v3141 = vadd.f32 %v2539, %v2889
        %v3142 = vadd.f32 %v2540, %v2888
        %v3143 = vadd.f32 %v2541, %v2892
        %v3144 = vadd.f32 %v2542, %v2894
        %v3145 = vadd.f32 %v2543, %v2896
        %v3146 = vadd.f32 %v2544, %v2895
        %v3147 = vadd.f32 %v2545, %v2899
        %v3148 = vadd.f32 %v2546, %v2901
        %v3149 = vadd.f32 %v2547, %v2903
        %v3150 = vadd.f32 %v2548, %v2902
        %v3151 = vadd.f32 %v2549, %v2906
        %v3152 = vadd.f32 %v2550, %v2908
        %v3153 = vadd.f32 %v2551, %v2910
        %v3154 = vadd.f32 %v2552, %v2909
        %v3155 = vadd.f32 %v2553, %v2913
        %v3156 = vadd.f32 %v2554, %v2915
        %v3157 = vadd.f32 %v2555, %v2917
        %v3158 = vadd.f32 %v2556, %v2916
        %v3159 = vadd.f32 %v2557, %v2920
        %v3160 = vadd.f32 %v2558, %v2922
        %v3161 = vadd.f32 %v2559, %v2924
        %v3162 = vadd.f32 %v2560, %v2923
        %v3163 = vadd.f32 %v2561, %v2927
        %v3164 = vadd.f32 %v2562, %v2929
        %v3165 = vadd.f32 %v2563, %v2931
        %v3166 = vadd.f32 %v2564, %v2930
        %v3167 = vadd.f32 %v2565, %v2934
        %v3168 = vadd.f32 %v2566, %v2936
        %v3169 = vadd.f32 %v2567, %v2938
        %v3170 = vadd.f32 %v2568, %v2937
        %v3171 = vadd.f32 %v2569, %v2941
        %v3172 = vadd.f32 %v2570, %v2943
        %v3173 = vadd.f32 %v2571, %v2945
        %v3174 = vadd.f32 %v2572, %v2944
        %v3175 = vadd.f32 %v2573, %v2948
        %v3176 = vadd.f32 %v2574, %v2950
        %v3177 = vadd.f32 %v2575, %v2952
        %v3178 = vadd.f32 %v2576, %v2951
        %v3179 = vadd.f32 %v2577, %v2955
        %v3180 = vadd.f32 %v2578, %v2957
        %v3181 = vadd.f32 %v2579, %v2959
        %v3182 = vadd.f32 %v2580, %v2958
        %v3183 = vadd.f32 %v2581, %v2962
        %v3184 = vadd.f32 %v2582, %v2964
        %v3185 = vadd.f32 %v2583, %v2966
        %v3186 = vadd.f32 %v2584, %v2965
        %v3187 = vadd.f32 %v2585, %v2969
        %v3188 = vadd.f32 %v2586, %v2971
        %v3189 = vadd.f32 %v2587, %v2973
        %v3190 = vadd.f32 %v2588, %v2972
        %v3191 = vadd.f32 %v2589, %v2976
        %v3192 = vadd.f32 %v2590, %v2978
        %v3193 = vadd.f32 %v2591, %v2980
        %v3194 = vadd.f32 %v2592, %v2979
        %v3195 = vadd.f32 %v2593, %v2983
        %v3196 = vadd.f32 %v2594, %v2985
        %v3197 = vadd.f32 %v2595, %v2987
        %v3198 = vadd.f32 %v2596, %v2986
        %v3199 = vadd.f32 %v2597, %v2990
        %v3200 = vadd.f32 %v2598, %v2992
        %v3201 = vadd.f32 %v2599, %v2994
        %v3202 = vadd.f32 %v2600, %v2993
        %v3203 = vlaneseq
        %v3204 = vshrl.u32 %v3203, 7
        %v3205 = vsub.s32 5, %v3204
        %v3206 = vrot.slane %v393, %v3205
        %v3207 = vmul.f32 %v454, %v3206
        %v3208 = vmul.f32 %v459, %v3206
        %v3209 = vmul.f32 %v464, %v3206
        %v3210 = vmul.f32 %v469, %v3206
        %v3211 = vmul.f32 %v474, %v3206
        %v3212 = vmul.f32 %v479, %v3206
        %v3213 = vmul.f32 %v484, %v3206
        %v3214 = vmul.f32 %v489, %v3206
        %v3215 = vmul.f32 %v494, %v3206
        %v3216 = vmul.f32 %v499, %v3206
        %v3217 = vmul.f32 %v504, %v3206
        %v3218 = vmul.f32 %v509, %v3206
        %v3219 = vmul.f32 %v514, %v3206
        %v3220 = vmul.f32 %v519, %v3206
        %v3221 = vmul.f32 %v524, %v3206
        %v3222 = vmul.f32 %v529, %v3206
        %v3223 = vmul.f32 %v534, %v3206
        %v3224 = vmul.f32 %v539, %v3206
        %v3225 = vmul.f32 %v544, %v3206
        %v3226 = vmul.f32 %v549, %v3206
        %v3227 = vmul.f32 %v554, %v3206
        %v3228 = vmul.f32 %v559, %v3206
        %v3229 = vmul.f32 %v564, %v3206
        %v3230 = vmul.f32 %v569, %v3206
        %v3231 = vmul.f32 %v574, %v3206
        %v3232 = vmul.f32 %v579, %v3206
        %v3233 = vmul.f32 %v584, %v3206
        %v3234 = vmul.f32 %v589, %v3206
        %v3235 = vmul.f32 %v594, %v3206
        %v3236 = vmul.f32 %v599, %v3206
        %v3237 = vmul.f32 %v604, %v3206
        %v3238 = vmul.f32 %v609, %v3206
        %v3239 = vmul.f32 %v614, %v3206
        %v3240 = vmul.f32 %v619, %v3206
        %v3241 = vmul.f32 %v624, %v3206
        %v3242 = vmul.f32 %v629, %v3206
        %v3243 = vmul.f32 %v634, %v3206
        %v3244 = vmul.f32 %v639, %v3206
        %v3245 = vmul.f32 %v644, %v3206
        %v3246 = vmul.f32 %v649, %v3206
        %v3247 = vmul.f32 %v654, %v3206
        %v3248 = vmul.f32 %v659, %v3206
        %v3249 = vmul.f32 %v664, %v3206
        %v3250 = vmul.f32 %v669, %v3206
        %v3251 = vmul.f32 %v674, %v3206
        %v3252 = vmul.f32 %v679, %v3206
        %v3253 = vmul.f32 %v684, %v3206
        %v3254 = vmul.f32 %v689, %v3206
        %v3255 = vmul.f32 %v694, %v3206
        %v3256 = vmul.f32 %v699, %v3206
        %v3257 = vmul.f32 %v704, %v3206
        %v3258 = vmul.f32 %v709, %v3206
        %v3259 = vmul.f32 %v714, %v3206
        %v3260 = vmul.f32 %v719, %v3206
        %v3261 = vmul.f32 %v724, %v3206
        %v3262 = vmul.f32 %v729, %v3206
        %v3263 = vmul.f32 %v734, %v3206
        %v3264 = vmul.f32 %v739, %v3206
        %v3265 = vmul.f32 %v744, %v3206
        %v3266 = vmul.f32 %v749, %v3206
        %v3267 = vmul.f32 %v754, %v3206
        %v3268 = vmul.f32 %v759, %v3206
        %v3269 = vmul.f32 %v764, %v3206
        %v3270 = vmul.f32 %v769, %v3206
        %v3271 = vmul.f32 %v774, %v3206
        %v3272 = vmul.f32 %v779, %v3206
        %v3273 = vmul.f32 %v784, %v3206
        %v3274 = vmul.f32 %v789, %v3206
        %v3275 = vmul.f32 %v794, %v3206
        %v3276 = vmul.f32 %v799, %v3206
        %v3277 = vmul.f32 %v804, %v3206
        %v3278 = vmul.f32 %v809, %v3206
        %v3279 = vmul.f32 %v814, %v3206
        %v3280 = vmul.f32 %v819, %v3206
        %v3281 = vmul.f32 %v824, %v3206
        %v3282 = vmul.f32 %v829, %v3206
        %v3283 = vmul.f32 %v834, %v3206
        %v3284 = vmul.f32 %v839, %v3206
        %v3285 = vmul.f32 %v844, %v3206
        %v3286 = vmul.f32 %v849, %v3206
        %v3287 = vmul.f32 %v854, %v3206
        %v3288 = vmul.f32 %v859, %v3206
        %v3289 = vmul.f32 %v864, %v3206
        %v3290 = vmul.f32 %v869, %v3206
        %v3291 = vmul.f32 %v874, %v3206
        %v3292 = vmul.f32 %v879, %v3206
        %v3293 = vmul.f32 %v884, %v3206
        %v3294 = vmul.f32 %v889, %v3206
        %v3295 = vmul.f32 %v894, %v3206
        %v3296 = vmul.f32 %v899, %v3206
        %v3297 = vmul.f32 %v904, %v3206
        %v3298 = vmul.f32 %v909, %v3206
        %v3299 = vmul.f32 %v914, %v3206
        %v3300 = vmul.f32 %v919, %v3206
        %v3301 = vmul.f32 %v924, %v3206
        %v3302 = vmul.f32 %v929, %v3206
        %v3303 = vmul.f32 %v934, %v3206
        %v3304 = vmul.f32 %v939, %v3206
        %v3305 = vmul.f32 %v944, %v3206
        %v3306 = vmul.f32 %v949, %v3206
        %v3307 = vmul.f32 %v2372, %v3206
        %v3308 = vmul.f32 %v2377, %v3206
        %v3309 = vmul.f32 %v2382, %v3206
        %v3310 = vmul.f32 %v2387, %v3206
        %v3415 = vrot.slane %v3207, 2
        %v3416 = vrot.slane %v3208, 2
        %v3417 = vsel %vm1978, %v3415, %v3416
        %v3418 = vrot.slane %v3209, 2
        %v3419 = vsel %vm1978, %v3416, %v3418
        %v3420 = vrot.slane %v3210, 2
        %v3421 = vsel %vm1978, %v3418, %v3420
        %v3422 = vrot.slane %v3211, 2
        %v3423 = vrot.slane %v3212, 2
        %v3424 = vsel %vm1978, %v3422, %v3423
        %v3425 = vrot.slane %v3213, 2
        %v3426 = vsel %vm1978, %v3423, %v3425
        %v3427 = vrot.slane %v3214, 2
        %v3428 = vsel %vm1978, %v3425, %v3427
        %v3429 = vrot.slane %v3215, 2
        %v3430 = vrot.slane %v3216, 2
        %v3431 = vsel %vm1978, %v3429, %v3430
        %v3432 = vrot.slane %v3217, 2
        %v3433 = vsel %vm1978, %v3430, %v3432
        %v3434 = vrot.slane %v3218, 2
        %v3435 = vsel %vm1978, %v3432, %v3434
        %v3436 = vrot.slane %v3219, 2
        %v3437 = vrot.slane %v3220, 2
        %v3438 = vsel %vm1978, %v3436, %v3437
        %v3439 = vrot.slane %v3221, 2
        %v3440 = vsel %vm1978, %v3437, %v3439
        %v3441 = vrot.slane %v3222, 2
        %v3442 = vsel %vm1978, %v3439, %v3441
        %v3443 = vrot.slane %v3223, 2
        %v3444 = vrot.slane %v3224, 2
        %v3445 = vsel %vm1978, %v3443, %v3444
        %v3446 = vrot.slane %v3225, 2
        %v3447 = vsel %vm1978, %v3444, %v3446
        %v3448 = vrot.slane %v3226, 2
        %v3449 = vsel %vm1978, %v3446, %v3448
        %v3450 = vrot.slane %v3227, 2
        %v3451 = vrot.slane %v3228, 2
        %v3452 = vsel %vm1978, %v3450, %v3451
        %v3453 = vrot.slane %v3229, 2
        %v3454 = vsel %vm1978, %v3451, %v3453
        %v3455 = vrot.slane %v3230, 2
        %v3456 = vsel %vm1978, %v3453, %v3455
        %v3457 = vrot.slane %v3231, 2
        %v3458 = vrot.slane %v3232, 2
        %v3459 = vsel %vm1978, %v3457, %v3458
        %v3460 = vrot.slane %v3233, 2
        %v3461 = vsel %vm1978, %v3458, %v3460
        %v3462 = vrot.slane %v3234, 2
        %v3463 = vsel %vm1978, %v3460, %v3462
        %v3464 = vrot.slane %v3235, 2
        %v3465 = vrot.slane %v3236, 2
        %v3466 = vsel %vm1978, %v3464, %v3465
        %v3467 = vrot.slane %v3237, 2
        %v3468 = vsel %vm1978, %v3465, %v3467
        %v3469 = vrot.slane %v3238, 2
        %v3470 = vsel %vm1978, %v3467, %v3469
        %v3471 = vrot.slane %v3239, 2
        %v3472 = vrot.slane %v3240, 2
        %v3473 = vsel %vm1978, %v3471, %v3472
        %v3474 = vrot.slane %v3241, 2
        %v3475 = vsel %vm1978, %v3472, %v3474
        %v3476 = vrot.slane %v3242, 2
        %v3477 = vsel %vm1978, %v3474, %v3476
        %v3478 = vrot.slane %v3243, 2
        %v3479 = vrot.slane %v3244, 2
        %v3480 = vsel %vm1978, %v3478, %v3479
        %v3481 = vrot.slane %v3245, 2
        %v3482 = vsel %vm1978, %v3479, %v3481
        %v3483 = vrot.slane %v3246, 2
        %v3484 = vsel %vm1978, %v3481, %v3483
        %v3485 = vrot.slane %v3247, 2
        %v3486 = vrot.slane %v3248, 2
        %v3487 = vsel %vm1978, %v3485, %v3486
        %v3488 = vrot.slane %v3249, 2
        %v3489 = vsel %vm1978, %v3486, %v3488
        %v3490 = vrot.slane %v3250, 2
        %v3491 = vsel %vm1978, %v3488, %v3490
        %v3492 = vrot.slane %v3251, 2
        %v3493 = vrot.slane %v3252, 2
        %v3494 = vsel %vm1978, %v3492, %v3493
        %v3495 = vrot.slane %v3253, 2
        %v3496 = vsel %vm1978, %v3493, %v3495
        %v3497 = vrot.slane %v3254, 2
        %v3498 = vsel %vm1978, %v3495, %v3497
        %v3499 = vrot.slane %v3255, 2
        %v3500 = vrot.slane %v3256, 2
        %v3501 = vsel %vm1978, %v3499, %v3500
        %v3502 = vrot.slane %v3257, 2
        %v3503 = vsel %vm1978, %v3500, %v3502
        %v3504 = vrot.slane %v3258, 2
        %v3505 = vsel %vm1978, %v3502, %v3504
        %v3506 = vrot.slane %v3259, 2
        %v3507 = vrot.slane %v3260, 2
        %v3508 = vsel %vm1978, %v3506, %v3507
        %v3509 = vrot.slane %v3261, 2
        %v3510 = vsel %vm1978, %v3507, %v3509
        %v3511 = vrot.slane %v3262, 2
        %v3512 = vsel %vm1978, %v3509, %v3511
        %v3513 = vrot.slane %v3263, 2
        %v3514 = vrot.slane %v3264, 2
        %v3515 = vsel %vm1978, %v3513, %v3514
        %v3516 = vrot.slane %v3265, 2
        %v3517 = vsel %vm1978, %v3514, %v3516
        %v3518 = vrot.slane %v3266, 2
        %v3519 = vsel %vm1978, %v3516, %v3518
        %v3520 = vrot.slane %v3267, 2
        %v3521 = vrot.slane %v3268, 2
        %v3522 = vsel %vm1978, %v3520, %v3521
        %v3523 = vrot.slane %v3269, 2
        %v3524 = vsel %vm1978, %v3521, %v3523
        %v3525 = vrot.slane %v3270, 2
        %v3526 = vsel %vm1978, %v3523, %v3525
        %v3527 = vrot.slane %v3271, 2
        %v3528 = vrot.slane %v3272, 2
        %v3529 = vsel %vm1978, %v3527, %v3528
        %v3530 = vrot.slane %v3273, 2
        %v3531 = vsel %vm1978, %v3528, %v3530
        %v3532 = vrot.slane %v3274, 2
        %v3533 = vsel %vm1978, %v3530, %v3532
        %v3534 = vrot.slane %v3275, 2
        %v3535 = vrot.slane %v3276, 2
        %v3536 = vsel %vm1978, %v3534, %v3535
        %v3537 = vrot.slane %v3277, 2
        %v3538 = vsel %vm1978, %v3535, %v3537
        %v3539 = vrot.slane %v3278, 2
        %v3540 = vsel %vm1978, %v3537, %v3539
        %v3541 = vrot.slane %v3279, 2
        %v3542 = vrot.slane %v3280, 2
        %v3543 = vsel %vm1978, %v3541, %v3542
        %v3544 = vrot.slane %v3281, 2
        %v3545 = vsel %vm1978, %v3542, %v3544
        %v3546 = vrot.slane %v3282, 2
        %v3547 = vsel %vm1978, %v3544, %v3546
        %v3548 = vrot.slane %v3283, 2
        %v3549 = vrot.slane %v3284, 2
        %v3550 = vsel %vm1978, %v3548, %v3549
        %v3551 = vrot.slane %v3285, 2
        %v3552 = vsel %vm1978, %v3549, %v3551
        %v3553 = vrot.slane %v3286, 2
        %v3554 = vsel %vm1978, %v3551, %v3553
        %v3555 = vrot.slane %v3287, 2
        %v3556 = vrot.slane %v3288, 2
        %v3557 = vsel %vm1978, %v3555, %v3556
        %v3558 = vrot.slane %v3289, 2
        %v3559 = vsel %vm1978, %v3556, %v3558
        %v3560 = vrot.slane %v3290, 2
        %v3561 = vsel %vm1978, %v3558, %v3560
        %v3562 = vrot.slane %v3291, 2
        %v3563 = vrot.slane %v3292, 2
        %v3564 = vsel %vm1978, %v3562, %v3563
        %v3565 = vrot.slane %v3293, 2
        %v3566 = vsel %vm1978, %v3563, %v3565
        %v3567 = vrot.slane %v3294, 2
        %v3568 = vsel %vm1978, %v3565, %v3567
        %v3569 = vrot.slane %v3295, 2
        %v3570 = vrot.slane %v3296, 2
        %v3571 = vsel %vm1978, %v3569, %v3570
        %v3572 = vrot.slane %v3297, 2
        %v3573 = vsel %vm1978, %v3570, %v3572
        %v3574 = vrot.slane %v3298, 2
        %v3575 = vsel %vm1978, %v3572, %v3574
        %v3576 = vrot.slane %v3299, 2
        %v3577 = vrot.slane %v3300, 2
        %v3578 = vsel %vm1978, %v3576, %v3577
        %v3579 = vrot.slane %v3301, 2
        %v3580 = vsel %vm1978, %v3577, %v3579
        %v3581 = vrot.slane %v3302, 2
        %v3582 = vsel %vm1978, %v3579, %v3581
        %v3583 = vrot.slane %v3303, 2
        %v3584 = vrot.slane %v3304, 2
        %v3585 = vsel %vm1978, %v3583, %v3584
        %v3586 = vrot.slane %v3305, 2
        %v3587 = vsel %vm1978, %v3584, %v3586
        %v3588 = vrot.slane %v3306, 2
        %v3589 = vsel %vm1978, %v3586, %v3588
        %v3590 = vrot.slane %v3307, 2
        %v3591 = vrot.slane %v3308, 2
        %v3592 = vsel %vm1978, %v3590, %v3591
        %v3593 = vrot.slane %v3309, 2
        %v3594 = vsel %vm1978, %v3591, %v3593
        %v3595 = vrot.slane %v3310, 2
        %v3596 = vsel %vm1978, %v3593, %v3595
        %v3701 = vadd.f32 %v3099, %v3417
        %v3702 = vadd.f32 %v3100, %v3419
        %v3703 = vadd.f32 %v3101, %v3421
        %v3704 = vadd.f32 %v3102, %v3420
        %v3705 = vadd.f32 %v3103, %v3424
        %v3706 = vadd.f32 %v3104, %v3426
        %v3707 = vadd.f32 %v3105, %v3428
        %v3708 = vadd.f32 %v3106, %v3427
        %v3709 = vadd.f32 %v3107, %v3431
        %v3710 = vadd.f32 %v3108, %v3433
        %v3711 = vadd.f32 %v3109, %v3435
        %v3712 = vadd.f32 %v3110, %v3434
        %v3713 = vadd.f32 %v3111, %v3438
        %v3714 = vadd.f32 %v3112, %v3440
        %v3715 = vadd.f32 %v3113, %v3442
        %v3716 = vadd.f32 %v3114, %v3441
        %v3717 = vadd.f32 %v3115, %v3445
        %v3718 = vadd.f32 %v3116, %v3447
        %v3719 = vadd.f32 %v3117, %v3449
        %v3720 = vadd.f32 %v3118, %v3448
        %v3721 = vadd.f32 %v3119, %v3452
        %v3722 = vadd.f32 %v3120, %v3454
        %v3723 = vadd.f32 %v3121, %v3456
        %v3724 = vadd.f32 %v3122, %v3455
        %v3725 = vadd.f32 %v3123, %v3459
        %v3726 = vadd.f32 %v3124, %v3461
        %v3727 = vadd.f32 %v3125, %v3463
        %v3728 = vadd.f32 %v3126, %v3462
        %v3729 = vadd.f32 %v3127, %v3466
        %v3730 = vadd.f32 %v3128, %v3468
        %v3731 = vadd.f32 %v3129, %v3470
        %v3732 = vadd.f32 %v3130, %v3469
        %v3733 = vadd.f32 %v3131, %v3473
        %v3734 = vadd.f32 %v3132, %v3475
        %v3735 = vadd.f32 %v3133, %v3477
        %v3736 = vadd.f32 %v3134, %v3476
        %v3737 = vadd.f32 %v3135, %v3480
        %v3738 = vadd.f32 %v3136, %v3482
        %v3739 = vadd.f32 %v3137, %v3484
        %v3740 = vadd.f32 %v3138, %v3483
        %v3741 = vadd.f32 %v3139, %v3487
        %v3742 = vadd.f32 %v3140, %v3489
        %v3743 = vadd.f32 %v3141, %v3491
        %v3744 = vadd.f32 %v3142, %v3490
        %v3745 = vadd.f32 %v3143, %v3494
        %v3746 = vadd.f32 %v3144, %v3496
        %v3747 = vadd.f32 %v3145, %v3498
        %v3748 = vadd.f32 %v3146, %v3497
        %v3749 = vadd.f32 %v3147, %v3501
        %v3750 = vadd.f32 %v3148, %v3503
        %v3751 = vadd.f32 %v3149, %v3505
        %v3752 = vadd.f32 %v3150, %v3504
        %v3753 = vadd.f32 %v3151, %v3508
        %v3754 = vadd.f32 %v3152, %v3510
        %v3755 = vadd.f32 %v3153, %v3512
        %v3756 = vadd.f32 %v3154, %v3511
        %v3757 = vadd.f32 %v3155, %v3515
        %v3758 = vadd.f32 %v3156, %v3517
        %v3759 = vadd.f32 %v3157, %v3519
        %v3760 = vadd.f32 %v3158, %v3518
        %v3761 = vadd.f32 %v3159, %v3522
        %v3762 = vadd.f32 %v3160, %v3524
        %v3763 = vadd.f32 %v3161, %v3526
        %v3764 = vadd.f32 %v3162, %v3525
        %v3765 = vadd.f32 %v3163, %v3529
        %v3766 = vadd.f32 %v3164, %v3531
        %v3767 = vadd.f32 %v3165, %v3533
        %v3768 = vadd.f32 %v3166, %v3532
        %v3769 = vadd.f32 %v3167, %v3536
        %v3770 = vadd.f32 %v3168, %v3538
        %v3771 = vadd.f32 %v3169, %v3540
        %v3772 = vadd.f32 %v3170, %v3539
        %v3773 = vadd.f32 %v3171, %v3543
        %v3774 = vadd.f32 %v3172, %v3545
        %v3775 = vadd.f32 %v3173, %v3547
        %v3776 = vadd.f32 %v3174, %v3546
        %v3777 = vadd.f32 %v3175, %v3550
        %v3778 = vadd.f32 %v3176, %v3552
        %v3779 = vadd.f32 %v3177, %v3554
        %v3780 = vadd.f32 %v3178, %v3553
        %v3781 = vadd.f32 %v3179, %v3557
        %v3782 = vadd.f32 %v3180, %v3559
        %v3783 = vadd.f32 %v3181, %v3561
        %v3784 = vadd.f32 %v3182, %v3560
        %v3785 = vadd.f32 %v3183, %v3564
        %v3786 = vadd.f32 %v3184, %v3566
        %v3787 = vadd.f32 %v3185, %v3568
        %v3788 = vadd.f32 %v3186, %v3567
        %v3789 = vadd.f32 %v3187, %v3571
        %v3790 = vadd.f32 %v3188, %v3573
        %v3791 = vadd.f32 %v3189, %v3575
        %v3792 = vadd.f32 %v3190, %v3574
        %v3793 = vadd.f32 %v3191, %v3578
        %v3794 = vadd.f32 %v3192, %v3580
        %v3795 = vadd.f32 %v3193, %v3582
        %v3796 = vadd.f32 %v3194, %v3581
        %v3797 = vadd.f32 %v3195, %v3585
        %v3798 = vadd.f32 %v3196, %v3587
        %v3799 = vadd.f32 %v3197, %v3589
        %v3800 = vadd.f32 %v3198, %v3588
        %v3801 = vadd.f32 %v3199, %v3592
        %v3802 = vadd.f32 %v3200, %v3594
        %v3803 = vadd.f32 %v3201, %v3596
        %v3804 = vadd.f32 %v3202, %v3595
        %3806 = vset.pattern.permute.xlu0 0
        %3807 = vperm.xlu0 %3806, %v389
        %v3808 = vpop.permute.xlu0 %3807
        %3811 = vset.pattern.permute.xlu0 0
        %3812 = vperm.xlu0 %3811, %v390
        %v3813 = vpop.permute.xlu0 %3812
        %3816 = vset.pattern.permute.xlu0 0
        %3817 = vperm.xlu0 %3816, %v391
        %v3818 = vpop.permute.xlu0 %3817
        %3821 = vset.pattern.permute.xlu0 0
        %3822 = vperm.xlu0 %3821, %v392
        %v3823 = vpop.permute.xlu0 %3822
        %v3825 = vlaneseq
        %v3826 = vshrl.u32 %v3825, 7
        %v3827 = vsub.s32 6, %v3826
        %v3828 = vrot.slane %v393, %v3827
        %v3829 = vmul.f32 %v474, %v3828
        %v3830 = vmul.f32 %v479, %v3828
        %v3831 = vmul.f32 %v484, %v3828
        %v3832 = vmul.f32 %v489, %v3828
        %v3833 = vmul.f32 %v494, %v3828
        %v3834 = vmul.f32 %v499, %v3828
        %v3835 = vmul.f32 %v504, %v3828
        %v3836 = vmul.f32 %v509, %v3828
        %v3837 = vmul.f32 %v514, %v3828
        %v3838 = vmul.f32 %v519, %v3828
        %v3839 = vmul.f32 %v524, %v3828
        %v3840 = vmul.f32 %v529, %v3828
        %v3841 = vmul.f32 %v534, %v3828
        %v3842 = vmul.f32 %v539, %v3828
        %v3843 = vmul.f32 %v544, %v3828
        %v3844 = vmul.f32 %v549, %v3828
        %v3845 = vmul.f32 %v554, %v3828
        %v3846 = vmul.f32 %v559, %v3828
        %v3847 = vmul.f32 %v564, %v3828
        %v3848 = vmul.f32 %v569, %v3828
        %v3849 = vmul.f32 %v574, %v3828
        %v3850 = vmul.f32 %v579, %v3828
        %v3851 = vmul.f32 %v584, %v3828
        %v3852 = vmul.f32 %v589, %v3828
        %v3853 = vmul.f32 %v594, %v3828
        %v3854 = vmul.f32 %v599, %v3828
        %v3855 = vmul.f32 %v604, %v3828
        %v3856 = vmul.f32 %v609, %v3828
        %v3857 = vmul.f32 %v614, %v3828
        %v3858 = vmul.f32 %v619, %v3828
        %v3859 = vmul.f32 %v624, %v3828
        %v3860 = vmul.f32 %v629, %v3828
        %v3861 = vmul.f32 %v634, %v3828
        %v3862 = vmul.f32 %v639, %v3828
        %v3863 = vmul.f32 %v644, %v3828
        %v3864 = vmul.f32 %v649, %v3828
        %v3865 = vmul.f32 %v654, %v3828
        %v3866 = vmul.f32 %v659, %v3828
        %v3867 = vmul.f32 %v664, %v3828
        %v3868 = vmul.f32 %v669, %v3828
        %v3869 = vmul.f32 %v674, %v3828
        %v3870 = vmul.f32 %v679, %v3828
        %v3871 = vmul.f32 %v684, %v3828
        %v3872 = vmul.f32 %v689, %v3828
        %v3873 = vmul.f32 %v694, %v3828
        %v3874 = vmul.f32 %v699, %v3828
        %v3875 = vmul.f32 %v704, %v3828
        %v3876 = vmul.f32 %v709, %v3828
        %v3877 = vmul.f32 %v714, %v3828
        %v3878 = vmul.f32 %v719, %v3828
        %v3879 = vmul.f32 %v724, %v3828
        %v3880 = vmul.f32 %v729, %v3828
        %v3881 = vmul.f32 %v734, %v3828
        %v3882 = vmul.f32 %v739, %v3828
        %v3883 = vmul.f32 %v744, %v3828
        %v3884 = vmul.f32 %v749, %v3828
        %v3885 = vmul.f32 %v754, %v3828
        %v3886 = vmul.f32 %v759, %v3828
        %v3887 = vmul.f32 %v764, %v3828
        %v3888 = vmul.f32 %v769, %v3828
        %v3889 = vmul.f32 %v774, %v3828
        %v3890 = vmul.f32 %v779, %v3828
        %v3891 = vmul.f32 %v784, %v3828
        %v3892 = vmul.f32 %v789, %v3828
        %v3893 = vmul.f32 %v794, %v3828
        %v3894 = vmul.f32 %v799, %v3828
        %v3895 = vmul.f32 %v804, %v3828
        %v3896 = vmul.f32 %v809, %v3828
        %v3897 = vmul.f32 %v814, %v3828
        %v3898 = vmul.f32 %v819, %v3828
        %v3899 = vmul.f32 %v824, %v3828
        %v3900 = vmul.f32 %v829, %v3828
        %v3901 = vmul.f32 %v834, %v3828
        %v3902 = vmul.f32 %v839, %v3828
        %v3903 = vmul.f32 %v844, %v3828
        %v3904 = vmul.f32 %v849, %v3828
        %v3905 = vmul.f32 %v854, %v3828
        %v3906 = vmul.f32 %v859, %v3828
        %v3907 = vmul.f32 %v864, %v3828
        %v3908 = vmul.f32 %v869, %v3828
        %v3909 = vmul.f32 %v874, %v3828
        %v3910 = vmul.f32 %v879, %v3828
        %v3911 = vmul.f32 %v884, %v3828
        %v3912 = vmul.f32 %v889, %v3828
        %v3913 = vmul.f32 %v894, %v3828
        %v3914 = vmul.f32 %v899, %v3828
        %v3915 = vmul.f32 %v904, %v3828
        %v3916 = vmul.f32 %v909, %v3828
        %v3917 = vmul.f32 %v914, %v3828
        %v3918 = vmul.f32 %v919, %v3828
        %v3919 = vmul.f32 %v924, %v3828
        %v3920 = vmul.f32 %v929, %v3828
        %v3921 = vmul.f32 %v934, %v3828
        %v3922 = vmul.f32 %v939, %v3828
        %v3923 = vmul.f32 %v944, %v3828
        %v3924 = vmul.f32 %v949, %v3828
        %v3925 = vmul.f32 %v2372, %v3828
        %v3926 = vmul.f32 %v2377, %v3828
        %v3927 = vmul.f32 %v2382, %v3828
        %v3928 = vmul.f32 %v2387, %v3828
        %v3929 = vmul.f32 %v3808, %v3828
        %v3930 = vmul.f32 %v3813, %v3828
        %v3931 = vmul.f32 %v3818, %v3828
        %v3932 = vmul.f32 %v3823, %v3828
        %v3933 = vadd.f32 %v3701, %v3829
        %v3934 = vadd.f32 %v3702, %v3830
        %v3935 = vadd.f32 %v3703, %v3831
        %v3936 = vadd.f32 %v3704, %v3832
        %v3937 = vadd.f32 %v3705, %v3833
        %v3938 = vadd.f32 %v3706, %v3834
        %v3939 = vadd.f32 %v3707, %v3835
        %v3940 = vadd.f32 %v3708, %v3836
        %v3941 = vadd.f32 %v3709, %v3837
        %v3942 = vadd.f32 %v3710, %v3838
        %v3943 = vadd.f32 %v3711, %v3839
        %v3944 = vadd.f32 %v3712, %v3840
        %v3945 = vadd.f32 %v3713, %v3841
        %v3946 = vadd.f32 %v3714, %v3842
        %v3947 = vadd.f32 %v3715, %v3843
        %v3948 = vadd.f32 %v3716, %v3844
        %v3949 = vadd.f32 %v3717, %v3845
        %v3950 = vadd.f32 %v3718, %v3846
        %v3951 = vadd.f32 %v3719, %v3847
        %v3952 = vadd.f32 %v3720, %v3848
        %v3953 = vadd.f32 %v3721, %v3849
        %v3954 = vadd.f32 %v3722, %v3850
        %v3955 = vadd.f32 %v3723, %v3851
        %v3956 = vadd.f32 %v3724, %v3852
        %v3957 = vadd.f32 %v3725, %v3853
        %v3958 = vadd.f32 %v3726, %v3854
        %v3959 = vadd.f32 %v3727, %v3855
        %v3960 = vadd.f32 %v3728, %v3856
        %v3961 = vadd.f32 %v3729, %v3857
        %v3962 = vadd.f32 %v3730, %v3858
        %v3963 = vadd.f32 %v3731, %v3859
        %v3964 = vadd.f32 %v3732, %v3860
        %v3965 = vadd.f32 %v3733, %v3861
        %v3966 = vadd.f32 %v3734, %v3862
        %v3967 = vadd.f32 %v3735, %v3863
        %v3968 = vadd.f32 %v3736, %v3864
        %v3969 = vadd.f32 %v3737, %v3865
        %v3970 = vadd.f32 %v3738, %v3866
        %v3971 = vadd.f32 %v3739, %v3867
        %v3972 = vadd.f32 %v3740, %v3868
        %v3973 = vadd.f32 %v3741, %v3869
        %v3974 = vadd.f32 %v3742, %v3870
        %v3975 = vadd.f32 %v3743, %v3871
        %v3976 = vadd.f32 %v3744, %v3872
        %v3977 = vadd.f32 %v3745, %v3873
        %v3978 = vadd.f32 %v3746, %v3874
        %v3979 = vadd.f32 %v3747, %v3875
        %v3980 = vadd.f32 %v3748, %v3876
        %v3981 = vadd.f32 %v3749, %v3877
        %v3982 = vadd.f32 %v3750, %v3878
        %v3983 = vadd.f32 %v3751, %v3879
        %v3984 = vadd.f32 %v3752, %v3880
        %v3985 = vadd.f32 %v3753, %v3881
        %v3986 = vadd.f32 %v3754, %v3882
        %v3987 = vadd.f32 %v3755, %v3883
        %v3988 = vadd.f32 %v3756, %v3884
        %v3989 = vadd.f32 %v3757, %v3885
        %v3990 = vadd.f32 %v3758, %v3886
        %v3991 = vadd.f32 %v3759, %v3887
        %v3992 = vadd.f32 %v3760, %v3888
        %v3993 = vadd.f32 %v3761, %v3889
        %v3994 = vadd.f32 %v3762, %v3890
        %v3995 = vadd.f32 %v3763, %v3891
        %v3996 = vadd.f32 %v3764, %v3892
        %v3997 = vadd.f32 %v3765, %v3893
        %v3998 = vadd.f32 %v3766, %v3894
        %v3999 = vadd.f32 %v3767, %v3895
        %v4000 = vadd.f32 %v3768, %v3896
        %v4001 = vadd.f32 %v3769, %v3897
        %v4002 = vadd.f32 %v3770, %v3898
        %v4003 = vadd.f32 %v3771, %v3899
        %v4004 = vadd.f32 %v3772, %v3900
        %v4005 = vadd.f32 %v3773, %v3901
        %v4006 = vadd.f32 %v3774, %v3902
        %v4007 = vadd.f32 %v3775, %v3903
        %v4008 = vadd.f32 %v3776, %v3904
        %v4009 = vadd.f32 %v3777, %v3905
        %v4010 = vadd.f32 %v3778, %v3906
        %v4011 = vadd.f32 %v3779, %v3907
        %v4012 = vadd.f32 %v3780, %v3908
        %v4013 = vadd.f32 %v3781, %v3909
        %v4014 = vadd.f32 %v3782, %v3910
        %v4015 = vadd.f32 %v3783, %v3911
        %v4016 = vadd.f32 %v3784, %v3912
        %v4017 = vadd.f32 %v3785, %v3913
        %v4018 = vadd.f32 %v3786, %v3914
        %v4019 = vadd.f32 %v3787, %v3915
        %v4020 = vadd.f32 %v3788, %v3916
        %v4021 = vadd.f32 %v3789, %v3917
        %v4022 = vadd.f32 %v3790, %v3918
        %v4023 = vadd.f32 %v3791, %v3919
        %v4024 = vadd.f32 %v3792, %v3920
        %v4025 = vadd.f32 %v3793, %v3921
        %v4026 = vadd.f32 %v3794, %v3922
        %v4027 = vadd.f32 %v3795, %v3923
        %v4028 = vadd.f32 %v3796, %v3924
        %v4029 = vadd.f32 %v3797, %v3925
        %v4030 = vadd.f32 %v3798, %v3926
        %v4031 = vadd.f32 %v3799, %v3927
        %v4032 = vadd.f32 %v3800, %v3928
        %v4033 = vadd.f32 %v3801, %v3929
        %v4034 = vadd.f32 %v3802, %v3930
        %v4035 = vadd.f32 %v3803, %v3931
        %v4036 = vadd.f32 %v3804, %v3932
        %v4037 = vlaneseq
        %v4038 = vshrl.u32 %v4037, 7
        %v4039 = vsub.s32 7, %v4038
        %v4040 = vrot.slane %v393, %v4039
        %v4041 = vmul.f32 %v474, %v4040
        %v4042 = vmul.f32 %v479, %v4040
        %v4043 = vmul.f32 %v484, %v4040
        %v4044 = vmul.f32 %v489, %v4040
        %v4045 = vmul.f32 %v494, %v4040
        %v4046 = vmul.f32 %v499, %v4040
        %v4047 = vmul.f32 %v504, %v4040
        %v4048 = vmul.f32 %v509, %v4040
        %v4049 = vmul.f32 %v514, %v4040
        %v4050 = vmul.f32 %v519, %v4040
        %v4051 = vmul.f32 %v524, %v4040
        %v4052 = vmul.f32 %v529, %v4040
        %v4053 = vmul.f32 %v534, %v4040
        %v4054 = vmul.f32 %v539, %v4040
        %v4055 = vmul.f32 %v544, %v4040
        %v4056 = vmul.f32 %v549, %v4040
        %v4057 = vmul.f32 %v554, %v4040
        %v4058 = vmul.f32 %v559, %v4040
        %v4059 = vmul.f32 %v564, %v4040
        %v4060 = vmul.f32 %v569, %v4040
        %v4061 = vmul.f32 %v574, %v4040
        %v4062 = vmul.f32 %v579, %v4040
        %v4063 = vmul.f32 %v584, %v4040
        %v4064 = vmul.f32 %v589, %v4040
        %v4065 = vmul.f32 %v594, %v4040
        %v4066 = vmul.f32 %v599, %v4040
        %v4067 = vmul.f32 %v604, %v4040
        %v4068 = vmul.f32 %v609, %v4040
        %v4069 = vmul.f32 %v614, %v4040
        %v4070 = vmul.f32 %v619, %v4040
        %v4071 = vmul.f32 %v624, %v4040
        %v4072 = vmul.f32 %v629, %v4040
        %v4073 = vmul.f32 %v634, %v4040
        %v4074 = vmul.f32 %v639, %v4040
        %v4075 = vmul.f32 %v644, %v4040
        %v4076 = vmul.f32 %v649, %v4040
        %v4077 = vmul.f32 %v654, %v4040
        %v4078 = vmul.f32 %v659, %v4040
        %v4079 = vmul.f32 %v664, %v4040
        %v4080 = vmul.f32 %v669, %v4040
        %v4081 = vmul.f32 %v674, %v4040
        %v4082 = vmul.f32 %v679, %v4040
        %v4083 = vmul.f32 %v684, %v4040
        %v4084 = vmul.f32 %v689, %v4040
        %v4085 = vmul.f32 %v694, %v4040
        %v4086 = vmul.f32 %v699, %v4040
        %v4087 = vmul.f32 %v704, %v4040
        %v4088 = vmul.f32 %v709, %v4040
        %v4089 = vmul.f32 %v714, %v4040
        %v4090 = vmul.f32 %v719, %v4040
        %v4091 = vmul.f32 %v724, %v4040
        %v4092 = vmul.f32 %v729, %v4040
        %v4093 = vmul.f32 %v734, %v4040
        %v4094 = vmul.f32 %v739, %v4040
        %v4095 = vmul.f32 %v744, %v4040
        %v4096 = vmul.f32 %v749, %v4040
        %v4097 = vmul.f32 %v754, %v4040
        %v4098 = vmul.f32 %v759, %v4040
        %v4099 = vmul.f32 %v764, %v4040
        %v4100 = vmul.f32 %v769, %v4040
        %v4101 = vmul.f32 %v774, %v4040
        %v4102 = vmul.f32 %v779, %v4040
        %v4103 = vmul.f32 %v784, %v4040
        %v4104 = vmul.f32 %v789, %v4040
        %v4105 = vmul.f32 %v794, %v4040
        %v4106 = vmul.f32 %v799, %v4040
        %v4107 = vmul.f32 %v804, %v4040
        %v4108 = vmul.f32 %v809, %v4040
        %v4109 = vmul.f32 %v814, %v4040
        %v4110 = vmul.f32 %v819, %v4040
        %v4111 = vmul.f32 %v824, %v4040
        %v4112 = vmul.f32 %v829, %v4040
        %v4113 = vmul.f32 %v834, %v4040
        %v4114 = vmul.f32 %v839, %v4040
        %v4115 = vmul.f32 %v844, %v4040
        %v4116 = vmul.f32 %v849, %v4040
        %v4117 = vmul.f32 %v854, %v4040
        %v4118 = vmul.f32 %v859, %v4040
        %v4119 = vmul.f32 %v864, %v4040
        %v4120 = vmul.f32 %v869, %v4040
        %v4121 = vmul.f32 %v874, %v4040
        %v4122 = vmul.f32 %v879, %v4040
        %v4123 = vmul.f32 %v884, %v4040
        %v4124 = vmul.f32 %v889, %v4040
        %v4125 = vmul.f32 %v894, %v4040
        %v4126 = vmul.f32 %v899, %v4040
        %v4127 = vmul.f32 %v904, %v4040
        %v4128 = vmul.f32 %v909, %v4040
        %v4129 = vmul.f32 %v914, %v4040
        %v4130 = vmul.f32 %v919, %v4040
        %v4131 = vmul.f32 %v924, %v4040
        %v4132 = vmul.f32 %v929, %v4040
        %v4133 = vmul.f32 %v934, %v4040
        %v4134 = vmul.f32 %v939, %v4040
        %v4135 = vmul.f32 %v944, %v4040
        %v4136 = vmul.f32 %v949, %v4040
        %v4137 = vmul.f32 %v2372, %v4040
        %v4138 = vmul.f32 %v2377, %v4040
        %v4139 = vmul.f32 %v2382, %v4040
        %v4140 = vmul.f32 %v2387, %v4040
        %v4141 = vmul.f32 %v3808, %v4040
        %v4142 = vmul.f32 %v3813, %v4040
        %v4143 = vmul.f32 %v3818, %v4040
        %v4144 = vmul.f32 %v3823, %v4040
        %v4249 = vrot.slane %v4041, 1
        %v4250 = vrot.slane %v4042, 1
        %v4251 = vsel %vm1375, %v4249, %v4250
        %v4252 = vrot.slane %v4043, 1
        %v4253 = vsel %vm1375, %v4250, %v4252
        %v4254 = vrot.slane %v4044, 1
        %v4255 = vsel %vm1375, %v4252, %v4254
        %v4256 = vrot.slane %v4045, 1
        %v4257 = vrot.slane %v4046, 1
        %v4258 = vsel %vm1375, %v4256, %v4257
        %v4259 = vrot.slane %v4047, 1
        %v4260 = vsel %vm1375, %v4257, %v4259
        %v4261 = vrot.slane %v4048, 1
        %v4262 = vsel %vm1375, %v4259, %v4261
        %v4263 = vrot.slane %v4049, 1
        %v4264 = vrot.slane %v4050, 1
        %v4265 = vsel %vm1375, %v4263, %v4264
        %v4266 = vrot.slane %v4051, 1
        %v4267 = vsel %vm1375, %v4264, %v4266
        %v4268 = vrot.slane %v4052, 1
        %v4269 = vsel %vm1375, %v4266, %v4268
        %v4270 = vrot.slane %v4053, 1
        %v4271 = vrot.slane %v4054, 1
        %v4272 = vsel %vm1375, %v4270, %v4271
        %v4273 = vrot.slane %v4055, 1
        %v4274 = vsel %vm1375, %v4271, %v4273
        %v4275 = vrot.slane %v4056, 1
        %v4276 = vsel %vm1375, %v4273, %v4275
        %v4277 = vrot.slane %v4057, 1
        %v4278 = vrot.slane %v4058, 1
        %v4279 = vsel %vm1375, %v4277, %v4278
        %v4280 = vrot.slane %v4059, 1
        %v4281 = vsel %vm1375, %v4278, %v4280
        %v4282 = vrot.slane %v4060, 1
        %v4283 = vsel %vm1375, %v4280, %v4282
        %v4284 = vrot.slane %v4061, 1
        %v4285 = vrot.slane %v4062, 1
        %v4286 = vsel %vm1375, %v4284, %v4285
        %v4287 = vrot.slane %v4063, 1
        %v4288 = vsel %vm1375, %v4285, %v4287
        %v4289 = vrot.slane %v4064, 1
        %v4290 = vsel %vm1375, %v4287, %v4289
        %v4291 = vrot.slane %v4065, 1
        %v4292 = vrot.slane %v4066, 1
        %v4293 = vsel %vm1375, %v4291, %v4292
        %v4294 = vrot.slane %v4067, 1
        %v4295 = vsel %vm1375, %v4292, %v4294
        %v4296 = vrot.slane %v4068, 1
        %v4297 = vsel %vm1375, %v4294, %v4296
        %v4298 = vrot.slane %v4069, 1
        %v4299 = vrot.slane %v4070, 1
        %v4300 = vsel %vm1375, %v4298, %v4299
        %v4301 = vrot.slane %v4071, 1
        %v4302 = vsel %vm1375, %v4299, %v4301
        %v4303 = vrot.slane %v4072, 1
        %v4304 = vsel %vm1375, %v4301, %v4303
        %v4305 = vrot.slane %v4073, 1
        %v4306 = vrot.slane %v4074, 1
        %v4307 = vsel %vm1375, %v4305, %v4306
        %v4308 = vrot.slane %v4075, 1
        %v4309 = vsel %vm1375, %v4306, %v4308
        %v4310 = vrot.slane %v4076, 1
        %v4311 = vsel %vm1375, %v4308, %v4310
        %v4312 = vrot.slane %v4077, 1
        %v4313 = vrot.slane %v4078, 1
        %v4314 = vsel %vm1375, %v4312, %v4313
        %v4315 = vrot.slane %v4079, 1
        %v4316 = vsel %vm1375, %v4313, %v4315
        %v4317 = vrot.slane %v4080, 1
        %v4318 = vsel %vm1375, %v4315, %v4317
        %v4319 = vrot.slane %v4081, 1
        %v4320 = vrot.slane %v4082, 1
        %v4321 = vsel %vm1375, %v4319, %v4320
        %v4322 = vrot.slane %v4083, 1
        %v4323 = vsel %vm1375, %v4320, %v4322
        %v4324 = vrot.slane %v4084, 1
        %v4325 = vsel %vm1375, %v4322, %v4324
        %v4326 = vrot.slane %v4085, 1
        %v4327 = vrot.slane %v4086, 1
        %v4328 = vsel %vm1375, %v4326, %v4327
        %v4329 = vrot.slane %v4087, 1
        %v4330 = vsel %vm1375, %v4327, %v4329
        %v4331 = vrot.slane %v4088, 1
        %v4332 = vsel %vm1375, %v4329, %v4331
        %v4333 = vrot.slane %v4089, 1
        %v4334 = vrot.slane %v4090, 1
        %v4335 = vsel %vm1375, %v4333, %v4334
        %v4336 = vrot.slane %v4091, 1
        %v4337 = vsel %vm1375, %v4334, %v4336
        %v4338 = vrot.slane %v4092, 1
        %v4339 = vsel %vm1375, %v4336, %v4338
        %v4340 = vrot.slane %v4093, 1
        %v4341 = vrot.slane %v4094, 1
        %v4342 = vsel %vm1375, %v4340, %v4341
        %v4343 = vrot.slane %v4095, 1
        %v4344 = vsel %vm1375, %v4341, %v4343
        %v4345 = vrot.slane %v4096, 1
        %v4346 = vsel %vm1375, %v4343, %v4345
        %v4347 = vrot.slane %v4097, 1
        %v4348 = vrot.slane %v4098, 1
        %v4349 = vsel %vm1375, %v4347, %v4348
        %v4350 = vrot.slane %v4099, 1
        %v4351 = vsel %vm1375, %v4348, %v4350
        %v4352 = vrot.slane %v4100, 1
        %v4353 = vsel %vm1375, %v4350, %v4352
        %v4354 = vrot.slane %v4101, 1
        %v4355 = vrot.slane %v4102, 1
        %v4356 = vsel %vm1375, %v4354, %v4355
        %v4357 = vrot.slane %v4103, 1
        %v4358 = vsel %vm1375, %v4355, %v4357
        %v4359 = vrot.slane %v4104, 1
        %v4360 = vsel %vm1375, %v4357, %v4359
        %v4361 = vrot.slane %v4105, 1
        %v4362 = vrot.slane %v4106, 1
        %v4363 = vsel %vm1375, %v4361, %v4362
        %v4364 = vrot.slane %v4107, 1
        %v4365 = vsel %vm1375, %v4362, %v4364
        %v4366 = vrot.slane %v4108, 1
        %v4367 = vsel %vm1375, %v4364, %v4366
        %v4368 = vrot.slane %v4109, 1
        %v4369 = vrot.slane %v4110, 1
        %v4370 = vsel %vm1375, %v4368, %v4369
        %v4371 = vrot.slane %v4111, 1
        %v4372 = vsel %vm1375, %v4369, %v4371
        %v4373 = vrot.slane %v4112, 1
        %v4374 = vsel %vm1375, %v4371, %v4373
        %v4375 = vrot.slane %v4113, 1
        %v4376 = vrot.slane %v4114, 1
        %v4377 = vsel %vm1375, %v4375, %v4376
        %v4378 = vrot.slane %v4115, 1
        %v4379 = vsel %vm1375, %v4376, %v4378
        %v4380 = vrot.slane %v4116, 1
        %v4381 = vsel %vm1375, %v4378, %v4380
        %v4382 = vrot.slane %v4117, 1
        %v4383 = vrot.slane %v4118, 1
        %v4384 = vsel %vm1375, %v4382, %v4383
        %v4385 = vrot.slane %v4119, 1
        %v4386 = vsel %vm1375, %v4383, %v4385
        %v4387 = vrot.slane %v4120, 1
        %v4388 = vsel %vm1375, %v4385, %v4387
        %v4389 = vrot.slane %v4121, 1
        %v4390 = vrot.slane %v4122, 1
        %v4391 = vsel %vm1375, %v4389, %v4390
        %v4392 = vrot.slane %v4123, 1
        %v4393 = vsel %vm1375, %v4390, %v4392
        %v4394 = vrot.slane %v4124, 1
        %v4395 = vsel %vm1375, %v4392, %v4394
        %v4396 = vrot.slane %v4125, 1
        %v4397 = vrot.slane %v4126, 1
        %v4398 = vsel %vm1375, %v4396, %v4397
        %v4399 = vrot.slane %v4127, 1
        %v4400 = vsel %vm1375, %v4397, %v4399
        %v4401 = vrot.slane %v4128, 1
        %v4402 = vsel %vm1375, %v4399, %v4401
        %v4403 = vrot.slane %v4129, 1
        %v4404 = vrot.slane %v4130, 1
        %v4405 = vsel %vm1375, %v4403, %v4404
        %v4406 = vrot.slane %v4131, 1
        %v4407 = vsel %vm1375, %v4404, %v4406
        %v4408 = vrot.slane %v4132, 1
        %v4409 = vsel %vm1375, %v4406, %v4408
        %v4410 = vrot.slane %v4133, 1
        %v4411 = vrot.slane %v4134, 1
        %v4412 = vsel %vm1375, %v4410, %v4411
        %v4413 = vrot.slane %v4135, 1
        %v4414 = vsel %vm1375, %v4411, %v4413
        %v4415 = vrot.slane %v4136, 1
        %v4416 = vsel %vm1375, %v4413, %v4415
        %v4417 = vrot.slane %v4137, 1
        %v4418 = vrot.slane %v4138, 1
        %v4419 = vsel %vm1375, %v4417, %v4418
        %v4420 = vrot.slane %v4139, 1
        %v4421 = vsel %vm1375, %v4418, %v4420
        %v4422 = vrot.slane %v4140, 1
        %v4423 = vsel %vm1375, %v4420, %v4422
        %v4424 = vrot.slane %v4141, 1
        %v4425 = vrot.slane %v4142, 1
        %v4426 = vsel %vm1375, %v4424, %v4425
        %v4427 = vrot.slane %v4143, 1
        %v4428 = vsel %vm1375, %v4425, %v4427
        %v4429 = vrot.slane %v4144, 1
        %v4430 = vsel %vm1375, %v4427, %v4429
        %v4535 = vadd.f32 %v3933, %v4251
        %v4536 = vadd.f32 %v3934, %v4253
        %v4537 = vadd.f32 %v3935, %v4255
        %v4538 = vadd.f32 %v3936, %v4254
        %v4539 = vadd.f32 %v3937, %v4258
        %v4540 = vadd.f32 %v3938, %v4260
        %v4541 = vadd.f32 %v3939, %v4262
        %v4542 = vadd.f32 %v3940, %v4261
        %v4543 = vadd.f32 %v3941, %v4265
        %v4544 = vadd.f32 %v3942, %v4267
        %v4545 = vadd.f32 %v3943, %v4269
        %v4546 = vadd.f32 %v3944, %v4268
        %v4547 = vadd.f32 %v3945, %v4272
        %v4548 = vadd.f32 %v3946, %v4274
        %v4549 = vadd.f32 %v3947, %v4276
        %v4550 = vadd.f32 %v3948, %v4275
        %v4551 = vadd.f32 %v3949, %v4279
        %v4552 = vadd.f32 %v3950, %v4281
        %v4553 = vadd.f32 %v3951, %v4283
        %v4554 = vadd.f32 %v3952, %v4282
        %v4555 = vadd.f32 %v3953, %v4286
        %v4556 = vadd.f32 %v3954, %v4288
        %v4557 = vadd.f32 %v3955, %v4290
        %v4558 = vadd.f32 %v3956, %v4289
        %v4559 = vadd.f32 %v3957, %v4293
        %v4560 = vadd.f32 %v3958, %v4295
        %v4561 = vadd.f32 %v3959, %v4297
        %v4562 = vadd.f32 %v3960, %v4296
        %v4563 = vadd.f32 %v3961, %v4300
        %v4564 = vadd.f32 %v3962, %v4302
        %v4565 = vadd.f32 %v3963, %v4304
        %v4566 = vadd.f32 %v3964, %v4303
        %v4567 = vadd.f32 %v3965, %v4307
        %v4568 = vadd.f32 %v3966, %v4309
        %v4569 = vadd.f32 %v3967, %v4311
        %v4570 = vadd.f32 %v3968, %v4310
        %v4571 = vadd.f32 %v3969, %v4314
        %v4572 = vadd.f32 %v3970, %v4316
        %v4573 = vadd.f32 %v3971, %v4318
        %v4574 = vadd.f32 %v3972, %v4317
        %v4575 = vadd.f32 %v3973, %v4321
        %v4576 = vadd.f32 %v3974, %v4323
        %v4577 = vadd.f32 %v3975, %v4325
        %v4578 = vadd.f32 %v3976, %v4324
        %v4579 = vadd.f32 %v3977, %v4328
        %v4580 = vadd.f32 %v3978, %v4330
        %v4581 = vadd.f32 %v3979, %v4332
        %v4582 = vadd.f32 %v3980, %v4331
        %v4583 = vadd.f32 %v3981, %v4335
        %v4584 = vadd.f32 %v3982, %v4337
        %v4585 = vadd.f32 %v3983, %v4339
        %v4586 = vadd.f32 %v3984, %v4338
        %v4587 = vadd.f32 %v3985, %v4342
        %v4588 = vadd.f32 %v3986, %v4344
        %v4589 = vadd.f32 %v3987, %v4346
        %v4590 = vadd.f32 %v3988, %v4345
        %v4591 = vadd.f32 %v3989, %v4349
        %v4592 = vadd.f32 %v3990, %v4351
        %v4593 = vadd.f32 %v3991, %v4353
        %v4594 = vadd.f32 %v3992, %v4352
        %v4595 = vadd.f32 %v3993, %v4356
        %v4596 = vadd.f32 %v3994, %v4358
        %v4597 = vadd.f32 %v3995, %v4360
        %v4598 = vadd.f32 %v3996, %v4359
        %v4599 = vadd.f32 %v3997, %v4363
        %v4600 = vadd.f32 %v3998, %v4365
        %v4601 = vadd.f32 %v3999, %v4367
        %v4602 = vadd.f32 %v4000, %v4366
        %v4603 = vadd.f32 %v4001, %v4370
        %v4604 = vadd.f32 %v4002, %v4372
        %v4605 = vadd.f32 %v4003, %v4374
        %v4606 = vadd.f32 %v4004, %v4373
        %v4607 = vadd.f32 %v4005, %v4377
        %v4608 = vadd.f32 %v4006, %v4379
        %v4609 = vadd.f32 %v4007, %v4381
        %v4610 = vadd.f32 %v4008, %v4380
        %v4611 = vadd.f32 %v4009, %v4384
        %v4612 = vadd.f32 %v4010, %v4386
        %v4613 = vadd.f32 %v4011, %v4388
        %v4614 = vadd.f32 %v4012, %v4387
        %v4615 = vadd.f32 %v4013, %v4391
        %v4616 = vadd.f32 %v4014, %v4393
        %v4617 = vadd.f32 %v4015, %v4395
        %v4618 = vadd.f32 %v4016, %v4394
        %v4619 = vadd.f32 %v4017, %v4398
        %v4620 = vadd.f32 %v4018, %v4400
        %v4621 = vadd.f32 %v4019, %v4402
        %v4622 = vadd.f32 %v4020, %v4401
        %v4623 = vadd.f32 %v4021, %v4405
        %v4624 = vadd.f32 %v4022, %v4407
        %v4625 = vadd.f32 %v4023, %v4409
        %v4626 = vadd.f32 %v4024, %v4408
        %v4627 = vadd.f32 %v4025, %v4412
        %v4628 = vadd.f32 %v4026, %v4414
        %v4629 = vadd.f32 %v4027, %v4416
        %v4630 = vadd.f32 %v4028, %v4415
        %v4631 = vadd.f32 %v4029, %v4419
        %v4632 = vadd.f32 %v4030, %v4421
        %v4633 = vadd.f32 %v4031, %v4423
        %v4634 = vadd.f32 %v4032, %v4422
        %v4635 = vadd.f32 %v4033, %v4426
        %v4636 = vadd.f32 %v4034, %v4428
        %v4637 = vadd.f32 %v4035, %v4430
        %v4638 = vadd.f32 %v4036, %v4429
        %v4639 = vlaneseq
        %v4640 = vshrl.u32 %v4639, 7
        %v4641 = vsub.s32 0, %v4640
        %v4642 = vrot.slane %v394, %v4641
        %v4643 = vmul.f32 %v474, %v4642
        %v4644 = vmul.f32 %v479, %v4642
        %v4645 = vmul.f32 %v484, %v4642
        %v4646 = vmul.f32 %v489, %v4642
        %v4647 = vmul.f32 %v494, %v4642
        %v4648 = vmul.f32 %v499, %v4642
        %v4649 = vmul.f32 %v504, %v4642
        %v4650 = vmul.f32 %v509, %v4642
        %v4651 = vmul.f32 %v514, %v4642
        %v4652 = vmul.f32 %v519, %v4642
        %v4653 = vmul.f32 %v524, %v4642
        %v4654 = vmul.f32 %v529, %v4642
        %v4655 = vmul.f32 %v534, %v4642
        %v4656 = vmul.f32 %v539, %v4642
        %v4657 = vmul.f32 %v544, %v4642
        %v4658 = vmul.f32 %v549, %v4642
        %v4659 = vmul.f32 %v554, %v4642
        %v4660 = vmul.f32 %v559, %v4642
        %v4661 = vmul.f32 %v564, %v4642
        %v4662 = vmul.f32 %v569, %v4642
        %v4663 = vmul.f32 %v574, %v4642
        %v4664 = vmul.f32 %v579, %v4642
        %v4665 = vmul.f32 %v584, %v4642
        %v4666 = vmul.f32 %v589, %v4642
        %v4667 = vmul.f32 %v594, %v4642
        %v4668 = vmul.f32 %v599, %v4642
        %v4669 = vmul.f32 %v604, %v4642
        %v4670 = vmul.f32 %v609, %v4642
        %v4671 = vmul.f32 %v614, %v4642
        %v4672 = vmul.f32 %v619, %v4642
        %v4673 = vmul.f32 %v624, %v4642
        %v4674 = vmul.f32 %v629, %v4642
        %v4675 = vmul.f32 %v634, %v4642
        %v4676 = vmul.f32 %v639, %v4642
        %v4677 = vmul.f32 %v644, %v4642
        %v4678 = vmul.f32 %v649, %v4642
        %v4679 = vmul.f32 %v654, %v4642
        %v4680 = vmul.f32 %v659, %v4642
        %v4681 = vmul.f32 %v664, %v4642
        %v4682 = vmul.f32 %v669, %v4642
        %v4683 = vmul.f32 %v674, %v4642
        %v4684 = vmul.f32 %v679, %v4642
        %v4685 = vmul.f32 %v684, %v4642
        %v4686 = vmul.f32 %v689, %v4642
        %v4687 = vmul.f32 %v694, %v4642
        %v4688 = vmul.f32 %v699, %v4642
        %v4689 = vmul.f32 %v704, %v4642
        %v4690 = vmul.f32 %v709, %v4642
        %v4691 = vmul.f32 %v714, %v4642
        %v4692 = vmul.f32 %v719, %v4642
        %v4693 = vmul.f32 %v724, %v4642
        %v4694 = vmul.f32 %v729, %v4642
        %v4695 = vmul.f32 %v734, %v4642
        %v4696 = vmul.f32 %v739, %v4642
        %v4697 = vmul.f32 %v744, %v4642
        %v4698 = vmul.f32 %v749, %v4642
        %v4699 = vmul.f32 %v754, %v4642
        %v4700 = vmul.f32 %v759, %v4642
        %v4701 = vmul.f32 %v764, %v4642
        %v4702 = vmul.f32 %v769, %v4642
        %v4703 = vmul.f32 %v774, %v4642
        %v4704 = vmul.f32 %v779, %v4642
        %v4705 = vmul.f32 %v784, %v4642
        %v4706 = vmul.f32 %v789, %v4642
        %v4707 = vmul.f32 %v794, %v4642
        %v4708 = vmul.f32 %v799, %v4642
        %v4709 = vmul.f32 %v804, %v4642
        %v4710 = vmul.f32 %v809, %v4642
        %v4711 = vmul.f32 %v814, %v4642
        %v4712 = vmul.f32 %v819, %v4642
        %v4713 = vmul.f32 %v824, %v4642
        %v4714 = vmul.f32 %v829, %v4642
        %v4715 = vmul.f32 %v834, %v4642
        %v4716 = vmul.f32 %v839, %v4642
        %v4717 = vmul.f32 %v844, %v4642
        %v4718 = vmul.f32 %v849, %v4642
        %v4719 = vmul.f32 %v854, %v4642
        %v4720 = vmul.f32 %v859, %v4642
        %v4721 = vmul.f32 %v864, %v4642
        %v4722 = vmul.f32 %v869, %v4642
        %v4723 = vmul.f32 %v874, %v4642
        %v4724 = vmul.f32 %v879, %v4642
        %v4725 = vmul.f32 %v884, %v4642
        %v4726 = vmul.f32 %v889, %v4642
        %v4727 = vmul.f32 %v894, %v4642
        %v4728 = vmul.f32 %v899, %v4642
        %v4729 = vmul.f32 %v904, %v4642
        %v4730 = vmul.f32 %v909, %v4642
        %v4731 = vmul.f32 %v914, %v4642
        %v4732 = vmul.f32 %v919, %v4642
        %v4733 = vmul.f32 %v924, %v4642
        %v4734 = vmul.f32 %v929, %v4642
        %v4735 = vmul.f32 %v934, %v4642
        %v4736 = vmul.f32 %v939, %v4642
        %v4737 = vmul.f32 %v944, %v4642
        %v4738 = vmul.f32 %v949, %v4642
        %v4739 = vmul.f32 %v2372, %v4642
        %v4740 = vmul.f32 %v2377, %v4642
        %v4741 = vmul.f32 %v2382, %v4642
        %v4742 = vmul.f32 %v2387, %v4642
        %v4743 = vmul.f32 %v3808, %v4642
        %v4744 = vmul.f32 %v3813, %v4642
        %v4745 = vmul.f32 %v3818, %v4642
        %v4746 = vmul.f32 %v3823, %v4642
        %v4851 = vrot.slane %v4643, 2
        %v4852 = vrot.slane %v4644, 2
        %v4853 = vsel %vm1978, %v4851, %v4852
        %v4854 = vrot.slane %v4645, 2
        %v4855 = vsel %vm1978, %v4852, %v4854
        %v4856 = vrot.slane %v4646, 2
        %v4857 = vsel %vm1978, %v4854, %v4856
        %v4858 = vrot.slane %v4647, 2
        %v4859 = vrot.slane %v4648, 2
        %v4860 = vsel %vm1978, %v4858, %v4859
        %v4861 = vrot.slane %v4649, 2
        %v4862 = vsel %vm1978, %v4859, %v4861
        %v4863 = vrot.slane %v4650, 2
        %v4864 = vsel %vm1978, %v4861, %v4863
        %v4865 = vrot.slane %v4651, 2
        %v4866 = vrot.slane %v4652, 2
        %v4867 = vsel %vm1978, %v4865, %v4866
        %v4868 = vrot.slane %v4653, 2
        %v4869 = vsel %vm1978, %v4866, %v4868
        %v4870 = vrot.slane %v4654, 2
        %v4871 = vsel %vm1978, %v4868, %v4870
        %v4872 = vrot.slane %v4655, 2
        %v4873 = vrot.slane %v4656, 2
        %v4874 = vsel %vm1978, %v4872, %v4873
        %v4875 = vrot.slane %v4657, 2
        %v4876 = vsel %vm1978, %v4873, %v4875
        %v4877 = vrot.slane %v4658, 2
        %v4878 = vsel %vm1978, %v4875, %v4877
        %v4879 = vrot.slane %v4659, 2
        %v4880 = vrot.slane %v4660, 2
        %v4881 = vsel %vm1978, %v4879, %v4880
        %v4882 = vrot.slane %v4661, 2
        %v4883 = vsel %vm1978, %v4880, %v4882
        %v4884 = vrot.slane %v4662, 2
        %v4885 = vsel %vm1978, %v4882, %v4884
        %v4886 = vrot.slane %v4663, 2
        %v4887 = vrot.slane %v4664, 2
        %v4888 = vsel %vm1978, %v4886, %v4887
        %v4889 = vrot.slane %v4665, 2
        %v4890 = vsel %vm1978, %v4887, %v4889
        %v4891 = vrot.slane %v4666, 2
        %v4892 = vsel %vm1978, %v4889, %v4891
        %v4893 = vrot.slane %v4667, 2
        %v4894 = vrot.slane %v4668, 2
        %v4895 = vsel %vm1978, %v4893, %v4894
        %v4896 = vrot.slane %v4669, 2
        %v4897 = vsel %vm1978, %v4894, %v4896
        %v4898 = vrot.slane %v4670, 2
        %v4899 = vsel %vm1978, %v4896, %v4898
        %v4900 = vrot.slane %v4671, 2
        %v4901 = vrot.slane %v4672, 2
        %v4902 = vsel %vm1978, %v4900, %v4901
        %v4903 = vrot.slane %v4673, 2
        %v4904 = vsel %vm1978, %v4901, %v4903
        %v4905 = vrot.slane %v4674, 2
        %v4906 = vsel %vm1978, %v4903, %v4905
        %v4907 = vrot.slane %v4675, 2
        %v4908 = vrot.slane %v4676, 2
        %v4909 = vsel %vm1978, %v4907, %v4908
        %v4910 = vrot.slane %v4677, 2
        %v4911 = vsel %vm1978, %v4908, %v4910
        %v4912 = vrot.slane %v4678, 2
        %v4913 = vsel %vm1978, %v4910, %v4912
        %v4914 = vrot.slane %v4679, 2
        %v4915 = vrot.slane %v4680, 2
        %v4916 = vsel %vm1978, %v4914, %v4915
        %v4917 = vrot.slane %v4681, 2
        %v4918 = vsel %vm1978, %v4915, %v4917
        %v4919 = vrot.slane %v4682, 2
        %v4920 = vsel %vm1978, %v4917, %v4919
        %v4921 = vrot.slane %v4683, 2
        %v4922 = vrot.slane %v4684, 2
        %v4923 = vsel %vm1978, %v4921, %v4922
        %v4924 = vrot.slane %v4685, 2
        %v4925 = vsel %vm1978, %v4922, %v4924
        %v4926 = vrot.slane %v4686, 2
        %v4927 = vsel %vm1978, %v4924, %v4926
        %v4928 = vrot.slane %v4687, 2
        %v4929 = vrot.slane %v4688, 2
        %v4930 = vsel %vm1978, %v4928, %v4929
        %v4931 = vrot.slane %v4689, 2
        %v4932 = vsel %vm1978, %v4929, %v4931
        %v4933 = vrot.slane %v4690, 2
        %v4934 = vsel %vm1978, %v4931, %v4933
        %v4935 = vrot.slane %v4691, 2
        %v4936 = vrot.slane %v4692, 2
        %v4937 = vsel %vm1978, %v4935, %v4936
        %v4938 = vrot.slane %v4693, 2
        %v4939 = vsel %vm1978, %v4936, %v4938
        %v4940 = vrot.slane %v4694, 2
        %v4941 = vsel %vm1978, %v4938, %v4940
        %v4942 = vrot.slane %v4695, 2
        %v4943 = vrot.slane %v4696, 2
        %v4944 = vsel %vm1978, %v4942, %v4943
        %v4945 = vrot.slane %v4697, 2
        %v4946 = vsel %vm1978, %v4943, %v4945
        %v4947 = vrot.slane %v4698, 2
        %v4948 = vsel %vm1978, %v4945, %v4947
        %v4949 = vrot.slane %v4699, 2
        %v4950 = vrot.slane %v4700, 2
        %v4951 = vsel %vm1978, %v4949, %v4950
        %v4952 = vrot.slane %v4701, 2
        %v4953 = vsel %vm1978, %v4950, %v4952
        %v4954 = vrot.slane %v4702, 2
        %v4955 = vsel %vm1978, %v4952, %v4954
        %v4956 = vrot.slane %v4703, 2
        %v4957 = vrot.slane %v4704, 2
        %v4958 = vsel %vm1978, %v4956, %v4957
        %v4959 = vrot.slane %v4705, 2
        %v4960 = vsel %vm1978, %v4957, %v4959
        %v4961 = vrot.slane %v4706, 2
        %v4962 = vsel %vm1978, %v4959, %v4961
        %v4963 = vrot.slane %v4707, 2
        %v4964 = vrot.slane %v4708, 2
        %v4965 = vsel %vm1978, %v4963, %v4964
        %v4966 = vrot.slane %v4709, 2
        %v4967 = vsel %vm1978, %v4964, %v4966
        %v4968 = vrot.slane %v4710, 2
        %v4969 = vsel %vm1978, %v4966, %v4968
        %v4970 = vrot.slane %v4711, 2
        %v4971 = vrot.slane %v4712, 2
        %v4972 = vsel %vm1978, %v4970, %v4971
        %v4973 = vrot.slane %v4713, 2
        %v4974 = vsel %vm1978, %v4971, %v4973
        %v4975 = vrot.slane %v4714, 2
        %v4976 = vsel %vm1978, %v4973, %v4975
        %v4977 = vrot.slane %v4715, 2
        %v4978 = vrot.slane %v4716, 2
        %v4979 = vsel %vm1978, %v4977, %v4978
        %v4980 = vrot.slane %v4717, 2
        %v4981 = vsel %vm1978, %v4978, %v4980
        %v4982 = vrot.slane %v4718, 2
        %v4983 = vsel %vm1978, %v4980, %v4982
        %v4984 = vrot.slane %v4719, 2
        %v4985 = vrot.slane %v4720, 2
        %v4986 = vsel %vm1978, %v4984, %v4985
        %v4987 = vrot.slane %v4721, 2
        %v4988 = vsel %vm1978, %v4985, %v4987
        %v4989 = vrot.slane %v4722, 2
        %v4990 = vsel %vm1978, %v4987, %v4989
        %v4991 = vrot.slane %v4723, 2
        %v4992 = vrot.slane %v4724, 2
        %v4993 = vsel %vm1978, %v4991, %v4992
        %v4994 = vrot.slane %v4725, 2
        %v4995 = vsel %vm1978, %v4992, %v4994
        %v4996 = vrot.slane %v4726, 2
        %v4997 = vsel %vm1978, %v4994, %v4996
        %v4998 = vrot.slane %v4727, 2
        %v4999 = vrot.slane %v4728, 2
        %v5000 = vsel %vm1978, %v4998, %v4999
        %v5001 = vrot.slane %v4729, 2
        %v5002 = vsel %vm1978, %v4999, %v5001
        %v5003 = vrot.slane %v4730, 2
        %v5004 = vsel %vm1978, %v5001, %v5003
        %v5005 = vrot.slane %v4731, 2
        %v5006 = vrot.slane %v4732, 2
        %v5007 = vsel %vm1978, %v5005, %v5006
        %v5008 = vrot.slane %v4733, 2
        %v5009 = vsel %vm1978, %v5006, %v5008
        %v5010 = vrot.slane %v4734, 2
        %v5011 = vsel %vm1978, %v5008, %v5010
        %v5012 = vrot.slane %v4735, 2
        %v5013 = vrot.slane %v4736, 2
        %v5014 = vsel %vm1978, %v5012, %v5013
        %v5015 = vrot.slane %v4737, 2
        %v5016 = vsel %vm1978, %v5013, %v5015
        %v5017 = vrot.slane %v4738, 2
        %v5018 = vsel %vm1978, %v5015, %v5017
        %v5019 = vrot.slane %v4739, 2
        %v5020 = vrot.slane %v4740, 2
        %v5021 = vsel %vm1978, %v5019, %v5020
        %v5022 = vrot.slane %v4741, 2
        %v5023 = vsel %vm1978, %v5020, %v5022
        %v5024 = vrot.slane %v4742, 2
        %v5025 = vsel %vm1978, %v5022, %v5024
        %v5026 = vrot.slane %v4743, 2
        %v5027 = vrot.slane %v4744, 2
        %v5028 = vsel %vm1978, %v5026, %v5027
        %v5029 = vrot.slane %v4745, 2
        %v5030 = vsel %vm1978, %v5027, %v5029
        %v5031 = vrot.slane %v4746, 2
        %v5032 = vsel %vm1978, %v5029, %v5031
        %v5137 = vadd.f32 %v4535, %v4853
        %v5138 = vadd.f32 %v4536, %v4855
        %v5139 = vadd.f32 %v4537, %v4857
        %v5140 = vadd.f32 %v4538, %v4856
        %v5141 = vadd.f32 %v4539, %v4860
        %v5142 = vadd.f32 %v4540, %v4862
        %v5143 = vadd.f32 %v4541, %v4864
        %v5144 = vadd.f32 %v4542, %v4863
        %v5145 = vadd.f32 %v4543, %v4867
        %v5146 = vadd.f32 %v4544, %v4869
        %v5147 = vadd.f32 %v4545, %v4871
        %v5148 = vadd.f32 %v4546, %v4870
        %v5149 = vadd.f32 %v4547, %v4874
        %v5150 = vadd.f32 %v4548, %v4876
        %v5151 = vadd.f32 %v4549, %v4878
        %v5152 = vadd.f32 %v4550, %v4877
        %v5153 = vadd.f32 %v4551, %v4881
        %v5154 = vadd.f32 %v4552, %v4883
        %v5155 = vadd.f32 %v4553, %v4885
        %v5156 = vadd.f32 %v4554, %v4884
        %v5157 = vadd.f32 %v4555, %v4888
        %v5158 = vadd.f32 %v4556, %v4890
        %v5159 = vadd.f32 %v4557, %v4892
        %v5160 = vadd.f32 %v4558, %v4891
        %v5161 = vadd.f32 %v4559, %v4895
        %v5162 = vadd.f32 %v4560, %v4897
        %v5163 = vadd.f32 %v4561, %v4899
        %v5164 = vadd.f32 %v4562, %v4898
        %v5165 = vadd.f32 %v4563, %v4902
        %v5166 = vadd.f32 %v4564, %v4904
        %v5167 = vadd.f32 %v4565, %v4906
        %v5168 = vadd.f32 %v4566, %v4905
        %v5169 = vadd.f32 %v4567, %v4909
        %v5170 = vadd.f32 %v4568, %v4911
        %v5171 = vadd.f32 %v4569, %v4913
        %v5172 = vadd.f32 %v4570, %v4912
        %v5173 = vadd.f32 %v4571, %v4916
        %v5174 = vadd.f32 %v4572, %v4918
        %v5175 = vadd.f32 %v4573, %v4920
        %v5176 = vadd.f32 %v4574, %v4919
        %v5177 = vadd.f32 %v4575, %v4923
        %v5178 = vadd.f32 %v4576, %v4925
        %v5179 = vadd.f32 %v4577, %v4927
        %v5180 = vadd.f32 %v4578, %v4926
        %v5181 = vadd.f32 %v4579, %v4930
        %v5182 = vadd.f32 %v4580, %v4932
        %v5183 = vadd.f32 %v4581, %v4934
        %v5184 = vadd.f32 %v4582, %v4933
        %v5185 = vadd.f32 %v4583, %v4937
        %v5186 = vadd.f32 %v4584, %v4939
        %v5187 = vadd.f32 %v4585, %v4941
        %v5188 = vadd.f32 %v4586, %v4940
        %v5189 = vadd.f32 %v4587, %v4944
        %v5190 = vadd.f32 %v4588, %v4946
        %v5191 = vadd.f32 %v4589, %v4948
        %v5192 = vadd.f32 %v4590, %v4947
        %v5193 = vadd.f32 %v4591, %v4951
        %v5194 = vadd.f32 %v4592, %v4953
        %v5195 = vadd.f32 %v4593, %v4955
        %v5196 = vadd.f32 %v4594, %v4954
        %v5197 = vadd.f32 %v4595, %v4958
        %v5198 = vadd.f32 %v4596, %v4960
        %v5199 = vadd.f32 %v4597, %v4962
        %v5200 = vadd.f32 %v4598, %v4961
        %v5201 = vadd.f32 %v4599, %v4965
        %v5202 = vadd.f32 %v4600, %v4967
        %v5203 = vadd.f32 %v4601, %v4969
        %v5204 = vadd.f32 %v4602, %v4968
        %v5205 = vadd.f32 %v4603, %v4972
        %v5206 = vadd.f32 %v4604, %v4974
        %v5207 = vadd.f32 %v4605, %v4976
        %v5208 = vadd.f32 %v4606, %v4975
        %v5209 = vadd.f32 %v4607, %v4979
        %v5210 = vadd.f32 %v4608, %v4981
        %v5211 = vadd.f32 %v4609, %v4983
        %v5212 = vadd.f32 %v4610, %v4982
        %v5213 = vadd.f32 %v4611, %v4986
        %v5214 = vadd.f32 %v4612, %v4988
        %v5215 = vadd.f32 %v4613, %v4990
        %v5216 = vadd.f32 %v4614, %v4989
        %v5217 = vadd.f32 %v4615, %v4993
        %v5218 = vadd.f32 %v4616, %v4995
        %v5219 = vadd.f32 %v4617, %v4997
        %v5220 = vadd.f32 %v4618, %v4996
        %v5221 = vadd.f32 %v4619, %v5000
        %v5222 = vadd.f32 %v4620, %v5002
        %v5223 = vadd.f32 %v4621, %v5004
        %v5224 = vadd.f32 %v4622, %v5003
        %v5225 = vadd.f32 %v4623, %v5007
        %v5226 = vadd.f32 %v4624, %v5009
        %v5227 = vadd.f32 %v4625, %v5011
        %v5228 = vadd.f32 %v4626, %v5010
        %v5229 = vadd.f32 %v4627, %v5014
        %v5230 = vadd.f32 %v4628, %v5016
        %v5231 = vadd.f32 %v4629, %v5018
        %v5232 = vadd.f32 %v4630, %v5017
        %v5233 = vadd.f32 %v4631, %v5021
        %v5234 = vadd.f32 %v4632, %v5023
        %v5235 = vadd.f32 %v4633, %v5025
        %v5236 = vadd.f32 %v4634, %v5024
        %v5237 = vadd.f32 %v4635, %v5028
        %v5238 = vadd.f32 %v4636, %v5030
        %v5239 = vadd.f32 %v4637, %v5032
        %v5240 = vadd.f32 %v4638, %v5031
        %v5241 = vld [vmem:[#allocation4] sm:$0x1]
        %v5243 = vlaneseq
        %v5244 = vshrl.u32 %v5243, 7
        %v5245 = vsub.s32 0, %v5244
        %v5246 = vrot.slane %v5241, %v5245
        %v5248 = vadd.f32 %v5137, %v5246
        %v5249 = vadd.f32 %v5138, %v5246
        %v5250 = vadd.f32 %v5139, %v5246
        %v5251 = vadd.f32 %v5140, %v5246
        %v5252 = vadd.f32 %v5141, %v5246
        %v5253 = vadd.f32 %v5142, %v5246
        %v5254 = vadd.f32 %v5143, %v5246
        %v5255 = vadd.f32 %v5144, %v5246
        %v5256 = vadd.f32 %v5145, %v5246
        %v5257 = vadd.f32 %v5146, %v5246
        %v5258 = vadd.f32 %v5147, %v5246
        %v5259 = vadd.f32 %v5148, %v5246
        %v5260 = vadd.f32 %v5149, %v5246
        %v5261 = vadd.f32 %v5150, %v5246
        %v5262 = vadd.f32 %v5151, %v5246
        %v5263 = vadd.f32 %v5152, %v5246
        %v5264 = vadd.f32 %v5153, %v5246
        %v5265 = vadd.f32 %v5154, %v5246
        %v5266 = vadd.f32 %v5155, %v5246
        %v5267 = vadd.f32 %v5156, %v5246
        %v5268 = vadd.f32 %v5157, %v5246
        %v5269 = vadd.f32 %v5158, %v5246
        %v5270 = vadd.f32 %v5159, %v5246
        %v5271 = vadd.f32 %v5160, %v5246
        %v5272 = vadd.f32 %v5161, %v5246
        %v5273 = vadd.f32 %v5162, %v5246
        %v5274 = vadd.f32 %v5163, %v5246
        %v5275 = vadd.f32 %v5164, %v5246
        %v5276 = vadd.f32 %v5165, %v5246
        %v5277 = vadd.f32 %v5166, %v5246
        %v5278 = vadd.f32 %v5167, %v5246
        %v5279 = vadd.f32 %v5168, %v5246
        %v5280 = vadd.f32 %v5169, %v5246
        %v5281 = vadd.f32 %v5170, %v5246
        %v5282 = vadd.f32 %v5171, %v5246
        %v5283 = vadd.f32 %v5172, %v5246
        %v5284 = vadd.f32 %v5173, %v5246
        %v5285 = vadd.f32 %v5174, %v5246
        %v5286 = vadd.f32 %v5175, %v5246
        %v5287 = vadd.f32 %v5176, %v5246
        %v5288 = vadd.f32 %v5177, %v5246
        %v5289 = vadd.f32 %v5178, %v5246
        %v5290 = vadd.f32 %v5179, %v5246
        %v5291 = vadd.f32 %v5180, %v5246
        %v5292 = vadd.f32 %v5181, %v5246
        %v5293 = vadd.f32 %v5182, %v5246
        %v5294 = vadd.f32 %v5183, %v5246
        %v5295 = vadd.f32 %v5184, %v5246
        %v5296 = vadd.f32 %v5185, %v5246
        %v5297 = vadd.f32 %v5186, %v5246
        %v5298 = vadd.f32 %v5187, %v5246
        %v5299 = vadd.f32 %v5188, %v5246
        %v5300 = vadd.f32 %v5189, %v5246
        %v5301 = vadd.f32 %v5190, %v5246
        %v5302 = vadd.f32 %v5191, %v5246
        %v5303 = vadd.f32 %v5192, %v5246
        %v5304 = vadd.f32 %v5193, %v5246
        %v5305 = vadd.f32 %v5194, %v5246
        %v5306 = vadd.f32 %v5195, %v5246
        %v5307 = vadd.f32 %v5196, %v5246
        %v5308 = vadd.f32 %v5197, %v5246
        %v5309 = vadd.f32 %v5198, %v5246
        %v5310 = vadd.f32 %v5199, %v5246
        %v5311 = vadd.f32 %v5200, %v5246
        %v5312 = vadd.f32 %v5201, %v5246
        %v5313 = vadd.f32 %v5202, %v5246
        %v5314 = vadd.f32 %v5203, %v5246
        %v5315 = vadd.f32 %v5204, %v5246
        %v5316 = vadd.f32 %v5205, %v5246
        %v5317 = vadd.f32 %v5206, %v5246
        %v5318 = vadd.f32 %v5207, %v5246
        %v5319 = vadd.f32 %v5208, %v5246
        %v5320 = vadd.f32 %v5209, %v5246
        %v5321 = vadd.f32 %v5210, %v5246
        %v5322 = vadd.f32 %v5211, %v5246
        %v5323 = vadd.f32 %v5212, %v5246
        %v5324 = vadd.f32 %v5213, %v5246
        %v5325 = vadd.f32 %v5214, %v5246
        %v5326 = vadd.f32 %v5215, %v5246
        %v5327 = vadd.f32 %v5216, %v5246
        %v5328 = vadd.f32 %v5217, %v5246
        %v5329 = vadd.f32 %v5218, %v5246
        %v5330 = vadd.f32 %v5219, %v5246
        %v5331 = vadd.f32 %v5220, %v5246
        %v5332 = vadd.f32 %v5221, %v5246
        %v5333 = vadd.f32 %v5222, %v5246
        %v5334 = vadd.f32 %v5223, %v5246
        %v5335 = vadd.f32 %v5224, %v5246
        %v5336 = vadd.f32 %v5225, %v5246
        %v5337 = vadd.f32 %v5226, %v5246
        %v5338 = vadd.f32 %v5227, %v5246
        %v5339 = vadd.f32 %v5228, %v5246
        %v5340 = vadd.f32 %v5229, %v5246
        %v5341 = vadd.f32 %v5230, %v5246
        %v5342 = vadd.f32 %v5231, %v5246
        %v5343 = vadd.f32 %v5232, %v5246
        %v5344 = vadd.f32 %v5233, %v5246
        %v5345 = vadd.f32 %v5234, %v5246
        %v5346 = vadd.f32 %v5235, %v5246
        %v5347 = vadd.f32 %v5236, %v5246
        %v5348 = vadd.f32 %v5237, %v5246
        %v5349 = vadd.f32 %v5238, %v5246
        %v5350 = vadd.f32 %v5239, %v5246
        %v5351 = vadd.f32 %v5240, %v5246
        %v5352 = vmax.f32 %v5248, 0.0
        %v5353 = vmax.f32 %v5249, 0.0
        %v5354 = vmax.f32 %v5250, 0.0
        %v5355 = vmax.f32 %v5251, 0.0
        %v5356 = vmax.f32 %v5252, 0.0
        %v5357 = vmax.f32 %v5253, 0.0
        %v5358 = vmax.f32 %v5254, 0.0
        %v5359 = vmax.f32 %v5255, 0.0
        %v5360 = vmax.f32 %v5256, 0.0
        %v5361 = vmax.f32 %v5257, 0.0
        %v5362 = vmax.f32 %v5258, 0.0
        %v5363 = vmax.f32 %v5259, 0.0
        %v5364 = vmax.f32 %v5260, 0.0
        %v5365 = vmax.f32 %v5261, 0.0
        %v5366 = vmax.f32 %v5262, 0.0
        %v5367 = vmax.f32 %v5263, 0.0
        %v5368 = vmax.f32 %v5264, 0.0
        %v5369 = vmax.f32 %v5265, 0.0
        %v5370 = vmax.f32 %v5266, 0.0
        %v5371 = vmax.f32 %v5267, 0.0
        %v5372 = vmax.f32 %v5268, 0.0
        %v5373 = vmax.f32 %v5269, 0.0
        %v5374 = vmax.f32 %v5270, 0.0
        %v5375 = vmax.f32 %v5271, 0.0
        %v5376 = vmax.f32 %v5272, 0.0
        %v5377 = vmax.f32 %v5273, 0.0
        %v5378 = vmax.f32 %v5274, 0.0
        %v5379 = vmax.f32 %v5275, 0.0
        %v5380 = vmax.f32 %v5276, 0.0
        %v5381 = vmax.f32 %v5277, 0.0
        %v5382 = vmax.f32 %v5278, 0.0
        %v5383 = vmax.f32 %v5279, 0.0
        %v5384 = vmax.f32 %v5280, 0.0
        %v5385 = vmax.f32 %v5281, 0.0
        %v5386 = vmax.f32 %v5282, 0.0
        %v5387 = vmax.f32 %v5283, 0.0
        %v5388 = vmax.f32 %v5284, 0.0
        %v5389 = vmax.f32 %v5285, 0.0
        %v5390 = vmax.f32 %v5286, 0.0
        %v5391 = vmax.f32 %v5287, 0.0
        %v5392 = vmax.f32 %v5288, 0.0
        %v5393 = vmax.f32 %v5289, 0.0
        %v5394 = vmax.f32 %v5290, 0.0
        %v5395 = vmax.f32 %v5291, 0.0
        %v5396 = vmax.f32 %v5292, 0.0
        %v5397 = vmax.f32 %v5293, 0.0
        %v5398 = vmax.f32 %v5294, 0.0
        %v5399 = vmax.f32 %v5295, 0.0
        %v5400 = vmax.f32 %v5296, 0.0
        %v5401 = vmax.f32 %v5297, 0.0
        %v5402 = vmax.f32 %v5298, 0.0
        %v5403 = vmax.f32 %v5299, 0.0
        %v5404 = vmax.f32 %v5300, 0.0
        %v5405 = vmax.f32 %v5301, 0.0
        %v5406 = vmax.f32 %v5302, 0.0
        %v5407 = vmax.f32 %v5303, 0.0
        %v5408 = vmax.f32 %v5304, 0.0
        %v5409 = vmax.f32 %v5305, 0.0
        %v5410 = vmax.f32 %v5306, 0.0
        %v5411 = vmax.f32 %v5307, 0.0
        %v5412 = vmax.f32 %v5308, 0.0
        %v5413 = vmax.f32 %v5309, 0.0
        %v5414 = vmax.f32 %v5310, 0.0
        %v5415 = vmax.f32 %v5311, 0.0
        %v5416 = vmax.f32 %v5312, 0.0
        %v5417 = vmax.f32 %v5313, 0.0
        %v5418 = vmax.f32 %v5314, 0.0
        %v5419 = vmax.f32 %v5315, 0.0
        %v5420 = vmax.f32 %v5316, 0.0
        %v5421 = vmax.f32 %v5317, 0.0
        %v5422 = vmax.f32 %v5318, 0.0
        %v5423 = vmax.f32 %v5319, 0.0
        %v5424 = vmax.f32 %v5320, 0.0
        %v5425 = vmax.f32 %v5321, 0.0
        %v5426 = vmax.f32 %v5322, 0.0
        %v5427 = vmax.f32 %v5323, 0.0
        %v5428 = vmax.f32 %v5324, 0.0
        %v5429 = vmax.f32 %v5325, 0.0
        %v5430 = vmax.f32 %v5326, 0.0
        %v5431 = vmax.f32 %v5327, 0.0
        %v5432 = vmax.f32 %v5328, 0.0
        %v5433 = vmax.f32 %v5329, 0.0
        %v5434 = vmax.f32 %v5330, 0.0
        %v5435 = vmax.f32 %v5331, 0.0
        %v5436 = vmax.f32 %v5332, 0.0
        %v5437 = vmax.f32 %v5333, 0.0
        %v5438 = vmax.f32 %v5334, 0.0
        %v5439 = vmax.f32 %v5335, 0.0
        %v5440 = vmax.f32 %v5336, 0.0
        %v5441 = vmax.f32 %v5337, 0.0
        %v5442 = vmax.f32 %v5338, 0.0
        %v5443 = vmax.f32 %v5339, 0.0
        %v5444 = vmax.f32 %v5340, 0.0
        %v5445 = vmax.f32 %v5341, 0.0
        %v5446 = vmax.f32 %v5342, 0.0
        %v5447 = vmax.f32 %v5343, 0.0
        %v5448 = vmax.f32 %v5344, 0.0
        %v5449 = vmax.f32 %v5345, 0.0
        %v5450 = vmax.f32 %v5346, 0.0
        %v5451 = vmax.f32 %v5347, 0.0
        %v5452 = vmax.f32 %v5348, 0.0
        %v5453 = vmax.f32 %v5349, 0.0
        %v5454 = vmax.f32 %v5350, 0.0
        %v5455 = vmax.f32 %v5351, 0.0
        %v5456 = vpack.c.bf16 %v5353, %v5352
        %v5457 = vpack.c.bf16 %v5356, %v5354
        %v5458 = vpack.c.bf16 %v5358, %v5357
        %v5459 = vpack.c.bf16 %v5361, %v5360
        %v5460 = vpack.c.bf16 %v5364, %v5362
        %v5461 = vpack.c.bf16 %v5366, %v5365
        %v5462 = vpack.c.bf16 %v5369, %v5368
        %v5463 = vpack.c.bf16 %v5372, %v5370
        %v5464 = vpack.c.bf16 %v5374, %v5373
        %v5465 = vpack.c.bf16 %v5377, %v5376
        %v5466 = vpack.c.bf16 %v5380, %v5378
        %v5467 = vpack.c.bf16 %v5382, %v5381
        %v5468 = vpack.c.bf16 %v5385, %v5384
        %v5469 = vpack.c.bf16 %v5388, %v5386
        %v5470 = vpack.c.bf16 %v5390, %v5389
        %v5471 = vpack.c.bf16 %v5393, %v5392
        %v5472 = vpack.c.bf16 %v5396, %v5394
        %v5473 = vpack.c.bf16 %v5398, %v5397
        %v5474 = vpack.c.bf16 %v5401, %v5400
        %v5475 = vpack.c.bf16 %v5404, %v5402
        %v5476 = vpack.c.bf16 %v5406, %v5405
        %v5477 = vpack.c.bf16 %v5409, %v5408
        %v5478 = vpack.c.bf16 %v5412, %v5410
        %v5479 = vpack.c.bf16 %v5414, %v5413
        %v5480 = vpack.c.bf16 %v5417, %v5416
        %v5481 = vpack.c.bf16 %v5420, %v5418
        %v5482 = vpack.c.bf16 %v5422, %v5421
        %v5483 = vpack.c.bf16 %v5425, %v5424
        %v5484 = vpack.c.bf16 %v5428, %v5426
        %v5485 = vpack.c.bf16 %v5430, %v5429
        %v5486 = vpack.c.bf16 %v5433, %v5432
        %v5487 = vpack.c.bf16 %v5436, %v5434
        %v5488 = vpack.c.bf16 %v5438, %v5437
        %v5489 = vpack.c.bf16 %v5441, %v5440
        %v5490 = vpack.c.bf16 %v5444, %v5442
        %v5491 = vpack.c.bf16 %v5446, %v5445
        %v5588 = vrot.slane %v5352, 1
        %v5589 = vrot.slane %v5353, 1
        %v5590 = vsel %vm1375, %v5588, %v5589
        %v5591 = vrot.slane %v5354, 1
        %v5592 = vsel %vm1375, %v5589, %v5591
        %v5593 = vrot.slane %v5355, 1
        %v5594 = vsel %vm1375, %v5591, %v5593
        %v5595 = vrot.slane %v5356, 1
        %v5596 = vrot.slane %v5357, 1
        %v5597 = vsel %vm1375, %v5595, %v5596
        %v5598 = vrot.slane %v5358, 1
        %v5599 = vsel %vm1375, %v5596, %v5598
        %v5600 = vrot.slane %v5359, 1
        %v5601 = vsel %vm1375, %v5598, %v5600
        %v5602 = vrot.slane %v5360, 1
        %v5603 = vrot.slane %v5361, 1
        %v5604 = vsel %vm1375, %v5602, %v5603
        %v5605 = vrot.slane %v5362, 1
        %v5606 = vsel %vm1375, %v5603, %v5605
        %v5607 = vrot.slane %v5363, 1
        %v5608 = vsel %vm1375, %v5605, %v5607
        %v5609 = vrot.slane %v5364, 1
        %v5610 = vrot.slane %v5365, 1
        %v5611 = vsel %vm1375, %v5609, %v5610
        %v5612 = vrot.slane %v5366, 1
        %v5613 = vsel %vm1375, %v5610, %v5612
        %v5614 = vrot.slane %v5367, 1
        %v5615 = vsel %vm1375, %v5612, %v5614
        %v5616 = vrot.slane %v5368, 1
        %v5617 = vrot.slane %v5369, 1
        %v5618 = vsel %vm1375, %v5616, %v5617
        %v5619 = vrot.slane %v5370, 1
        %v5620 = vsel %vm1375, %v5617, %v5619
        %v5621 = vrot.slane %v5371, 1
        %v5622 = vsel %vm1375, %v5619, %v5621
        %v5623 = vrot.slane %v5372, 1
        %v5624 = vrot.slane %v5373, 1
        %v5625 = vsel %vm1375, %v5623, %v5624
        %v5626 = vrot.slane %v5374, 1
        %v5627 = vsel %vm1375, %v5624, %v5626
        %v5628 = vrot.slane %v5375, 1
        %v5629 = vsel %vm1375, %v5626, %v5628
        %v5630 = vrot.slane %v5376, 1
        %v5631 = vrot.slane %v5377, 1
        %v5632 = vsel %vm1375, %v5630, %v5631
        %v5633 = vrot.slane %v5378, 1
        %v5634 = vsel %vm1375, %v5631, %v5633
        %v5635 = vrot.slane %v5379, 1
        %v5636 = vsel %vm1375, %v5633, %v5635
        %v5637 = vrot.slane %v5380, 1
        %v5638 = vrot.slane %v5381, 1
        %v5639 = vsel %vm1375, %v5637, %v5638
        %v5640 = vrot.slane %v5382, 1
        %v5641 = vsel %vm1375, %v5638, %v5640
        %v5642 = vrot.slane %v5383, 1
        %v5643 = vsel %vm1375, %v5640, %v5642
        %v5644 = vrot.slane %v5384, 1
        %v5645 = vrot.slane %v5385, 1
        %v5646 = vsel %vm1375, %v5644, %v5645
        %v5647 = vrot.slane %v5386, 1
        %v5648 = vsel %vm1375, %v5645, %v5647
        %v5649 = vrot.slane %v5387, 1
        %v5650 = vsel %vm1375, %v5647, %v5649
        %v5651 = vrot.slane %v5388, 1
        %v5652 = vrot.slane %v5389, 1
        %v5653 = vsel %vm1375, %v5651, %v5652
        %v5654 = vrot.slane %v5390, 1
        %v5655 = vsel %vm1375, %v5652, %v5654
        %v5656 = vrot.slane %v5391, 1
        %v5657 = vsel %vm1375, %v5654, %v5656
        %v5658 = vrot.slane %v5392, 1
        %v5659 = vrot.slane %v5393, 1
        %v5660 = vsel %vm1375, %v5658, %v5659
        %v5661 = vrot.slane %v5394, 1
        %v5662 = vsel %vm1375, %v5659, %v5661
        %v5663 = vrot.slane %v5395, 1
        %v5664 = vsel %vm1375, %v5661, %v5663
        %v5665 = vrot.slane %v5396, 1
        %v5666 = vrot.slane %v5397, 1
        %v5667 = vsel %vm1375, %v5665, %v5666
        %v5668 = vrot.slane %v5398, 1
        %v5669 = vsel %vm1375, %v5666, %v5668
        %v5670 = vrot.slane %v5399, 1
        %v5671 = vsel %vm1375, %v5668, %v5670
        %v5672 = vrot.slane %v5400, 1
        %v5673 = vrot.slane %v5401, 1
        %v5674 = vsel %vm1375, %v5672, %v5673
        %v5675 = vrot.slane %v5402, 1
        %v5676 = vsel %vm1375, %v5673, %v5675
        %v5677 = vrot.slane %v5403, 1
        %v5678 = vsel %vm1375, %v5675, %v5677
        %v5679 = vrot.slane %v5404, 1
        %v5680 = vrot.slane %v5405, 1
        %v5681 = vsel %vm1375, %v5679, %v5680
        %v5682 = vrot.slane %v5406, 1
        %v5683 = vsel %vm1375, %v5680, %v5682
        %v5684 = vrot.slane %v5407, 1
        %v5685 = vsel %vm1375, %v5682, %v5684
        %v5686 = vrot.slane %v5408, 1
        %v5687 = vrot.slane %v5409, 1
        %v5688 = vsel %vm1375, %v5686, %v5687
        %v5689 = vrot.slane %v5410, 1
        %v5690 = vsel %vm1375, %v5687, %v5689
        %v5691 = vrot.slane %v5411, 1
        %v5692 = vsel %vm1375, %v5689, %v5691
        %v5693 = vrot.slane %v5412, 1
        %v5694 = vrot.slane %v5413, 1
        %v5695 = vsel %vm1375, %v5693, %v5694
        %v5696 = vrot.slane %v5414, 1
        %v5697 = vsel %vm1375, %v5694, %v5696
        %v5698 = vrot.slane %v5415, 1
        %v5699 = vsel %vm1375, %v5696, %v5698
        %v5700 = vrot.slane %v5416, 1
        %v5701 = vrot.slane %v5417, 1
        %v5702 = vsel %vm1375, %v5700, %v5701
        %v5703 = vrot.slane %v5418, 1
        %v5704 = vsel %vm1375, %v5701, %v5703
        %v5705 = vrot.slane %v5419, 1
        %v5706 = vsel %vm1375, %v5703, %v5705
        %v5707 = vrot.slane %v5420, 1
        %v5708 = vrot.slane %v5421, 1
        %v5709 = vsel %vm1375, %v5707, %v5708
        %v5710 = vrot.slane %v5422, 1
        %v5711 = vsel %vm1375, %v5708, %v5710
        %v5712 = vrot.slane %v5423, 1
        %v5713 = vsel %vm1375, %v5710, %v5712
        %v5714 = vrot.slane %v5424, 1
        %v5715 = vrot.slane %v5425, 1
        %v5716 = vsel %vm1375, %v5714, %v5715
        %v5717 = vrot.slane %v5426, 1
        %v5718 = vsel %vm1375, %v5715, %v5717
        %v5719 = vrot.slane %v5427, 1
        %v5720 = vsel %vm1375, %v5717, %v5719
        %v5721 = vrot.slane %v5428, 1
        %v5722 = vrot.slane %v5429, 1
        %v5723 = vsel %vm1375, %v5721, %v5722
        %v5724 = vrot.slane %v5430, 1
        %v5725 = vsel %vm1375, %v5722, %v5724
        %v5726 = vrot.slane %v5431, 1
        %v5727 = vsel %vm1375, %v5724, %v5726
        %v5728 = vrot.slane %v5432, 1
        %v5729 = vrot.slane %v5433, 1
        %v5730 = vsel %vm1375, %v5728, %v5729
        %v5731 = vrot.slane %v5434, 1
        %v5732 = vsel %vm1375, %v5729, %v5731
        %v5733 = vrot.slane %v5435, 1
        %v5734 = vsel %vm1375, %v5731, %v5733
        %v5735 = vrot.slane %v5436, 1
        %v5736 = vrot.slane %v5437, 1
        %v5737 = vsel %vm1375, %v5735, %v5736
        %v5738 = vrot.slane %v5438, 1
        %v5739 = vsel %vm1375, %v5736, %v5738
        %v5740 = vrot.slane %v5439, 1
        %v5741 = vsel %vm1375, %v5738, %v5740
        %v5742 = vrot.slane %v5440, 1
        %v5743 = vrot.slane %v5441, 1
        %v5744 = vsel %vm1375, %v5742, %v5743
        %v5745 = vrot.slane %v5442, 1
        %v5746 = vsel %vm1375, %v5743, %v5745
        %v5747 = vrot.slane %v5443, 1
        %v5748 = vsel %vm1375, %v5745, %v5747
        %v5749 = vrot.slane %v5444, 1
        %v5750 = vrot.slane %v5445, 1
        %v5751 = vsel %vm1375, %v5749, %v5750
        %v5752 = vrot.slane %v5446, 1
        %v5753 = vsel %vm1375, %v5750, %v5752
        %v5754 = vrot.slane %v5447, 1
        %v5755 = vsel %vm1375, %v5752, %v5754
        %v5828 = vpack.c.bf16 %v5592, %v5590
        %v5829 = vpack.c.bf16 %v5597, %v5594
        %v5830 = vpack.c.bf16 %v5601, %v5599
        %v5831 = vpack.c.bf16 %v5606, %v5604
        %v5832 = vpack.c.bf16 %v5611, %v5608
        %v5833 = vpack.c.bf16 %v5615, %v5613
        %v5834 = vpack.c.bf16 %v5620, %v5618
        %v5835 = vpack.c.bf16 %v5625, %v5622
        %v5836 = vpack.c.bf16 %v5629, %v5627
        %v5837 = vpack.c.bf16 %v5634, %v5632
        %v5838 = vpack.c.bf16 %v5639, %v5636
        %v5839 = vpack.c.bf16 %v5643, %v5641
        %v5840 = vpack.c.bf16 %v5648, %v5646
        %v5841 = vpack.c.bf16 %v5653, %v5650
        %v5842 = vpack.c.bf16 %v5657, %v5655
        %v5843 = vpack.c.bf16 %v5662, %v5660
        %v5844 = vpack.c.bf16 %v5667, %v5664
        %v5845 = vpack.c.bf16 %v5671, %v5669
        %v5846 = vpack.c.bf16 %v5676, %v5674
        %v5847 = vpack.c.bf16 %v5681, %v5678
        %v5848 = vpack.c.bf16 %v5685, %v5683
        %v5849 = vpack.c.bf16 %v5690, %v5688
        %v5850 = vpack.c.bf16 %v5695, %v5692
        %v5851 = vpack.c.bf16 %v5699, %v5697
        %v5852 = vpack.c.bf16 %v5704, %v5702
        %v5853 = vpack.c.bf16 %v5709, %v5706
        %v5854 = vpack.c.bf16 %v5713, %v5711
        %v5855 = vpack.c.bf16 %v5718, %v5716
        %v5856 = vpack.c.bf16 %v5723, %v5720
        %v5857 = vpack.c.bf16 %v5727, %v5725
        %v5858 = vpack.c.bf16 %v5732, %v5730
        %v5859 = vpack.c.bf16 %v5737, %v5734
        %v5860 = vpack.c.bf16 %v5741, %v5739
        %v5861 = vpack.c.bf16 %v5746, %v5744
        %v5862 = vpack.c.bf16 %v5751, %v5748
        %v5863 = vpack.c.bf16 %v5755, %v5753
        %v5868 = vunpack.c.l.b16 %v399
        %v5869 = vunpack.c.l.b16 %v400
        %v5870 = vunpack.c.l.b16 %v401
        %v5871 = vunpack.c.l.b16 %v402
        %v5872 = vpack.c.b16 %v5869, %v5868
        %v5873 = vpack.c.b16 %v5871, %v5870
        %vm5876 = vcmask 261120
        %v5878 = vsel %vm5876, %v5828, 0
        %v5881 = vsel %vm5876, %v5829, 0
        %v5884 = vsel %vm5876, %v5830, 0
        %v5887 = vsel %vm5876, %v5831, 0
        %v5890 = vsel %vm5876, %v5832, 0
        %v5893 = vsel %vm5876, %v5833, 0
        %v5896 = vsel %vm5876, %v5834, 0
        %v5899 = vsel %vm5876, %v5835, 0
        %v5902 = vsel %vm5876, %v5836, 0
        %v5905 = vsel %vm5876, %v5837, 0
        %v5908 = vsel %vm5876, %v5838, 0
        %v5911 = vsel %vm5876, %v5839, 0
        %v5914 = vsel %vm5876, %v5840, 0
        %v5917 = vsel %vm5876, %v5841, 0
        %v5920 = vsel %vm5876, %v5842, 0
        %v5923 = vsel %vm5876, %v5843, 0
        %v5926 = vsel %vm5876, %v5844, 0
        %v5929 = vsel %vm5876, %v5845, 0
        %v5932 = vsel %vm5876, %v5846, 0
        %v5935 = vsel %vm5876, %v5847, 0
        %v5938 = vsel %vm5876, %v5848, 0
        %v5941 = vsel %vm5876, %v5849, 0
        %v5944 = vsel %vm5876, %v5850, 0
        %v5947 = vsel %vm5876, %v5851, 0
        %v5950 = vsel %vm5876, %v5852, 0
        %v5953 = vsel %vm5876, %v5853, 0
        %v5956 = vsel %vm5876, %v5854, 0
        %v5959 = vsel %vm5876, %v5855, 0
        %v5962 = vsel %vm5876, %v5856, 0
        %v5965 = vsel %vm5876, %v5857, 0
        %v5968 = vsel %vm5876, %v5858, 0
        %v5971 = vsel %vm5876, %v5859, 0
        %v5974 = vsel %vm5876, %v5860, 0
        %v5977 = vsel %vm5876, %v5861, 0
        %v5980 = vsel %vm5876, %v5862, 0
        %v5983 = vsel %vm5876, %v5863, 0
        %5985 = vmatprep.subr.bf16.mxu0 0
        %5986 = vmatpush1.bf16.msra.mxu0 %v5872
        %5987 = vmatprep.subr.bf16.mxu0 0
        %5988 = vmatpush1.bf16.msra.mxu0 %v5873
        %5989 = vmatprep.subr.bf16.mxu0 0
        %5990 = vmatpush1.bf16.msra.mxu0 0
        %5991 = vmatprep.subr.bf16.mxu0 0
        %5992 = vmatpush1.bf16.msra.mxu0 0
        %5993 = vmatprep.subr.bf16.mxu0 0
        %5994 = vmatpush1.bf16.msra.mxu0 0
        %5995 = vmatprep.subr.bf16.mxu0 0
        %5996 = vmatpush1.bf16.msra.mxu0 0
        %5997 = vmatprep.subr.bf16.mxu0 0
        %5998 = vmatpush1.bf16.msra.mxu0 0
        %5999 = vmatprep.subr.bf16.mxu0 0
        %6000 = vmatpush1.bf16.msra.mxu0 0
        %6001 = vmatprep.subr.bf16.mxu0 0
        %6002 = vmatpush1.bf16.msra.mxu0 0
        %6003 = vmatprep.subr.bf16.mxu0 0
        %6004 = vmatpush1.bf16.msra.mxu0 0
        %6005 = vmatprep.subr.bf16.mxu0 0
        %6006 = vmatpush1.bf16.msra.mxu0 0
        %6007 = vmatprep.subr.bf16.mxu0 0
        %6008 = vmatpush1.bf16.msra.mxu0 0
        %6009 = vmatprep.subr.bf16.mxu0 0
        %6010 = vmatpush1.bf16.msra.mxu0 0
        %6011 = vmatprep.subr.bf16.mxu0 0
        %6012 = vmatpush1.bf16.msra.mxu0 0
        %6013 = vmatprep.subr.bf16.mxu0 0
        %6014 = vmatpush1.bf16.msra.mxu0 0
        %6015 = vmatprep.subr.bf16.mxu0 0
        %6016 = vmatpush1.bf16.msra.mxu0 0
        %6017 = vmatprep.mubr.bf16.mxu0 0
        %6018 = vmatmul.mubr.bf16.gmra.mrb[0].mxu0 %v5878
        %v6019 = vpop.f32.mrb[0].mxu0
        %v6020 = vadd.f32 0.0, %v6019
        %v6021 = vpop.f32.mrb[0].mxu0
        %v6022 = vpop.f32.mrb[0].mxu0
        %v6023 = vadd.f32 0.0, %v6022
        %v6024 = vpop.f32.mrb[0].mxu0
        %6025 = vmatprep.mubr.bf16.mxu0 0
        %6026 = vmatmul.mubr.bf16.gmra.mrb[0].mxu0 %v5881
        %v6027 = vpop.f32.mrb[0].mxu0
        %v6028 = vadd.f32 0.0, %v6027
        %v6029 = vpop.f32.mrb[0].mxu0
        %v6030 = vpop.f32.mrb[0].mxu0
        %v6031 = vadd.f32 0.0, %v6030
        %v6032 = vpop.f32.mrb[0].mxu0
        %6033 = vmatprep.mubr.bf16.mxu0 0
        %6034 = vmatmul.mubr.bf16.gmra.mrb[0].mxu0 %v5884
        %v6035 = vpop.f32.mrb[0].mxu0
        %v6036 = vadd.f32 0.0, %v6035
        %v6037 = vpop.f32.mrb[0].mxu0
        %v6038 = vpop.f32.mrb[0].mxu0
        %v6039 = vadd.f32 0.0, %v6038
        %v6040 = vpop.f32.mrb[0].mxu0
        %6041 = vmatprep.mubr.bf16.mxu0 0
        %6042 = vmatmul.mubr.bf16.gmra.mrb[0].mxu0 %v5887
        %v6043 = vpop.f32.mrb[0].mxu0
        %v6044 = vadd.f32 0.0, %v6043
        %v6045 = vpop.f32.mrb[0].mxu0
        %v6046 = vpop.f32.mrb[0].mxu0
        %v6047 = vadd.f32 0.0, %v6046
        %v6048 = vpop.f32.mrb[0].mxu0
        %6049 = vmatprep.mubr.bf16.mxu0 0
        %6050 = vmatmul.mubr.bf16.gmra.mrb[0].mxu0 %v5890
        %v6051 = vpop.f32.mrb[0].mxu0
        %v6052 = vadd.f32 0.0, %v6051
        %v6053 = vpop.f32.mrb[0].mxu0
        %v6054 = vpop.f32.mrb[0].mxu0
        %v6055 = vadd.f32 0.0, %v6054
        %v6056 = vpop.f32.mrb[0].mxu0
        %6057 = vmatprep.mubr.bf16.mxu0 0
        %6058 = vmatmul.mubr.bf16.gmra.mrb[0].mxu0 %v5893
        %v6059 = vpop.f32.mrb[0].mxu0
        %v6060 = vadd.f32 0.0, %v6059
        %v6061 = vpop.f32.mrb[0].mxu0
        %v6062 = vpop.f32.mrb[0].mxu0
        %v6063 = vadd.f32 0.0, %v6062
        %v6064 = vpop.f32.mrb[0].mxu0
        %6065 = vmatprep.mubr.bf16.mxu0 0
        %6066 = vmatmul.mubr.bf16.gmra.mrb[0].mxu0 %v5896
        %v6067 = vpop.f32.mrb[0].mxu0
        %v6068 = vadd.f32 0.0, %v6067
        %v6069 = vpop.f32.mrb[0].mxu0
        %v6070 = vpop.f32.mrb[0].mxu0
        %v6071 = vadd.f32 0.0, %v6070
        %v6072 = vpop.f32.mrb[0].mxu0
        %6073 = vmatprep.mubr.bf16.mxu0 0
        %6074 = vmatmul.mubr.bf16.gmra.mrb[0].mxu0 %v5899
        %v6075 = vpop.f32.mrb[0].mxu0
        %v6076 = vadd.f32 0.0, %v6075
        %v6077 = vpop.f32.mrb[0].mxu0
        %v6078 = vpop.f32.mrb[0].mxu0
        %v6079 = vadd.f32 0.0, %v6078
        %v6080 = vpop.f32.mrb[0].mxu0
        %6081 = vmatprep.mubr.bf16.mxu0 0
        %6082 = vmatmul.mubr.bf16.gmra.mrb[0].mxu0 %v5902
        %v6083 = vpop.f32.mrb[0].mxu0
        %v6084 = vadd.f32 0.0, %v6083
        %v6085 = vpop.f32.mrb[0].mxu0
        %v6086 = vpop.f32.mrb[0].mxu0
        %v6087 = vadd.f32 0.0, %v6086
        %v6088 = vpop.f32.mrb[0].mxu0
        %6089 = vmatprep.mubr.bf16.mxu0 0
        %6090 = vmatmul.mubr.bf16.gmra.mrb[0].mxu0 %v5905
        %v6091 = vpop.f32.mrb[0].mxu0
        %v6092 = vadd.f32 0.0, %v6091
        %v6093 = vpop.f32.mrb[0].mxu0
        %v6094 = vpop.f32.mrb[0].mxu0
        %v6095 = vadd.f32 0.0, %v6094
        %v6096 = vpop.f32.mrb[0].mxu0
        %6097 = vmatprep.mubr.bf16.mxu0 0
        %6098 = vmatmul.mubr.bf16.gmra.mrb[0].mxu0 %v5908
        %v6099 = vpop.f32.mrb[0].mxu0
        %v6100 = vadd.f32 0.0, %v6099
        %v6101 = vpop.f32.mrb[0].mxu0
        %v6102 = vpop.f32.mrb[0].mxu0
        %v6103 = vadd.f32 0.0, %v6102
        %v6104 = vpop.f32.mrb[0].mxu0
        %6105 = vmatprep.mubr.bf16.mxu0 0
        %6106 = vmatmul.mubr.bf16.gmra.mrb[0].mxu0 %v5911
        %v6107 = vpop.f32.mrb[0].mxu0
        %v6108 = vadd.f32 0.0, %v6107
        %v6109 = vpop.f32.mrb[0].mxu0
        %v6110 = vpop.f32.mrb[0].mxu0
        %v6111 = vadd.f32 0.0, %v6110
        %v6112 = vpop.f32.mrb[0].mxu0
        %6113 = vmatprep.mubr.bf16.mxu0 0
        %6114 = vmatmul.mubr.bf16.gmra.mrb[0].mxu0 %v5914
        %v6115 = vpop.f32.mrb[0].mxu0
        %v6116 = vadd.f32 0.0, %v6115
        %v6117 = vpop.f32.mrb[0].mxu0
        %v6118 = vpop.f32.mrb[0].mxu0
        %v6119 = vadd.f32 0.0, %v6118
        %v6120 = vpop.f32.mrb[0].mxu0
        %6121 = vmatprep.mubr.bf16.mxu0 0
        %6122 = vmatmul.mubr.bf16.gmra.mrb[0].mxu0 %v5917
        %v6123 = vpop.f32.mrb[0].mxu0
        %v6124 = vadd.f32 0.0, %v6123
        %v6125 = vpop.f32.mrb[0].mxu0
        %v6126 = vpop.f32.mrb[0].mxu0
        %v6127 = vadd.f32 0.0, %v6126
        %v6128 = vpop.f32.mrb[0].mxu0
        %6129 = vmatprep.mubr.bf16.mxu0 0
        %6130 = vmatmul.mubr.bf16.gmra.mrb[0].mxu0 %v5920
        %v6131 = vpop.f32.mrb[0].mxu0
        %v6132 = vadd.f32 0.0, %v6131
        %v6133 = vpop.f32.mrb[0].mxu0
        %v6134 = vpop.f32.mrb[0].mxu0
        %v6135 = vadd.f32 0.0, %v6134
        %v6136 = vpop.f32.mrb[0].mxu0
        %6137 = vmatprep.mubr.bf16.mxu0 0
        %6138 = vmatmul.mubr.bf16.gmra.mrb[0].mxu0 %v5923
        %v6139 = vpop.f32.mrb[0].mxu0
        %v6140 = vadd.f32 0.0, %v6139
        %v6141 = vpop.f32.mrb[0].mxu0
        %v6142 = vpop.f32.mrb[0].mxu0
        %v6143 = vadd.f32 0.0, %v6142
        %v6144 = vpop.f32.mrb[0].mxu0
        %6145 = vmatprep.mubr.bf16.mxu0 0
        %6146 = vmatmul.mubr.bf16.gmra.mrb[0].mxu0 %v5926
        %v6147 = vpop.f32.mrb[0].mxu0
        %v6148 = vadd.f32 0.0, %v6147
        %v6149 = vpop.f32.mrb[0].mxu0
        %v6150 = vpop.f32.mrb[0].mxu0
        %v6151 = vadd.f32 0.0, %v6150
        %v6152 = vpop.f32.mrb[0].mxu0
        %6153 = vmatprep.mubr.bf16.mxu0 0
        %6154 = vmatmul.mubr.bf16.gmra.mrb[0].mxu0 %v5929
        %v6155 = vpop.f32.mrb[0].mxu0
        %v6156 = vadd.f32 0.0, %v6155
        %v6157 = vpop.f32.mrb[0].mxu0
        %v6158 = vpop.f32.mrb[0].mxu0
        %v6159 = vadd.f32 0.0, %v6158
        %v6160 = vpop.f32.mrb[0].mxu0
        %6161 = vmatprep.mubr.bf16.mxu0 0
        %6162 = vmatmul.mubr.bf16.gmra.mrb[0].mxu0 %v5932
        %v6163 = vpop.f32.mrb[0].mxu0
        %v6164 = vadd.f32 0.0, %v6163
        %v6165 = vpop.f32.mrb[0].mxu0
        %v6166 = vpop.f32.mrb[0].mxu0
        %v6167 = vadd.f32 0.0, %v6166
        %v6168 = vpop.f32.mrb[0].mxu0
        %6169 = vmatprep.mubr.bf16.mxu0 0
        %6170 = vmatmul.mubr.bf16.gmra.mrb[0].mxu0 %v5935
        %v6171 = vpop.f32.mrb[0].mxu0
        %v6172 = vadd.f32 0.0, %v6171
        %v6173 = vpop.f32.mrb[0].mxu0
        %v6174 = vpop.f32.mrb[0].mxu0
        %v6175 = vadd.f32 0.0, %v6174
        %v6176 = vpop.f32.mrb[0].mxu0
        %6177 = vmatprep.mubr.bf16.mxu0 0
        %6178 = vmatmul.mubr.bf16.gmra.mrb[0].mxu0 %v5938
        %v6179 = vpop.f32.mrb[0].mxu0
        %v6180 = vadd.f32 0.0, %v6179
        %v6181 = vpop.f32.mrb[0].mxu0
        %v6182 = vpop.f32.mrb[0].mxu0
        %v6183 = vadd.f32 0.0, %v6182
        %v6184 = vpop.f32.mrb[0].mxu0
        %6185 = vmatprep.mubr.bf16.mxu0 0
        %6186 = vmatmul.mubr.bf16.gmra.mrb[0].mxu0 %v5941
        %v6187 = vpop.f32.mrb[0].mxu0
        %v6188 = vadd.f32 0.0, %v6187
        %v6189 = vpop.f32.mrb[0].mxu0
        %v6190 = vpop.f32.mrb[0].mxu0
        %v6191 = vadd.f32 0.0, %v6190
        %v6192 = vpop.f32.mrb[0].mxu0
        %6193 = vmatprep.mubr.bf16.mxu0 0
        %6194 = vmatmul.mubr.bf16.gmra.mrb[0].mxu0 %v5944
        %v6195 = vpop.f32.mrb[0].mxu0
        %v6196 = vadd.f32 0.0, %v6195
        %v6197 = vpop.f32.mrb[0].mxu0
        %v6198 = vpop.f32.mrb[0].mxu0
        %v6199 = vadd.f32 0.0, %v6198
        %v6200 = vpop.f32.mrb[0].mxu0
        %6201 = vmatprep.mubr.bf16.mxu0 0
        %6202 = vmatmul.mubr.bf16.gmra.mrb[0].mxu0 %v5947
        %v6203 = vpop.f32.mrb[0].mxu0
        %v6204 = vadd.f32 0.0, %v6203
        %v6205 = vpop.f32.mrb[0].mxu0
        %v6206 = vpop.f32.mrb[0].mxu0
        %v6207 = vadd.f32 0.0, %v6206
        %v6208 = vpop.f32.mrb[0].mxu0
        %6209 = vmatprep.mubr.bf16.mxu0 0
        %6210 = vmatmul.mubr.bf16.gmra.mrb[0].mxu0 %v5950
        %v6211 = vpop.f32.mrb[0].mxu0
        %v6212 = vadd.f32 0.0, %v6211
        %v6213 = vpop.f32.mrb[0].mxu0
        %v6214 = vpop.f32.mrb[0].mxu0
        %v6215 = vadd.f32 0.0, %v6214
        %v6216 = vpop.f32.mrb[0].mxu0
        %6217 = vmatprep.mubr.bf16.mxu0 0
        %6218 = vmatmul.mubr.bf16.gmra.mrb[0].mxu0 %v5953
        %v6219 = vpop.f32.mrb[0].mxu0
        %v6220 = vadd.f32 0.0, %v6219
        %v6221 = vpop.f32.mrb[0].mxu0
        %v6222 = vpop.f32.mrb[0].mxu0
        %v6223 = vadd.f32 0.0, %v6222
        %v6224 = vpop.f32.mrb[0].mxu0
        %6225 = vmatprep.mubr.bf16.mxu0 0
        %6226 = vmatmul.mubr.bf16.gmra.mrb[0].mxu0 %v5956
        %v6227 = vpop.f32.mrb[0].mxu0
        %v6228 = vadd.f32 0.0, %v6227
        %v6229 = vpop.f32.mrb[0].mxu0
        %v6230 = vpop.f32.mrb[0].mxu0
        %v6231 = vadd.f32 0.0, %v6230
        %v6232 = vpop.f32.mrb[0].mxu0
        %6233 = vmatprep.mubr.bf16.mxu0 0
        %6234 = vmatmul.mubr.bf16.gmra.mrb[0].mxu0 %v5959
        %v6235 = vpop.f32.mrb[0].mxu0
        %v6236 = vadd.f32 0.0, %v6235
        %v6237 = vpop.f32.mrb[0].mxu0
        %v6238 = vpop.f32.mrb[0].mxu0
        %v6239 = vadd.f32 0.0, %v6238
        %v6240 = vpop.f32.mrb[0].mxu0
        %6241 = vmatprep.mubr.bf16.mxu0 0
        %6242 = vmatmul.mubr.bf16.gmra.mrb[0].mxu0 %v5962
        %v6243 = vpop.f32.mrb[0].mxu0
        %v6244 = vadd.f32 0.0, %v6243
        %v6245 = vpop.f32.mrb[0].mxu0
        %v6246 = vpop.f32.mrb[0].mxu0
        %v6247 = vadd.f32 0.0, %v6246
        %v6248 = vpop.f32.mrb[0].mxu0
        %6249 = vmatprep.mubr.bf16.mxu0 0
        %6250 = vmatmul.mubr.bf16.gmra.mrb[0].mxu0 %v5965
        %v6251 = vpop.f32.mrb[0].mxu0
        %v6252 = vadd.f32 0.0, %v6251
        %v6253 = vpop.f32.mrb[0].mxu0
        %v6254 = vpop.f32.mrb[0].mxu0
        %v6255 = vadd.f32 0.0, %v6254
        %v6256 = vpop.f32.mrb[0].mxu0
        %6257 = vmatprep.mubr.bf16.mxu0 0
        %6258 = vmatmul.mubr.bf16.gmra.mrb[0].mxu0 %v5968
        %v6259 = vpop.f32.mrb[0].mxu0
        %v6260 = vadd.f32 0.0, %v6259
        %v6261 = vpop.f32.mrb[0].mxu0
        %v6262 = vpop.f32.mrb[0].mxu0
        %v6263 = vadd.f32 0.0, %v6262
        %v6264 = vpop.f32.mrb[0].mxu0
        %6265 = vmatprep.mubr.bf16.mxu0 0
        %6266 = vmatmul.mubr.bf16.gmra.mrb[0].mxu0 %v5971
        %v6267 = vpop.f32.mrb[0].mxu0
        %v6268 = vadd.f32 0.0, %v6267
        %v6269 = vpop.f32.mrb[0].mxu0
        %v6270 = vpop.f32.mrb[0].mxu0
        %v6271 = vadd.f32 0.0, %v6270
        %v6272 = vpop.f32.mrb[0].mxu0
        %6273 = vmatprep.mubr.bf16.mxu0 0
        %6274 = vmatmul.mubr.bf16.gmra.mrb[0].mxu0 %v5974
        %v6275 = vpop.f32.mrb[0].mxu0
        %v6276 = vadd.f32 0.0, %v6275
        %v6277 = vpop.f32.mrb[0].mxu0
        %v6278 = vpop.f32.mrb[0].mxu0
        %v6279 = vadd.f32 0.0, %v6278
        %v6280 = vpop.f32.mrb[0].mxu0
        %6281 = vmatprep.mubr.bf16.mxu0 0
        %6282 = vmatmul.mubr.bf16.gmra.mrb[0].mxu0 %v5977
        %v6283 = vpop.f32.mrb[0].mxu0
        %v6284 = vadd.f32 0.0, %v6283
        %v6285 = vpop.f32.mrb[0].mxu0
        %v6286 = vpop.f32.mrb[0].mxu0
        %v6287 = vadd.f32 0.0, %v6286
        %v6288 = vpop.f32.mrb[0].mxu0
        %6289 = vmatprep.mubr.bf16.mxu0 0
        %6290 = vmatmul.mubr.bf16.gmra.mrb[0].mxu0 %v5980
        %v6291 = vpop.f32.mrb[0].mxu0
        %v6292 = vadd.f32 0.0, %v6291
        %v6293 = vpop.f32.mrb[0].mxu0
        %v6294 = vpop.f32.mrb[0].mxu0
        %v6295 = vadd.f32 0.0, %v6294
        %v6296 = vpop.f32.mrb[0].mxu0
        %6297 = vmatprep.mubr.bf16.mxu0 0
        %6298 = vmatmul.mubr.bf16.gmra.mrb[0].mxu0 %v5983
        %v6299 = vpop.f32.mrb[0].mxu0
        %v6300 = vadd.f32 0.0, %v6299
        %v6301 = vpop.f32.mrb[0].mxu0
        %v6302 = vpop.f32.mrb[0].mxu0
        %v6303 = vadd.f32 0.0, %v6302
        %v6304 = vpop.f32.mrb[0].mxu0
        %6305 = vdwg.mxu0
        %v6310 = vunpack.c.l.b16 %v395
        %v6311 = vunpack.c.l.b16 %v396
        %v6312 = vunpack.c.l.b16 %v397
        %v6313 = vunpack.c.l.b16 %v398
        %v6314 = vpack.c.b16 %v6311, %v6310
        %v6315 = vpack.c.b16 %v6313, %v6312
        %v6319 = vsel %vm5876, %v5456, 0
        %v6322 = vsel %vm5876, %v5457, 0
        %v6325 = vsel %vm5876, %v5458, 0
        %v6328 = vsel %vm5876, %v5459, 0
        %v6331 = vsel %vm5876, %v5460, 0
        %v6334 = vsel %vm5876, %v5461, 0
        %v6337 = vsel %vm5876, %v5462, 0
        %v6340 = vsel %vm5876, %v5463, 0
        %v6343 = vsel %vm5876, %v5464, 0
        %v6346 = vsel %vm5876, %v5465, 0
        %v6349 = vsel %vm5876, %v5466, 0
        %v6352 = vsel %vm5876, %v5467, 0
        %v6355 = vsel %vm5876, %v5468, 0
        %v6358 = vsel %vm5876, %v5469, 0
        %v6361 = vsel %vm5876, %v5470, 0
        %v6364 = vsel %vm5876, %v5471, 0
        %v6367 = vsel %vm5876, %v5472, 0
        %v6370 = vsel %vm5876, %v5473, 0
        %v6373 = vsel %vm5876, %v5474, 0
        %v6376 = vsel %vm5876, %v5475, 0
        %v6379 = vsel %vm5876, %v5476, 0
        %v6382 = vsel %vm5876, %v5477, 0
        %v6385 = vsel %vm5876, %v5478, 0
        %v6388 = vsel %vm5876, %v5479, 0
        %v6391 = vsel %vm5876, %v5480, 0
        %v6394 = vsel %vm5876, %v5481, 0
        %v6397 = vsel %vm5876, %v5482, 0
        %v6400 = vsel %vm5876, %v5483, 0
        %v6403 = vsel %vm5876, %v5484, 0
        %v6406 = vsel %vm5876, %v5485, 0
        %v6409 = vsel %vm5876, %v5486, 0
        %v6412 = vsel %vm5876, %v5487, 0
        %v6415 = vsel %vm5876, %v5488, 0
        %v6418 = vsel %vm5876, %v5489, 0
        %v6421 = vsel %vm5876, %v5490, 0
        %v6424 = vsel %vm5876, %v5491, 0
        %6426 = vmatprep.subr.bf16.mxu0 0
        %6427 = vmatpush1.bf16.msra.mxu0 %v6314
        %6428 = vmatprep.subr.bf16.mxu0 0
        %6429 = vmatpush1.bf16.msra.mxu0 %v6315
        %6430 = vmatprep.subr.bf16.mxu0 0
        %6431 = vmatpush1.bf16.msra.mxu0 0
        %6432 = vmatprep.subr.bf16.mxu0 0
        %6433 = vmatpush1.bf16.msra.mxu0 0
        %6434 = vmatprep.subr.bf16.mxu0 0
        %6435 = vmatpush1.bf16.msra.mxu0 0
        %6436 = vmatprep.subr.bf16.mxu0 0
        %6437 = vmatpush1.bf16.msra.mxu0 0
        %6438 = vmatprep.subr.bf16.mxu0 0
        %6439 = vmatpush1.bf16.msra.mxu0 0
        %6440 = vmatprep.subr.bf16.mxu0 0
        %6441 = vmatpush1.bf16.msra.mxu0 0
        %6442 = vmatprep.subr.bf16.mxu0 0
        %6443 = vmatpush1.bf16.msra.mxu0 0
        %6444 = vmatprep.subr.bf16.mxu0 0
        %6445 = vmatpush1.bf16.msra.mxu0 0
        %6446 = vmatprep.subr.bf16.mxu0 0
        %6447 = vmatpush1.bf16.msra.mxu0 0
        %6448 = vmatprep.subr.bf16.mxu0 0
        %6449 = vmatpush1.bf16.msra.mxu0 0
        %6450 = vmatprep.subr.bf16.mxu0 0
        %6451 = vmatpush1.bf16.msra.mxu0 0
        %6452 = vmatprep.subr.bf16.mxu0 0
        %6453 = vmatpush1.bf16.msra.mxu0 0
        %6454 = vmatprep.subr.bf16.mxu0 0
        %6455 = vmatpush1.bf16.msra.mxu0 0
        %6456 = vmatprep.subr.bf16.mxu0 0
        %6457 = vmatpush1.bf16.msra.mxu0 0
        %6458 = vmatprep.mubr.bf16.mxu0 0
        %6459 = vmatmul.mubr.bf16.gmra.mrb[0].mxu0 %v6319
        %v6460 = vpop.f32.mrb[0].mxu0
        %v6461 = vadd.f32 %v6020, %v6460
        %v6462 = vpop.f32.mrb[0].mxu0
        %v6463 = vpop.f32.mrb[0].mxu0
        %v6464 = vadd.f32 %v6023, %v6463
        %v6465 = vpop.f32.mrb[0].mxu0
        %6466 = vmatprep.mubr.bf16.mxu0 0
        %6467 = vmatmul.mubr.bf16.gmra.mrb[0].mxu0 %v6322
        %v6468 = vpop.f32.mrb[0].mxu0
        %v6469 = vadd.f32 %v6028, %v6468
        %v6470 = vpop.f32.mrb[0].mxu0
        %v6471 = vpop.f32.mrb[0].mxu0
        %v6472 = vadd.f32 %v6031, %v6471
        %v6473 = vpop.f32.mrb[0].mxu0
        %6474 = vmatprep.mubr.bf16.mxu0 0
        %6475 = vmatmul.mubr.bf16.gmra.mrb[0].mxu0 %v6325
        %v6476 = vpop.f32.mrb[0].mxu0
        %v6477 = vadd.f32 %v6036, %v6476
        %v6478 = vpop.f32.mrb[0].mxu0
        %v6479 = vpop.f32.mrb[0].mxu0
        %v6480 = vadd.f32 %v6039, %v6479
        %v6481 = vpop.f32.mrb[0].mxu0
        %6482 = vmatprep.mubr.bf16.mxu0 0
        %6483 = vmatmul.mubr.bf16.gmra.mrb[0].mxu0 %v6328
        %v6484 = vpop.f32.mrb[0].mxu0
        %v6485 = vadd.f32 %v6044, %v6484
        %v6486 = vpop.f32.mrb[0].mxu0
        %v6487 = vpop.f32.mrb[0].mxu0
        %v6488 = vadd.f32 %v6047, %v6487
        %v6489 = vpop.f32.mrb[0].mxu0
        %6490 = vmatprep.mubr.bf16.mxu0 0
        %6491 = vmatmul.mubr.bf16.gmra.mrb[0].mxu0 %v6331
        %v6492 = vpop.f32.mrb[0].mxu0
        %v6493 = vadd.f32 %v6052, %v6492
        %v6494 = vpop.f32.mrb[0].mxu0
        %v6495 = vpop.f32.mrb[0].mxu0
        %v6496 = vadd.f32 %v6055, %v6495
        %v6497 = vpop.f32.mrb[0].mxu0
        %6498 = vmatprep.mubr.bf16.mxu0 0
        %6499 = vmatmul.mubr.bf16.gmra.mrb[0].mxu0 %v6334
        %v6500 = vpop.f32.mrb[0].mxu0
        %v6501 = vadd.f32 %v6060, %v6500
        %v6502 = vpop.f32.mrb[0].mxu0
        %v6503 = vpop.f32.mrb[0].mxu0
        %v6504 = vadd.f32 %v6063, %v6503
        %v6505 = vpop.f32.mrb[0].mxu0
        %6506 = vmatprep.mubr.bf16.mxu0 0
        %6507 = vmatmul.mubr.bf16.gmra.mrb[0].mxu0 %v6337
        %v6508 = vpop.f32.mrb[0].mxu0
        %v6509 = vadd.f32 %v6068, %v6508
        %v6510 = vpop.f32.mrb[0].mxu0
        %v6511 = vpop.f32.mrb[0].mxu0
        %v6512 = vadd.f32 %v6071, %v6511
        %v6513 = vpop.f32.mrb[0].mxu0
        %6514 = vmatprep.mubr.bf16.mxu0 0
        %6515 = vmatmul.mubr.bf16.gmra.mrb[0].mxu0 %v6340
        %v6516 = vpop.f32.mrb[0].mxu0
        %v6517 = vadd.f32 %v6076, %v6516
        %v6518 = vpop.f32.mrb[0].mxu0
        %v6519 = vpop.f32.mrb[0].mxu0
        %v6520 = vadd.f32 %v6079, %v6519
        %v6521 = vpop.f32.mrb[0].mxu0
        %6522 = vmatprep.mubr.bf16.mxu0 0
        %6523 = vmatmul.mubr.bf16.gmra.mrb[0].mxu0 %v6343
        %v6524 = vpop.f32.mrb[0].mxu0
        %v6525 = vadd.f32 %v6084, %v6524
        %v6526 = vpop.f32.mrb[0].mxu0
        %v6527 = vpop.f32.mrb[0].mxu0
        %v6528 = vadd.f32 %v6087, %v6527
        %v6529 = vpop.f32.mrb[0].mxu0
        %6530 = vmatprep.mubr.bf16.mxu0 0
        %6531 = vmatmul.mubr.bf16.gmra.mrb[0].mxu0 %v6346
        %v6532 = vpop.f32.mrb[0].mxu0
        %v6533 = vadd.f32 %v6092, %v6532
        %v6534 = vpop.f32.mrb[0].mxu0
        %v6535 = vpop.f32.mrb[0].mxu0
        %v6536 = vadd.f32 %v6095, %v6535
        %v6537 = vpop.f32.mrb[0].mxu0
        %6538 = vmatprep.mubr.bf16.mxu0 0
        %6539 = vmatmul.mubr.bf16.gmra.mrb[0].mxu0 %v6349
        %v6540 = vpop.f32.mrb[0].mxu0
        %v6541 = vadd.f32 %v6100, %v6540
        %v6542 = vpop.f32.mrb[0].mxu0
        %v6543 = vpop.f32.mrb[0].mxu0
        %v6544 = vadd.f32 %v6103, %v6543
        %v6545 = vpop.f32.mrb[0].mxu0
        %6546 = vmatprep.mubr.bf16.mxu0 0
        %6547 = vmatmul.mubr.bf16.gmra.mrb[0].mxu0 %v6352
        %v6548 = vpop.f32.mrb[0].mxu0
        %v6549 = vadd.f32 %v6108, %v6548
        %v6550 = vpop.f32.mrb[0].mxu0
        %v6551 = vpop.f32.mrb[0].mxu0
        %v6552 = vadd.f32 %v6111, %v6551
        %v6553 = vpop.f32.mrb[0].mxu0
        %6554 = vmatprep.mubr.bf16.mxu0 0
        %6555 = vmatmul.mubr.bf16.gmra.mrb[0].mxu0 %v6355
        %v6556 = vpop.f32.mrb[0].mxu0
        %v6557 = vadd.f32 %v6116, %v6556
        %v6558 = vpop.f32.mrb[0].mxu0
        %v6559 = vpop.f32.mrb[0].mxu0
        %v6560 = vadd.f32 %v6119, %v6559
        %v6561 = vpop.f32.mrb[0].mxu0
        %6562 = vmatprep.mubr.bf16.mxu0 0
        %6563 = vmatmul.mubr.bf16.gmra.mrb[0].mxu0 %v6358
        %v6564 = vpop.f32.mrb[0].mxu0
        %v6565 = vadd.f32 %v6124, %v6564
        %v6566 = vpop.f32.mrb[0].mxu0
        %v6567 = vpop.f32.mrb[0].mxu0
        %v6568 = vadd.f32 %v6127, %v6567
        %v6569 = vpop.f32.mrb[0].mxu0
        %6570 = vmatprep.mubr.bf16.mxu0 0
        %6571 = vmatmul.mubr.bf16.gmra.mrb[0].mxu0 %v6361
        %v6572 = vpop.f32.mrb[0].mxu0
        %v6573 = vadd.f32 %v6132, %v6572
        %v6574 = vpop.f32.mrb[0].mxu0
        %v6575 = vpop.f32.mrb[0].mxu0
        %v6576 = vadd.f32 %v6135, %v6575
        %v6577 = vpop.f32.mrb[0].mxu0
        %6578 = vmatprep.mubr.bf16.mxu0 0
        %6579 = vmatmul.mubr.bf16.gmra.mrb[0].mxu0 %v6364
        %v6580 = vpop.f32.mrb[0].mxu0
        %v6581 = vadd.f32 %v6140, %v6580
        %v6582 = vpop.f32.mrb[0].mxu0
        %v6583 = vpop.f32.mrb[0].mxu0
        %v6584 = vadd.f32 %v6143, %v6583
        %v6585 = vpop.f32.mrb[0].mxu0
        %6586 = vmatprep.mubr.bf16.mxu0 0
        %6587 = vmatmul.mubr.bf16.gmra.mrb[0].mxu0 %v6367
        %v6588 = vpop.f32.mrb[0].mxu0
        %v6589 = vadd.f32 %v6148, %v6588
        %v6590 = vpop.f32.mrb[0].mxu0
        %v6591 = vpop.f32.mrb[0].mxu0
        %v6592 = vadd.f32 %v6151, %v6591
        %v6593 = vpop.f32.mrb[0].mxu0
        %6594 = vmatprep.mubr.bf16.mxu0 0
        %6595 = vmatmul.mubr.bf16.gmra.mrb[0].mxu0 %v6370
        %v6596 = vpop.f32.mrb[0].mxu0
        %v6597 = vadd.f32 %v6156, %v6596
        %v6598 = vpop.f32.mrb[0].mxu0
        %v6599 = vpop.f32.mrb[0].mxu0
        %v6600 = vadd.f32 %v6159, %v6599
        %v6601 = vpop.f32.mrb[0].mxu0
        %6602 = vmatprep.mubr.bf16.mxu0 0
        %6603 = vmatmul.mubr.bf16.gmra.mrb[0].mxu0 %v6373
        %v6604 = vpop.f32.mrb[0].mxu0
        %v6605 = vadd.f32 %v6164, %v6604
        %v6606 = vpop.f32.mrb[0].mxu0
        %v6607 = vpop.f32.mrb[0].mxu0
        %v6608 = vadd.f32 %v6167, %v6607
        %v6609 = vpop.f32.mrb[0].mxu0
        %6610 = vmatprep.mubr.bf16.mxu0 0
        %6611 = vmatmul.mubr.bf16.gmra.mrb[0].mxu0 %v6376
        %v6612 = vpop.f32.mrb[0].mxu0
        %v6613 = vadd.f32 %v6172, %v6612
        %v6614 = vpop.f32.mrb[0].mxu0
        %v6615 = vpop.f32.mrb[0].mxu0
        %v6616 = vadd.f32 %v6175, %v6615
        %v6617 = vpop.f32.mrb[0].mxu0
        %6618 = vmatprep.mubr.bf16.mxu0 0
        %6619 = vmatmul.mubr.bf16.gmra.mrb[0].mxu0 %v6379
        %v6620 = vpop.f32.mrb[0].mxu0
        %v6621 = vadd.f32 %v6180, %v6620
        %v6622 = vpop.f32.mrb[0].mxu0
        %v6623 = vpop.f32.mrb[0].mxu0
        %v6624 = vadd.f32 %v6183, %v6623
        %v6625 = vpop.f32.mrb[0].mxu0
        %6626 = vmatprep.mubr.bf16.mxu0 0
        %6627 = vmatmul.mubr.bf16.gmra.mrb[0].mxu0 %v6382
        %v6628 = vpop.f32.mrb[0].mxu0
        %v6629 = vadd.f32 %v6188, %v6628
        %v6630 = vpop.f32.mrb[0].mxu0
        %v6631 = vpop.f32.mrb[0].mxu0
        %v6632 = vadd.f32 %v6191, %v6631
        %v6633 = vpop.f32.mrb[0].mxu0
        %6634 = vmatprep.mubr.bf16.mxu0 0
        %6635 = vmatmul.mubr.bf16.gmra.mrb[0].mxu0 %v6385
        %v6636 = vpop.f32.mrb[0].mxu0
        %v6637 = vadd.f32 %v6196, %v6636
        %v6638 = vpop.f32.mrb[0].mxu0
        %v6639 = vpop.f32.mrb[0].mxu0
        %v6640 = vadd.f32 %v6199, %v6639
        %v6641 = vpop.f32.mrb[0].mxu0
        %6642 = vmatprep.mubr.bf16.mxu0 0
        %6643 = vmatmul.mubr.bf16.gmra.mrb[0].mxu0 %v6388
        %v6644 = vpop.f32.mrb[0].mxu0
        %v6645 = vadd.f32 %v6204, %v6644
        %v6646 = vpop.f32.mrb[0].mxu0
        %v6647 = vpop.f32.mrb[0].mxu0
        %v6648 = vadd.f32 %v6207, %v6647
        %v6649 = vpop.f32.mrb[0].mxu0
        %6650 = vmatprep.mubr.bf16.mxu0 0
        %6651 = vmatmul.mubr.bf16.gmra.mrb[0].mxu0 %v6391
        %v6652 = vpop.f32.mrb[0].mxu0
        %v6653 = vadd.f32 %v6212, %v6652
        %v6654 = vpop.f32.mrb[0].mxu0
        %v6655 = vpop.f32.mrb[0].mxu0
        %v6656 = vadd.f32 %v6215, %v6655
        %v6657 = vpop.f32.mrb[0].mxu0
        %6658 = vmatprep.mubr.bf16.mxu0 0
        %6659 = vmatmul.mubr.bf16.gmra.mrb[0].mxu0 %v6394
        %v6660 = vpop.f32.mrb[0].mxu0
        %v6661 = vadd.f32 %v6220, %v6660
        %v6662 = vpop.f32.mrb[0].mxu0
        %v6663 = vpop.f32.mrb[0].mxu0
        %v6664 = vadd.f32 %v6223, %v6663
        %v6665 = vpop.f32.mrb[0].mxu0
        %6666 = vmatprep.mubr.bf16.mxu0 0
        %6667 = vmatmul.mubr.bf16.gmra.mrb[0].mxu0 %v6397
        %v6668 = vpop.f32.mrb[0].mxu0
        %v6669 = vadd.f32 %v6228, %v6668
        %v6670 = vpop.f32.mrb[0].mxu0
        %v6671 = vpop.f32.mrb[0].mxu0
        %v6672 = vadd.f32 %v6231, %v6671
        %v6673 = vpop.f32.mrb[0].mxu0
        %6674 = vmatprep.mubr.bf16.mxu0 0
        %6675 = vmatmul.mubr.bf16.gmra.mrb[0].mxu0 %v6400
        %v6676 = vpop.f32.mrb[0].mxu0
        %v6677 = vadd.f32 %v6236, %v6676
        %v6678 = vpop.f32.mrb[0].mxu0
        %v6679 = vpop.f32.mrb[0].mxu0
        %v6680 = vadd.f32 %v6239, %v6679
        %v6681 = vpop.f32.mrb[0].mxu0
        %6682 = vmatprep.mubr.bf16.mxu0 0
        %6683 = vmatmul.mubr.bf16.gmra.mrb[0].mxu0 %v6403
        %v6684 = vpop.f32.mrb[0].mxu0
        %v6685 = vadd.f32 %v6244, %v6684
        %v6686 = vpop.f32.mrb[0].mxu0
        %v6687 = vpop.f32.mrb[0].mxu0
        %v6688 = vadd.f32 %v6247, %v6687
        %v6689 = vpop.f32.mrb[0].mxu0
        %6690 = vmatprep.mubr.bf16.mxu0 0
        %6691 = vmatmul.mubr.bf16.gmra.mrb[0].mxu0 %v6406
        %v6692 = vpop.f32.mrb[0].mxu0
        %v6693 = vadd.f32 %v6252, %v6692
        %v6694 = vpop.f32.mrb[0].mxu0
        %v6695 = vpop.f32.mrb[0].mxu0
        %v6696 = vadd.f32 %v6255, %v6695
        %v6697 = vpop.f32.mrb[0].mxu0
        %6698 = vmatprep.mubr.bf16.mxu0 0
        %6699 = vmatmul.mubr.bf16.gmra.mrb[0].mxu0 %v6409
        %v6700 = vpop.f32.mrb[0].mxu0
        %v6701 = vadd.f32 %v6260, %v6700
        %v6702 = vpop.f32.mrb[0].mxu0
        %v6703 = vpop.f32.mrb[0].mxu0
        %v6704 = vadd.f32 %v6263, %v6703
        %v6705 = vpop.f32.mrb[0].mxu0
        %6706 = vmatprep.mubr.bf16.mxu0 0
        %6707 = vmatmul.mubr.bf16.gmra.mrb[0].mxu0 %v6412
        %v6708 = vpop.f32.mrb[0].mxu0
        %v6709 = vadd.f32 %v6268, %v6708
        %v6710 = vpop.f32.mrb[0].mxu0
        %v6711 = vpop.f32.mrb[0].mxu0
        %v6712 = vadd.f32 %v6271, %v6711
        %v6713 = vpop.f32.mrb[0].mxu0
        %6714 = vmatprep.mubr.bf16.mxu0 0
        %6715 = vmatmul.mubr.bf16.gmra.mrb[0].mxu0 %v6415
        %v6716 = vpop.f32.mrb[0].mxu0
        %v6717 = vadd.f32 %v6276, %v6716
        %v6718 = vpop.f32.mrb[0].mxu0
        %v6719 = vpop.f32.mrb[0].mxu0
        %v6720 = vadd.f32 %v6279, %v6719
        %v6721 = vpop.f32.mrb[0].mxu0
        %6722 = vmatprep.mubr.bf16.mxu0 0
        %6723 = vmatmul.mubr.bf16.gmra.mrb[0].mxu0 %v6418
        %v6724 = vpop.f32.mrb[0].mxu0
        %v6725 = vadd.f32 %v6284, %v6724
        %v6726 = vpop.f32.mrb[0].mxu0
        %v6727 = vpop.f32.mrb[0].mxu0
        %v6728 = vadd.f32 %v6287, %v6727
        %v6729 = vpop.f32.mrb[0].mxu0
        %6730 = vmatprep.mubr.bf16.mxu0 0
        %6731 = vmatmul.mubr.bf16.gmra.mrb[0].mxu0 %v6421
        %v6732 = vpop.f32.mrb[0].mxu0
        %v6733 = vadd.f32 %v6292, %v6732
        %v6734 = vpop.f32.mrb[0].mxu0
        %v6735 = vpop.f32.mrb[0].mxu0
        %v6736 = vadd.f32 %v6295, %v6735
        %v6737 = vpop.f32.mrb[0].mxu0
        %6738 = vmatprep.mubr.bf16.mxu0 0
        %6739 = vmatmul.mubr.bf16.gmra.mrb[0].mxu0 %v6424
        %v6740 = vpop.f32.mrb[0].mxu0
        %v6741 = vadd.f32 %v6300, %v6740
        %v6742 = vpop.f32.mrb[0].mxu0
        %v6743 = vpop.f32.mrb[0].mxu0
        %v6744 = vadd.f32 %v6303, %v6743
        %v6745 = vpop.f32.mrb[0].mxu0
        %6746 = vdwg.mxu0
        %v6747 = vrot.slane %v5352, 2
        %v6748 = vrot.slane %v5353, 2
        %v6749 = vsel %vm1978, %v6747, %v6748
        %v6750 = vrot.slane %v5354, 2
        %v6751 = vsel %vm1978, %v6748, %v6750
        %v6752 = vrot.slane %v5355, 2
        %v6753 = vsel %vm1978, %v6750, %v6752
        %v6754 = vrot.slane %v5356, 2
        %v6755 = vrot.slane %v5357, 2
        %v6756 = vsel %vm1978, %v6754, %v6755
        %v6757 = vrot.slane %v5358, 2
        %v6758 = vsel %vm1978, %v6755, %v6757
        %v6759 = vrot.slane %v5359, 2
        %v6760 = vsel %vm1978, %v6757, %v6759
        %v6761 = vrot.slane %v5360, 2
        %v6762 = vrot.slane %v5361, 2
        %v6763 = vsel %vm1978, %v6761, %v6762
        %v6764 = vrot.slane %v5362, 2
        %v6765 = vsel %vm1978, %v6762, %v6764
        %v6766 = vrot.slane %v5363, 2
        %v6767 = vsel %vm1978, %v6764, %v6766
        %v6768 = vrot.slane %v5364, 2
        %v6769 = vrot.slane %v5365, 2
        %v6770 = vsel %vm1978, %v6768, %v6769
        %v6771 = vrot.slane %v5366, 2
        %v6772 = vsel %vm1978, %v6769, %v6771
        %v6773 = vrot.slane %v5367, 2
        %v6774 = vsel %vm1978, %v6771, %v6773
        %v6775 = vrot.slane %v5368, 2
        %v6776 = vrot.slane %v5369, 2
        %v6777 = vsel %vm1978, %v6775, %v6776
        %v6778 = vrot.slane %v5370, 2
        %v6779 = vsel %vm1978, %v6776, %v6778
        %v6780 = vrot.slane %v5371, 2
        %v6781 = vsel %vm1978, %v6778, %v6780
        %v6782 = vrot.slane %v5372, 2
        %v6783 = vrot.slane %v5373, 2
        %v6784 = vsel %vm1978, %v6782, %v6783
        %v6785 = vrot.slane %v5374, 2
        %v6786 = vsel %vm1978, %v6783, %v6785
        %v6787 = vrot.slane %v5375, 2
        %v6788 = vsel %vm1978, %v6785, %v6787
        %v6789 = vrot.slane %v5376, 2
        %v6790 = vrot.slane %v5377, 2
        %v6791 = vsel %vm1978, %v6789, %v6790
        %v6792 = vrot.slane %v5378, 2
        %v6793 = vsel %vm1978, %v6790, %v6792
        %v6794 = vrot.slane %v5379, 2
        %v6795 = vsel %vm1978, %v6792, %v6794
        %v6796 = vrot.slane %v5380, 2
        %v6797 = vrot.slane %v5381, 2
        %v6798 = vsel %vm1978, %v6796, %v6797
        %v6799 = vrot.slane %v5382, 2
        %v6800 = vsel %vm1978, %v6797, %v6799
        %v6801 = vrot.slane %v5383, 2
        %v6802 = vsel %vm1978, %v6799, %v6801
        %v6803 = vrot.slane %v5384, 2
        %v6804 = vrot.slane %v5385, 2
        %v6805 = vsel %vm1978, %v6803, %v6804
        %v6806 = vrot.slane %v5386, 2
        %v6807 = vsel %vm1978, %v6804, %v6806
        %v6808 = vrot.slane %v5387, 2
        %v6809 = vsel %vm1978, %v6806, %v6808
        %v6810 = vrot.slane %v5388, 2
        %v6811 = vrot.slane %v5389, 2
        %v6812 = vsel %vm1978, %v6810, %v6811
        %v6813 = vrot.slane %v5390, 2
        %v6814 = vsel %vm1978, %v6811, %v6813
        %v6815 = vrot.slane %v5391, 2
        %v6816 = vsel %vm1978, %v6813, %v6815
        %v6817 = vrot.slane %v5392, 2
        %v6818 = vrot.slane %v5393, 2
        %v6819 = vsel %vm1978, %v6817, %v6818
        %v6820 = vrot.slane %v5394, 2
        %v6821 = vsel %vm1978, %v6818, %v6820
        %v6822 = vrot.slane %v5395, 2
        %v6823 = vsel %vm1978, %v6820, %v6822
        %v6824 = vrot.slane %v5396, 2
        %v6825 = vrot.slane %v5397, 2
        %v6826 = vsel %vm1978, %v6824, %v6825
        %v6827 = vrot.slane %v5398, 2
        %v6828 = vsel %vm1978, %v6825, %v6827
        %v6829 = vrot.slane %v5399, 2
        %v6830 = vsel %vm1978, %v6827, %v6829
        %v6831 = vrot.slane %v5400, 2
        %v6832 = vrot.slane %v5401, 2
        %v6833 = vsel %vm1978, %v6831, %v6832
        %v6834 = vrot.slane %v5402, 2
        %v6835 = vsel %vm1978, %v6832, %v6834
        %v6836 = vrot.slane %v5403, 2
        %v6837 = vsel %vm1978, %v6834, %v6836
        %v6838 = vrot.slane %v5404, 2
        %v6839 = vrot.slane %v5405, 2
        %v6840 = vsel %vm1978, %v6838, %v6839
        %v6841 = vrot.slane %v5406, 2
        %v6842 = vsel %vm1978, %v6839, %v6841
        %v6843 = vrot.slane %v5407, 2
        %v6844 = vsel %vm1978, %v6841, %v6843
        %v6845 = vrot.slane %v5408, 2
        %v6846 = vrot.slane %v5409, 2
        %v6847 = vsel %vm1978, %v6845, %v6846
        %v6848 = vrot.slane %v5410, 2
        %v6849 = vsel %vm1978, %v6846, %v6848
        %v6850 = vrot.slane %v5411, 2
        %v6851 = vsel %vm1978, %v6848, %v6850
        %v6852 = vrot.slane %v5412, 2
        %v6853 = vrot.slane %v5413, 2
        %v6854 = vsel %vm1978, %v6852, %v6853
        %v6855 = vrot.slane %v5414, 2
        %v6856 = vsel %vm1978, %v6853, %v6855
        %v6857 = vrot.slane %v5415, 2
        %v6858 = vsel %vm1978, %v6855, %v6857
        %v6859 = vrot.slane %v5416, 2
        %v6860 = vrot.slane %v5417, 2
        %v6861 = vsel %vm1978, %v6859, %v6860
        %v6862 = vrot.slane %v5418, 2
        %v6863 = vsel %vm1978, %v6860, %v6862
        %v6864 = vrot.slane %v5419, 2
        %v6865 = vsel %vm1978, %v6862, %v6864
        %v6866 = vrot.slane %v5420, 2
        %v6867 = vrot.slane %v5421, 2
        %v6868 = vsel %vm1978, %v6866, %v6867
        %v6869 = vrot.slane %v5422, 2
        %v6870 = vsel %vm1978, %v6867, %v6869
        %v6871 = vrot.slane %v5423, 2
        %v6872 = vsel %vm1978, %v6869, %v6871
        %v6873 = vrot.slane %v5424, 2
        %v6874 = vrot.slane %v5425, 2
        %v6875 = vsel %vm1978, %v6873, %v6874
        %v6876 = vrot.slane %v5426, 2
        %v6877 = vsel %vm1978, %v6874, %v6876
        %v6878 = vrot.slane %v5427, 2
        %v6879 = vsel %vm1978, %v6876, %v6878
        %v6880 = vrot.slane %v5428, 2
        %v6881 = vrot.slane %v5429, 2
        %v6882 = vsel %vm1978, %v6880, %v6881
        %v6883 = vrot.slane %v5430, 2
        %v6884 = vsel %vm1978, %v6881, %v6883
        %v6885 = vrot.slane %v5431, 2
        %v6886 = vsel %vm1978, %v6883, %v6885
        %v6887 = vrot.slane %v5432, 2
        %v6888 = vrot.slane %v5433, 2
        %v6889 = vsel %vm1978, %v6887, %v6888
        %v6890 = vrot.slane %v5434, 2
        %v6891 = vsel %vm1978, %v6888, %v6890
        %v6892 = vrot.slane %v5435, 2
        %v6893 = vsel %vm1978, %v6890, %v6892
        %v6894 = vrot.slane %v5436, 2
        %v6895 = vrot.slane %v5437, 2
        %v6896 = vsel %vm1978, %v6894, %v6895
        %v6897 = vrot.slane %v5438, 2
        %v6898 = vsel %vm1978, %v6895, %v6897
        %v6899 = vrot.slane %v5439, 2
        %v6900 = vsel %vm1978, %v6897, %v6899
        %v6901 = vrot.slane %v5440, 2
        %v6902 = vrot.slane %v5441, 2
        %v6903 = vsel %vm1978, %v6901, %v6902
        %v6904 = vrot.slane %v5442, 2
        %v6905 = vsel %vm1978, %v6902, %v6904
        %v6906 = vrot.slane %v5443, 2
        %v6907 = vsel %vm1978, %v6904, %v6906
        %v6908 = vrot.slane %v5444, 2
        %v6909 = vrot.slane %v5445, 2
        %v6910 = vsel %vm1978, %v6908, %v6909
        %v6911 = vrot.slane %v5446, 2
        %v6912 = vsel %vm1978, %v6909, %v6911
        %v6913 = vrot.slane %v5447, 2
        %v6914 = vsel %vm1978, %v6911, %v6913
        %v6987 = vpack.c.bf16 %v6751, %v6749
        %v6988 = vpack.c.bf16 %v6756, %v6753
        %v6989 = vpack.c.bf16 %v6760, %v6758
        %v6990 = vpack.c.bf16 %v6765, %v6763
        %v6991 = vpack.c.bf16 %v6770, %v6767
        %v6992 = vpack.c.bf16 %v6774, %v6772
        %v6993 = vpack.c.bf16 %v6779, %v6777
        %v6994 = vpack.c.bf16 %v6784, %v6781
        %v6995 = vpack.c.bf16 %v6788, %v6786
        %v6996 = vpack.c.bf16 %v6793, %v6791
        %v6997 = vpack.c.bf16 %v6798, %v6795
        %v6998 = vpack.c.bf16 %v6802, %v6800
        %v6999 = vpack.c.bf16 %v6807, %v6805
        %v7000 = vpack.c.bf16 %v6812, %v6809
        %v7001 = vpack.c.bf16 %v6816, %v6814
        %v7002 = vpack.c.bf16 %v6821, %v6819
        %v7003 = vpack.c.bf16 %v6826, %v6823
        %v7004 = vpack.c.bf16 %v6830, %v6828
        %v7005 = vpack.c.bf16 %v6835, %v6833
        %v7006 = vpack.c.bf16 %v6840, %v6837
        %v7007 = vpack.c.bf16 %v6844, %v6842
        %v7008 = vpack.c.bf16 %v6849, %v6847
        %v7009 = vpack.c.bf16 %v6854, %v6851
        %v7010 = vpack.c.bf16 %v6858, %v6856
        %v7011 = vpack.c.bf16 %v6863, %v6861
        %v7012 = vpack.c.bf16 %v6868, %v6865
        %v7013 = vpack.c.bf16 %v6872, %v6870
        %v7014 = vpack.c.bf16 %v6877, %v6875
        %v7015 = vpack.c.bf16 %v6882, %v6879
        %v7016 = vpack.c.bf16 %v6886, %v6884
        %v7017 = vpack.c.bf16 %v6891, %v6889
        %v7018 = vpack.c.bf16 %v6896, %v6893
        %v7019 = vpack.c.bf16 %v6900, %v6898
        %v7020 = vpack.c.bf16 %v6905, %v6903
        %v7021 = vpack.c.bf16 %v6910, %v6907
        %v7022 = vpack.c.bf16 %v6914, %v6912
        %v7027 = vunpack.c.l.b16 %v403
        %v7028 = vunpack.c.l.b16 %v404
        %v7029 = vunpack.c.l.b16 %v405
        %v7030 = vunpack.c.l.b16 %v406
        %v7031 = vpack.c.b16 %v7028, %v7027
        %v7032 = vpack.c.b16 %v7030, %v7029
        %v7036 = vsel %vm5876, %v6987, 0
        %v7039 = vsel %vm5876, %v6988, 0
        %v7042 = vsel %vm5876, %v6989, 0
        %v7045 = vsel %vm5876, %v6990, 0
        %v7048 = vsel %vm5876, %v6991, 0
        %v7051 = vsel %vm5876, %v6992, 0
        %v7054 = vsel %vm5876, %v6993, 0
        %v7057 = vsel %vm5876, %v6994, 0
        %v7060 = vsel %vm5876, %v6995, 0
        %v7063 = vsel %vm5876, %v6996, 0
        %v7066 = vsel %vm5876, %v6997, 0
        %v7069 = vsel %vm5876, %v6998, 0
        %v7072 = vsel %vm5876, %v6999, 0
        %v7075 = vsel %vm5876, %v7000, 0
        %v7078 = vsel %vm5876, %v7001, 0
        %v7081 = vsel %vm5876, %v7002, 0
        %v7084 = vsel %vm5876, %v7003, 0
        %v7087 = vsel %vm5876, %v7004, 0
        %v7090 = vsel %vm5876, %v7005, 0
        %v7093 = vsel %vm5876, %v7006, 0
        %v7096 = vsel %vm5876, %v7007, 0
        %v7099 = vsel %vm5876, %v7008, 0
        %v7102 = vsel %vm5876, %v7009, 0
        %v7105 = vsel %vm5876, %v7010, 0
        %v7108 = vsel %vm5876, %v7011, 0
        %v7111 = vsel %vm5876, %v7012, 0
        %v7114 = vsel %vm5876, %v7013, 0
        %v7117 = vsel %vm5876, %v7014, 0
        %v7120 = vsel %vm5876, %v7015, 0
        %v7123 = vsel %vm5876, %v7016, 0
        %v7126 = vsel %vm5876, %v7017, 0
        %v7129 = vsel %vm5876, %v7018, 0
        %v7132 = vsel %vm5876, %v7019, 0
        %v7135 = vsel %vm5876, %v7020, 0
        %v7138 = vsel %vm5876, %v7021, 0
        %v7141 = vsel %vm5876, %v7022, 0
        %7143 = vmatprep.subr.bf16.mxu0 0
        %7144 = vmatpush1.bf16.msra.mxu0 %v7031
        %7145 = vmatprep.subr.bf16.mxu0 0
        %7146 = vmatpush1.bf16.msra.mxu0 %v7032
        %7147 = vmatprep.subr.bf16.mxu0 0
        %7148 = vmatpush1.bf16.msra.mxu0 0
        %7149 = vmatprep.subr.bf16.mxu0 0
        %7150 = vmatpush1.bf16.msra.mxu0 0
        %7151 = vmatprep.subr.bf16.mxu0 0
        %7152 = vmatpush1.bf16.msra.mxu0 0
        %7153 = vmatprep.subr.bf16.mxu0 0
        %7154 = vmatpush1.bf16.msra.mxu0 0
        %7155 = vmatprep.subr.bf16.mxu0 0
        %7156 = vmatpush1.bf16.msra.mxu0 0
        %7157 = vmatprep.subr.bf16.mxu0 0
        %7158 = vmatpush1.bf16.msra.mxu0 0
        %7159 = vmatprep.subr.bf16.mxu0 0
        %7160 = vmatpush1.bf16.msra.mxu0 0
        %7161 = vmatprep.subr.bf16.mxu0 0
        %7162 = vmatpush1.bf16.msra.mxu0 0
        %7163 = vmatprep.subr.bf16.mxu0 0
        %7164 = vmatpush1.bf16.msra.mxu0 0
        %7165 = vmatprep.subr.bf16.mxu0 0
        %7166 = vmatpush1.bf16.msra.mxu0 0
        %7167 = vmatprep.subr.bf16.mxu0 0
        %7168 = vmatpush1.bf16.msra.mxu0 0
        %7169 = vmatprep.subr.bf16.mxu0 0
        %7170 = vmatpush1.bf16.msra.mxu0 0
        %7171 = vmatprep.subr.bf16.mxu0 0
        %7172 = vmatpush1.bf16.msra.mxu0 0
        %7173 = vmatprep.subr.bf16.mxu0 0
        %7174 = vmatpush1.bf16.msra.mxu0 0
        %7175 = vmatprep.mubr.bf16.mxu0 0
        %7176 = vmatmul.mubr.bf16.gmra.mrb[0].mxu0 %v7036
        %v7177 = vpop.f32.mrb[0].mxu0
        %v7178 = vadd.f32 0.0, %v7177
        %v7179 = vpop.f32.mrb[0].mxu0
        %v7180 = vpop.f32.mrb[0].mxu0
        %v7181 = vadd.f32 0.0, %v7180
        %v7182 = vpop.f32.mrb[0].mxu0
        %7183 = vmatprep.mubr.bf16.mxu0 0
        %7184 = vmatmul.mubr.bf16.gmra.mrb[0].mxu0 %v7039
        %v7185 = vpop.f32.mrb[0].mxu0
        %v7186 = vadd.f32 0.0, %v7185
        %v7187 = vpop.f32.mrb[0].mxu0
        %v7188 = vpop.f32.mrb[0].mxu0
        %v7189 = vadd.f32 0.0, %v7188
        %v7190 = vpop.f32.mrb[0].mxu0
        %7191 = vmatprep.mubr.bf16.mxu0 0
        %7192 = vmatmul.mubr.bf16.gmra.mrb[0].mxu0 %v7042
        %v7193 = vpop.f32.mrb[0].mxu0
        %v7194 = vadd.f32 0.0, %v7193
        %v7195 = vpop.f32.mrb[0].mxu0
        %v7196 = vpop.f32.mrb[0].mxu0
        %v7197 = vadd.f32 0.0, %v7196
        %v7198 = vpop.f32.mrb[0].mxu0
        %7199 = vmatprep.mubr.bf16.mxu0 0
        %7200 = vmatmul.mubr.bf16.gmra.mrb[0].mxu0 %v7045
        %v7201 = vpop.f32.mrb[0].mxu0
        %v7202 = vadd.f32 0.0, %v7201
        %v7203 = vpop.f32.mrb[0].mxu0
        %v7204 = vpop.f32.mrb[0].mxu0
        %v7205 = vadd.f32 0.0, %v7204
        %v7206 = vpop.f32.mrb[0].mxu0
        %7207 = vmatprep.mubr.bf16.mxu0 0
        %7208 = vmatmul.mubr.bf16.gmra.mrb[0].mxu0 %v7048
        %v7209 = vpop.f32.mrb[0].mxu0
        %v7210 = vadd.f32 0.0, %v7209
        %v7211 = vpop.f32.mrb[0].mxu0
        %v7212 = vpop.f32.mrb[0].mxu0
        %v7213 = vadd.f32 0.0, %v7212
        %v7214 = vpop.f32.mrb[0].mxu0
        %7215 = vmatprep.mubr.bf16.mxu0 0
        %7216 = vmatmul.mubr.bf16.gmra.mrb[0].mxu0 %v7051
        %v7217 = vpop.f32.mrb[0].mxu0
        %v7218 = vadd.f32 0.0, %v7217
        %v7219 = vpop.f32.mrb[0].mxu0
        %v7220 = vpop.f32.mrb[0].mxu0
        %v7221 = vadd.f32 0.0, %v7220
        %v7222 = vpop.f32.mrb[0].mxu0
        %7223 = vmatprep.mubr.bf16.mxu0 0
        %7224 = vmatmul.mubr.bf16.gmra.mrb[0].mxu0 %v7054
        %v7225 = vpop.f32.mrb[0].mxu0
        %v7226 = vadd.f32 0.0, %v7225
        %v7227 = vpop.f32.mrb[0].mxu0
        %v7228 = vpop.f32.mrb[0].mxu0
        %v7229 = vadd.f32 0.0, %v7228
        %v7230 = vpop.f32.mrb[0].mxu0
        %7231 = vmatprep.mubr.bf16.mxu0 0
        %7232 = vmatmul.mubr.bf16.gmra.mrb[0].mxu0 %v7057
        %v7233 = vpop.f32.mrb[0].mxu0
        %v7234 = vadd.f32 0.0, %v7233
        %v7235 = vpop.f32.mrb[0].mxu0
        %v7236 = vpop.f32.mrb[0].mxu0
        %v7237 = vadd.f32 0.0, %v7236
        %v7238 = vpop.f32.mrb[0].mxu0
        %7239 = vmatprep.mubr.bf16.mxu0 0
        %7240 = vmatmul.mubr.bf16.gmra.mrb[0].mxu0 %v7060
        %v7241 = vpop.f32.mrb[0].mxu0
        %v7242 = vadd.f32 0.0, %v7241
        %v7243 = vpop.f32.mrb[0].mxu0
        %v7244 = vpop.f32.mrb[0].mxu0
        %v7245 = vadd.f32 0.0, %v7244
        %v7246 = vpop.f32.mrb[0].mxu0
        %7247 = vmatprep.mubr.bf16.mxu0 0
        %7248 = vmatmul.mubr.bf16.gmra.mrb[0].mxu0 %v7063
        %v7249 = vpop.f32.mrb[0].mxu0
        %v7250 = vadd.f32 0.0, %v7249
        %v7251 = vpop.f32.mrb[0].mxu0
        %v7252 = vpop.f32.mrb[0].mxu0
        %v7253 = vadd.f32 0.0, %v7252
        %v7254 = vpop.f32.mrb[0].mxu0
        %7255 = vmatprep.mubr.bf16.mxu0 0
        %7256 = vmatmul.mubr.bf16.gmra.mrb[0].mxu0 %v7066
        %v7257 = vpop.f32.mrb[0].mxu0
        %v7258 = vadd.f32 0.0, %v7257
        %v7259 = vpop.f32.mrb[0].mxu0
        %v7260 = vpop.f32.mrb[0].mxu0
        %v7261 = vadd.f32 0.0, %v7260
        %v7262 = vpop.f32.mrb[0].mxu0
        %7263 = vmatprep.mubr.bf16.mxu0 0
        %7264 = vmatmul.mubr.bf16.gmra.mrb[0].mxu0 %v7069
        %v7265 = vpop.f32.mrb[0].mxu0
        %v7266 = vadd.f32 0.0, %v7265
        %v7267 = vpop.f32.mrb[0].mxu0
        %v7268 = vpop.f32.mrb[0].mxu0
        %v7269 = vadd.f32 0.0, %v7268
        %v7270 = vpop.f32.mrb[0].mxu0
        %7271 = vmatprep.mubr.bf16.mxu0 0
        %7272 = vmatmul.mubr.bf16.gmra.mrb[0].mxu0 %v7072
        %v7273 = vpop.f32.mrb[0].mxu0
        %v7274 = vadd.f32 0.0, %v7273
        %v7275 = vpop.f32.mrb[0].mxu0
        %v7276 = vpop.f32.mrb[0].mxu0
        %v7277 = vadd.f32 0.0, %v7276
        %v7278 = vpop.f32.mrb[0].mxu0
        %7279 = vmatprep.mubr.bf16.mxu0 0
        %7280 = vmatmul.mubr.bf16.gmra.mrb[0].mxu0 %v7075
        %v7281 = vpop.f32.mrb[0].mxu0
        %v7282 = vadd.f32 0.0, %v7281
        %v7283 = vpop.f32.mrb[0].mxu0
        %v7284 = vpop.f32.mrb[0].mxu0
        %v7285 = vadd.f32 0.0, %v7284
        %v7286 = vpop.f32.mrb[0].mxu0
        %7287 = vmatprep.mubr.bf16.mxu0 0
        %7288 = vmatmul.mubr.bf16.gmra.mrb[0].mxu0 %v7078
        %v7289 = vpop.f32.mrb[0].mxu0
        %v7290 = vadd.f32 0.0, %v7289
        %v7291 = vpop.f32.mrb[0].mxu0
        %v7292 = vpop.f32.mrb[0].mxu0
        %v7293 = vadd.f32 0.0, %v7292
        %v7294 = vpop.f32.mrb[0].mxu0
        %7295 = vmatprep.mubr.bf16.mxu0 0
        %7296 = vmatmul.mubr.bf16.gmra.mrb[0].mxu0 %v7081
        %v7297 = vpop.f32.mrb[0].mxu0
        %v7298 = vadd.f32 0.0, %v7297
        %v7299 = vpop.f32.mrb[0].mxu0
        %v7300 = vpop.f32.mrb[0].mxu0
        %v7301 = vadd.f32 0.0, %v7300
        %v7302 = vpop.f32.mrb[0].mxu0
        %7303 = vmatprep.mubr.bf16.mxu0 0
        %7304 = vmatmul.mubr.bf16.gmra.mrb[0].mxu0 %v7084
        %v7305 = vpop.f32.mrb[0].mxu0
        %v7306 = vadd.f32 0.0, %v7305
        %v7307 = vpop.f32.mrb[0].mxu0
        %v7308 = vpop.f32.mrb[0].mxu0
        %v7309 = vadd.f32 0.0, %v7308
        %v7310 = vpop.f32.mrb[0].mxu0
        %7311 = vmatprep.mubr.bf16.mxu0 0
        %7312 = vmatmul.mubr.bf16.gmra.mrb[0].mxu0 %v7087
        %v7313 = vpop.f32.mrb[0].mxu0
        %v7314 = vadd.f32 0.0, %v7313
        %v7315 = vpop.f32.mrb[0].mxu0
        %v7316 = vpop.f32.mrb[0].mxu0
        %v7317 = vadd.f32 0.0, %v7316
        %v7318 = vpop.f32.mrb[0].mxu0
        %7319 = vmatprep.mubr.bf16.mxu0 0
        %7320 = vmatmul.mubr.bf16.gmra.mrb[0].mxu0 %v7090
        %v7321 = vpop.f32.mrb[0].mxu0
        %v7322 = vadd.f32 0.0, %v7321
        %v7323 = vpop.f32.mrb[0].mxu0
        %v7324 = vpop.f32.mrb[0].mxu0
        %v7325 = vadd.f32 0.0, %v7324
        %v7326 = vpop.f32.mrb[0].mxu0
        %7327 = vmatprep.mubr.bf16.mxu0 0
        %7328 = vmatmul.mubr.bf16.gmra.mrb[0].mxu0 %v7093
        %v7329 = vpop.f32.mrb[0].mxu0
        %v7330 = vadd.f32 0.0, %v7329
        %v7331 = vpop.f32.mrb[0].mxu0
        %v7332 = vpop.f32.mrb[0].mxu0
        %v7333 = vadd.f32 0.0, %v7332
        %v7334 = vpop.f32.mrb[0].mxu0
        %7335 = vmatprep.mubr.bf16.mxu0 0
        %7336 = vmatmul.mubr.bf16.gmra.mrb[0].mxu0 %v7096
        %v7337 = vpop.f32.mrb[0].mxu0
        %v7338 = vadd.f32 0.0, %v7337
        %v7339 = vpop.f32.mrb[0].mxu0
        %v7340 = vpop.f32.mrb[0].mxu0
        %v7341 = vadd.f32 0.0, %v7340
        %v7342 = vpop.f32.mrb[0].mxu0
        %7343 = vmatprep.mubr.bf16.mxu0 0
        %7344 = vmatmul.mubr.bf16.gmra.mrb[0].mxu0 %v7099
        %v7345 = vpop.f32.mrb[0].mxu0
        %v7346 = vadd.f32 0.0, %v7345
        %v7347 = vpop.f32.mrb[0].mxu0
        %v7348 = vpop.f32.mrb[0].mxu0
        %v7349 = vadd.f32 0.0, %v7348
        %v7350 = vpop.f32.mrb[0].mxu0
        %7351 = vmatprep.mubr.bf16.mxu0 0
        %7352 = vmatmul.mubr.bf16.gmra.mrb[0].mxu0 %v7102
        %v7353 = vpop.f32.mrb[0].mxu0
        %v7354 = vadd.f32 0.0, %v7353
        %v7355 = vpop.f32.mrb[0].mxu0
        %v7356 = vpop.f32.mrb[0].mxu0
        %v7357 = vadd.f32 0.0, %v7356
        %v7358 = vpop.f32.mrb[0].mxu0
        %7359 = vmatprep.mubr.bf16.mxu0 0
        %7360 = vmatmul.mubr.bf16.gmra.mrb[0].mxu0 %v7105
        %v7361 = vpop.f32.mrb[0].mxu0
        %v7362 = vadd.f32 0.0, %v7361
        %v7363 = vpop.f32.mrb[0].mxu0
        %v7364 = vpop.f32.mrb[0].mxu0
        %v7365 = vadd.f32 0.0, %v7364
        %v7366 = vpop.f32.mrb[0].mxu0
        %7367 = vmatprep.mubr.bf16.mxu0 0
        %7368 = vmatmul.mubr.bf16.gmra.mrb[0].mxu0 %v7108
        %v7369 = vpop.f32.mrb[0].mxu0
        %v7370 = vadd.f32 0.0, %v7369
        %v7371 = vpop.f32.mrb[0].mxu0
        %v7372 = vpop.f32.mrb[0].mxu0
        %v7373 = vadd.f32 0.0, %v7372
        %v7374 = vpop.f32.mrb[0].mxu0
        %7375 = vmatprep.mubr.bf16.mxu0 0
        %7376 = vmatmul.mubr.bf16.gmra.mrb[0].mxu0 %v7111
        %v7377 = vpop.f32.mrb[0].mxu0
        %v7378 = vadd.f32 0.0, %v7377
        %v7379 = vpop.f32.mrb[0].mxu0
        %v7380 = vpop.f32.mrb[0].mxu0
        %v7381 = vadd.f32 0.0, %v7380
        %v7382 = vpop.f32.mrb[0].mxu0
        %7383 = vmatprep.mubr.bf16.mxu0 0
        %7384 = vmatmul.mubr.bf16.gmra.mrb[0].mxu0 %v7114
        %v7385 = vpop.f32.mrb[0].mxu0
        %v7386 = vadd.f32 0.0, %v7385
        %v7387 = vpop.f32.mrb[0].mxu0
        %v7388 = vpop.f32.mrb[0].mxu0
        %v7389 = vadd.f32 0.0, %v7388
        %v7390 = vpop.f32.mrb[0].mxu0
        %7391 = vmatprep.mubr.bf16.mxu0 0
        %7392 = vmatmul.mubr.bf16.gmra.mrb[0].mxu0 %v7117
        %v7393 = vpop.f32.mrb[0].mxu0
        %v7394 = vadd.f32 0.0, %v7393
        %v7395 = vpop.f32.mrb[0].mxu0
        %v7396 = vpop.f32.mrb[0].mxu0
        %v7397 = vadd.f32 0.0, %v7396
        %v7398 = vpop.f32.mrb[0].mxu0
        %7399 = vmatprep.mubr.bf16.mxu0 0
        %7400 = vmatmul.mubr.bf16.gmra.mrb[0].mxu0 %v7120
        %v7401 = vpop.f32.mrb[0].mxu0
        %v7402 = vadd.f32 0.0, %v7401
        %v7403 = vpop.f32.mrb[0].mxu0
        %v7404 = vpop.f32.mrb[0].mxu0
        %v7405 = vadd.f32 0.0, %v7404
        %v7406 = vpop.f32.mrb[0].mxu0
        %7407 = vmatprep.mubr.bf16.mxu0 0
        %7408 = vmatmul.mubr.bf16.gmra.mrb[0].mxu0 %v7123
        %v7409 = vpop.f32.mrb[0].mxu0
        %v7410 = vadd.f32 0.0, %v7409
        %v7411 = vpop.f32.mrb[0].mxu0
        %v7412 = vpop.f32.mrb[0].mxu0
        %v7413 = vadd.f32 0.0, %v7412
        %v7414 = vpop.f32.mrb[0].mxu0
        %7415 = vmatprep.mubr.bf16.mxu0 0
        %7416 = vmatmul.mubr.bf16.gmra.mrb[0].mxu0 %v7126
        %v7417 = vpop.f32.mrb[0].mxu0
        %v7418 = vadd.f32 0.0, %v7417
        %v7419 = vpop.f32.mrb[0].mxu0
        %v7420 = vpop.f32.mrb[0].mxu0
        %v7421 = vadd.f32 0.0, %v7420
        %v7422 = vpop.f32.mrb[0].mxu0
        %7423 = vmatprep.mubr.bf16.mxu0 0
        %7424 = vmatmul.mubr.bf16.gmra.mrb[0].mxu0 %v7129
        %v7425 = vpop.f32.mrb[0].mxu0
        %v7426 = vadd.f32 0.0, %v7425
        %v7427 = vpop.f32.mrb[0].mxu0
        %v7428 = vpop.f32.mrb[0].mxu0
        %v7429 = vadd.f32 0.0, %v7428
        %v7430 = vpop.f32.mrb[0].mxu0
        %7431 = vmatprep.mubr.bf16.mxu0 0
        %7432 = vmatmul.mubr.bf16.gmra.mrb[0].mxu0 %v7132
        %v7433 = vpop.f32.mrb[0].mxu0
        %v7434 = vadd.f32 0.0, %v7433
        %v7435 = vpop.f32.mrb[0].mxu0
        %v7436 = vpop.f32.mrb[0].mxu0
        %v7437 = vadd.f32 0.0, %v7436
        %v7438 = vpop.f32.mrb[0].mxu0
        %7439 = vmatprep.mubr.bf16.mxu0 0
        %7440 = vmatmul.mubr.bf16.gmra.mrb[0].mxu0 %v7135
        %v7441 = vpop.f32.mrb[0].mxu0
        %v7442 = vadd.f32 0.0, %v7441
        %v7443 = vpop.f32.mrb[0].mxu0
        %v7444 = vpop.f32.mrb[0].mxu0
        %v7445 = vadd.f32 0.0, %v7444
        %v7446 = vpop.f32.mrb[0].mxu0
        %7447 = vmatprep.mubr.bf16.mxu0 0
        %7448 = vmatmul.mubr.bf16.gmra.mrb[0].mxu0 %v7138
        %v7449 = vpop.f32.mrb[0].mxu0
        %v7450 = vadd.f32 0.0, %v7449
        %v7451 = vpop.f32.mrb[0].mxu0
        %v7452 = vpop.f32.mrb[0].mxu0
        %v7453 = vadd.f32 0.0, %v7452
        %v7454 = vpop.f32.mrb[0].mxu0
        %7455 = vmatprep.mubr.bf16.mxu0 0
        %7456 = vmatmul.mubr.bf16.gmra.mrb[0].mxu0 %v7141
        %v7457 = vpop.f32.mrb[0].mxu0
        %v7458 = vadd.f32 0.0, %v7457
        %v7459 = vpop.f32.mrb[0].mxu0
        %v7460 = vpop.f32.mrb[0].mxu0
        %v7461 = vadd.f32 0.0, %v7460
        %v7462 = vpop.f32.mrb[0].mxu0
        %7463 = vdwg.mxu0
        %v7464 = vadd.f32 %v6461, %v7178
        %v7465 = vadd.f32 %v6464, %v7181
        %v7466 = vadd.f32 %v6469, %v7186
        %v7467 = vadd.f32 %v6472, %v7189
        %v7468 = vadd.f32 %v6477, %v7194
        %v7469 = vadd.f32 %v6480, %v7197
        %v7470 = vadd.f32 %v6485, %v7202
        %v7471 = vadd.f32 %v6488, %v7205
        %v7472 = vadd.f32 %v6493, %v7210
        %v7473 = vadd.f32 %v6496, %v7213
        %v7474 = vadd.f32 %v6501, %v7218
        %v7475 = vadd.f32 %v6504, %v7221
        %v7476 = vadd.f32 %v6509, %v7226
        %v7477 = vadd.f32 %v6512, %v7229
        %v7478 = vadd.f32 %v6517, %v7234
        %v7479 = vadd.f32 %v6520, %v7237
        %v7480 = vadd.f32 %v6525, %v7242
        %v7481 = vadd.f32 %v6528, %v7245
        %v7482 = vadd.f32 %v6533, %v7250
        %v7483 = vadd.f32 %v6536, %v7253
        %v7484 = vadd.f32 %v6541, %v7258
        %v7485 = vadd.f32 %v6544, %v7261
        %v7486 = vadd.f32 %v6549, %v7266
        %v7487 = vadd.f32 %v6552, %v7269
        %v7488 = vadd.f32 %v6557, %v7274
        %v7489 = vadd.f32 %v6560, %v7277
        %v7490 = vadd.f32 %v6565, %v7282
        %v7491 = vadd.f32 %v6568, %v7285
        %v7492 = vadd.f32 %v6573, %v7290
        %v7493 = vadd.f32 %v6576, %v7293
        %v7494 = vadd.f32 %v6581, %v7298
        %v7495 = vadd.f32 %v6584, %v7301
        %v7496 = vadd.f32 %v6589, %v7306
        %v7497 = vadd.f32 %v6592, %v7309
        %v7498 = vadd.f32 %v6597, %v7314
        %v7499 = vadd.f32 %v6600, %v7317
        %v7500 = vadd.f32 %v6605, %v7322
        %v7501 = vadd.f32 %v6608, %v7325
        %v7502 = vadd.f32 %v6613, %v7330
        %v7503 = vadd.f32 %v6616, %v7333
        %v7504 = vadd.f32 %v6621, %v7338
        %v7505 = vadd.f32 %v6624, %v7341
        %v7506 = vadd.f32 %v6629, %v7346
        %v7507 = vadd.f32 %v6632, %v7349
        %v7508 = vadd.f32 %v6637, %v7354
        %v7509 = vadd.f32 %v6640, %v7357
        %v7510 = vadd.f32 %v6645, %v7362
        %v7511 = vadd.f32 %v6648, %v7365
        %v7512 = vadd.f32 %v6653, %v7370
        %v7513 = vadd.f32 %v6656, %v7373
        %v7514 = vadd.f32 %v6661, %v7378
        %v7515 = vadd.f32 %v6664, %v7381
        %v7516 = vadd.f32 %v6669, %v7386
        %v7517 = vadd.f32 %v6672, %v7389
        %v7518 = vadd.f32 %v6677, %v7394
        %v7519 = vadd.f32 %v6680, %v7397
        %v7520 = vadd.f32 %v6685, %v7402
        %v7521 = vadd.f32 %v6688, %v7405
        %v7522 = vadd.f32 %v6693, %v7410
        %v7523 = vadd.f32 %v6696, %v7413
        %v7524 = vadd.f32 %v6701, %v7418
        %v7525 = vadd.f32 %v6704, %v7421
        %v7526 = vadd.f32 %v6709, %v7426
        %v7527 = vadd.f32 %v6712, %v7429
        %v7528 = vadd.f32 %v6717, %v7434
        %v7529 = vadd.f32 %v6720, %v7437
        %v7530 = vadd.f32 %v6725, %v7442
        %v7531 = vadd.f32 %v6728, %v7445
        %v7532 = vadd.f32 %v6733, %v7450
        %v7533 = vadd.f32 %v6736, %v7453
        %v7534 = vadd.f32 %v6741, %v7458
        %v7535 = vadd.f32 %v6744, %v7461
        %v7536 = vpack.c.bf16 %v5357, %v5356
        %v7537 = vpack.c.bf16 %v5360, %v5358
        %v7538 = vpack.c.bf16 %v5362, %v5361
        %v7539 = vpack.c.bf16 %v5365, %v5364
        %v7540 = vpack.c.bf16 %v5368, %v5366
        %v7541 = vpack.c.bf16 %v5370, %v5369
        %v7542 = vpack.c.bf16 %v5373, %v5372
        %v7543 = vpack.c.bf16 %v5376, %v5374
        %v7544 = vpack.c.bf16 %v5378, %v5377
        %v7545 = vpack.c.bf16 %v5381, %v5380
        %v7546 = vpack.c.bf16 %v5384, %v5382
        %v7547 = vpack.c.bf16 %v5386, %v5385
        %v7548 = vpack.c.bf16 %v5389, %v5388
        %v7549 = vpack.c.bf16 %v5392, %v5390
        %v7550 = vpack.c.bf16 %v5394, %v5393
        %v7551 = vpack.c.bf16 %v5397, %v5396
        %v7552 = vpack.c.bf16 %v5400, %v5398
        %v7553 = vpack.c.bf16 %v5402, %v5401
        %v7554 = vpack.c.bf16 %v5405, %v5404
        %v7555 = vpack.c.bf16 %v5408, %v5406
        %v7556 = vpack.c.bf16 %v5410, %v5409
        %v7557 = vpack.c.bf16 %v5413, %v5412
        %v7558 = vpack.c.bf16 %v5416, %v5414
        %v7559 = vpack.c.bf16 %v5418, %v5417
        %v7560 = vpack.c.bf16 %v5421, %v5420
        %v7561 = vpack.c.bf16 %v5424, %v5422
        %v7562 = vpack.c.bf16 %v5426, %v5425
        %v7563 = vpack.c.bf16 %v5429, %v5428
        %v7564 = vpack.c.bf16 %v5432, %v5430
        %v7565 = vpack.c.bf16 %v5434, %v5433
        %v7566 = vpack.c.bf16 %v5437, %v5436
        %v7567 = vpack.c.bf16 %v5440, %v5438
        %v7568 = vpack.c.bf16 %v5442, %v5441
        %v7569 = vpack.c.bf16 %v5445, %v5444
        %v7570 = vpack.c.bf16 %v5448, %v5446
        %v7571 = vpack.c.bf16 %v5450, %v5449
        %v7576 = vunpack.c.l.b16 %v407
        %v7577 = vunpack.c.l.b16 %v408
        %v7578 = vunpack.c.l.b16 %v409
        %v7579 = vunpack.c.l.b16 %v410
        %v7580 = vpack.c.b16 %v7577, %v7576
        %v7581 = vpack.c.b16 %v7579, %v7578
        %v7585 = vsel %vm5876, %v7536, 0
        %v7588 = vsel %vm5876, %v7537, 0
        %v7591 = vsel %vm5876, %v7538, 0
        %v7594 = vsel %vm5876, %v7539, 0
        %v7597 = vsel %vm5876, %v7540, 0
        %v7600 = vsel %vm5876, %v7541, 0
        %v7603 = vsel %vm5876, %v7542, 0
        %v7606 = vsel %vm5876, %v7543, 0
        %v7609 = vsel %vm5876, %v7544, 0
        %v7612 = vsel %vm5876, %v7545, 0
        %v7615 = vsel %vm5876, %v7546, 0
        %v7618 = vsel %vm5876, %v7547, 0
        %v7621 = vsel %vm5876, %v7548, 0
        %v7624 = vsel %vm5876, %v7549, 0
        %v7627 = vsel %vm5876, %v7550, 0
        %v7630 = vsel %vm5876, %v7551, 0
        %v7633 = vsel %vm5876, %v7552, 0
        %v7636 = vsel %vm5876, %v7553, 0
        %v7639 = vsel %vm5876, %v7554, 0
        %v7642 = vsel %vm5876, %v7555, 0
        %v7645 = vsel %vm5876, %v7556, 0
        %v7648 = vsel %vm5876, %v7557, 0
        %v7651 = vsel %vm5876, %v7558, 0
        %v7654 = vsel %vm5876, %v7559, 0
        %v7657 = vsel %vm5876, %v7560, 0
        %v7660 = vsel %vm5876, %v7561, 0
        %v7663 = vsel %vm5876, %v7562, 0
        %v7666 = vsel %vm5876, %v7563, 0
        %v7669 = vsel %vm5876, %v7564, 0
        %v7672 = vsel %vm5876, %v7565, 0
        %v7675 = vsel %vm5876, %v7566, 0
        %v7678 = vsel %vm5876, %v7567, 0
        %v7681 = vsel %vm5876, %v7568, 0
        %v7684 = vsel %vm5876, %v7569, 0
        %v7687 = vsel %vm5876, %v7570, 0
        %v7690 = vsel %vm5876, %v7571, 0
        %7692 = vmatprep.subr.bf16.mxu0 0
        %7693 = vmatpush1.bf16.msra.mxu0 %v7580
        %7694 = vmatprep.subr.bf16.mxu0 0
        %7695 = vmatpush1.bf16.msra.mxu0 %v7581
        %7696 = vmatprep.subr.bf16.mxu0 0
        %7697 = vmatpush1.bf16.msra.mxu0 0
        %7698 = vmatprep.subr.bf16.mxu0 0
        %7699 = vmatpush1.bf16.msra.mxu0 0
        %7700 = vmatprep.subr.bf16.mxu0 0
        %7701 = vmatpush1.bf16.msra.mxu0 0
        %7702 = vmatprep.subr.bf16.mxu0 0
        %7703 = vmatpush1.bf16.msra.mxu0 0
        %7704 = vmatprep.subr.bf16.mxu0 0
        %7705 = vmatpush1.bf16.msra.mxu0 0
        %7706 = vmatprep.subr.bf16.mxu0 0
        %7707 = vmatpush1.bf16.msra.mxu0 0
        %7708 = vmatprep.subr.bf16.mxu0 0
        %7709 = vmatpush1.bf16.msra.mxu0 0
        %7710 = vmatprep.subr.bf16.mxu0 0
        %7711 = vmatpush1.bf16.msra.mxu0 0
        %7712 = vmatprep.subr.bf16.mxu0 0
        %7713 = vmatpush1.bf16.msra.mxu0 0
        %7714 = vmatprep.subr.bf16.mxu0 0
        %7715 = vmatpush1.bf16.msra.mxu0 0
        %7716 = vmatprep.subr.bf16.mxu0 0
        %7717 = vmatpush1.bf16.msra.mxu0 0
        %7718 = vmatprep.subr.bf16.mxu0 0
        %7719 = vmatpush1.bf16.msra.mxu0 0
        %7720 = vmatprep.subr.bf16.mxu0 0
        %7721 = vmatpush1.bf16.msra.mxu0 0
        %7722 = vmatprep.subr.bf16.mxu0 0
        %7723 = vmatpush1.bf16.msra.mxu0 0
        %7724 = vmatprep.mubr.bf16.mxu0 0
        %7725 = vmatmul.mubr.bf16.gmra.mrb[0].mxu0 %v7585
        %v7726 = vpop.f32.mrb[0].mxu0
        %v7727 = vadd.f32 0.0, %v7726
        %v7728 = vpop.f32.mrb[0].mxu0
        %v7729 = vpop.f32.mrb[0].mxu0
        %v7730 = vadd.f32 0.0, %v7729
        %v7731 = vpop.f32.mrb[0].mxu0
        %7732 = vmatprep.mubr.bf16.mxu0 0
        %7733 = vmatmul.mubr.bf16.gmra.mrb[0].mxu0 %v7588
        %v7734 = vpop.f32.mrb[0].mxu0
        %v7735 = vadd.f32 0.0, %v7734
        %v7736 = vpop.f32.mrb[0].mxu0
        %v7737 = vpop.f32.mrb[0].mxu0
        %v7738 = vadd.f32 0.0, %v7737
        %v7739 = vpop.f32.mrb[0].mxu0
        %7740 = vmatprep.mubr.bf16.mxu0 0
        %7741 = vmatmul.mubr.bf16.gmra.mrb[0].mxu0 %v7591
        %v7742 = vpop.f32.mrb[0].mxu0
        %v7743 = vadd.f32 0.0, %v7742
        %v7744 = vpop.f32.mrb[0].mxu0
        %v7745 = vpop.f32.mrb[0].mxu0
        %v7746 = vadd.f32 0.0, %v7745
        %v7747 = vpop.f32.mrb[0].mxu0
        %7748 = vmatprep.mubr.bf16.mxu0 0
        %7749 = vmatmul.mubr.bf16.gmra.mrb[0].mxu0 %v7594
        %v7750 = vpop.f32.mrb[0].mxu0
        %v7751 = vadd.f32 0.0, %v7750
        %v7752 = vpop.f32.mrb[0].mxu0
        %v7753 = vpop.f32.mrb[0].mxu0
        %v7754 = vadd.f32 0.0, %v7753
        %v7755 = vpop.f32.mrb[0].mxu0
        %7756 = vmatprep.mubr.bf16.mxu0 0
        %7757 = vmatmul.mubr.bf16.gmra.mrb[0].mxu0 %v7597
        %v7758 = vpop.f32.mrb[0].mxu0
        %v7759 = vadd.f32 0.0, %v7758
        %v7760 = vpop.f32.mrb[0].mxu0
        %v7761 = vpop.f32.mrb[0].mxu0
        %v7762 = vadd.f32 0.0, %v7761
        %v7763 = vpop.f32.mrb[0].mxu0
        %7764 = vmatprep.mubr.bf16.mxu0 0
        %7765 = vmatmul.mubr.bf16.gmra.mrb[0].mxu0 %v7600
        %v7766 = vpop.f32.mrb[0].mxu0
        %v7767 = vadd.f32 0.0, %v7766
        %v7768 = vpop.f32.mrb[0].mxu0
        %v7769 = vpop.f32.mrb[0].mxu0
        %v7770 = vadd.f32 0.0, %v7769
        %v7771 = vpop.f32.mrb[0].mxu0
        %7772 = vmatprep.mubr.bf16.mxu0 0
        %7773 = vmatmul.mubr.bf16.gmra.mrb[0].mxu0 %v7603
        %v7774 = vpop.f32.mrb[0].mxu0
        %v7775 = vadd.f32 0.0, %v7774
        %v7776 = vpop.f32.mrb[0].mxu0
        %v7777 = vpop.f32.mrb[0].mxu0
        %v7778 = vadd.f32 0.0, %v7777
        %v7779 = vpop.f32.mrb[0].mxu0
        %7780 = vmatprep.mubr.bf16.mxu0 0
        %7781 = vmatmul.mubr.bf16.gmra.mrb[0].mxu0 %v7606
        %v7782 = vpop.f32.mrb[0].mxu0
        %v7783 = vadd.f32 0.0, %v7782
        %v7784 = vpop.f32.mrb[0].mxu0
        %v7785 = vpop.f32.mrb[0].mxu0
        %v7786 = vadd.f32 0.0, %v7785
        %v7787 = vpop.f32.mrb[0].mxu0
        %7788 = vmatprep.mubr.bf16.mxu0 0
        %7789 = vmatmul.mubr.bf16.gmra.mrb[0].mxu0 %v7609
        %v7790 = vpop.f32.mrb[0].mxu0
        %v7791 = vadd.f32 0.0, %v7790
        %v7792 = vpop.f32.mrb[0].mxu0
        %v7793 = vpop.f32.mrb[0].mxu0
        %v7794 = vadd.f32 0.0, %v7793
        %v7795 = vpop.f32.mrb[0].mxu0
        %7796 = vmatprep.mubr.bf16.mxu0 0
        %7797 = vmatmul.mubr.bf16.gmra.mrb[0].mxu0 %v7612
        %v7798 = vpop.f32.mrb[0].mxu0
        %v7799 = vadd.f32 0.0, %v7798
        %v7800 = vpop.f32.mrb[0].mxu0
        %v7801 = vpop.f32.mrb[0].mxu0
        %v7802 = vadd.f32 0.0, %v7801
        %v7803 = vpop.f32.mrb[0].mxu0
        %7804 = vmatprep.mubr.bf16.mxu0 0
        %7805 = vmatmul.mubr.bf16.gmra.mrb[0].mxu0 %v7615
        %v7806 = vpop.f32.mrb[0].mxu0
        %v7807 = vadd.f32 0.0, %v7806
        %v7808 = vpop.f32.mrb[0].mxu0
        %v7809 = vpop.f32.mrb[0].mxu0
        %v7810 = vadd.f32 0.0, %v7809
        %v7811 = vpop.f32.mrb[0].mxu0
        %7812 = vmatprep.mubr.bf16.mxu0 0
        %7813 = vmatmul.mubr.bf16.gmra.mrb[0].mxu0 %v7618
        %v7814 = vpop.f32.mrb[0].mxu0
        %v7815 = vadd.f32 0.0, %v7814
        %v7816 = vpop.f32.mrb[0].mxu0
        %v7817 = vpop.f32.mrb[0].mxu0
        %v7818 = vadd.f32 0.0, %v7817
        %v7819 = vpop.f32.mrb[0].mxu0
        %7820 = vmatprep.mubr.bf16.mxu0 0
        %7821 = vmatmul.mubr.bf16.gmra.mrb[0].mxu0 %v7621
        %v7822 = vpop.f32.mrb[0].mxu0
        %v7823 = vadd.f32 0.0, %v7822
        %v7824 = vpop.f32.mrb[0].mxu0
        %v7825 = vpop.f32.mrb[0].mxu0
        %v7826 = vadd.f32 0.0, %v7825
        %v7827 = vpop.f32.mrb[0].mxu0
        %7828 = vmatprep.mubr.bf16.mxu0 0
        %7829 = vmatmul.mubr.bf16.gmra.mrb[0].mxu0 %v7624
        %v7830 = vpop.f32.mrb[0].mxu0
        %v7831 = vadd.f32 0.0, %v7830
        %v7832 = vpop.f32.mrb[0].mxu0
        %v7833 = vpop.f32.mrb[0].mxu0
        %v7834 = vadd.f32 0.0, %v7833
        %v7835 = vpop.f32.mrb[0].mxu0
        %7836 = vmatprep.mubr.bf16.mxu0 0
        %7837 = vmatmul.mubr.bf16.gmra.mrb[0].mxu0 %v7627
        %v7838 = vpop.f32.mrb[0].mxu0
        %v7839 = vadd.f32 0.0, %v7838
        %v7840 = vpop.f32.mrb[0].mxu0
        %v7841 = vpop.f32.mrb[0].mxu0
        %v7842 = vadd.f32 0.0, %v7841
        %v7843 = vpop.f32.mrb[0].mxu0
        %7844 = vmatprep.mubr.bf16.mxu0 0
        %7845 = vmatmul.mubr.bf16.gmra.mrb[0].mxu0 %v7630
        %v7846 = vpop.f32.mrb[0].mxu0
        %v7847 = vadd.f32 0.0, %v7846
        %v7848 = vpop.f32.mrb[0].mxu0
        %v7849 = vpop.f32.mrb[0].mxu0
        %v7850 = vadd.f32 0.0, %v7849
        %v7851 = vpop.f32.mrb[0].mxu0
        %7852 = vmatprep.mubr.bf16.mxu0 0
        %7853 = vmatmul.mubr.bf16.gmra.mrb[0].mxu0 %v7633
        %v7854 = vpop.f32.mrb[0].mxu0
        %v7855 = vadd.f32 0.0, %v7854
        %v7856 = vpop.f32.mrb[0].mxu0
        %v7857 = vpop.f32.mrb[0].mxu0
        %v7858 = vadd.f32 0.0, %v7857
        %v7859 = vpop.f32.mrb[0].mxu0
        %7860 = vmatprep.mubr.bf16.mxu0 0
        %7861 = vmatmul.mubr.bf16.gmra.mrb[0].mxu0 %v7636
        %v7862 = vpop.f32.mrb[0].mxu0
        %v7863 = vadd.f32 0.0, %v7862
        %v7864 = vpop.f32.mrb[0].mxu0
        %v7865 = vpop.f32.mrb[0].mxu0
        %v7866 = vadd.f32 0.0, %v7865
        %v7867 = vpop.f32.mrb[0].mxu0
        %7868 = vmatprep.mubr.bf16.mxu0 0
        %7869 = vmatmul.mubr.bf16.gmra.mrb[0].mxu0 %v7639
        %v7870 = vpop.f32.mrb[0].mxu0
        %v7871 = vadd.f32 0.0, %v7870
        %v7872 = vpop.f32.mrb[0].mxu0
        %v7873 = vpop.f32.mrb[0].mxu0
        %v7874 = vadd.f32 0.0, %v7873
        %v7875 = vpop.f32.mrb[0].mxu0
        %7876 = vmatprep.mubr.bf16.mxu0 0
        %7877 = vmatmul.mubr.bf16.gmra.mrb[0].mxu0 %v7642
        %v7878 = vpop.f32.mrb[0].mxu0
        %v7879 = vadd.f32 0.0, %v7878
        %v7880 = vpop.f32.mrb[0].mxu0
        %v7881 = vpop.f32.mrb[0].mxu0
        %v7882 = vadd.f32 0.0, %v7881
        %v7883 = vpop.f32.mrb[0].mxu0
        %7884 = vmatprep.mubr.bf16.mxu0 0
        %7885 = vmatmul.mubr.bf16.gmra.mrb[0].mxu0 %v7645
        %v7886 = vpop.f32.mrb[0].mxu0
        %v7887 = vadd.f32 0.0, %v7886
        %v7888 = vpop.f32.mrb[0].mxu0
        %v7889 = vpop.f32.mrb[0].mxu0
        %v7890 = vadd.f32 0.0, %v7889
        %v7891 = vpop.f32.mrb[0].mxu0
        %7892 = vmatprep.mubr.bf16.mxu0 0
        %7893 = vmatmul.mubr.bf16.gmra.mrb[0].mxu0 %v7648
        %v7894 = vpop.f32.mrb[0].mxu0
        %v7895 = vadd.f32 0.0, %v7894
        %v7896 = vpop.f32.mrb[0].mxu0
        %v7897 = vpop.f32.mrb[0].mxu0
        %v7898 = vadd.f32 0.0, %v7897
        %v7899 = vpop.f32.mrb[0].mxu0
        %7900 = vmatprep.mubr.bf16.mxu0 0
        %7901 = vmatmul.mubr.bf16.gmra.mrb[0].mxu0 %v7651
        %v7902 = vpop.f32.mrb[0].mxu0
        %v7903 = vadd.f32 0.0, %v7902
        %v7904 = vpop.f32.mrb[0].mxu0
        %v7905 = vpop.f32.mrb[0].mxu0
        %v7906 = vadd.f32 0.0, %v7905
        %v7907 = vpop.f32.mrb[0].mxu0
        %7908 = vmatprep.mubr.bf16.mxu0 0
        %7909 = vmatmul.mubr.bf16.gmra.mrb[0].mxu0 %v7654
        %v7910 = vpop.f32.mrb[0].mxu0
        %v7911 = vadd.f32 0.0, %v7910
        %v7912 = vpop.f32.mrb[0].mxu0
        %v7913 = vpop.f32.mrb[0].mxu0
        %v7914 = vadd.f32 0.0, %v7913
        %v7915 = vpop.f32.mrb[0].mxu0
        %7916 = vmatprep.mubr.bf16.mxu0 0
        %7917 = vmatmul.mubr.bf16.gmra.mrb[0].mxu0 %v7657
        %v7918 = vpop.f32.mrb[0].mxu0
        %v7919 = vadd.f32 0.0, %v7918
        %v7920 = vpop.f32.mrb[0].mxu0
        %v7921 = vpop.f32.mrb[0].mxu0
        %v7922 = vadd.f32 0.0, %v7921
        %v7923 = vpop.f32.mrb[0].mxu0
        %7924 = vmatprep.mubr.bf16.mxu0 0
        %7925 = vmatmul.mubr.bf16.gmra.mrb[0].mxu0 %v7660
        %v7926 = vpop.f32.mrb[0].mxu0
        %v7927 = vadd.f32 0.0, %v7926
        %v7928 = vpop.f32.mrb[0].mxu0
        %v7929 = vpop.f32.mrb[0].mxu0
        %v7930 = vadd.f32 0.0, %v7929
        %v7931 = vpop.f32.mrb[0].mxu0
        %7932 = vmatprep.mubr.bf16.mxu0 0
        %7933 = vmatmul.mubr.bf16.gmra.mrb[0].mxu0 %v7663
        %v7934 = vpop.f32.mrb[0].mxu0
        %v7935 = vadd.f32 0.0, %v7934
        %v7936 = vpop.f32.mrb[0].mxu0
        %v7937 = vpop.f32.mrb[0].mxu0
        %v7938 = vadd.f32 0.0, %v7937
        %v7939 = vpop.f32.mrb[0].mxu0
        %7940 = vmatprep.mubr.bf16.mxu0 0
        %7941 = vmatmul.mubr.bf16.gmra.mrb[0].mxu0 %v7666
        %v7942 = vpop.f32.mrb[0].mxu0
        %v7943 = vadd.f32 0.0, %v7942
        %v7944 = vpop.f32.mrb[0].mxu0
        %v7945 = vpop.f32.mrb[0].mxu0
        %v7946 = vadd.f32 0.0, %v7945
        %v7947 = vpop.f32.mrb[0].mxu0
        %7948 = vmatprep.mubr.bf16.mxu0 0
        %7949 = vmatmul.mubr.bf16.gmra.mrb[0].mxu0 %v7669
        %v7950 = vpop.f32.mrb[0].mxu0
        %v7951 = vadd.f32 0.0, %v7950
        %v7952 = vpop.f32.mrb[0].mxu0
        %v7953 = vpop.f32.mrb[0].mxu0
        %v7954 = vadd.f32 0.0, %v7953
        %v7955 = vpop.f32.mrb[0].mxu0
        %7956 = vmatprep.mubr.bf16.mxu0 0
        %7957 = vmatmul.mubr.bf16.gmra.mrb[0].mxu0 %v7672
        %v7958 = vpop.f32.mrb[0].mxu0
        %v7959 = vadd.f32 0.0, %v7958
        %v7960 = vpop.f32.mrb[0].mxu0
        %v7961 = vpop.f32.mrb[0].mxu0
        %v7962 = vadd.f32 0.0, %v7961
        %v7963 = vpop.f32.mrb[0].mxu0
        %7964 = vmatprep.mubr.bf16.mxu0 0
        %7965 = vmatmul.mubr.bf16.gmra.mrb[0].mxu0 %v7675
        %v7966 = vpop.f32.mrb[0].mxu0
        %v7967 = vadd.f32 0.0, %v7966
        %v7968 = vpop.f32.mrb[0].mxu0
        %v7969 = vpop.f32.mrb[0].mxu0
        %v7970 = vadd.f32 0.0, %v7969
        %v7971 = vpop.f32.mrb[0].mxu0
        %7972 = vmatprep.mubr.bf16.mxu0 0
        %7973 = vmatmul.mubr.bf16.gmra.mrb[0].mxu0 %v7678
        %v7974 = vpop.f32.mrb[0].mxu0
        %v7975 = vadd.f32 0.0, %v7974
        %v7976 = vpop.f32.mrb[0].mxu0
        %v7977 = vpop.f32.mrb[0].mxu0
        %v7978 = vadd.f32 0.0, %v7977
        %v7979 = vpop.f32.mrb[0].mxu0
        %7980 = vmatprep.mubr.bf16.mxu0 0
        %7981 = vmatmul.mubr.bf16.gmra.mrb[0].mxu0 %v7681
        %v7982 = vpop.f32.mrb[0].mxu0
        %v7983 = vadd.f32 0.0, %v7982
        %v7984 = vpop.f32.mrb[0].mxu0
        %v7985 = vpop.f32.mrb[0].mxu0
        %v7986 = vadd.f32 0.0, %v7985
        %v7987 = vpop.f32.mrb[0].mxu0
        %7988 = vmatprep.mubr.bf16.mxu0 0
        %7989 = vmatmul.mubr.bf16.gmra.mrb[0].mxu0 %v7684
        %v7990 = vpop.f32.mrb[0].mxu0
        %v7991 = vadd.f32 0.0, %v7990
        %v7992 = vpop.f32.mrb[0].mxu0
        %v7993 = vpop.f32.mrb[0].mxu0
        %v7994 = vadd.f32 0.0, %v7993
        %v7995 = vpop.f32.mrb[0].mxu0
        %7996 = vmatprep.mubr.bf16.mxu0 0
        %7997 = vmatmul.mubr.bf16.gmra.mrb[0].mxu0 %v7687
        %v7998 = vpop.f32.mrb[0].mxu0
        %v7999 = vadd.f32 0.0, %v7998
        %v8000 = vpop.f32.mrb[0].mxu0
        %v8001 = vpop.f32.mrb[0].mxu0
        %v8002 = vadd.f32 0.0, %v8001
        %v8003 = vpop.f32.mrb[0].mxu0
        %8004 = vmatprep.mubr.bf16.mxu0 0
        %8005 = vmatmul.mubr.bf16.gmra.mrb[0].mxu0 %v7690
        %v8006 = vpop.f32.mrb[0].mxu0
        %v8007 = vadd.f32 0.0, %v8006
        %v8008 = vpop.f32.mrb[0].mxu0
        %v8009 = vpop.f32.mrb[0].mxu0
        %v8010 = vadd.f32 0.0, %v8009
        %v8011 = vpop.f32.mrb[0].mxu0
        %8012 = vdwg.mxu0
        %v8013 = vadd.f32 %v7464, %v7727
        %v8014 = vadd.f32 %v7465, %v7730
        %v8015 = vadd.f32 %v7466, %v7735
        %v8016 = vadd.f32 %v7467, %v7738
        %v8017 = vadd.f32 %v7468, %v7743
        %v8018 = vadd.f32 %v7469, %v7746
        %v8019 = vadd.f32 %v7470, %v7751
        %v8020 = vadd.f32 %v7471, %v7754
        %v8021 = vadd.f32 %v7472, %v7759
        %v8022 = vadd.f32 %v7473, %v7762
        %v8023 = vadd.f32 %v7474, %v7767
        %v8024 = vadd.f32 %v7475, %v7770
        %v8025 = vadd.f32 %v7476, %v7775
        %v8026 = vadd.f32 %v7477, %v7778
        %v8027 = vadd.f32 %v7478, %v7783
        %v8028 = vadd.f32 %v7479, %v7786
        %v8029 = vadd.f32 %v7480, %v7791
        %v8030 = vadd.f32 %v7481, %v7794
        %v8031 = vadd.f32 %v7482, %v7799
        %v8032 = vadd.f32 %v7483, %v7802
        %v8033 = vadd.f32 %v7484, %v7807
        %v8034 = vadd.f32 %v7485, %v7810
        %v8035 = vadd.f32 %v7486, %v7815
        %v8036 = vadd.f32 %v7487, %v7818
        %v8037 = vadd.f32 %v7488, %v7823
        %v8038 = vadd.f32 %v7489, %v7826
        %v8039 = vadd.f32 %v7490, %v7831
        %v8040 = vadd.f32 %v7491, %v7834
        %v8041 = vadd.f32 %v7492, %v7839
        %v8042 = vadd.f32 %v7493, %v7842
        %v8043 = vadd.f32 %v7494, %v7847
        %v8044 = vadd.f32 %v7495, %v7850
        %v8045 = vadd.f32 %v7496, %v7855
        %v8046 = vadd.f32 %v7497, %v7858
        %v8047 = vadd.f32 %v7498, %v7863
        %v8048 = vadd.f32 %v7499, %v7866
        %v8049 = vadd.f32 %v7500, %v7871
        %v8050 = vadd.f32 %v7501, %v7874
        %v8051 = vadd.f32 %v7502, %v7879
        %v8052 = vadd.f32 %v7503, %v7882
        %v8053 = vadd.f32 %v7504, %v7887
        %v8054 = vadd.f32 %v7505, %v7890
        %v8055 = vadd.f32 %v7506, %v7895
        %v8056 = vadd.f32 %v7507, %v7898
        %v8057 = vadd.f32 %v7508, %v7903
        %v8058 = vadd.f32 %v7509, %v7906
        %v8059 = vadd.f32 %v7510, %v7911
        %v8060 = vadd.f32 %v7511, %v7914
        %v8061 = vadd.f32 %v7512, %v7919
        %v8062 = vadd.f32 %v7513, %v7922
        %v8063 = vadd.f32 %v7514, %v7927
        %v8064 = vadd.f32 %v7515, %v7930
        %v8065 = vadd.f32 %v7516, %v7935
        %v8066 = vadd.f32 %v7517, %v7938
        %v8067 = vadd.f32 %v7518, %v7943
        %v8068 = vadd.f32 %v7519, %v7946
        %v8069 = vadd.f32 %v7520, %v7951
        %v8070 = vadd.f32 %v7521, %v7954
        %v8071 = vadd.f32 %v7522, %v7959
        %v8072 = vadd.f32 %v7523, %v7962
        %v8073 = vadd.f32 %v7524, %v7967
        %v8074 = vadd.f32 %v7525, %v7970
        %v8075 = vadd.f32 %v7526, %v7975
        %v8076 = vadd.f32 %v7527, %v7978
        %v8077 = vadd.f32 %v7528, %v7983
        %v8078 = vadd.f32 %v7529, %v7986
        %v8079 = vadd.f32 %v7530, %v7991
        %v8080 = vadd.f32 %v7531, %v7994
        %v8081 = vadd.f32 %v7532, %v7999
        %v8082 = vadd.f32 %v7533, %v8002
        %v8083 = vadd.f32 %v7534, %v8007
        %v8084 = vadd.f32 %v7535, %v8010
        %v8089 = vrot.slane %v5448, 1
        %v8090 = vrot.slane %v5449, 1
        %v8091 = vsel %vm1375, %v8089, %v8090
        %v8092 = vrot.slane %v5450, 1
        %v8093 = vsel %vm1375, %v8090, %v8092
        %v8094 = vrot.slane %v5451, 1
        %v8095 = vsel %vm1375, %v8092, %v8094
        %v8099 = vpack.c.bf16 %v5599, %v5597
        %v8100 = vpack.c.bf16 %v5604, %v5601
        %v8101 = vpack.c.bf16 %v5608, %v5606
        %v8102 = vpack.c.bf16 %v5613, %v5611
        %v8103 = vpack.c.bf16 %v5618, %v5615
        %v8104 = vpack.c.bf16 %v5622, %v5620
        %v8105 = vpack.c.bf16 %v5627, %v5625
        %v8106 = vpack.c.bf16 %v5632, %v5629
        %v8107 = vpack.c.bf16 %v5636, %v5634
        %v8108 = vpack.c.bf16 %v5641, %v5639
        %v8109 = vpack.c.bf16 %v5646, %v5643
        %v8110 = vpack.c.bf16 %v5650, %v5648
        %v8111 = vpack.c.bf16 %v5655, %v5653
        %v8112 = vpack.c.bf16 %v5660, %v5657
        %v8113 = vpack.c.bf16 %v5664, %v5662
        %v8114 = vpack.c.bf16 %v5669, %v5667
        %v8115 = vpack.c.bf16 %v5674, %v5671
        %v8116 = vpack.c.bf16 %v5678, %v5676
        %v8117 = vpack.c.bf16 %v5683, %v5681
        %v8118 = vpack.c.bf16 %v5688, %v5685
        %v8119 = vpack.c.bf16 %v5692, %v5690
        %v8120 = vpack.c.bf16 %v5697, %v5695
        %v8121 = vpack.c.bf16 %v5702, %v5699
        %v8122 = vpack.c.bf16 %v5706, %v5704
        %v8123 = vpack.c.bf16 %v5711, %v5709
        %v8124 = vpack.c.bf16 %v5716, %v5713
        %v8125 = vpack.c.bf16 %v5720, %v5718
        %v8126 = vpack.c.bf16 %v5725, %v5723
        %v8127 = vpack.c.bf16 %v5730, %v5727
        %v8128 = vpack.c.bf16 %v5734, %v5732
        %v8129 = vpack.c.bf16 %v5739, %v5737
        %v8130 = vpack.c.bf16 %v5744, %v5741
        %v8131 = vpack.c.bf16 %v5748, %v5746
        %v8132 = vpack.c.bf16 %v5753, %v5751
        %v8133 = vpack.c.bf16 %v8091, %v5755
        %v8134 = vpack.c.bf16 %v8095, %v8093
        %v8139 = vunpack.c.l.b16 %v411
        %v8140 = vunpack.c.l.b16 %v412
        %v8141 = vunpack.c.l.b16 %v413
        %v8142 = vunpack.c.l.b16 %v414
        %v8143 = vpack.c.b16 %v8140, %v8139
        %v8144 = vpack.c.b16 %v8142, %v8141
        %v8148 = vsel %vm5876, %v8099, 0
        %v8151 = vsel %vm5876, %v8100, 0
        %v8154 = vsel %vm5876, %v8101, 0
        %v8157 = vsel %vm5876, %v8102, 0
        %v8160 = vsel %vm5876, %v8103, 0
        %v8163 = vsel %vm5876, %v8104, 0
        %v8166 = vsel %vm5876, %v8105, 0
        %v8169 = vsel %vm5876, %v8106, 0
        %v8172 = vsel %vm5876, %v8107, 0
        %v8175 = vsel %vm5876, %v8108, 0
        %v8178 = vsel %vm5876, %v8109, 0
        %v8181 = vsel %vm5876, %v8110, 0
        %v8184 = vsel %vm5876, %v8111, 0
        %v8187 = vsel %vm5876, %v8112, 0
        %v8190 = vsel %vm5876, %v8113, 0
        %v8193 = vsel %vm5876, %v8114, 0
        %v8196 = vsel %vm5876, %v8115, 0
        %v8199 = vsel %vm5876, %v8116, 0
        %v8202 = vsel %vm5876, %v8117, 0
        %v8205 = vsel %vm5876, %v8118, 0
        %v8208 = vsel %vm5876, %v8119, 0
        %v8211 = vsel %vm5876, %v8120, 0
        %v8214 = vsel %vm5876, %v8121, 0
        %v8217 = vsel %vm5876, %v8122, 0
        %v8220 = vsel %vm5876, %v8123, 0
        %v8223 = vsel %vm5876, %v8124, 0
        %v8226 = vsel %vm5876, %v8125, 0
        %v8229 = vsel %vm5876, %v8126, 0
        %v8232 = vsel %vm5876, %v8127, 0
        %v8235 = vsel %vm5876, %v8128, 0
        %v8238 = vsel %vm5876, %v8129, 0
        %v8241 = vsel %vm5876, %v8130, 0
        %v8244 = vsel %vm5876, %v8131, 0
        %v8247 = vsel %vm5876, %v8132, 0
        %v8250 = vsel %vm5876, %v8133, 0
        %v8253 = vsel %vm5876, %v8134, 0
        %8255 = vmatprep.subr.bf16.mxu0 0
        %8256 = vmatpush1.bf16.msra.mxu0 %v8143
        %8257 = vmatprep.subr.bf16.mxu0 0
        %8258 = vmatpush1.bf16.msra.mxu0 %v8144
        %8259 = vmatprep.subr.bf16.mxu0 0
        %8260 = vmatpush1.bf16.msra.mxu0 0
        %8261 = vmatprep.subr.bf16.mxu0 0
        %8262 = vmatpush1.bf16.msra.mxu0 0
        %8263 = vmatprep.subr.bf16.mxu0 0
        %8264 = vmatpush1.bf16.msra.mxu0 0
        %8265 = vmatprep.subr.bf16.mxu0 0
        %8266 = vmatpush1.bf16.msra.mxu0 0
        %8267 = vmatprep.subr.bf16.mxu0 0
        %8268 = vmatpush1.bf16.msra.mxu0 0
        %8269 = vmatprep.subr.bf16.mxu0 0
        %8270 = vmatpush1.bf16.msra.mxu0 0
        %8271 = vmatprep.subr.bf16.mxu0 0
        %8272 = vmatpush1.bf16.msra.mxu0 0
        %8273 = vmatprep.subr.bf16.mxu0 0
        %8274 = vmatpush1.bf16.msra.mxu0 0
        %8275 = vmatprep.subr.bf16.mxu0 0
        %8276 = vmatpush1.bf16.msra.mxu0 0
        %8277 = vmatprep.subr.bf16.mxu0 0
        %8278 = vmatpush1.bf16.msra.mxu0 0
        %8279 = vmatprep.subr.bf16.mxu0 0
        %8280 = vmatpush1.bf16.msra.mxu0 0
        %8281 = vmatprep.subr.bf16.mxu0 0
        %8282 = vmatpush1.bf16.msra.mxu0 0
        %8283 = vmatprep.subr.bf16.mxu0 0
        %8284 = vmatpush1.bf16.msra.mxu0 0
        %8285 = vmatprep.subr.bf16.mxu0 0
        %8286 = vmatpush1.bf16.msra.mxu0 0
        %8287 = vmatprep.mubr.bf16.mxu0 0
        %8288 = vmatmul.mubr.bf16.gmra.mrb[0].mxu0 %v8148
        %v8289 = vpop.f32.mrb[0].mxu0
        %v8290 = vadd.f32 0.0, %v8289
        %v8291 = vpop.f32.mrb[0].mxu0
        %v8292 = vpop.f32.mrb[0].mxu0
        %v8293 = vadd.f32 0.0, %v8292
        %v8294 = vpop.f32.mrb[0].mxu0
        %8295 = vmatprep.mubr.bf16.mxu0 0
        %8296 = vmatmul.mubr.bf16.gmra.mrb[0].mxu0 %v8151
        %v8297 = vpop.f32.mrb[0].mxu0
        %v8298 = vadd.f32 0.0, %v8297
        %v8299 = vpop.f32.mrb[0].mxu0
        %v8300 = vpop.f32.mrb[0].mxu0
        %v8301 = vadd.f32 0.0, %v8300
        %v8302 = vpop.f32.mrb[0].mxu0
        %8303 = vmatprep.mubr.bf16.mxu0 0
        %8304 = vmatmul.mubr.bf16.gmra.mrb[0].mxu0 %v8154
        %v8305 = vpop.f32.mrb[0].mxu0
        %v8306 = vadd.f32 0.0, %v8305
        %v8307 = vpop.f32.mrb[0].mxu0
        %v8308 = vpop.f32.mrb[0].mxu0
        %v8309 = vadd.f32 0.0, %v8308
        %v8310 = vpop.f32.mrb[0].mxu0
        %8311 = vmatprep.mubr.bf16.mxu0 0
        %8312 = vmatmul.mubr.bf16.gmra.mrb[0].mxu0 %v8157
        %v8313 = vpop.f32.mrb[0].mxu0
        %v8314 = vadd.f32 0.0, %v8313
        %v8315 = vpop.f32.mrb[0].mxu0
        %v8316 = vpop.f32.mrb[0].mxu0
        %v8317 = vadd.f32 0.0, %v8316
        %v8318 = vpop.f32.mrb[0].mxu0
        %8319 = vmatprep.mubr.bf16.mxu0 0
        %8320 = vmatmul.mubr.bf16.gmra.mrb[0].mxu0 %v8160
        %v8321 = vpop.f32.mrb[0].mxu0
        %v8322 = vadd.f32 0.0, %v8321
        %v8323 = vpop.f32.mrb[0].mxu0
        %v8324 = vpop.f32.mrb[0].mxu0
        %v8325 = vadd.f32 0.0, %v8324
        %v8326 = vpop.f32.mrb[0].mxu0
        %8327 = vmatprep.mubr.bf16.mxu0 0
        %8328 = vmatmul.mubr.bf16.gmra.mrb[0].mxu0 %v8163
        %v8329 = vpop.f32.mrb[0].mxu0
        %v8330 = vadd.f32 0.0, %v8329
        %v8331 = vpop.f32.mrb[0].mxu0
        %v8332 = vpop.f32.mrb[0].mxu0
        %v8333 = vadd.f32 0.0, %v8332
        %v8334 = vpop.f32.mrb[0].mxu0
        %8335 = vmatprep.mubr.bf16.mxu0 0
        %8336 = vmatmul.mubr.bf16.gmra.mrb[0].mxu0 %v8166
        %v8337 = vpop.f32.mrb[0].mxu0
        %v8338 = vadd.f32 0.0, %v8337
        %v8339 = vpop.f32.mrb[0].mxu0
        %v8340 = vpop.f32.mrb[0].mxu0
        %v8341 = vadd.f32 0.0, %v8340
        %v8342 = vpop.f32.mrb[0].mxu0
        %8343 = vmatprep.mubr.bf16.mxu0 0
        %8344 = vmatmul.mubr.bf16.gmra.mrb[0].mxu0 %v8169
        %v8345 = vpop.f32.mrb[0].mxu0
        %v8346 = vadd.f32 0.0, %v8345
        %v8347 = vpop.f32.mrb[0].mxu0
        %v8348 = vpop.f32.mrb[0].mxu0
        %v8349 = vadd.f32 0.0, %v8348
        %v8350 = vpop.f32.mrb[0].mxu0
        %8351 = vmatprep.mubr.bf16.mxu0 0
        %8352 = vmatmul.mubr.bf16.gmra.mrb[0].mxu0 %v8172
        %v8353 = vpop.f32.mrb[0].mxu0
        %v8354 = vadd.f32 0.0, %v8353
        %v8355 = vpop.f32.mrb[0].mxu0
        %v8356 = vpop.f32.mrb[0].mxu0
        %v8357 = vadd.f32 0.0, %v8356
        %v8358 = vpop.f32.mrb[0].mxu0
        %8359 = vmatprep.mubr.bf16.mxu0 0
        %8360 = vmatmul.mubr.bf16.gmra.mrb[0].mxu0 %v8175
        %v8361 = vpop.f32.mrb[0].mxu0
        %v8362 = vadd.f32 0.0, %v8361
        %v8363 = vpop.f32.mrb[0].mxu0
        %v8364 = vpop.f32.mrb[0].mxu0
        %v8365 = vadd.f32 0.0, %v8364
        %v8366 = vpop.f32.mrb[0].mxu0
        %8367 = vmatprep.mubr.bf16.mxu0 0
        %8368 = vmatmul.mubr.bf16.gmra.mrb[0].mxu0 %v8178
        %v8369 = vpop.f32.mrb[0].mxu0
        %v8370 = vadd.f32 0.0, %v8369
        %v8371 = vpop.f32.mrb[0].mxu0
        %v8372 = vpop.f32.mrb[0].mxu0
        %v8373 = vadd.f32 0.0, %v8372
        %v8374 = vpop.f32.mrb[0].mxu0
        %8375 = vmatprep.mubr.bf16.mxu0 0
        %8376 = vmatmul.mubr.bf16.gmra.mrb[0].mxu0 %v8181
        %v8377 = vpop.f32.mrb[0].mxu0
        %v8378 = vadd.f32 0.0, %v8377
        %v8379 = vpop.f32.mrb[0].mxu0
        %v8380 = vpop.f32.mrb[0].mxu0
        %v8381 = vadd.f32 0.0, %v8380
        %v8382 = vpop.f32.mrb[0].mxu0
        %8383 = vmatprep.mubr.bf16.mxu0 0
        %8384 = vmatmul.mubr.bf16.gmra.mrb[0].mxu0 %v8184
        %v8385 = vpop.f32.mrb[0].mxu0
        %v8386 = vadd.f32 0.0, %v8385
        %v8387 = vpop.f32.mrb[0].mxu0
        %v8388 = vpop.f32.mrb[0].mxu0
        %v8389 = vadd.f32 0.0, %v8388
        %v8390 = vpop.f32.mrb[0].mxu0
        %8391 = vmatprep.mubr.bf16.mxu0 0
        %8392 = vmatmul.mubr.bf16.gmra.mrb[0].mxu0 %v8187
        %v8393 = vpop.f32.mrb[0].mxu0
        %v8394 = vadd.f32 0.0, %v8393
        %v8395 = vpop.f32.mrb[0].mxu0
        %v8396 = vpop.f32.mrb[0].mxu0
        %v8397 = vadd.f32 0.0, %v8396
        %v8398 = vpop.f32.mrb[0].mxu0
        %8399 = vmatprep.mubr.bf16.mxu0 0
        %8400 = vmatmul.mubr.bf16.gmra.mrb[0].mxu0 %v8190
        %v8401 = vpop.f32.mrb[0].mxu0
        %v8402 = vadd.f32 0.0, %v8401
        %v8403 = vpop.f32.mrb[0].mxu0
        %v8404 = vpop.f32.mrb[0].mxu0
        %v8405 = vadd.f32 0.0, %v8404
        %v8406 = vpop.f32.mrb[0].mxu0
        %8407 = vmatprep.mubr.bf16.mxu0 0
        %8408 = vmatmul.mubr.bf16.gmra.mrb[0].mxu0 %v8193
        %v8409 = vpop.f32.mrb[0].mxu0
        %v8410 = vadd.f32 0.0, %v8409
        %v8411 = vpop.f32.mrb[0].mxu0
        %v8412 = vpop.f32.mrb[0].mxu0
        %v8413 = vadd.f32 0.0, %v8412
        %v8414 = vpop.f32.mrb[0].mxu0
        %8415 = vmatprep.mubr.bf16.mxu0 0
        %8416 = vmatmul.mubr.bf16.gmra.mrb[0].mxu0 %v8196
        %v8417 = vpop.f32.mrb[0].mxu0
        %v8418 = vadd.f32 0.0, %v8417
        %v8419 = vpop.f32.mrb[0].mxu0
        %v8420 = vpop.f32.mrb[0].mxu0
        %v8421 = vadd.f32 0.0, %v8420
        %v8422 = vpop.f32.mrb[0].mxu0
        %8423 = vmatprep.mubr.bf16.mxu0 0
        %8424 = vmatmul.mubr.bf16.gmra.mrb[0].mxu0 %v8199
        %v8425 = vpop.f32.mrb[0].mxu0
        %v8426 = vadd.f32 0.0, %v8425
        %v8427 = vpop.f32.mrb[0].mxu0
        %v8428 = vpop.f32.mrb[0].mxu0
        %v8429 = vadd.f32 0.0, %v8428
        %v8430 = vpop.f32.mrb[0].mxu0
        %8431 = vmatprep.mubr.bf16.mxu0 0
        %8432 = vmatmul.mubr.bf16.gmra.mrb[0].mxu0 %v8202
        %v8433 = vpop.f32.mrb[0].mxu0
        %v8434 = vadd.f32 0.0, %v8433
        %v8435 = vpop.f32.mrb[0].mxu0
        %v8436 = vpop.f32.mrb[0].mxu0
        %v8437 = vadd.f32 0.0, %v8436
        %v8438 = vpop.f32.mrb[0].mxu0
        %8439 = vmatprep.mubr.bf16.mxu0 0
        %8440 = vmatmul.mubr.bf16.gmra.mrb[0].mxu0 %v8205
        %v8441 = vpop.f32.mrb[0].mxu0
        %v8442 = vadd.f32 0.0, %v8441
        %v8443 = vpop.f32.mrb[0].mxu0
        %v8444 = vpop.f32.mrb[0].mxu0
        %v8445 = vadd.f32 0.0, %v8444
        %v8446 = vpop.f32.mrb[0].mxu0
        %8447 = vmatprep.mubr.bf16.mxu0 0
        %8448 = vmatmul.mubr.bf16.gmra.mrb[0].mxu0 %v8208
        %v8449 = vpop.f32.mrb[0].mxu0
        %v8450 = vadd.f32 0.0, %v8449
        %v8451 = vpop.f32.mrb[0].mxu0
        %v8452 = vpop.f32.mrb[0].mxu0
        %v8453 = vadd.f32 0.0, %v8452
        %v8454 = vpop.f32.mrb[0].mxu0
        %8455 = vmatprep.mubr.bf16.mxu0 0
        %8456 = vmatmul.mubr.bf16.gmra.mrb[0].mxu0 %v8211
        %v8457 = vpop.f32.mrb[0].mxu0
        %v8458 = vadd.f32 0.0, %v8457
        %v8459 = vpop.f32.mrb[0].mxu0
        %v8460 = vpop.f32.mrb[0].mxu0
        %v8461 = vadd.f32 0.0, %v8460
        %v8462 = vpop.f32.mrb[0].mxu0
        %8463 = vmatprep.mubr.bf16.mxu0 0
        %8464 = vmatmul.mubr.bf16.gmra.mrb[0].mxu0 %v8214
        %v8465 = vpop.f32.mrb[0].mxu0
        %v8466 = vadd.f32 0.0, %v8465
        %v8467 = vpop.f32.mrb[0].mxu0
        %v8468 = vpop.f32.mrb[0].mxu0
        %v8469 = vadd.f32 0.0, %v8468
        %v8470 = vpop.f32.mrb[0].mxu0
        %8471 = vmatprep.mubr.bf16.mxu0 0
        %8472 = vmatmul.mubr.bf16.gmra.mrb[0].mxu0 %v8217
        %v8473 = vpop.f32.mrb[0].mxu0
        %v8474 = vadd.f32 0.0, %v8473
        %v8475 = vpop.f32.mrb[0].mxu0
        %v8476 = vpop.f32.mrb[0].mxu0
        %v8477 = vadd.f32 0.0, %v8476
        %v8478 = vpop.f32.mrb[0].mxu0
        %8479 = vmatprep.mubr.bf16.mxu0 0
        %8480 = vmatmul.mubr.bf16.gmra.mrb[0].mxu0 %v8220
        %v8481 = vpop.f32.mrb[0].mxu0
        %v8482 = vadd.f32 0.0, %v8481
        %v8483 = vpop.f32.mrb[0].mxu0
        %v8484 = vpop.f32.mrb[0].mxu0
        %v8485 = vadd.f32 0.0, %v8484
        %v8486 = vpop.f32.mrb[0].mxu0
        %8487 = vmatprep.mubr.bf16.mxu0 0
        %8488 = vmatmul.mubr.bf16.gmra.mrb[0].mxu0 %v8223
        %v8489 = vpop.f32.mrb[0].mxu0
        %v8490 = vadd.f32 0.0, %v8489
        %v8491 = vpop.f32.mrb[0].mxu0
        %v8492 = vpop.f32.mrb[0].mxu0
        %v8493 = vadd.f32 0.0, %v8492
        %v8494 = vpop.f32.mrb[0].mxu0
        %8495 = vmatprep.mubr.bf16.mxu0 0
        %8496 = vmatmul.mubr.bf16.gmra.mrb[0].mxu0 %v8226
        %v8497 = vpop.f32.mrb[0].mxu0
        %v8498 = vadd.f32 0.0, %v8497
        %v8499 = vpop.f32.mrb[0].mxu0
        %v8500 = vpop.f32.mrb[0].mxu0
        %v8501 = vadd.f32 0.0, %v8500
        %v8502 = vpop.f32.mrb[0].mxu0
        %8503 = vmatprep.mubr.bf16.mxu0 0
        %8504 = vmatmul.mubr.bf16.gmra.mrb[0].mxu0 %v8229
        %v8505 = vpop.f32.mrb[0].mxu0
        %v8506 = vadd.f32 0.0, %v8505
        %v8507 = vpop.f32.mrb[0].mxu0
        %v8508 = vpop.f32.mrb[0].mxu0
        %v8509 = vadd.f32 0.0, %v8508
        %v8510 = vpop.f32.mrb[0].mxu0
        %8511 = vmatprep.mubr.bf16.mxu0 0
        %8512 = vmatmul.mubr.bf16.gmra.mrb[0].mxu0 %v8232
        %v8513 = vpop.f32.mrb[0].mxu0
        %v8514 = vadd.f32 0.0, %v8513
        %v8515 = vpop.f32.mrb[0].mxu0
        %v8516 = vpop.f32.mrb[0].mxu0
        %v8517 = vadd.f32 0.0, %v8516
        %v8518 = vpop.f32.mrb[0].mxu0
        %8519 = vmatprep.mubr.bf16.mxu0 0
        %8520 = vmatmul.mubr.bf16.gmra.mrb[0].mxu0 %v8235
        %v8521 = vpop.f32.mrb[0].mxu0
        %v8522 = vadd.f32 0.0, %v8521
        %v8523 = vpop.f32.mrb[0].mxu0
        %v8524 = vpop.f32.mrb[0].mxu0
        %v8525 = vadd.f32 0.0, %v8524
        %v8526 = vpop.f32.mrb[0].mxu0
        %8527 = vmatprep.mubr.bf16.mxu0 0
        %8528 = vmatmul.mubr.bf16.gmra.mrb[0].mxu0 %v8238
        %v8529 = vpop.f32.mrb[0].mxu0
        %v8530 = vadd.f32 0.0, %v8529
        %v8531 = vpop.f32.mrb[0].mxu0
        %v8532 = vpop.f32.mrb[0].mxu0
        %v8533 = vadd.f32 0.0, %v8532
        %v8534 = vpop.f32.mrb[0].mxu0
        %8535 = vmatprep.mubr.bf16.mxu0 0
        %8536 = vmatmul.mubr.bf16.gmra.mrb[0].mxu0 %v8241
        %v8537 = vpop.f32.mrb[0].mxu0
        %v8538 = vadd.f32 0.0, %v8537
        %v8539 = vpop.f32.mrb[0].mxu0
        %v8540 = vpop.f32.mrb[0].mxu0
        %v8541 = vadd.f32 0.0, %v8540
        %v8542 = vpop.f32.mrb[0].mxu0
        %8543 = vmatprep.mubr.bf16.mxu0 0
        %8544 = vmatmul.mubr.bf16.gmra.mrb[0].mxu0 %v8244
        %v8545 = vpop.f32.mrb[0].mxu0
        %v8546 = vadd.f32 0.0, %v8545
        %v8547 = vpop.f32.mrb[0].mxu0
        %v8548 = vpop.f32.mrb[0].mxu0
        %v8549 = vadd.f32 0.0, %v8548
        %v8550 = vpop.f32.mrb[0].mxu0
        %8551 = vmatprep.mubr.bf16.mxu0 0
        %8552 = vmatmul.mubr.bf16.gmra.mrb[0].mxu0 %v8247
        %v8553 = vpop.f32.mrb[0].mxu0
        %v8554 = vadd.f32 0.0, %v8553
        %v8555 = vpop.f32.mrb[0].mxu0
        %v8556 = vpop.f32.mrb[0].mxu0
        %v8557 = vadd.f32 0.0, %v8556
        %v8558 = vpop.f32.mrb[0].mxu0
        %8559 = vmatprep.mubr.bf16.mxu0 0
        %8560 = vmatmul.mubr.bf16.gmra.mrb[0].mxu0 %v8250
        %v8561 = vpop.f32.mrb[0].mxu0
        %v8562 = vadd.f32 0.0, %v8561
        %v8563 = vpop.f32.mrb[0].mxu0
        %v8564 = vpop.f32.mrb[0].mxu0
        %v8565 = vadd.f32 0.0, %v8564
        %v8566 = vpop.f32.mrb[0].mxu0
        %8567 = vmatprep.mubr.bf16.mxu0 0
        %8568 = vmatmul.mubr.bf16.gmra.mrb[0].mxu0 %v8253
        %v8569 = vpop.f32.mrb[0].mxu0
        %v8570 = vadd.f32 0.0, %v8569
        %v8571 = vpop.f32.mrb[0].mxu0
        %v8572 = vpop.f32.mrb[0].mxu0
        %v8573 = vadd.f32 0.0, %v8572
        %v8574 = vpop.f32.mrb[0].mxu0
        %8575 = vdwg.mxu0
        %v8576 = vadd.f32 %v8013, %v8290
        %v8577 = vadd.f32 %v8014, %v8293
        %v8578 = vadd.f32 %v8015, %v8298
        %v8579 = vadd.f32 %v8016, %v8301
        %v8580 = vadd.f32 %v8017, %v8306
        %v8581 = vadd.f32 %v8018, %v8309
        %v8582 = vadd.f32 %v8019, %v8314
        %v8583 = vadd.f32 %v8020, %v8317
        %v8584 = vadd.f32 %v8021, %v8322
        %v8585 = vadd.f32 %v8022, %v8325
        %v8586 = vadd.f32 %v8023, %v8330
        %v8587 = vadd.f32 %v8024, %v8333
        %v8588 = vadd.f32 %v8025, %v8338
        %v8589 = vadd.f32 %v8026, %v8341
        %v8590 = vadd.f32 %v8027, %v8346
        %v8591 = vadd.f32 %v8028, %v8349
        %v8592 = vadd.f32 %v8029, %v8354
        %v8593 = vadd.f32 %v8030, %v8357
        %v8594 = vadd.f32 %v8031, %v8362
        %v8595 = vadd.f32 %v8032, %v8365
        %v8596 = vadd.f32 %v8033, %v8370
        %v8597 = vadd.f32 %v8034, %v8373
        %v8598 = vadd.f32 %v8035, %v8378
        %v8599 = vadd.f32 %v8036, %v8381
        %v8600 = vadd.f32 %v8037, %v8386
        %v8601 = vadd.f32 %v8038, %v8389
        %v8602 = vadd.f32 %v8039, %v8394
        %v8603 = vadd.f32 %v8040, %v8397
        %v8604 = vadd.f32 %v8041, %v8402
        %v8605 = vadd.f32 %v8042, %v8405
        %v8606 = vadd.f32 %v8043, %v8410
        %v8607 = vadd.f32 %v8044, %v8413
        %v8608 = vadd.f32 %v8045, %v8418
        %v8609 = vadd.f32 %v8046, %v8421
        %v8610 = vadd.f32 %v8047, %v8426
        %v8611 = vadd.f32 %v8048, %v8429
        %v8612 = vadd.f32 %v8049, %v8434
        %v8613 = vadd.f32 %v8050, %v8437
        %v8614 = vadd.f32 %v8051, %v8442
        %v8615 = vadd.f32 %v8052, %v8445
        %v8616 = vadd.f32 %v8053, %v8450
        %v8617 = vadd.f32 %v8054, %v8453
        %v8618 = vadd.f32 %v8055, %v8458
        %v8619 = vadd.f32 %v8056, %v8461
        %v8620 = vadd.f32 %v8057, %v8466
        %v8621 = vadd.f32 %v8058, %v8469
        %v8622 = vadd.f32 %v8059, %v8474
        %v8623 = vadd.f32 %v8060, %v8477
        %v8624 = vadd.f32 %v8061, %v8482
        %v8625 = vadd.f32 %v8062, %v8485
        %v8626 = vadd.f32 %v8063, %v8490
        %v8627 = vadd.f32 %v8064, %v8493
        %v8628 = vadd.f32 %v8065, %v8498
        %v8629 = vadd.f32 %v8066, %v8501
        %v8630 = vadd.f32 %v8067, %v8506
        %v8631 = vadd.f32 %v8068, %v8509
        %v8632 = vadd.f32 %v8069, %v8514
        %v8633 = vadd.f32 %v8070, %v8517
        %v8634 = vadd.f32 %v8071, %v8522
        %v8635 = vadd.f32 %v8072, %v8525
        %v8636 = vadd.f32 %v8073, %v8530
        %v8637 = vadd.f32 %v8074, %v8533
        %v8638 = vadd.f32 %v8075, %v8538
        %v8639 = vadd.f32 %v8076, %v8541
        %v8640 = vadd.f32 %v8077, %v8546
        %v8641 = vadd.f32 %v8078, %v8549
        %v8642 = vadd.f32 %v8079, %v8554
        %v8643 = vadd.f32 %v8080, %v8557
        %v8644 = vadd.f32 %v8081, %v8562
        %v8645 = vadd.f32 %v8082, %v8565
        %v8646 = vadd.f32 %v8083, %v8570
        %v8647 = vadd.f32 %v8084, %v8573
        %v8648 = vrot.slane %v5448, 2
        %v8649 = vrot.slane %v5449, 2
        %v8650 = vsel %vm1978, %v8648, %v8649
        %v8651 = vrot.slane %v5450, 2
        %v8652 = vsel %vm1978, %v8649, %v8651
        %v8653 = vrot.slane %v5451, 2
        %v8654 = vsel %vm1978, %v8651, %v8653
        %v8658 = vpack.c.bf16 %v6758, %v6756
        %v8659 = vpack.c.bf16 %v6763, %v6760
        %v8660 = vpack.c.bf16 %v6767, %v6765
        %v8661 = vpack.c.bf16 %v6772, %v6770
        %v8662 = vpack.c.bf16 %v6777, %v6774
        %v8663 = vpack.c.bf16 %v6781, %v6779
        %v8664 = vpack.c.bf16 %v6786, %v6784
        %v8665 = vpack.c.bf16 %v6791, %v6788
        %v8666 = vpack.c.bf16 %v6795, %v6793
        %v8667 = vpack.c.bf16 %v6800, %v6798
        %v8668 = vpack.c.bf16 %v6805, %v6802
        %v8669 = vpack.c.bf16 %v6809, %v6807
        %v8670 = vpack.c.bf16 %v6814, %v6812
        %v8671 = vpack.c.bf16 %v6819, %v6816
        %v8672 = vpack.c.bf16 %v6823, %v6821
        %v8673 = vpack.c.bf16 %v6828, %v6826
        %v8674 = vpack.c.bf16 %v6833, %v6830
        %v8675 = vpack.c.bf16 %v6837, %v6835
        %v8676 = vpack.c.bf16 %v6842, %v6840
        %v8677 = vpack.c.bf16 %v6847, %v6844
        %v8678 = vpack.c.bf16 %v6851, %v6849
        %v8679 = vpack.c.bf16 %v6856, %v6854
        %v8680 = vpack.c.bf16 %v6861, %v6858
        %v8681 = vpack.c.bf16 %v6865, %v6863
        %v8682 = vpack.c.bf16 %v6870, %v6868
        %v8683 = vpack.c.bf16 %v6875, %v6872
        %v8684 = vpack.c.bf16 %v6879, %v6877
        %v8685 = vpack.c.bf16 %v6884, %v6882
        %v8686 = vpack.c.bf16 %v6889, %v6886
        %v8687 = vpack.c.bf16 %v6893, %v6891
        %v8688 = vpack.c.bf16 %v6898, %v6896
        %v8689 = vpack.c.bf16 %v6903, %v6900
        %v8690 = vpack.c.bf16 %v6907, %v6905
        %v8691 = vpack.c.bf16 %v6912, %v6910
        %v8692 = vpack.c.bf16 %v8650, %v6914
        %v8693 = vpack.c.bf16 %v8654, %v8652
        %v8698 = vunpack.c.l.b16 %v415
        %v8699 = vunpack.c.l.b16 %v416
        %v8700 = vunpack.c.l.b16 %v417
        %v8701 = vunpack.c.l.b16 %v418
        %v8702 = vpack.c.b16 %v8699, %v8698
        %v8703 = vpack.c.b16 %v8701, %v8700
        %v8707 = vsel %vm5876, %v8658, 0
        %v8710 = vsel %vm5876, %v8659, 0
        %v8713 = vsel %vm5876, %v8660, 0
        %v8716 = vsel %vm5876, %v8661, 0
        %v8719 = vsel %vm5876, %v8662, 0
        %v8722 = vsel %vm5876, %v8663, 0
        %v8725 = vsel %vm5876, %v8664, 0
        %v8728 = vsel %vm5876, %v8665, 0
        %v8731 = vsel %vm5876, %v8666, 0
        %v8734 = vsel %vm5876, %v8667, 0
        %v8737 = vsel %vm5876, %v8668, 0
        %v8740 = vsel %vm5876, %v8669, 0
        %v8743 = vsel %vm5876, %v8670, 0
        %v8746 = vsel %vm5876, %v8671, 0
        %v8749 = vsel %vm5876, %v8672, 0
        %v8752 = vsel %vm5876, %v8673, 0
        %v8755 = vsel %vm5876, %v8674, 0
        %v8758 = vsel %vm5876, %v8675, 0
        %v8761 = vsel %vm5876, %v8676, 0
        %v8764 = vsel %vm5876, %v8677, 0
        %v8767 = vsel %vm5876, %v8678, 0
        %v8770 = vsel %vm5876, %v8679, 0
        %v8773 = vsel %vm5876, %v8680, 0
        %v8776 = vsel %vm5876, %v8681, 0
        %v8779 = vsel %vm5876, %v8682, 0
        %v8782 = vsel %vm5876, %v8683, 0
        %v8785 = vsel %vm5876, %v8684, 0
        %v8788 = vsel %vm5876, %v8685, 0
        %v8791 = vsel %vm5876, %v8686, 0
        %v8794 = vsel %vm5876, %v8687, 0
        %v8797 = vsel %vm5876, %v8688, 0
        %v8800 = vsel %vm5876, %v8689, 0
        %v8803 = vsel %vm5876, %v8690, 0
        %v8806 = vsel %vm5876, %v8691, 0
        %v8809 = vsel %vm5876, %v8692, 0
        %v8812 = vsel %vm5876, %v8693, 0
        %8814 = vmatprep.subr.bf16.mxu0 0
        %8815 = vmatpush1.bf16.msra.mxu0 %v8702
        %8816 = vmatprep.subr.bf16.mxu0 0
        %8817 = vmatpush1.bf16.msra.mxu0 %v8703
        %8818 = vmatprep.subr.bf16.mxu0 0
        %8819 = vmatpush1.bf16.msra.mxu0 0
        %8820 = vmatprep.subr.bf16.mxu0 0
        %8821 = vmatpush1.bf16.msra.mxu0 0
        %8822 = vmatprep.subr.bf16.mxu0 0
        %8823 = vmatpush1.bf16.msra.mxu0 0
        %8824 = vmatprep.subr.bf16.mxu0 0
        %8825 = vmatpush1.bf16.msra.mxu0 0
        %8826 = vmatprep.subr.bf16.mxu0 0
        %8827 = vmatpush1.bf16.msra.mxu0 0
        %8828 = vmatprep.subr.bf16.mxu0 0
        %8829 = vmatpush1.bf16.msra.mxu0 0
        %8830 = vmatprep.subr.bf16.mxu0 0
        %8831 = vmatpush1.bf16.msra.mxu0 0
        %8832 = vmatprep.subr.bf16.mxu0 0
        %8833 = vmatpush1.bf16.msra.mxu0 0
        %8834 = vmatprep.subr.bf16.mxu0 0
        %8835 = vmatpush1.bf16.msra.mxu0 0
        %8836 = vmatprep.subr.bf16.mxu0 0
        %8837 = vmatpush1.bf16.msra.mxu0 0
        %8838 = vmatprep.subr.bf16.mxu0 0
        %8839 = vmatpush1.bf16.msra.mxu0 0
        %8840 = vmatprep.subr.bf16.mxu0 0
        %8841 = vmatpush1.bf16.msra.mxu0 0
        %8842 = vmatprep.subr.bf16.mxu0 0
        %8843 = vmatpush1.bf16.msra.mxu0 0
        %8844 = vmatprep.subr.bf16.mxu0 0
        %8845 = vmatpush1.bf16.msra.mxu0 0
        %8846 = vmatprep.mubr.bf16.mxu0 0
        %8847 = vmatmul.mubr.bf16.gmra.mrb[0].mxu0 %v8707
        %v8848 = vpop.f32.mrb[0].mxu0
        %v8849 = vadd.f32 0.0, %v8848
        %v8850 = vpop.f32.mrb[0].mxu0
        %v8851 = vpop.f32.mrb[0].mxu0
        %v8852 = vadd.f32 0.0, %v8851
        %v8853 = vpop.f32.mrb[0].mxu0
        %8854 = vmatprep.mubr.bf16.mxu0 0
        %8855 = vmatmul.mubr.bf16.gmra.mrb[0].mxu0 %v8710
        %v8856 = vpop.f32.mrb[0].mxu0
        %v8857 = vadd.f32 0.0, %v8856
        %v8858 = vpop.f32.mrb[0].mxu0
        %v8859 = vpop.f32.mrb[0].mxu0
        %v8860 = vadd.f32 0.0, %v8859
        %v8861 = vpop.f32.mrb[0].mxu0
        %8862 = vmatprep.mubr.bf16.mxu0 0
        %8863 = vmatmul.mubr.bf16.gmra.mrb[0].mxu0 %v8713
        %v8864 = vpop.f32.mrb[0].mxu0
        %v8865 = vadd.f32 0.0, %v8864
        %v8866 = vpop.f32.mrb[0].mxu0
        %v8867 = vpop.f32.mrb[0].mxu0
        %v8868 = vadd.f32 0.0, %v8867
        %v8869 = vpop.f32.mrb[0].mxu0
        %8870 = vmatprep.mubr.bf16.mxu0 0
        %8871 = vmatmul.mubr.bf16.gmra.mrb[0].mxu0 %v8716
        %v8872 = vpop.f32.mrb[0].mxu0
        %v8873 = vadd.f32 0.0, %v8872
        %v8874 = vpop.f32.mrb[0].mxu0
        %v8875 = vpop.f32.mrb[0].mxu0
        %v8876 = vadd.f32 0.0, %v8875
        %v8877 = vpop.f32.mrb[0].mxu0
        %8878 = vmatprep.mubr.bf16.mxu0 0
        %8879 = vmatmul.mubr.bf16.gmra.mrb[0].mxu0 %v8719
        %v8880 = vpop.f32.mrb[0].mxu0
        %v8881 = vadd.f32 0.0, %v8880
        %v8882 = vpop.f32.mrb[0].mxu0
        %v8883 = vpop.f32.mrb[0].mxu0
        %v8884 = vadd.f32 0.0, %v8883
        %v8885 = vpop.f32.mrb[0].mxu0
        %8886 = vmatprep.mubr.bf16.mxu0 0
        %8887 = vmatmul.mubr.bf16.gmra.mrb[0].mxu0 %v8722
        %v8888 = vpop.f32.mrb[0].mxu0
        %v8889 = vadd.f32 0.0, %v8888
        %v8890 = vpop.f32.mrb[0].mxu0
        %v8891 = vpop.f32.mrb[0].mxu0
        %v8892 = vadd.f32 0.0, %v8891
        %v8893 = vpop.f32.mrb[0].mxu0
        %8894 = vmatprep.mubr.bf16.mxu0 0
        %8895 = vmatmul.mubr.bf16.gmra.mrb[0].mxu0 %v8725
        %v8896 = vpop.f32.mrb[0].mxu0
        %v8897 = vadd.f32 0.0, %v8896
        %v8898 = vpop.f32.mrb[0].mxu0
        %v8899 = vpop.f32.mrb[0].mxu0
        %v8900 = vadd.f32 0.0, %v8899
        %v8901 = vpop.f32.mrb[0].mxu0
        %8902 = vmatprep.mubr.bf16.mxu0 0
        %8903 = vmatmul.mubr.bf16.gmra.mrb[0].mxu0 %v8728
        %v8904 = vpop.f32.mrb[0].mxu0
        %v8905 = vadd.f32 0.0, %v8904
        %v8906 = vpop.f32.mrb[0].mxu0
        %v8907 = vpop.f32.mrb[0].mxu0
        %v8908 = vadd.f32 0.0, %v8907
        %v8909 = vpop.f32.mrb[0].mxu0
        %8910 = vmatprep.mubr.bf16.mxu0 0
        %8911 = vmatmul.mubr.bf16.gmra.mrb[0].mxu0 %v8731
        %v8912 = vpop.f32.mrb[0].mxu0
        %v8913 = vadd.f32 0.0, %v8912
        %v8914 = vpop.f32.mrb[0].mxu0
        %v8915 = vpop.f32.mrb[0].mxu0
        %v8916 = vadd.f32 0.0, %v8915
        %v8917 = vpop.f32.mrb[0].mxu0
        %8918 = vmatprep.mubr.bf16.mxu0 0
        %8919 = vmatmul.mubr.bf16.gmra.mrb[0].mxu0 %v8734
        %v8920 = vpop.f32.mrb[0].mxu0
        %v8921 = vadd.f32 0.0, %v8920
        %v8922 = vpop.f32.mrb[0].mxu0
        %v8923 = vpop.f32.mrb[0].mxu0
        %v8924 = vadd.f32 0.0, %v8923
        %v8925 = vpop.f32.mrb[0].mxu0
        %8926 = vmatprep.mubr.bf16.mxu0 0
        %8927 = vmatmul.mubr.bf16.gmra.mrb[0].mxu0 %v8737
        %v8928 = vpop.f32.mrb[0].mxu0
        %v8929 = vadd.f32 0.0, %v8928
        %v8930 = vpop.f32.mrb[0].mxu0
        %v8931 = vpop.f32.mrb[0].mxu0
        %v8932 = vadd.f32 0.0, %v8931
        %v8933 = vpop.f32.mrb[0].mxu0
        %8934 = vmatprep.mubr.bf16.mxu0 0
        %8935 = vmatmul.mubr.bf16.gmra.mrb[0].mxu0 %v8740
        %v8936 = vpop.f32.mrb[0].mxu0
        %v8937 = vadd.f32 0.0, %v8936
        %v8938 = vpop.f32.mrb[0].mxu0
        %v8939 = vpop.f32.mrb[0].mxu0
        %v8940 = vadd.f32 0.0, %v8939
        %v8941 = vpop.f32.mrb[0].mxu0
        %8942 = vmatprep.mubr.bf16.mxu0 0
        %8943 = vmatmul.mubr.bf16.gmra.mrb[0].mxu0 %v8743
        %v8944 = vpop.f32.mrb[0].mxu0
        %v8945 = vadd.f32 0.0, %v8944
        %v8946 = vpop.f32.mrb[0].mxu0
        %v8947 = vpop.f32.mrb[0].mxu0
        %v8948 = vadd.f32 0.0, %v8947
        %v8949 = vpop.f32.mrb[0].mxu0
        %8950 = vmatprep.mubr.bf16.mxu0 0
        %8951 = vmatmul.mubr.bf16.gmra.mrb[0].mxu0 %v8746
        %v8952 = vpop.f32.mrb[0].mxu0
        %v8953 = vadd.f32 0.0, %v8952
        %v8954 = vpop.f32.mrb[0].mxu0
        %v8955 = vpop.f32.mrb[0].mxu0
        %v8956 = vadd.f32 0.0, %v8955
        %v8957 = vpop.f32.mrb[0].mxu0
        %8958 = vmatprep.mubr.bf16.mxu0 0
        %8959 = vmatmul.mubr.bf16.gmra.mrb[0].mxu0 %v8749
        %v8960 = vpop.f32.mrb[0].mxu0
        %v8961 = vadd.f32 0.0, %v8960
        %v8962 = vpop.f32.mrb[0].mxu0
        %v8963 = vpop.f32.mrb[0].mxu0
        %v8964 = vadd.f32 0.0, %v8963
        %v8965 = vpop.f32.mrb[0].mxu0
        %8966 = vmatprep.mubr.bf16.mxu0 0
        %8967 = vmatmul.mubr.bf16.gmra.mrb[0].mxu0 %v8752
        %v8968 = vpop.f32.mrb[0].mxu0
        %v8969 = vadd.f32 0.0, %v8968
        %v8970 = vpop.f32.mrb[0].mxu0
        %v8971 = vpop.f32.mrb[0].mxu0
        %v8972 = vadd.f32 0.0, %v8971
        %v8973 = vpop.f32.mrb[0].mxu0
        %8974 = vmatprep.mubr.bf16.mxu0 0
        %8975 = vmatmul.mubr.bf16.gmra.mrb[0].mxu0 %v8755
        %v8976 = vpop.f32.mrb[0].mxu0
        %v8977 = vadd.f32 0.0, %v8976
        %v8978 = vpop.f32.mrb[0].mxu0
        %v8979 = vpop.f32.mrb[0].mxu0
        %v8980 = vadd.f32 0.0, %v8979
        %v8981 = vpop.f32.mrb[0].mxu0
        %8982 = vmatprep.mubr.bf16.mxu0 0
        %8983 = vmatmul.mubr.bf16.gmra.mrb[0].mxu0 %v8758
        %v8984 = vpop.f32.mrb[0].mxu0
        %v8985 = vadd.f32 0.0, %v8984
        %v8986 = vpop.f32.mrb[0].mxu0
        %v8987 = vpop.f32.mrb[0].mxu0
        %v8988 = vadd.f32 0.0, %v8987
        %v8989 = vpop.f32.mrb[0].mxu0
        %8990 = vmatprep.mubr.bf16.mxu0 0
        %8991 = vmatmul.mubr.bf16.gmra.mrb[0].mxu0 %v8761
        %v8992 = vpop.f32.mrb[0].mxu0
        %v8993 = vadd.f32 0.0, %v8992
        %v8994 = vpop.f32.mrb[0].mxu0
        %v8995 = vpop.f32.mrb[0].mxu0
        %v8996 = vadd.f32 0.0, %v8995
        %v8997 = vpop.f32.mrb[0].mxu0
        %8998 = vmatprep.mubr.bf16.mxu0 0
        %8999 = vmatmul.mubr.bf16.gmra.mrb[0].mxu0 %v8764
        %v9000 = vpop.f32.mrb[0].mxu0
        %v9001 = vadd.f32 0.0, %v9000
        %v9002 = vpop.f32.mrb[0].mxu0
        %v9003 = vpop.f32.mrb[0].mxu0
        %v9004 = vadd.f32 0.0, %v9003
        %v9005 = vpop.f32.mrb[0].mxu0
        %9006 = vmatprep.mubr.bf16.mxu0 0
        %9007 = vmatmul.mubr.bf16.gmra.mrb[0].mxu0 %v8767
        %v9008 = vpop.f32.mrb[0].mxu0
        %v9009 = vadd.f32 0.0, %v9008
        %v9010 = vpop.f32.mrb[0].mxu0
        %v9011 = vpop.f32.mrb[0].mxu0
        %v9012 = vadd.f32 0.0, %v9011
        %v9013 = vpop.f32.mrb[0].mxu0
        %9014 = vmatprep.mubr.bf16.mxu0 0
        %9015 = vmatmul.mubr.bf16.gmra.mrb[0].mxu0 %v8770
        %v9016 = vpop.f32.mrb[0].mxu0
        %v9017 = vadd.f32 0.0, %v9016
        %v9018 = vpop.f32.mrb[0].mxu0
        %v9019 = vpop.f32.mrb[0].mxu0
        %v9020 = vadd.f32 0.0, %v9019
        %v9021 = vpop.f32.mrb[0].mxu0
        %9022 = vmatprep.mubr.bf16.mxu0 0
        %9023 = vmatmul.mubr.bf16.gmra.mrb[0].mxu0 %v8773
        %v9024 = vpop.f32.mrb[0].mxu0
        %v9025 = vadd.f32 0.0, %v9024
        %v9026 = vpop.f32.mrb[0].mxu0
        %v9027 = vpop.f32.mrb[0].mxu0
        %v9028 = vadd.f32 0.0, %v9027
        %v9029 = vpop.f32.mrb[0].mxu0
        %9030 = vmatprep.mubr.bf16.mxu0 0
        %9031 = vmatmul.mubr.bf16.gmra.mrb[0].mxu0 %v8776
        %v9032 = vpop.f32.mrb[0].mxu0
        %v9033 = vadd.f32 0.0, %v9032
        %v9034 = vpop.f32.mrb[0].mxu0
        %v9035 = vpop.f32.mrb[0].mxu0
        %v9036 = vadd.f32 0.0, %v9035
        %v9037 = vpop.f32.mrb[0].mxu0
        %9038 = vmatprep.mubr.bf16.mxu0 0
        %9039 = vmatmul.mubr.bf16.gmra.mrb[0].mxu0 %v8779
        %v9040 = vpop.f32.mrb[0].mxu0
        %v9041 = vadd.f32 0.0, %v9040
        %v9042 = vpop.f32.mrb[0].mxu0
        %v9043 = vpop.f32.mrb[0].mxu0
        %v9044 = vadd.f32 0.0, %v9043
        %v9045 = vpop.f32.mrb[0].mxu0
        %9046 = vmatprep.mubr.bf16.mxu0 0
        %9047 = vmatmul.mubr.bf16.gmra.mrb[0].mxu0 %v8782
        %v9048 = vpop.f32.mrb[0].mxu0
        %v9049 = vadd.f32 0.0, %v9048
        %v9050 = vpop.f32.mrb[0].mxu0
        %v9051 = vpop.f32.mrb[0].mxu0
        %v9052 = vadd.f32 0.0, %v9051
        %v9053 = vpop.f32.mrb[0].mxu0
        %9054 = vmatprep.mubr.bf16.mxu0 0
        %9055 = vmatmul.mubr.bf16.gmra.mrb[0].mxu0 %v8785
        %v9056 = vpop.f32.mrb[0].mxu0
        %v9057 = vadd.f32 0.0, %v9056
        %v9058 = vpop.f32.mrb[0].mxu0
        %v9059 = vpop.f32.mrb[0].mxu0
        %v9060 = vadd.f32 0.0, %v9059
        %v9061 = vpop.f32.mrb[0].mxu0
        %9062 = vmatprep.mubr.bf16.mxu0 0
        %9063 = vmatmul.mubr.bf16.gmra.mrb[0].mxu0 %v8788
        %v9064 = vpop.f32.mrb[0].mxu0
        %v9065 = vadd.f32 0.0, %v9064
        %v9066 = vpop.f32.mrb[0].mxu0
        %v9067 = vpop.f32.mrb[0].mxu0
        %v9068 = vadd.f32 0.0, %v9067
        %v9069 = vpop.f32.mrb[0].mxu0
        %9070 = vmatprep.mubr.bf16.mxu0 0
        %9071 = vmatmul.mubr.bf16.gmra.mrb[0].mxu0 %v8791
        %v9072 = vpop.f32.mrb[0].mxu0
        %v9073 = vadd.f32 0.0, %v9072
        %v9074 = vpop.f32.mrb[0].mxu0
        %v9075 = vpop.f32.mrb[0].mxu0
        %v9076 = vadd.f32 0.0, %v9075
        %v9077 = vpop.f32.mrb[0].mxu0
        %9078 = vmatprep.mubr.bf16.mxu0 0
        %9079 = vmatmul.mubr.bf16.gmra.mrb[0].mxu0 %v8794
        %v9080 = vpop.f32.mrb[0].mxu0
        %v9081 = vadd.f32 0.0, %v9080
        %v9082 = vpop.f32.mrb[0].mxu0
        %v9083 = vpop.f32.mrb[0].mxu0
        %v9084 = vadd.f32 0.0, %v9083
        %v9085 = vpop.f32.mrb[0].mxu0
        %9086 = vmatprep.mubr.bf16.mxu0 0
        %9087 = vmatmul.mubr.bf16.gmra.mrb[0].mxu0 %v8797
        %v9088 = vpop.f32.mrb[0].mxu0
        %v9089 = vadd.f32 0.0, %v9088
        %v9090 = vpop.f32.mrb[0].mxu0
        %v9091 = vpop.f32.mrb[0].mxu0
        %v9092 = vadd.f32 0.0, %v9091
        %v9093 = vpop.f32.mrb[0].mxu0
        %9094 = vmatprep.mubr.bf16.mxu0 0
        %9095 = vmatmul.mubr.bf16.gmra.mrb[0].mxu0 %v8800
        %v9096 = vpop.f32.mrb[0].mxu0
        %v9097 = vadd.f32 0.0, %v9096
        %v9098 = vpop.f32.mrb[0].mxu0
        %v9099 = vpop.f32.mrb[0].mxu0
        %v9100 = vadd.f32 0.0, %v9099
        %v9101 = vpop.f32.mrb[0].mxu0
        %9102 = vmatprep.mubr.bf16.mxu0 0
        %9103 = vmatmul.mubr.bf16.gmra.mrb[0].mxu0 %v8803
        %v9104 = vpop.f32.mrb[0].mxu0
        %v9105 = vadd.f32 0.0, %v9104
        %v9106 = vpop.f32.mrb[0].mxu0
        %v9107 = vpop.f32.mrb[0].mxu0
        %v9108 = vadd.f32 0.0, %v9107
        %v9109 = vpop.f32.mrb[0].mxu0
        %9110 = vmatprep.mubr.bf16.mxu0 0
        %9111 = vmatmul.mubr.bf16.gmra.mrb[0].mxu0 %v8806
        %v9112 = vpop.f32.mrb[0].mxu0
        %v9113 = vadd.f32 0.0, %v9112
        %v9114 = vpop.f32.mrb[0].mxu0
        %v9115 = vpop.f32.mrb[0].mxu0
        %v9116 = vadd.f32 0.0, %v9115
        %v9117 = vpop.f32.mrb[0].mxu0
        %9118 = vmatprep.mubr.bf16.mxu0 0
        %9119 = vmatmul.mubr.bf16.gmra.mrb[0].mxu0 %v8809
        %v9120 = vpop.f32.mrb[0].mxu0
        %v9121 = vadd.f32 0.0, %v9120
        %v9122 = vpop.f32.mrb[0].mxu0
        %v9123 = vpop.f32.mrb[0].mxu0
        %v9124 = vadd.f32 0.0, %v9123
        %v9125 = vpop.f32.mrb[0].mxu0
        %9126 = vmatprep.mubr.bf16.mxu0 0
        %9127 = vmatmul.mubr.bf16.gmra.mrb[0].mxu0 %v8812
        %v9128 = vpop.f32.mrb[0].mxu0
        %v9129 = vadd.f32 0.0, %v9128
        %v9130 = vpop.f32.mrb[0].mxu0
        %v9131 = vpop.f32.mrb[0].mxu0
        %v9132 = vadd.f32 0.0, %v9131
        %v9133 = vpop.f32.mrb[0].mxu0
        %9134 = vdwg.mxu0
        %v9135 = vadd.f32 %v8576, %v8849
        %v9136 = vadd.f32 %v8577, %v8852
        %v9137 = vadd.f32 %v8578, %v8857
        %v9138 = vadd.f32 %v8579, %v8860
        %v9139 = vadd.f32 %v8580, %v8865
        %v9140 = vadd.f32 %v8581, %v8868
        %v9141 = vadd.f32 %v8582, %v8873
        %v9142 = vadd.f32 %v8583, %v8876
        %v9143 = vadd.f32 %v8584, %v8881
        %v9144 = vadd.f32 %v8585, %v8884
        %v9145 = vadd.f32 %v8586, %v8889
        %v9146 = vadd.f32 %v8587, %v8892
        %v9147 = vadd.f32 %v8588, %v8897
        %v9148 = vadd.f32 %v8589, %v8900
        %v9149 = vadd.f32 %v8590, %v8905
        %v9150 = vadd.f32 %v8591, %v8908
        %v9151 = vadd.f32 %v8592, %v8913
        %v9152 = vadd.f32 %v8593, %v8916
        %v9153 = vadd.f32 %v8594, %v8921
        %v9154 = vadd.f32 %v8595, %v8924
        %v9155 = vadd.f32 %v8596, %v8929
        %v9156 = vadd.f32 %v8597, %v8932
        %v9157 = vadd.f32 %v8598, %v8937
        %v9158 = vadd.f32 %v8599, %v8940
        %v9159 = vadd.f32 %v8600, %v8945
        %v9160 = vadd.f32 %v8601, %v8948
        %v9161 = vadd.f32 %v8602, %v8953
        %v9162 = vadd.f32 %v8603, %v8956
        %v9163 = vadd.f32 %v8604, %v8961
        %v9164 = vadd.f32 %v8605, %v8964
        %v9165 = vadd.f32 %v8606, %v8969
        %v9166 = vadd.f32 %v8607, %v8972
        %v9167 = vadd.f32 %v8608, %v8977
        %v9168 = vadd.f32 %v8609, %v8980
        %v9169 = vadd.f32 %v8610, %v8985
        %v9170 = vadd.f32 %v8611, %v8988
        %v9171 = vadd.f32 %v8612, %v8993
        %v9172 = vadd.f32 %v8613, %v8996
        %v9173 = vadd.f32 %v8614, %v9001
        %v9174 = vadd.f32 %v8615, %v9004
        %v9175 = vadd.f32 %v8616, %v9009
        %v9176 = vadd.f32 %v8617, %v9012
        %v9177 = vadd.f32 %v8618, %v9017
        %v9178 = vadd.f32 %v8619, %v9020
        %v9179 = vadd.f32 %v8620, %v9025
        %v9180 = vadd.f32 %v8621, %v9028
        %v9181 = vadd.f32 %v8622, %v9033
        %v9182 = vadd.f32 %v8623, %v9036
        %v9183 = vadd.f32 %v8624, %v9041
        %v9184 = vadd.f32 %v8625, %v9044
        %v9185 = vadd.f32 %v8626, %v9049
        %v9186 = vadd.f32 %v8627, %v9052
        %v9187 = vadd.f32 %v8628, %v9057
        %v9188 = vadd.f32 %v8629, %v9060
        %v9189 = vadd.f32 %v8630, %v9065
        %v9190 = vadd.f32 %v8631, %v9068
        %v9191 = vadd.f32 %v8632, %v9073
        %v9192 = vadd.f32 %v8633, %v9076
        %v9193 = vadd.f32 %v8634, %v9081
        %v9194 = vadd.f32 %v8635, %v9084
        %v9195 = vadd.f32 %v8636, %v9089
        %v9196 = vadd.f32 %v8637, %v9092
        %v9197 = vadd.f32 %v8638, %v9097
        %v9198 = vadd.f32 %v8639, %v9100
        %v9199 = vadd.f32 %v8640, %v9105
        %v9200 = vadd.f32 %v8641, %v9108
        %v9201 = vadd.f32 %v8642, %v9113
        %v9202 = vadd.f32 %v8643, %v9116
        %v9203 = vadd.f32 %v8644, %v9121
        %v9204 = vadd.f32 %v8645, %v9124
        %v9205 = vadd.f32 %v8646, %v9129
        %v9206 = vadd.f32 %v8647, %v9132
        %v9207 = vpack.c.bf16 %v5449, %v5448
        %v9208 = vpack.c.bf16 %v5452, %v5450
        %v9209 = vpack.c.bf16 %v5454, %v5453
        %v9214 = vunpack.c.l.b16 %v419
        %v9215 = vunpack.c.l.b16 %v420
        %v9216 = vunpack.c.l.b16 %v421
        %v9217 = vunpack.c.l.b16 %v422
        %v9218 = vpack.c.b16 %v9215, %v9214
        %v9219 = vpack.c.b16 %v9217, %v9216
        %v9223 = vsel %vm5876, %v9207, 0
        %v9226 = vsel %vm5876, %v9208, 0
        %v9229 = vsel %vm5876, %v9209, 0
        %9231 = vmatprep.subr.bf16.mxu0 0
        %9232 = vmatpush1.bf16.msra.mxu0 %v9218
        %9233 = vmatprep.subr.bf16.mxu0 0
        %9234 = vmatpush1.bf16.msra.mxu0 %v9219
        %9235 = vmatprep.subr.bf16.mxu0 0
        %9236 = vmatpush1.bf16.msra.mxu0 0
        %9237 = vmatprep.subr.bf16.mxu0 0
        %9238 = vmatpush1.bf16.msra.mxu0 0
        %9239 = vmatprep.subr.bf16.mxu0 0
        %9240 = vmatpush1.bf16.msra.mxu0 0
        %9241 = vmatprep.subr.bf16.mxu0 0
        %9242 = vmatpush1.bf16.msra.mxu0 0
        %9243 = vmatprep.subr.bf16.mxu0 0
        %9244 = vmatpush1.bf16.msra.mxu0 0
        %9245 = vmatprep.subr.bf16.mxu0 0
        %9246 = vmatpush1.bf16.msra.mxu0 0
        %9247 = vmatprep.subr.bf16.mxu0 0
        %9248 = vmatpush1.bf16.msra.mxu0 0
        %9249 = vmatprep.subr.bf16.mxu0 0
        %9250 = vmatpush1.bf16.msra.mxu0 0
        %9251 = vmatprep.subr.bf16.mxu0 0
        %9252 = vmatpush1.bf16.msra.mxu0 0
        %9253 = vmatprep.subr.bf16.mxu0 0
        %9254 = vmatpush1.bf16.msra.mxu0 0
        %9255 = vmatprep.subr.bf16.mxu0 0
        %9256 = vmatpush1.bf16.msra.mxu0 0
        %9257 = vmatprep.subr.bf16.mxu0 0
        %9258 = vmatpush1.bf16.msra.mxu0 0
        %9259 = vmatprep.subr.bf16.mxu0 0
        %9260 = vmatpush1.bf16.msra.mxu0 0
        %9261 = vmatprep.subr.bf16.mxu0 0
        %9262 = vmatpush1.bf16.msra.mxu0 0
        %9263 = vmatprep.mubr.bf16.mxu0 0
        %9264 = vmatmul.mubr.bf16.gmra.mrb[0].mxu0 %v6328
        %v9265 = vpop.f32.mrb[0].mxu0
        %v9266 = vadd.f32 0.0, %v9265
        %v9267 = vpop.f32.mrb[0].mxu0
        %v9268 = vpop.f32.mrb[0].mxu0
        %v9269 = vadd.f32 0.0, %v9268
        %v9270 = vpop.f32.mrb[0].mxu0
        %9271 = vmatprep.mubr.bf16.mxu0 0
        %9272 = vmatmul.mubr.bf16.gmra.mrb[0].mxu0 %v6331
        %v9273 = vpop.f32.mrb[0].mxu0
        %v9274 = vadd.f32 0.0, %v9273
        %v9275 = vpop.f32.mrb[0].mxu0
        %v9276 = vpop.f32.mrb[0].mxu0
        %v9277 = vadd.f32 0.0, %v9276
        %v9278 = vpop.f32.mrb[0].mxu0
        %9279 = vmatprep.mubr.bf16.mxu0 0
        %9280 = vmatmul.mubr.bf16.gmra.mrb[0].mxu0 %v6334
        %v9281 = vpop.f32.mrb[0].mxu0
        %v9282 = vadd.f32 0.0, %v9281
        %v9283 = vpop.f32.mrb[0].mxu0
        %v9284 = vpop.f32.mrb[0].mxu0
        %v9285 = vadd.f32 0.0, %v9284
        %v9286 = vpop.f32.mrb[0].mxu0
        %9287 = vmatprep.mubr.bf16.mxu0 0
        %9288 = vmatmul.mubr.bf16.gmra.mrb[0].mxu0 %v6337
        %v9289 = vpop.f32.mrb[0].mxu0
        %v9290 = vadd.f32 0.0, %v9289
        %v9291 = vpop.f32.mrb[0].mxu0
        %v9292 = vpop.f32.mrb[0].mxu0
        %v9293 = vadd.f32 0.0, %v9292
        %v9294 = vpop.f32.mrb[0].mxu0
        %9295 = vmatprep.mubr.bf16.mxu0 0
        %9296 = vmatmul.mubr.bf16.gmra.mrb[0].mxu0 %v6340
        %v9297 = vpop.f32.mrb[0].mxu0
        %v9298 = vadd.f32 0.0, %v9297
        %v9299 = vpop.f32.mrb[0].mxu0
        %v9300 = vpop.f32.mrb[0].mxu0
        %v9301 = vadd.f32 0.0, %v9300
        %v9302 = vpop.f32.mrb[0].mxu0
        %9303 = vmatprep.mubr.bf16.mxu0 0
        %9304 = vmatmul.mubr.bf16.gmra.mrb[0].mxu0 %v6343
        %v9305 = vpop.f32.mrb[0].mxu0
        %v9306 = vadd.f32 0.0, %v9305
        %v9307 = vpop.f32.mrb[0].mxu0
        %v9308 = vpop.f32.mrb[0].mxu0
        %v9309 = vadd.f32 0.0, %v9308
        %v9310 = vpop.f32.mrb[0].mxu0
        %9311 = vmatprep.mubr.bf16.mxu0 0
        %9312 = vmatmul.mubr.bf16.gmra.mrb[0].mxu0 %v6346
        %v9313 = vpop.f32.mrb[0].mxu0
        %v9314 = vadd.f32 0.0, %v9313
        %v9315 = vpop.f32.mrb[0].mxu0
        %v9316 = vpop.f32.mrb[0].mxu0
        %v9317 = vadd.f32 0.0, %v9316
        %v9318 = vpop.f32.mrb[0].mxu0
        %9319 = vmatprep.mubr.bf16.mxu0 0
        %9320 = vmatmul.mubr.bf16.gmra.mrb[0].mxu0 %v6349
        %v9321 = vpop.f32.mrb[0].mxu0
        %v9322 = vadd.f32 0.0, %v9321
        %v9323 = vpop.f32.mrb[0].mxu0
        %v9324 = vpop.f32.mrb[0].mxu0
        %v9325 = vadd.f32 0.0, %v9324
        %v9326 = vpop.f32.mrb[0].mxu0
        %9327 = vmatprep.mubr.bf16.mxu0 0
        %9328 = vmatmul.mubr.bf16.gmra.mrb[0].mxu0 %v6352
        %v9329 = vpop.f32.mrb[0].mxu0
        %v9330 = vadd.f32 0.0, %v9329
        %v9331 = vpop.f32.mrb[0].mxu0
        %v9332 = vpop.f32.mrb[0].mxu0
        %v9333 = vadd.f32 0.0, %v9332
        %v9334 = vpop.f32.mrb[0].mxu0
        %9335 = vmatprep.mubr.bf16.mxu0 0
        %9336 = vmatmul.mubr.bf16.gmra.mrb[0].mxu0 %v6355
        %v9337 = vpop.f32.mrb[0].mxu0
        %v9338 = vadd.f32 0.0, %v9337
        %v9339 = vpop.f32.mrb[0].mxu0
        %v9340 = vpop.f32.mrb[0].mxu0
        %v9341 = vadd.f32 0.0, %v9340
        %v9342 = vpop.f32.mrb[0].mxu0
        %9343 = vmatprep.mubr.bf16.mxu0 0
        %9344 = vmatmul.mubr.bf16.gmra.mrb[0].mxu0 %v6358
        %v9345 = vpop.f32.mrb[0].mxu0
        %v9346 = vadd.f32 0.0, %v9345
        %v9347 = vpop.f32.mrb[0].mxu0
        %v9348 = vpop.f32.mrb[0].mxu0
        %v9349 = vadd.f32 0.0, %v9348
        %v9350 = vpop.f32.mrb[0].mxu0
        %9351 = vmatprep.mubr.bf16.mxu0 0
        %9352 = vmatmul.mubr.bf16.gmra.mrb[0].mxu0 %v6361
        %v9353 = vpop.f32.mrb[0].mxu0
        %v9354 = vadd.f32 0.0, %v9353
        %v9355 = vpop.f32.mrb[0].mxu0
        %v9356 = vpop.f32.mrb[0].mxu0
        %v9357 = vadd.f32 0.0, %v9356
        %v9358 = vpop.f32.mrb[0].mxu0
        %9359 = vmatprep.mubr.bf16.mxu0 0
        %9360 = vmatmul.mubr.bf16.gmra.mrb[0].mxu0 %v6364
        %v9361 = vpop.f32.mrb[0].mxu0
        %v9362 = vadd.f32 0.0, %v9361
        %v9363 = vpop.f32.mrb[0].mxu0
        %v9364 = vpop.f32.mrb[0].mxu0
        %v9365 = vadd.f32 0.0, %v9364
        %v9366 = vpop.f32.mrb[0].mxu0
        %9367 = vmatprep.mubr.bf16.mxu0 0
        %9368 = vmatmul.mubr.bf16.gmra.mrb[0].mxu0 %v6367
        %v9369 = vpop.f32.mrb[0].mxu0
        %v9370 = vadd.f32 0.0, %v9369
        %v9371 = vpop.f32.mrb[0].mxu0
        %v9372 = vpop.f32.mrb[0].mxu0
        %v9373 = vadd.f32 0.0, %v9372
        %v9374 = vpop.f32.mrb[0].mxu0
        %9375 = vmatprep.mubr.bf16.mxu0 0
        %9376 = vmatmul.mubr.bf16.gmra.mrb[0].mxu0 %v6370
        %v9377 = vpop.f32.mrb[0].mxu0
        %v9378 = vadd.f32 0.0, %v9377
        %v9379 = vpop.f32.mrb[0].mxu0
        %v9380 = vpop.f32.mrb[0].mxu0
        %v9381 = vadd.f32 0.0, %v9380
        %v9382 = vpop.f32.mrb[0].mxu0
        %9383 = vmatprep.mubr.bf16.mxu0 0
        %9384 = vmatmul.mubr.bf16.gmra.mrb[0].mxu0 %v6373
        %v9385 = vpop.f32.mrb[0].mxu0
        %v9386 = vadd.f32 0.0, %v9385
        %v9387 = vpop.f32.mrb[0].mxu0
        %v9388 = vpop.f32.mrb[0].mxu0
        %v9389 = vadd.f32 0.0, %v9388
        %v9390 = vpop.f32.mrb[0].mxu0
        %9391 = vmatprep.mubr.bf16.mxu0 0
        %9392 = vmatmul.mubr.bf16.gmra.mrb[0].mxu0 %v6376
        %v9393 = vpop.f32.mrb[0].mxu0
        %v9394 = vadd.f32 0.0, %v9393
        %v9395 = vpop.f32.mrb[0].mxu0
        %v9396 = vpop.f32.mrb[0].mxu0
        %v9397 = vadd.f32 0.0, %v9396
        %v9398 = vpop.f32.mrb[0].mxu0
        %9399 = vmatprep.mubr.bf16.mxu0 0
        %9400 = vmatmul.mubr.bf16.gmra.mrb[0].mxu0 %v6379
        %v9401 = vpop.f32.mrb[0].mxu0
        %v9402 = vadd.f32 0.0, %v9401
        %v9403 = vpop.f32.mrb[0].mxu0
        %v9404 = vpop.f32.mrb[0].mxu0
        %v9405 = vadd.f32 0.0, %v9404
        %v9406 = vpop.f32.mrb[0].mxu0
        %9407 = vmatprep.mubr.bf16.mxu0 0
        %9408 = vmatmul.mubr.bf16.gmra.mrb[0].mxu0 %v6382
        %v9409 = vpop.f32.mrb[0].mxu0
        %v9410 = vadd.f32 0.0, %v9409
        %v9411 = vpop.f32.mrb[0].mxu0
        %v9412 = vpop.f32.mrb[0].mxu0
        %v9413 = vadd.f32 0.0, %v9412
        %v9414 = vpop.f32.mrb[0].mxu0
        %9415 = vmatprep.mubr.bf16.mxu0 0
        %9416 = vmatmul.mubr.bf16.gmra.mrb[0].mxu0 %v6385
        %v9417 = vpop.f32.mrb[0].mxu0
        %v9418 = vadd.f32 0.0, %v9417
        %v9419 = vpop.f32.mrb[0].mxu0
        %v9420 = vpop.f32.mrb[0].mxu0
        %v9421 = vadd.f32 0.0, %v9420
        %v9422 = vpop.f32.mrb[0].mxu0
        %9423 = vmatprep.mubr.bf16.mxu0 0
        %9424 = vmatmul.mubr.bf16.gmra.mrb[0].mxu0 %v6388
        %v9425 = vpop.f32.mrb[0].mxu0
        %v9426 = vadd.f32 0.0, %v9425
        %v9427 = vpop.f32.mrb[0].mxu0
        %v9428 = vpop.f32.mrb[0].mxu0
        %v9429 = vadd.f32 0.0, %v9428
        %v9430 = vpop.f32.mrb[0].mxu0
        %9431 = vmatprep.mubr.bf16.mxu0 0
        %9432 = vmatmul.mubr.bf16.gmra.mrb[0].mxu0 %v6391
        %v9433 = vpop.f32.mrb[0].mxu0
        %v9434 = vadd.f32 0.0, %v9433
        %v9435 = vpop.f32.mrb[0].mxu0
        %v9436 = vpop.f32.mrb[0].mxu0
        %v9437 = vadd.f32 0.0, %v9436
        %v9438 = vpop.f32.mrb[0].mxu0
        %9439 = vmatprep.mubr.bf16.mxu0 0
        %9440 = vmatmul.mubr.bf16.gmra.mrb[0].mxu0 %v6394
        %v9441 = vpop.f32.mrb[0].mxu0
        %v9442 = vadd.f32 0.0, %v9441
        %v9443 = vpop.f32.mrb[0].mxu0
        %v9444 = vpop.f32.mrb[0].mxu0
        %v9445 = vadd.f32 0.0, %v9444
        %v9446 = vpop.f32.mrb[0].mxu0
        %9447 = vmatprep.mubr.bf16.mxu0 0
        %9448 = vmatmul.mubr.bf16.gmra.mrb[0].mxu0 %v6397
        %v9449 = vpop.f32.mrb[0].mxu0
        %v9450 = vadd.f32 0.0, %v9449
        %v9451 = vpop.f32.mrb[0].mxu0
        %v9452 = vpop.f32.mrb[0].mxu0
        %v9453 = vadd.f32 0.0, %v9452
        %v9454 = vpop.f32.mrb[0].mxu0
        %9455 = vmatprep.mubr.bf16.mxu0 0
        %9456 = vmatmul.mubr.bf16.gmra.mrb[0].mxu0 %v6400
        %v9457 = vpop.f32.mrb[0].mxu0
        %v9458 = vadd.f32 0.0, %v9457
        %v9459 = vpop.f32.mrb[0].mxu0
        %v9460 = vpop.f32.mrb[0].mxu0
        %v9461 = vadd.f32 0.0, %v9460
        %v9462 = vpop.f32.mrb[0].mxu0
        %9463 = vmatprep.mubr.bf16.mxu0 0
        %9464 = vmatmul.mubr.bf16.gmra.mrb[0].mxu0 %v6403
        %v9465 = vpop.f32.mrb[0].mxu0
        %v9466 = vadd.f32 0.0, %v9465
        %v9467 = vpop.f32.mrb[0].mxu0
        %v9468 = vpop.f32.mrb[0].mxu0
        %v9469 = vadd.f32 0.0, %v9468
        %v9470 = vpop.f32.mrb[0].mxu0
        %9471 = vmatprep.mubr.bf16.mxu0 0
        %9472 = vmatmul.mubr.bf16.gmra.mrb[0].mxu0 %v6406
        %v9473 = vpop.f32.mrb[0].mxu0
        %v9474 = vadd.f32 0.0, %v9473
        %v9475 = vpop.f32.mrb[0].mxu0
        %v9476 = vpop.f32.mrb[0].mxu0
        %v9477 = vadd.f32 0.0, %v9476
        %v9478 = vpop.f32.mrb[0].mxu0
        %9479 = vmatprep.mubr.bf16.mxu0 0
        %9480 = vmatmul.mubr.bf16.gmra.mrb[0].mxu0 %v6409
        %v9481 = vpop.f32.mrb[0].mxu0
        %v9482 = vadd.f32 0.0, %v9481
        %v9483 = vpop.f32.mrb[0].mxu0
        %v9484 = vpop.f32.mrb[0].mxu0
        %v9485 = vadd.f32 0.0, %v9484
        %v9486 = vpop.f32.mrb[0].mxu0
        %9487 = vmatprep.mubr.bf16.mxu0 0
        %9488 = vmatmul.mubr.bf16.gmra.mrb[0].mxu0 %v6412
        %v9489 = vpop.f32.mrb[0].mxu0
        %v9490 = vadd.f32 0.0, %v9489
        %v9491 = vpop.f32.mrb[0].mxu0
        %v9492 = vpop.f32.mrb[0].mxu0
        %v9493 = vadd.f32 0.0, %v9492
        %v9494 = vpop.f32.mrb[0].mxu0
        %9495 = vmatprep.mubr.bf16.mxu0 0
        %9496 = vmatmul.mubr.bf16.gmra.mrb[0].mxu0 %v6415
        %v9497 = vpop.f32.mrb[0].mxu0
        %v9498 = vadd.f32 0.0, %v9497
        %v9499 = vpop.f32.mrb[0].mxu0
        %v9500 = vpop.f32.mrb[0].mxu0
        %v9501 = vadd.f32 0.0, %v9500
        %v9502 = vpop.f32.mrb[0].mxu0
        %9503 = vmatprep.mubr.bf16.mxu0 0
        %9504 = vmatmul.mubr.bf16.gmra.mrb[0].mxu0 %v6418
        %v9505 = vpop.f32.mrb[0].mxu0
        %v9506 = vadd.f32 0.0, %v9505
        %v9507 = vpop.f32.mrb[0].mxu0
        %v9508 = vpop.f32.mrb[0].mxu0
        %v9509 = vadd.f32 0.0, %v9508
        %v9510 = vpop.f32.mrb[0].mxu0
        %9511 = vmatprep.mubr.bf16.mxu0 0
        %9512 = vmatmul.mubr.bf16.gmra.mrb[0].mxu0 %v6421
        %v9513 = vpop.f32.mrb[0].mxu0
        %v9514 = vadd.f32 0.0, %v9513
        %v9515 = vpop.f32.mrb[0].mxu0
        %v9516 = vpop.f32.mrb[0].mxu0
        %v9517 = vadd.f32 0.0, %v9516
        %v9518 = vpop.f32.mrb[0].mxu0
        %9519 = vmatprep.mubr.bf16.mxu0 0
        %9520 = vmatmul.mubr.bf16.gmra.mrb[0].mxu0 %v6424
        %v9521 = vpop.f32.mrb[0].mxu0
        %v9522 = vadd.f32 0.0, %v9521
        %v9523 = vpop.f32.mrb[0].mxu0
        %v9524 = vpop.f32.mrb[0].mxu0
        %v9525 = vadd.f32 0.0, %v9524
        %v9526 = vpop.f32.mrb[0].mxu0
        %9527 = vmatprep.mubr.bf16.mxu0 0
        %9528 = vmatmul.mubr.bf16.gmra.mrb[0].mxu0 %v9223
        %v9529 = vpop.f32.mrb[0].mxu0
        %v9530 = vadd.f32 0.0, %v9529
        %v9531 = vpop.f32.mrb[0].mxu0
        %v9532 = vpop.f32.mrb[0].mxu0
        %v9533 = vadd.f32 0.0, %v9532
        %v9534 = vpop.f32.mrb[0].mxu0
        %9535 = vmatprep.mubr.bf16.mxu0 0
        %9536 = vmatmul.mubr.bf16.gmra.mrb[0].mxu0 %v9226
        %v9537 = vpop.f32.mrb[0].mxu0
        %v9538 = vadd.f32 0.0, %v9537
        %v9539 = vpop.f32.mrb[0].mxu0
        %v9540 = vpop.f32.mrb[0].mxu0
        %v9541 = vadd.f32 0.0, %v9540
        %v9542 = vpop.f32.mrb[0].mxu0
        %9543 = vmatprep.mubr.bf16.mxu0 0
        %9544 = vmatmul.mubr.bf16.gmra.mrb[0].mxu0 %v9229
        %v9545 = vpop.f32.mrb[0].mxu0
        %v9546 = vadd.f32 0.0, %v9545
        %v9547 = vpop.f32.mrb[0].mxu0
        %v9548 = vpop.f32.mrb[0].mxu0
        %v9549 = vadd.f32 0.0, %v9548
        %v9550 = vpop.f32.mrb[0].mxu0
        %9551 = vdwg.mxu0
        %v9552 = vadd.f32 %v9135, %v9266
        %v9553 = vadd.f32 %v9136, %v9269
        %v9554 = vadd.f32 %v9137, %v9274
        %v9555 = vadd.f32 %v9138, %v9277
        %v9556 = vadd.f32 %v9139, %v9282
        %v9557 = vadd.f32 %v9140, %v9285
        %v9558 = vadd.f32 %v9141, %v9290
        %v9559 = vadd.f32 %v9142, %v9293
        %v9560 = vadd.f32 %v9143, %v9298
        %v9561 = vadd.f32 %v9144, %v9301
        %v9562 = vadd.f32 %v9145, %v9306
        %v9563 = vadd.f32 %v9146, %v9309
        %v9564 = vadd.f32 %v9147, %v9314
        %v9565 = vadd.f32 %v9148, %v9317
        %v9566 = vadd.f32 %v9149, %v9322
        %v9567 = vadd.f32 %v9150, %v9325
        %v9568 = vadd.f32 %v9151, %v9330
        %v9569 = vadd.f32 %v9152, %v9333
        %v9570 = vadd.f32 %v9153, %v9338
        %v9571 = vadd.f32 %v9154, %v9341
        %v9572 = vadd.f32 %v9155, %v9346
        %v9573 = vadd.f32 %v9156, %v9349
        %v9574 = vadd.f32 %v9157, %v9354
        %v9575 = vadd.f32 %v9158, %v9357
        %v9576 = vadd.f32 %v9159, %v9362
        %v9577 = vadd.f32 %v9160, %v9365
        %v9578 = vadd.f32 %v9161, %v9370
        %v9579 = vadd.f32 %v9162, %v9373
        %v9580 = vadd.f32 %v9163, %v9378
        %v9581 = vadd.f32 %v9164, %v9381
        %v9582 = vadd.f32 %v9165, %v9386
        %v9583 = vadd.f32 %v9166, %v9389
        %v9584 = vadd.f32 %v9167, %v9394
        %v9585 = vadd.f32 %v9168, %v9397
        %v9586 = vadd.f32 %v9169, %v9402
        %v9587 = vadd.f32 %v9170, %v9405
        %v9588 = vadd.f32 %v9171, %v9410
        %v9589 = vadd.f32 %v9172, %v9413
        %v9590 = vadd.f32 %v9173, %v9418
        %v9591 = vadd.f32 %v9174, %v9421
        %v9592 = vadd.f32 %v9175, %v9426
        %v9593 = vadd.f32 %v9176, %v9429
        %v9594 = vadd.f32 %v9177, %v9434
        %v9595 = vadd.f32 %v9178, %v9437
        %v9596 = vadd.f32 %v9179, %v9442
        %v9597 = vadd.f32 %v9180, %v9445
        %v9598 = vadd.f32 %v9181, %v9450
        %v9599 = vadd.f32 %v9182, %v9453
        %v9600 = vadd.f32 %v9183, %v9458
        %v9601 = vadd.f32 %v9184, %v9461
        %v9602 = vadd.f32 %v9185, %v9466
        %v9603 = vadd.f32 %v9186, %v9469
        %v9604 = vadd.f32 %v9187, %v9474
        %v9605 = vadd.f32 %v9188, %v9477
        %v9606 = vadd.f32 %v9189, %v9482
        %v9607 = vadd.f32 %v9190, %v9485
        %v9608 = vadd.f32 %v9191, %v9490
        %v9609 = vadd.f32 %v9192, %v9493
        %v9610 = vadd.f32 %v9193, %v9498
        %v9611 = vadd.f32 %v9194, %v9501
        %v9612 = vadd.f32 %v9195, %v9506
        %v9613 = vadd.f32 %v9196, %v9509
        %v9614 = vadd.f32 %v9197, %v9514
        %v9615 = vadd.f32 %v9198, %v9517
        %v9616 = vadd.f32 %v9199, %v9522
        %v9617 = vadd.f32 %v9200, %v9525
        %v9618 = vadd.f32 %v9201, %v9530
        %v9619 = vadd.f32 %v9202, %v9533
        %v9620 = vadd.f32 %v9203, %v9538
        %v9621 = vadd.f32 %v9204, %v9541
        %v9622 = vadd.f32 %v9205, %v9546
        %v9623 = vadd.f32 %v9206, %v9549
        %v9628 = vrot.slane %v5452, 1
        %v9629 = vrot.slane %v5453, 1
        %v9630 = vsel %vm1375, %v9628, %v9629
        %v9631 = vrot.slane %v5454, 1
        %v9632 = vsel %vm1375, %v9629, %v9631
        %v9633 = vrot.slane %v5455, 1
        %v9634 = vsel %vm1375, %v9631, %v9633
        %v9638 = vpack.c.bf16 %v8093, %v8091
        %v9639 = vpack.c.bf16 %v9630, %v8095
        %v9640 = vpack.c.bf16 %v9634, %v9632
        %v9645 = vunpack.c.l.b16 %v423
        %v9646 = vunpack.c.l.b16 %v424
        %v9647 = vunpack.c.l.b16 %v425
        %v9648 = vunpack.c.l.b16 %v426
        %v9649 = vpack.c.b16 %v9646, %v9645
        %v9650 = vpack.c.b16 %v9648, %v9647
        %v9654 = vsel %vm5876, %v9638, 0
        %v9657 = vsel %vm5876, %v9639, 0
        %v9660 = vsel %vm5876, %v9640, 0
        %9662 = vmatprep.subr.bf16.mxu0 0
        %9663 = vmatpush1.bf16.msra.mxu0 %v9649
        %9664 = vmatprep.subr.bf16.mxu0 0
        %9665 = vmatpush1.bf16.msra.mxu0 %v9650
        %9666 = vmatprep.subr.bf16.mxu0 0
        %9667 = vmatpush1.bf16.msra.mxu0 0
        %9668 = vmatprep.subr.bf16.mxu0 0
        %9669 = vmatpush1.bf16.msra.mxu0 0
        %9670 = vmatprep.subr.bf16.mxu0 0
        %9671 = vmatpush1.bf16.msra.mxu0 0
        %9672 = vmatprep.subr.bf16.mxu0 0
        %9673 = vmatpush1.bf16.msra.mxu0 0
        %9674 = vmatprep.subr.bf16.mxu0 0
        %9675 = vmatpush1.bf16.msra.mxu0 0
        %9676 = vmatprep.subr.bf16.mxu0 0
        %9677 = vmatpush1.bf16.msra.mxu0 0
        %9678 = vmatprep.subr.bf16.mxu0 0
        %9679 = vmatpush1.bf16.msra.mxu0 0
        %9680 = vmatprep.subr.bf16.mxu0 0
        %9681 = vmatpush1.bf16.msra.mxu0 0
        %9682 = vmatprep.subr.bf16.mxu0 0
        %9683 = vmatpush1.bf16.msra.mxu0 0
        %9684 = vmatprep.subr.bf16.mxu0 0
        %9685 = vmatpush1.bf16.msra.mxu0 0
        %9686 = vmatprep.subr.bf16.mxu0 0
        %9687 = vmatpush1.bf16.msra.mxu0 0
        %9688 = vmatprep.subr.bf16.mxu0 0
        %9689 = vmatpush1.bf16.msra.mxu0 0
        %9690 = vmatprep.subr.bf16.mxu0 0
        %9691 = vmatpush1.bf16.msra.mxu0 0
        %9692 = vmatprep.subr.bf16.mxu0 0
        %9693 = vmatpush1.bf16.msra.mxu0 0
        %9694 = vmatprep.mubr.bf16.mxu0 0
        %9695 = vmatmul.mubr.bf16.gmra.mrb[0].mxu0 %v5887
        %v9696 = vpop.f32.mrb[0].mxu0
        %v9697 = vadd.f32 0.0, %v9696
        %v9698 = vpop.f32.mrb[0].mxu0
        %v9699 = vpop.f32.mrb[0].mxu0
        %v9700 = vadd.f32 0.0, %v9699
        %v9701 = vpop.f32.mrb[0].mxu0
        %9702 = vmatprep.mubr.bf16.mxu0 0
        %9703 = vmatmul.mubr.bf16.gmra.mrb[0].mxu0 %v5890
        %v9704 = vpop.f32.mrb[0].mxu0
        %v9705 = vadd.f32 0.0, %v9704
        %v9706 = vpop.f32.mrb[0].mxu0
        %v9707 = vpop.f32.mrb[0].mxu0
        %v9708 = vadd.f32 0.0, %v9707
        %v9709 = vpop.f32.mrb[0].mxu0
        %9710 = vmatprep.mubr.bf16.mxu0 0
        %9711 = vmatmul.mubr.bf16.gmra.mrb[0].mxu0 %v5893
        %v9712 = vpop.f32.mrb[0].mxu0
        %v9713 = vadd.f32 0.0, %v9712
        %v9714 = vpop.f32.mrb[0].mxu0
        %v9715 = vpop.f32.mrb[0].mxu0
        %v9716 = vadd.f32 0.0, %v9715
        %v9717 = vpop.f32.mrb[0].mxu0
        %9718 = vmatprep.mubr.bf16.mxu0 0
        %9719 = vmatmul.mubr.bf16.gmra.mrb[0].mxu0 %v5896
        %v9720 = vpop.f32.mrb[0].mxu0
        %v9721 = vadd.f32 0.0, %v9720
        %v9722 = vpop.f32.mrb[0].mxu0
        %v9723 = vpop.f32.mrb[0].mxu0
        %v9724 = vadd.f32 0.0, %v9723
        %v9725 = vpop.f32.mrb[0].mxu0
        %9726 = vmatprep.mubr.bf16.mxu0 0
        %9727 = vmatmul.mubr.bf16.gmra.mrb[0].mxu0 %v5899
        %v9728 = vpop.f32.mrb[0].mxu0
        %v9729 = vadd.f32 0.0, %v9728
        %v9730 = vpop.f32.mrb[0].mxu0
        %v9731 = vpop.f32.mrb[0].mxu0
        %v9732 = vadd.f32 0.0, %v9731
        %v9733 = vpop.f32.mrb[0].mxu0
        %9734 = vmatprep.mubr.bf16.mxu0 0
        %9735 = vmatmul.mubr.bf16.gmra.mrb[0].mxu0 %v5902
        %v9736 = vpop.f32.mrb[0].mxu0
        %v9737 = vadd.f32 0.0, %v9736
        %v9738 = vpop.f32.mrb[0].mxu0
        %v9739 = vpop.f32.mrb[0].mxu0
        %v9740 = vadd.f32 0.0, %v9739
        %v9741 = vpop.f32.mrb[0].mxu0
        %9742 = vmatprep.mubr.bf16.mxu0 0
        %9743 = vmatmul.mubr.bf16.gmra.mrb[0].mxu0 %v5905
        %v9744 = vpop.f32.mrb[0].mxu0
        %v9745 = vadd.f32 0.0, %v9744
        %v9746 = vpop.f32.mrb[0].mxu0
        %v9747 = vpop.f32.mrb[0].mxu0
        %v9748 = vadd.f32 0.0, %v9747
        %v9749 = vpop.f32.mrb[0].mxu0
        %9750 = vmatprep.mubr.bf16.mxu0 0
        %9751 = vmatmul.mubr.bf16.gmra.mrb[0].mxu0 %v5908
        %v9752 = vpop.f32.mrb[0].mxu0
        %v9753 = vadd.f32 0.0, %v9752
        %v9754 = vpop.f32.mrb[0].mxu0
        %v9755 = vpop.f32.mrb[0].mxu0
        %v9756 = vadd.f32 0.0, %v9755
        %v9757 = vpop.f32.mrb[0].mxu0
        %9758 = vmatprep.mubr.bf16.mxu0 0
        %9759 = vmatmul.mubr.bf16.gmra.mrb[0].mxu0 %v5911
        %v9760 = vpop.f32.mrb[0].mxu0
        %v9761 = vadd.f32 0.0, %v9760
        %v9762 = vpop.f32.mrb[0].mxu0
        %v9763 = vpop.f32.mrb[0].mxu0
        %v9764 = vadd.f32 0.0, %v9763
        %v9765 = vpop.f32.mrb[0].mxu0
        %9766 = vmatprep.mubr.bf16.mxu0 0
        %9767 = vmatmul.mubr.bf16.gmra.mrb[0].mxu0 %v5914
        %v9768 = vpop.f32.mrb[0].mxu0
        %v9769 = vadd.f32 0.0, %v9768
        %v9770 = vpop.f32.mrb[0].mxu0
        %v9771 = vpop.f32.mrb[0].mxu0
        %v9772 = vadd.f32 0.0, %v9771
        %v9773 = vpop.f32.mrb[0].mxu0
        %9774 = vmatprep.mubr.bf16.mxu0 0
        %9775 = vmatmul.mubr.bf16.gmra.mrb[0].mxu0 %v5917
        %v9776 = vpop.f32.mrb[0].mxu0
        %v9777 = vadd.f32 0.0, %v9776
        %v9778 = vpop.f32.mrb[0].mxu0
        %v9779 = vpop.f32.mrb[0].mxu0
        %v9780 = vadd.f32 0.0, %v9779
        %v9781 = vpop.f32.mrb[0].mxu0
        %9782 = vmatprep.mubr.bf16.mxu0 0
        %9783 = vmatmul.mubr.bf16.gmra.mrb[0].mxu0 %v5920
        %v9784 = vpop.f32.mrb[0].mxu0
        %v9785 = vadd.f32 0.0, %v9784
        %v9786 = vpop.f32.mrb[0].mxu0
        %v9787 = vpop.f32.mrb[0].mxu0
        %v9788 = vadd.f32 0.0, %v9787
        %v9789 = vpop.f32.mrb[0].mxu0
        %9790 = vmatprep.mubr.bf16.mxu0 0
        %9791 = vmatmul.mubr.bf16.gmra.mrb[0].mxu0 %v5923
        %v9792 = vpop.f32.mrb[0].mxu0
        %v9793 = vadd.f32 0.0, %v9792
        %v9794 = vpop.f32.mrb[0].mxu0
        %v9795 = vpop.f32.mrb[0].mxu0
        %v9796 = vadd.f32 0.0, %v9795
        %v9797 = vpop.f32.mrb[0].mxu0
        %9798 = vmatprep.mubr.bf16.mxu0 0
        %9799 = vmatmul.mubr.bf16.gmra.mrb[0].mxu0 %v5926
        %v9800 = vpop.f32.mrb[0].mxu0
        %v9801 = vadd.f32 0.0, %v9800
        %v9802 = vpop.f32.mrb[0].mxu0
        %v9803 = vpop.f32.mrb[0].mxu0
        %v9804 = vadd.f32 0.0, %v9803
        %v9805 = vpop.f32.mrb[0].mxu0
        %9806 = vmatprep.mubr.bf16.mxu0 0
        %9807 = vmatmul.mubr.bf16.gmra.mrb[0].mxu0 %v5929
        %v9808 = vpop.f32.mrb[0].mxu0
        %v9809 = vadd.f32 0.0, %v9808
        %v9810 = vpop.f32.mrb[0].mxu0
        %v9811 = vpop.f32.mrb[0].mxu0
        %v9812 = vadd.f32 0.0, %v9811
        %v9813 = vpop.f32.mrb[0].mxu0
        %9814 = vmatprep.mubr.bf16.mxu0 0
        %9815 = vmatmul.mubr.bf16.gmra.mrb[0].mxu0 %v5932
        %v9816 = vpop.f32.mrb[0].mxu0
        %v9817 = vadd.f32 0.0, %v9816
        %v9818 = vpop.f32.mrb[0].mxu0
        %v9819 = vpop.f32.mrb[0].mxu0
        %v9820 = vadd.f32 0.0, %v9819
        %v9821 = vpop.f32.mrb[0].mxu0
        %9822 = vmatprep.mubr.bf16.mxu0 0
        %9823 = vmatmul.mubr.bf16.gmra.mrb[0].mxu0 %v5935
        %v9824 = vpop.f32.mrb[0].mxu0
        %v9825 = vadd.f32 0.0, %v9824
        %v9826 = vpop.f32.mrb[0].mxu0
        %v9827 = vpop.f32.mrb[0].mxu0
        %v9828 = vadd.f32 0.0, %v9827
        %v9829 = vpop.f32.mrb[0].mxu0
        %9830 = vmatprep.mubr.bf16.mxu0 0
        %9831 = vmatmul.mubr.bf16.gmra.mrb[0].mxu0 %v5938
        %v9832 = vpop.f32.mrb[0].mxu0
        %v9833 = vadd.f32 0.0, %v9832
        %v9834 = vpop.f32.mrb[0].mxu0
        %v9835 = vpop.f32.mrb[0].mxu0
        %v9836 = vadd.f32 0.0, %v9835
        %v9837 = vpop.f32.mrb[0].mxu0
        %9838 = vmatprep.mubr.bf16.mxu0 0
        %9839 = vmatmul.mubr.bf16.gmra.mrb[0].mxu0 %v5941
        %v9840 = vpop.f32.mrb[0].mxu0
        %v9841 = vadd.f32 0.0, %v9840
        %v9842 = vpop.f32.mrb[0].mxu0
        %v9843 = vpop.f32.mrb[0].mxu0
        %v9844 = vadd.f32 0.0, %v9843
        %v9845 = vpop.f32.mrb[0].mxu0
        %9846 = vmatprep.mubr.bf16.mxu0 0
        %9847 = vmatmul.mubr.bf16.gmra.mrb[0].mxu0 %v5944
        %v9848 = vpop.f32.mrb[0].mxu0
        %v9849 = vadd.f32 0.0, %v9848
        %v9850 = vpop.f32.mrb[0].mxu0
        %v9851 = vpop.f32.mrb[0].mxu0
        %v9852 = vadd.f32 0.0, %v9851
        %v9853 = vpop.f32.mrb[0].mxu0
        %9854 = vmatprep.mubr.bf16.mxu0 0
        %9855 = vmatmul.mubr.bf16.gmra.mrb[0].mxu0 %v5947
        %v9856 = vpop.f32.mrb[0].mxu0
        %v9857 = vadd.f32 0.0, %v9856
        %v9858 = vpop.f32.mrb[0].mxu0
        %v9859 = vpop.f32.mrb[0].mxu0
        %v9860 = vadd.f32 0.0, %v9859
        %v9861 = vpop.f32.mrb[0].mxu0
        %9862 = vmatprep.mubr.bf16.mxu0 0
        %9863 = vmatmul.mubr.bf16.gmra.mrb[0].mxu0 %v5950
        %v9864 = vpop.f32.mrb[0].mxu0
        %v9865 = vadd.f32 0.0, %v9864
        %v9866 = vpop.f32.mrb[0].mxu0
        %v9867 = vpop.f32.mrb[0].mxu0
        %v9868 = vadd.f32 0.0, %v9867
        %v9869 = vpop.f32.mrb[0].mxu0
        %9870 = vmatprep.mubr.bf16.mxu0 0
        %9871 = vmatmul.mubr.bf16.gmra.mrb[0].mxu0 %v5953
        %v9872 = vpop.f32.mrb[0].mxu0
        %v9873 = vadd.f32 0.0, %v9872
        %v9874 = vpop.f32.mrb[0].mxu0
        %v9875 = vpop.f32.mrb[0].mxu0
        %v9876 = vadd.f32 0.0, %v9875
        %v9877 = vpop.f32.mrb[0].mxu0
        %9878 = vmatprep.mubr.bf16.mxu0 0
        %9879 = vmatmul.mubr.bf16.gmra.mrb[0].mxu0 %v5956
        %v9880 = vpop.f32.mrb[0].mxu0
        %v9881 = vadd.f32 0.0, %v9880
        %v9882 = vpop.f32.mrb[0].mxu0
        %v9883 = vpop.f32.mrb[0].mxu0
        %v9884 = vadd.f32 0.0, %v9883
        %v9885 = vpop.f32.mrb[0].mxu0
        %9886 = vmatprep.mubr.bf16.mxu0 0
        %9887 = vmatmul.mubr.bf16.gmra.mrb[0].mxu0 %v5959
        %v9888 = vpop.f32.mrb[0].mxu0
        %v9889 = vadd.f32 0.0, %v9888
        %v9890 = vpop.f32.mrb[0].mxu0
        %v9891 = vpop.f32.mrb[0].mxu0
        %v9892 = vadd.f32 0.0, %v9891
        %v9893 = vpop.f32.mrb[0].mxu0
        %9894 = vmatprep.mubr.bf16.mxu0 0
        %9895 = vmatmul.mubr.bf16.gmra.mrb[0].mxu0 %v5962
        %v9896 = vpop.f32.mrb[0].mxu0
        %v9897 = vadd.f32 0.0, %v9896
        %v9898 = vpop.f32.mrb[0].mxu0
        %v9899 = vpop.f32.mrb[0].mxu0
        %v9900 = vadd.f32 0.0, %v9899
        %v9901 = vpop.f32.mrb[0].mxu0
        %9902 = vmatprep.mubr.bf16.mxu0 0
        %9903 = vmatmul.mubr.bf16.gmra.mrb[0].mxu0 %v5965
        %v9904 = vpop.f32.mrb[0].mxu0
        %v9905 = vadd.f32 0.0, %v9904
        %v9906 = vpop.f32.mrb[0].mxu0
        %v9907 = vpop.f32.mrb[0].mxu0
        %v9908 = vadd.f32 0.0, %v9907
        %v9909 = vpop.f32.mrb[0].mxu0
        %9910 = vmatprep.mubr.bf16.mxu0 0
        %9911 = vmatmul.mubr.bf16.gmra.mrb[0].mxu0 %v5968
        %v9912 = vpop.f32.mrb[0].mxu0
        %v9913 = vadd.f32 0.0, %v9912
        %v9914 = vpop.f32.mrb[0].mxu0
        %v9915 = vpop.f32.mrb[0].mxu0
        %v9916 = vadd.f32 0.0, %v9915
        %v9917 = vpop.f32.mrb[0].mxu0
        %9918 = vmatprep.mubr.bf16.mxu0 0
        %9919 = vmatmul.mubr.bf16.gmra.mrb[0].mxu0 %v5971
        %v9920 = vpop.f32.mrb[0].mxu0
        %v9921 = vadd.f32 0.0, %v9920
        %v9922 = vpop.f32.mrb[0].mxu0
        %v9923 = vpop.f32.mrb[0].mxu0
        %v9924 = vadd.f32 0.0, %v9923
        %v9925 = vpop.f32.mrb[0].mxu0
        %9926 = vmatprep.mubr.bf16.mxu0 0
        %9927 = vmatmul.mubr.bf16.gmra.mrb[0].mxu0 %v5974
        %v9928 = vpop.f32.mrb[0].mxu0
        %v9929 = vadd.f32 0.0, %v9928
        %v9930 = vpop.f32.mrb[0].mxu0
        %v9931 = vpop.f32.mrb[0].mxu0
        %v9932 = vadd.f32 0.0, %v9931
        %v9933 = vpop.f32.mrb[0].mxu0
        %9934 = vmatprep.mubr.bf16.mxu0 0
        %9935 = vmatmul.mubr.bf16.gmra.mrb[0].mxu0 %v5977
        %v9936 = vpop.f32.mrb[0].mxu0
        %v9937 = vadd.f32 0.0, %v9936
        %v9938 = vpop.f32.mrb[0].mxu0
        %v9939 = vpop.f32.mrb[0].mxu0
        %v9940 = vadd.f32 0.0, %v9939
        %v9941 = vpop.f32.mrb[0].mxu0
        %9942 = vmatprep.mubr.bf16.mxu0 0
        %9943 = vmatmul.mubr.bf16.gmra.mrb[0].mxu0 %v5980
        %v9944 = vpop.f32.mrb[0].mxu0
        %v9945 = vadd.f32 0.0, %v9944
        %v9946 = vpop.f32.mrb[0].mxu0
        %v9947 = vpop.f32.mrb[0].mxu0
        %v9948 = vadd.f32 0.0, %v9947
        %v9949 = vpop.f32.mrb[0].mxu0
        %9950 = vmatprep.mubr.bf16.mxu0 0
        %9951 = vmatmul.mubr.bf16.gmra.mrb[0].mxu0 %v5983
        %v9952 = vpop.f32.mrb[0].mxu0
        %v9953 = vadd.f32 0.0, %v9952
        %v9954 = vpop.f32.mrb[0].mxu0
        %v9955 = vpop.f32.mrb[0].mxu0
        %v9956 = vadd.f32 0.0, %v9955
        %v9957 = vpop.f32.mrb[0].mxu0
        %9958 = vmatprep.mubr.bf16.mxu0 0
        %9959 = vmatmul.mubr.bf16.gmra.mrb[0].mxu0 %v9654
        %v9960 = vpop.f32.mrb[0].mxu0
        %v9961 = vadd.f32 0.0, %v9960
        %v9962 = vpop.f32.mrb[0].mxu0
        %v9963 = vpop.f32.mrb[0].mxu0
        %v9964 = vadd.f32 0.0, %v9963
        %v9965 = vpop.f32.mrb[0].mxu0
        %9966 = vmatprep.mubr.bf16.mxu0 0
        %9967 = vmatmul.mubr.bf16.gmra.mrb[0].mxu0 %v9657
        %v9968 = vpop.f32.mrb[0].mxu0
        %v9969 = vadd.f32 0.0, %v9968
        %v9970 = vpop.f32.mrb[0].mxu0
        %v9971 = vpop.f32.mrb[0].mxu0
        %v9972 = vadd.f32 0.0, %v9971
        %v9973 = vpop.f32.mrb[0].mxu0
        %9974 = vmatprep.mubr.bf16.mxu0 0
        %9975 = vmatmul.mubr.bf16.gmra.mrb[0].mxu0 %v9660
        %v9976 = vpop.f32.mrb[0].mxu0
        %v9977 = vadd.f32 0.0, %v9976
        %v9978 = vpop.f32.mrb[0].mxu0
        %v9979 = vpop.f32.mrb[0].mxu0
        %v9980 = vadd.f32 0.0, %v9979
        %v9981 = vpop.f32.mrb[0].mxu0
        %9982 = vdwg.mxu0
        %v9983 = vadd.f32 %v9552, %v9697
        %v9984 = vadd.f32 %v9553, %v9700
        %v9985 = vadd.f32 %v9554, %v9705
        %v9986 = vadd.f32 %v9555, %v9708
        %v9987 = vadd.f32 %v9556, %v9713
        %v9988 = vadd.f32 %v9557, %v9716
        %v9989 = vadd.f32 %v9558, %v9721
        %v9990 = vadd.f32 %v9559, %v9724
        %v9991 = vadd.f32 %v9560, %v9729
        %v9992 = vadd.f32 %v9561, %v9732
        %v9993 = vadd.f32 %v9562, %v9737
        %v9994 = vadd.f32 %v9563, %v9740
        %v9995 = vadd.f32 %v9564, %v9745
        %v9996 = vadd.f32 %v9565, %v9748
        %v9997 = vadd.f32 %v9566, %v9753
        %v9998 = vadd.f32 %v9567, %v9756
        %v9999 = vadd.f32 %v9568, %v9761
        %v10000 = vadd.f32 %v9569, %v9764
        %v10001 = vadd.f32 %v9570, %v9769
        %v10002 = vadd.f32 %v9571, %v9772
        %v10003 = vadd.f32 %v9572, %v9777
        %v10004 = vadd.f32 %v9573, %v9780
        %v10005 = vadd.f32 %v9574, %v9785
        %v10006 = vadd.f32 %v9575, %v9788
        %v10007 = vadd.f32 %v9576, %v9793
        %v10008 = vadd.f32 %v9577, %v9796
        %v10009 = vadd.f32 %v9578, %v9801
        %v10010 = vadd.f32 %v9579, %v9804
        %v10011 = vadd.f32 %v9580, %v9809
        %v10012 = vadd.f32 %v9581, %v9812
        %v10013 = vadd.f32 %v9582, %v9817
        %v10014 = vadd.f32 %v9583, %v9820
        %v10015 = vadd.f32 %v9584, %v9825
        %v10016 = vadd.f32 %v9585, %v9828
        %v10017 = vadd.f32 %v9586, %v9833
        %v10018 = vadd.f32 %v9587, %v9836
        %v10019 = vadd.f32 %v9588, %v9841
        %v10020 = vadd.f32 %v9589, %v9844
        %v10021 = vadd.f32 %v9590, %v9849
        %v10022 = vadd.f32 %v9591, %v9852
        %v10023 = vadd.f32 %v9592, %v9857
        %v10024 = vadd.f32 %v9593, %v9860
        %v10025 = vadd.f32 %v9594, %v9865
        %v10026 = vadd.f32 %v9595, %v9868
        %v10027 = vadd.f32 %v9596, %v9873
        %v10028 = vadd.f32 %v9597, %v9876
        %v10029 = vadd.f32 %v9598, %v9881
        %v10030 = vadd.f32 %v9599, %v9884
        %v10031 = vadd.f32 %v9600, %v9889
        %v10032 = vadd.f32 %v9601, %v9892
        %v10033 = vadd.f32 %v9602, %v9897
        %v10034 = vadd.f32 %v9603, %v9900
        %v10035 = vadd.f32 %v9604, %v9905
        %v10036 = vadd.f32 %v9605, %v9908
        %v10037 = vadd.f32 %v9606, %v9913
        %v10038 = vadd.f32 %v9607, %v9916
        %v10039 = vadd.f32 %v9608, %v9921
        %v10040 = vadd.f32 %v9609, %v9924
        %v10041 = vadd.f32 %v9610, %v9929
        %v10042 = vadd.f32 %v9611, %v9932
        %v10043 = vadd.f32 %v9612, %v9937
        %v10044 = vadd.f32 %v9613, %v9940
        %v10045 = vadd.f32 %v9614, %v9945
        %v10046 = vadd.f32 %v9615, %v9948
        %v10047 = vadd.f32 %v9616, %v9953
        %v10048 = vadd.f32 %v9617, %v9956
        %v10049 = vadd.f32 %v9618, %v9961
        %v10050 = vadd.f32 %v9619, %v9964
        %v10051 = vadd.f32 %v9620, %v9969
        %v10052 = vadd.f32 %v9621, %v9972
        %v10053 = vadd.f32 %v9622, %v9977
        %v10054 = vadd.f32 %v9623, %v9980
        %v10055 = vrot.slane %v5452, 2
        %v10056 = vrot.slane %v5453, 2
        %v10057 = vsel %vm1978, %v10055, %v10056
        %v10058 = vrot.slane %v5454, 2
        %v10059 = vsel %vm1978, %v10056, %v10058
        %v10060 = vrot.slane %v5455, 2
        %v10061 = vsel %vm1978, %v10058, %v10060
        %v10065 = vpack.c.bf16 %v8652, %v8650
        %v10066 = vpack.c.bf16 %v10057, %v8654
        %v10067 = vpack.c.bf16 %v10061, %v10059
        %v10072 = vunpack.c.l.b16 %v427
        %v10073 = vunpack.c.l.b16 %v428
        %v10074 = vunpack.c.l.b16 %v429
        %v10075 = vunpack.c.l.b16 %v430
        %v10076 = vpack.c.b16 %v10073, %v10072
        %v10077 = vpack.c.b16 %v10075, %v10074
        %v10081 = vsel %vm5876, %v10065, 0
        %v10084 = vsel %vm5876, %v10066, 0
        %v10087 = vsel %vm5876, %v10067, 0
        %10089 = vmatprep.subr.bf16.mxu0 0
        %10090 = vmatpush1.bf16.msra.mxu0 %v10076
        %10091 = vmatprep.subr.bf16.mxu0 0
        %10092 = vmatpush1.bf16.msra.mxu0 %v10077
        %10093 = vmatprep.subr.bf16.mxu0 0
        %10094 = vmatpush1.bf16.msra.mxu0 0
        %10095 = vmatprep.subr.bf16.mxu0 0
        %10096 = vmatpush1.bf16.msra.mxu0 0
        %10097 = vmatprep.subr.bf16.mxu0 0
        %10098 = vmatpush1.bf16.msra.mxu0 0
        %10099 = vmatprep.subr.bf16.mxu0 0
        %10100 = vmatpush1.bf16.msra.mxu0 0
        %10101 = vmatprep.subr.bf16.mxu0 0
        %10102 = vmatpush1.bf16.msra.mxu0 0
        %10103 = vmatprep.subr.bf16.mxu0 0
        %10104 = vmatpush1.bf16.msra.mxu0 0
        %10105 = vmatprep.subr.bf16.mxu0 0
        %10106 = vmatpush1.bf16.msra.mxu0 0
        %10107 = vmatprep.subr.bf16.mxu0 0
        %10108 = vmatpush1.bf16.msra.mxu0 0
        %10109 = vmatprep.subr.bf16.mxu0 0
        %10110 = vmatpush1.bf16.msra.mxu0 0
        %10111 = vmatprep.subr.bf16.mxu0 0
        %10112 = vmatpush1.bf16.msra.mxu0 0
        %10113 = vmatprep.subr.bf16.mxu0 0
        %10114 = vmatpush1.bf16.msra.mxu0 0
        %10115 = vmatprep.subr.bf16.mxu0 0
        %10116 = vmatpush1.bf16.msra.mxu0 0
        %10117 = vmatprep.subr.bf16.mxu0 0
        %10118 = vmatpush1.bf16.msra.mxu0 0
        %10119 = vmatprep.subr.bf16.mxu0 0
        %10120 = vmatpush1.bf16.msra.mxu0 0
        %10121 = vmatprep.mubr.bf16.mxu0 0
        %10122 = vmatmul.mubr.bf16.gmra.mrb[0].mxu0 %v7045
        %v10123 = vpop.f32.mrb[0].mxu0
        %v10124 = vadd.f32 0.0, %v10123
        %v10125 = vpop.f32.mrb[0].mxu0
        %v10126 = vpop.f32.mrb[0].mxu0
        %v10127 = vadd.f32 0.0, %v10126
        %v10128 = vpop.f32.mrb[0].mxu0
        %10129 = vmatprep.mubr.bf16.mxu0 0
        %10130 = vmatmul.mubr.bf16.gmra.mrb[0].mxu0 %v7048
        %v10131 = vpop.f32.mrb[0].mxu0
        %v10132 = vadd.f32 0.0, %v10131
        %v10133 = vpop.f32.mrb[0].mxu0
        %v10134 = vpop.f32.mrb[0].mxu0
        %v10135 = vadd.f32 0.0, %v10134
        %v10136 = vpop.f32.mrb[0].mxu0
        %10137 = vmatprep.mubr.bf16.mxu0 0
        %10138 = vmatmul.mubr.bf16.gmra.mrb[0].mxu0 %v7051
        %v10139 = vpop.f32.mrb[0].mxu0
        %v10140 = vadd.f32 0.0, %v10139
        %v10141 = vpop.f32.mrb[0].mxu0
        %v10142 = vpop.f32.mrb[0].mxu0
        %v10143 = vadd.f32 0.0, %v10142
        %v10144 = vpop.f32.mrb[0].mxu0
        %10145 = vmatprep.mubr.bf16.mxu0 0
        %10146 = vmatmul.mubr.bf16.gmra.mrb[0].mxu0 %v7054
        %v10147 = vpop.f32.mrb[0].mxu0
        %v10148 = vadd.f32 0.0, %v10147
        %v10149 = vpop.f32.mrb[0].mxu0
        %v10150 = vpop.f32.mrb[0].mxu0
        %v10151 = vadd.f32 0.0, %v10150
        %v10152 = vpop.f32.mrb[0].mxu0
        %10153 = vmatprep.mubr.bf16.mxu0 0
        %10154 = vmatmul.mubr.bf16.gmra.mrb[0].mxu0 %v7057
        %v10155 = vpop.f32.mrb[0].mxu0
        %v10156 = vadd.f32 0.0, %v10155
        %v10157 = vpop.f32.mrb[0].mxu0
        %v10158 = vpop.f32.mrb[0].mxu0
        %v10159 = vadd.f32 0.0, %v10158
        %v10160 = vpop.f32.mrb[0].mxu0
        %10161 = vmatprep.mubr.bf16.mxu0 0
        %10162 = vmatmul.mubr.bf16.gmra.mrb[0].mxu0 %v7060
        %v10163 = vpop.f32.mrb[0].mxu0
        %v10164 = vadd.f32 0.0, %v10163
        %v10165 = vpop.f32.mrb[0].mxu0
        %v10166 = vpop.f32.mrb[0].mxu0
        %v10167 = vadd.f32 0.0, %v10166
        %v10168 = vpop.f32.mrb[0].mxu0
        %10169 = vmatprep.mubr.bf16.mxu0 0
        %10170 = vmatmul.mubr.bf16.gmra.mrb[0].mxu0 %v7063
        %v10171 = vpop.f32.mrb[0].mxu0
        %v10172 = vadd.f32 0.0, %v10171
        %v10173 = vpop.f32.mrb[0].mxu0
        %v10174 = vpop.f32.mrb[0].mxu0
        %v10175 = vadd.f32 0.0, %v10174
        %v10176 = vpop.f32.mrb[0].mxu0
        %10177 = vmatprep.mubr.bf16.mxu0 0
        %10178 = vmatmul.mubr.bf16.gmra.mrb[0].mxu0 %v7066
        %v10179 = vpop.f32.mrb[0].mxu0
        %v10180 = vadd.f32 0.0, %v10179
        %v10181 = vpop.f32.mrb[0].mxu0
        %v10182 = vpop.f32.mrb[0].mxu0
        %v10183 = vadd.f32 0.0, %v10182
        %v10184 = vpop.f32.mrb[0].mxu0
        %10185 = vmatprep.mubr.bf16.mxu0 0
        %10186 = vmatmul.mubr.bf16.gmra.mrb[0].mxu0 %v7069
        %v10187 = vpop.f32.mrb[0].mxu0
        %v10188 = vadd.f32 0.0, %v10187
        %v10189 = vpop.f32.mrb[0].mxu0
        %v10190 = vpop.f32.mrb[0].mxu0
        %v10191 = vadd.f32 0.0, %v10190
        %v10192 = vpop.f32.mrb[0].mxu0
        %10193 = vmatprep.mubr.bf16.mxu0 0
        %10194 = vmatmul.mubr.bf16.gmra.mrb[0].mxu0 %v7072
        %v10195 = vpop.f32.mrb[0].mxu0
        %v10196 = vadd.f32 0.0, %v10195
        %v10197 = vpop.f32.mrb[0].mxu0
        %v10198 = vpop.f32.mrb[0].mxu0
        %v10199 = vadd.f32 0.0, %v10198
        %v10200 = vpop.f32.mrb[0].mxu0
        %10201 = vmatprep.mubr.bf16.mxu0 0
        %10202 = vmatmul.mubr.bf16.gmra.mrb[0].mxu0 %v7075
        %v10203 = vpop.f32.mrb[0].mxu0
        %v10204 = vadd.f32 0.0, %v10203
        %v10205 = vpop.f32.mrb[0].mxu0
        %v10206 = vpop.f32.mrb[0].mxu0
        %v10207 = vadd.f32 0.0, %v10206
        %v10208 = vpop.f32.mrb[0].mxu0
        %10209 = vmatprep.mubr.bf16.mxu0 0
        %10210 = vmatmul.mubr.bf16.gmra.mrb[0].mxu0 %v7078
        %v10211 = vpop.f32.mrb[0].mxu0
        %v10212 = vadd.f32 0.0, %v10211
        %v10213 = vpop.f32.mrb[0].mxu0
        %v10214 = vpop.f32.mrb[0].mxu0
        %v10215 = vadd.f32 0.0, %v10214
        %v10216 = vpop.f32.mrb[0].mxu0
        %10217 = vmatprep.mubr.bf16.mxu0 0
        %10218 = vmatmul.mubr.bf16.gmra.mrb[0].mxu0 %v7081
        %v10219 = vpop.f32.mrb[0].mxu0
        %v10220 = vadd.f32 0.0, %v10219
        %v10221 = vpop.f32.mrb[0].mxu0
        %v10222 = vpop.f32.mrb[0].mxu0
        %v10223 = vadd.f32 0.0, %v10222
        %v10224 = vpop.f32.mrb[0].mxu0
        %10225 = vmatprep.mubr.bf16.mxu0 0
        %10226 = vmatmul.mubr.bf16.gmra.mrb[0].mxu0 %v7084
        %v10227 = vpop.f32.mrb[0].mxu0
        %v10228 = vadd.f32 0.0, %v10227
        %v10229 = vpop.f32.mrb[0].mxu0
        %v10230 = vpop.f32.mrb[0].mxu0
        %v10231 = vadd.f32 0.0, %v10230
        %v10232 = vpop.f32.mrb[0].mxu0
        %10233 = vmatprep.mubr.bf16.mxu0 0
        %10234 = vmatmul.mubr.bf16.gmra.mrb[0].mxu0 %v7087
        %v10235 = vpop.f32.mrb[0].mxu0
        %v10236 = vadd.f32 0.0, %v10235
        %v10237 = vpop.f32.mrb[0].mxu0
        %v10238 = vpop.f32.mrb[0].mxu0
        %v10239 = vadd.f32 0.0, %v10238
        %v10240 = vpop.f32.mrb[0].mxu0
        %10241 = vmatprep.mubr.bf16.mxu0 0
        %10242 = vmatmul.mubr.bf16.gmra.mrb[0].mxu0 %v7090
        %v10243 = vpop.f32.mrb[0].mxu0
        %v10244 = vadd.f32 0.0, %v10243
        %v10245 = vpop.f32.mrb[0].mxu0
        %v10246 = vpop.f32.mrb[0].mxu0
        %v10247 = vadd.f32 0.0, %v10246
        %v10248 = vpop.f32.mrb[0].mxu0
        %10249 = vmatprep.mubr.bf16.mxu0 0
        %10250 = vmatmul.mubr.bf16.gmra.mrb[0].mxu0 %v7093
        %v10251 = vpop.f32.mrb[0].mxu0
        %v10252 = vadd.f32 0.0, %v10251
        %v10253 = vpop.f32.mrb[0].mxu0
        %v10254 = vpop.f32.mrb[0].mxu0
        %v10255 = vadd.f32 0.0, %v10254
        %v10256 = vpop.f32.mrb[0].mxu0
        %10257 = vmatprep.mubr.bf16.mxu0 0
        %10258 = vmatmul.mubr.bf16.gmra.mrb[0].mxu0 %v7096
        %v10259 = vpop.f32.mrb[0].mxu0
        %v10260 = vadd.f32 0.0, %v10259
        %v10261 = vpop.f32.mrb[0].mxu0
        %v10262 = vpop.f32.mrb[0].mxu0
        %v10263 = vadd.f32 0.0, %v10262
        %v10264 = vpop.f32.mrb[0].mxu0
        %10265 = vmatprep.mubr.bf16.mxu0 0
        %10266 = vmatmul.mubr.bf16.gmra.mrb[0].mxu0 %v7099
        %v10267 = vpop.f32.mrb[0].mxu0
        %v10268 = vadd.f32 0.0, %v10267
        %v10269 = vpop.f32.mrb[0].mxu0
        %v10270 = vpop.f32.mrb[0].mxu0
        %v10271 = vadd.f32 0.0, %v10270
        %v10272 = vpop.f32.mrb[0].mxu0
        %10273 = vmatprep.mubr.bf16.mxu0 0
        %10274 = vmatmul.mubr.bf16.gmra.mrb[0].mxu0 %v7102
        %v10275 = vpop.f32.mrb[0].mxu0
        %v10276 = vadd.f32 0.0, %v10275
        %v10277 = vpop.f32.mrb[0].mxu0
        %v10278 = vpop.f32.mrb[0].mxu0
        %v10279 = vadd.f32 0.0, %v10278
        %v10280 = vpop.f32.mrb[0].mxu0
        %10281 = vmatprep.mubr.bf16.mxu0 0
        %10282 = vmatmul.mubr.bf16.gmra.mrb[0].mxu0 %v7105
        %v10283 = vpop.f32.mrb[0].mxu0
        %v10284 = vadd.f32 0.0, %v10283
        %v10285 = vpop.f32.mrb[0].mxu0
        %v10286 = vpop.f32.mrb[0].mxu0
        %v10287 = vadd.f32 0.0, %v10286
        %v10288 = vpop.f32.mrb[0].mxu0
        %10289 = vmatprep.mubr.bf16.mxu0 0
        %10290 = vmatmul.mubr.bf16.gmra.mrb[0].mxu0 %v7108
        %v10291 = vpop.f32.mrb[0].mxu0
        %v10292 = vadd.f32 0.0, %v10291
        %v10293 = vpop.f32.mrb[0].mxu0
        %v10294 = vpop.f32.mrb[0].mxu0
        %v10295 = vadd.f32 0.0, %v10294
        %v10296 = vpop.f32.mrb[0].mxu0
        %10297 = vmatprep.mubr.bf16.mxu0 0
        %10298 = vmatmul.mubr.bf16.gmra.mrb[0].mxu0 %v7111
        %v10299 = vpop.f32.mrb[0].mxu0
        %v10300 = vadd.f32 0.0, %v10299
        %v10301 = vpop.f32.mrb[0].mxu0
        %v10302 = vpop.f32.mrb[0].mxu0
        %v10303 = vadd.f32 0.0, %v10302
        %v10304 = vpop.f32.mrb[0].mxu0
        %10305 = vmatprep.mubr.bf16.mxu0 0
        %10306 = vmatmul.mubr.bf16.gmra.mrb[0].mxu0 %v7114
        %v10307 = vpop.f32.mrb[0].mxu0
        %v10308 = vadd.f32 0.0, %v10307
        %v10309 = vpop.f32.mrb[0].mxu0
        %v10310 = vpop.f32.mrb[0].mxu0
        %v10311 = vadd.f32 0.0, %v10310
        %v10312 = vpop.f32.mrb[0].mxu0
        %10313 = vmatprep.mubr.bf16.mxu0 0
        %10314 = vmatmul.mubr.bf16.gmra.mrb[0].mxu0 %v7117
        %v10315 = vpop.f32.mrb[0].mxu0
        %v10316 = vadd.f32 0.0, %v10315
        %v10317 = vpop.f32.mrb[0].mxu0
        %v10318 = vpop.f32.mrb[0].mxu0
        %v10319 = vadd.f32 0.0, %v10318
        %v10320 = vpop.f32.mrb[0].mxu0
        %10321 = vmatprep.mubr.bf16.mxu0 0
        %10322 = vmatmul.mubr.bf16.gmra.mrb[0].mxu0 %v7120
        %v10323 = vpop.f32.mrb[0].mxu0
        %v10324 = vadd.f32 0.0, %v10323
        %v10325 = vpop.f32.mrb[0].mxu0
        %v10326 = vpop.f32.mrb[0].mxu0
        %v10327 = vadd.f32 0.0, %v10326
        %v10328 = vpop.f32.mrb[0].mxu0
        %10329 = vmatprep.mubr.bf16.mxu0 0
        %10330 = vmatmul.mubr.bf16.gmra.mrb[0].mxu0 %v7123
        %v10331 = vpop.f32.mrb[0].mxu0
        %v10332 = vadd.f32 0.0, %v10331
        %v10333 = vpop.f32.mrb[0].mxu0
        %v10334 = vpop.f32.mrb[0].mxu0
        %v10335 = vadd.f32 0.0, %v10334
        %v10336 = vpop.f32.mrb[0].mxu0
        %10337 = vmatprep.mubr.bf16.mxu0 0
        %10338 = vmatmul.mubr.bf16.gmra.mrb[0].mxu0 %v7126
        %v10339 = vpop.f32.mrb[0].mxu0
        %v10340 = vadd.f32 0.0, %v10339
        %v10341 = vpop.f32.mrb[0].mxu0
        %v10342 = vpop.f32.mrb[0].mxu0
        %v10343 = vadd.f32 0.0, %v10342
        %v10344 = vpop.f32.mrb[0].mxu0
        %10345 = vmatprep.mubr.bf16.mxu0 0
        %10346 = vmatmul.mubr.bf16.gmra.mrb[0].mxu0 %v7129
        %v10347 = vpop.f32.mrb[0].mxu0
        %v10348 = vadd.f32 0.0, %v10347
        %v10349 = vpop.f32.mrb[0].mxu0
        %v10350 = vpop.f32.mrb[0].mxu0
        %v10351 = vadd.f32 0.0, %v10350
        %v10352 = vpop.f32.mrb[0].mxu0
        %10353 = vmatprep.mubr.bf16.mxu0 0
        %10354 = vmatmul.mubr.bf16.gmra.mrb[0].mxu0 %v7132
        %v10355 = vpop.f32.mrb[0].mxu0
        %v10356 = vadd.f32 0.0, %v10355
        %v10357 = vpop.f32.mrb[0].mxu0
        %v10358 = vpop.f32.mrb[0].mxu0
        %v10359 = vadd.f32 0.0, %v10358
        %v10360 = vpop.f32.mrb[0].mxu0
        %10361 = vmatprep.mubr.bf16.mxu0 0
        %10362 = vmatmul.mubr.bf16.gmra.mrb[0].mxu0 %v7135
        %v10363 = vpop.f32.mrb[0].mxu0
        %v10364 = vadd.f32 0.0, %v10363
        %v10365 = vpop.f32.mrb[0].mxu0
        %v10366 = vpop.f32.mrb[0].mxu0
        %v10367 = vadd.f32 0.0, %v10366
        %v10368 = vpop.f32.mrb[0].mxu0
        %10369 = vmatprep.mubr.bf16.mxu0 0
        %10370 = vmatmul.mubr.bf16.gmra.mrb[0].mxu0 %v7138
        %v10371 = vpop.f32.mrb[0].mxu0
        %v10372 = vadd.f32 0.0, %v10371
        %v10373 = vpop.f32.mrb[0].mxu0
        %v10374 = vpop.f32.mrb[0].mxu0
        %v10375 = vadd.f32 0.0, %v10374
        %v10376 = vpop.f32.mrb[0].mxu0
        %10377 = vmatprep.mubr.bf16.mxu0 0
        %10378 = vmatmul.mubr.bf16.gmra.mrb[0].mxu0 %v7141
        %v10379 = vpop.f32.mrb[0].mxu0
        %v10380 = vadd.f32 0.0, %v10379
        %v10381 = vpop.f32.mrb[0].mxu0
        %v10382 = vpop.f32.mrb[0].mxu0
        %v10383 = vadd.f32 0.0, %v10382
        %v10384 = vpop.f32.mrb[0].mxu0
        %10385 = vmatprep.mubr.bf16.mxu0 0
        %10386 = vmatmul.mubr.bf16.gmra.mrb[0].mxu0 %v10081
        %v10387 = vpop.f32.mrb[0].mxu0
        %v10388 = vadd.f32 0.0, %v10387
        %v10389 = vpop.f32.mrb[0].mxu0
        %v10390 = vpop.f32.mrb[0].mxu0
        %v10391 = vadd.f32 0.0, %v10390
        %v10392 = vpop.f32.mrb[0].mxu0
        %10393 = vmatprep.mubr.bf16.mxu0 0
        %10394 = vmatmul.mubr.bf16.gmra.mrb[0].mxu0 %v10084
        %v10395 = vpop.f32.mrb[0].mxu0
        %v10396 = vadd.f32 0.0, %v10395
        %v10397 = vpop.f32.mrb[0].mxu0
        %v10398 = vpop.f32.mrb[0].mxu0
        %v10399 = vadd.f32 0.0, %v10398
        %v10400 = vpop.f32.mrb[0].mxu0
        %10401 = vmatprep.mubr.bf16.mxu0 0
        %10402 = vmatmul.mubr.bf16.gmra.mrb[0].mxu0 %v10087
        %v10403 = vpop.f32.mrb[0].mxu0
        %v10404 = vadd.f32 0.0, %v10403
        %v10405 = vpop.f32.mrb[0].mxu0
        %v10406 = vpop.f32.mrb[0].mxu0
        %v10407 = vadd.f32 0.0, %v10406
        %v10408 = vpop.f32.mrb[0].mxu0
        %10409 = vdwg.mxu0
        %v10410 = vadd.f32 %v9983, %v10124
        %v10411 = vadd.f32 %v9984, %v10127
        %v10412 = vadd.f32 %v9985, %v10132
        %v10413 = vadd.f32 %v9986, %v10135
        %v10414 = vadd.f32 %v9987, %v10140
        %v10415 = vadd.f32 %v9988, %v10143
        %v10416 = vadd.f32 %v9989, %v10148
        %v10417 = vadd.f32 %v9990, %v10151
        %v10418 = vadd.f32 %v9991, %v10156
        %v10419 = vadd.f32 %v9992, %v10159
        %v10420 = vadd.f32 %v9993, %v10164
        %v10421 = vadd.f32 %v9994, %v10167
        %v10422 = vadd.f32 %v9995, %v10172
        %v10423 = vadd.f32 %v9996, %v10175
        %v10424 = vadd.f32 %v9997, %v10180
        %v10425 = vadd.f32 %v9998, %v10183
        %v10426 = vadd.f32 %v9999, %v10188
        %v10427 = vadd.f32 %v10000, %v10191
        %v10428 = vadd.f32 %v10001, %v10196
        %v10429 = vadd.f32 %v10002, %v10199
        %v10430 = vadd.f32 %v10003, %v10204
        %v10431 = vadd.f32 %v10004, %v10207
        %v10432 = vadd.f32 %v10005, %v10212
        %v10433 = vadd.f32 %v10006, %v10215
        %v10434 = vadd.f32 %v10007, %v10220
        %v10435 = vadd.f32 %v10008, %v10223
        %v10436 = vadd.f32 %v10009, %v10228
        %v10437 = vadd.f32 %v10010, %v10231
        %v10438 = vadd.f32 %v10011, %v10236
        %v10439 = vadd.f32 %v10012, %v10239
        %v10440 = vadd.f32 %v10013, %v10244
        %v10441 = vadd.f32 %v10014, %v10247
        %v10442 = vadd.f32 %v10015, %v10252
        %v10443 = vadd.f32 %v10016, %v10255
        %v10444 = vadd.f32 %v10017, %v10260
        %v10445 = vadd.f32 %v10018, %v10263
        %v10446 = vadd.f32 %v10019, %v10268
        %v10447 = vadd.f32 %v10020, %v10271
        %v10448 = vadd.f32 %v10021, %v10276
        %v10449 = vadd.f32 %v10022, %v10279
        %v10450 = vadd.f32 %v10023, %v10284
        %v10451 = vadd.f32 %v10024, %v10287
        %v10452 = vadd.f32 %v10025, %v10292
        %v10453 = vadd.f32 %v10026, %v10295
        %v10454 = vadd.f32 %v10027, %v10300
        %v10455 = vadd.f32 %v10028, %v10303
        %v10456 = vadd.f32 %v10029, %v10308
        %v10457 = vadd.f32 %v10030, %v10311
        %v10458 = vadd.f32 %v10031, %v10316
        %v10459 = vadd.f32 %v10032, %v10319
        %v10460 = vadd.f32 %v10033, %v10324
        %v10461 = vadd.f32 %v10034, %v10327
        %v10462 = vadd.f32 %v10035, %v10332
        %v10463 = vadd.f32 %v10036, %v10335
        %v10464 = vadd.f32 %v10037, %v10340
        %v10465 = vadd.f32 %v10038, %v10343
        %v10466 = vadd.f32 %v10039, %v10348
        %v10467 = vadd.f32 %v10040, %v10351
        %v10468 = vadd.f32 %v10041, %v10356
        %v10469 = vadd.f32 %v10042, %v10359
        %v10470 = vadd.f32 %v10043, %v10364
        %v10471 = vadd.f32 %v10044, %v10367
        %v10472 = vadd.f32 %v10045, %v10372
        %v10473 = vadd.f32 %v10046, %v10375
        %v10474 = vadd.f32 %v10047, %v10380
        %v10475 = vadd.f32 %v10048, %v10383
        %v10476 = vadd.f32 %v10049, %v10388
        %v10477 = vadd.f32 %v10050, %v10391
        %v10478 = vadd.f32 %v10051, %v10396
        %v10479 = vadd.f32 %v10052, %v10399
        %v10480 = vadd.f32 %v10053, %v10404
        %v10481 = vadd.f32 %v10054, %v10407
        %v10482 = vld [vmem:[#allocation7] sm:$0x1]
        %v10484 = vlaneseq
        %v10485 = vshrl.u32 %v10484, 7
        %v10486 = vsub.s32 0, %v10485
        %v10487 = vrot.slane %v10482, %v10486
        %v10489 = vadd.f32 %v10410, %v10487
        %v10490 = vadd.f32 %v10411, %v10487
        %v10491 = vadd.f32 %v10412, %v10487
        %v10492 = vadd.f32 %v10413, %v10487
        %v10493 = vadd.f32 %v10414, %v10487
        %v10494 = vadd.f32 %v10415, %v10487
        %v10495 = vadd.f32 %v10416, %v10487
        %v10496 = vadd.f32 %v10417, %v10487
        %v10497 = vadd.f32 %v10418, %v10487
        %v10498 = vadd.f32 %v10419, %v10487
        %v10499 = vadd.f32 %v10420, %v10487
        %v10500 = vadd.f32 %v10421, %v10487
        %v10501 = vadd.f32 %v10422, %v10487
        %v10502 = vadd.f32 %v10423, %v10487
        %v10503 = vadd.f32 %v10424, %v10487
        %v10504 = vadd.f32 %v10425, %v10487
        %v10505 = vadd.f32 %v10426, %v10487
        %v10506 = vadd.f32 %v10427, %v10487
        %v10507 = vadd.f32 %v10428, %v10487
        %v10508 = vadd.f32 %v10429, %v10487
        %v10509 = vadd.f32 %v10430, %v10487
        %v10510 = vadd.f32 %v10431, %v10487
        %v10511 = vadd.f32 %v10432, %v10487
        %v10512 = vadd.f32 %v10433, %v10487
        %v10513 = vadd.f32 %v10434, %v10487
        %v10514 = vadd.f32 %v10435, %v10487
        %v10515 = vadd.f32 %v10436, %v10487
        %v10516 = vadd.f32 %v10437, %v10487
        %v10517 = vadd.f32 %v10438, %v10487
        %v10518 = vadd.f32 %v10439, %v10487
        %v10519 = vadd.f32 %v10440, %v10487
        %v10520 = vadd.f32 %v10441, %v10487
        %v10521 = vadd.f32 %v10442, %v10487
        %v10522 = vadd.f32 %v10443, %v10487
        %v10523 = vadd.f32 %v10444, %v10487
        %v10524 = vadd.f32 %v10445, %v10487
        %v10525 = vadd.f32 %v10446, %v10487
        %v10526 = vadd.f32 %v10447, %v10487
        %v10527 = vadd.f32 %v10448, %v10487
        %v10528 = vadd.f32 %v10449, %v10487
        %v10529 = vadd.f32 %v10450, %v10487
        %v10530 = vadd.f32 %v10451, %v10487
        %v10531 = vadd.f32 %v10452, %v10487
        %v10532 = vadd.f32 %v10453, %v10487
        %v10533 = vadd.f32 %v10454, %v10487
        %v10534 = vadd.f32 %v10455, %v10487
        %v10535 = vadd.f32 %v10456, %v10487
        %v10536 = vadd.f32 %v10457, %v10487
        %v10537 = vadd.f32 %v10458, %v10487
        %v10538 = vadd.f32 %v10459, %v10487
        %v10539 = vadd.f32 %v10460, %v10487
        %v10540 = vadd.f32 %v10461, %v10487
        %v10541 = vadd.f32 %v10462, %v10487
        %v10542 = vadd.f32 %v10463, %v10487
        %v10543 = vadd.f32 %v10464, %v10487
        %v10544 = vadd.f32 %v10465, %v10487
        %v10545 = vadd.f32 %v10466, %v10487
        %v10546 = vadd.f32 %v10467, %v10487
        %v10547 = vadd.f32 %v10468, %v10487
        %v10548 = vadd.f32 %v10469, %v10487
        %v10549 = vadd.f32 %v10470, %v10487
        %v10550 = vadd.f32 %v10471, %v10487
        %v10551 = vadd.f32 %v10472, %v10487
        %v10552 = vadd.f32 %v10473, %v10487
        %v10553 = vadd.f32 %v10474, %v10487
        %v10554 = vadd.f32 %v10475, %v10487
        %v10555 = vadd.f32 %v10476, %v10487
        %v10556 = vadd.f32 %v10477, %v10487
        %v10557 = vadd.f32 %v10478, %v10487
        %v10558 = vadd.f32 %v10479, %v10487
        %v10559 = vadd.f32 %v10480, %v10487
        %v10560 = vadd.f32 %v10481, %v10487
        %v10561 = vmax.f32 %v10489, 0.0
        %v10562 = vmax.f32 %v10490, 0.0
        %v10563 = vmax.f32 %v10491, 0.0
        %v10564 = vmax.f32 %v10492, 0.0
        %v10565 = vmax.f32 %v10493, 0.0
        %v10566 = vmax.f32 %v10494, 0.0
        %v10567 = vmax.f32 %v10495, 0.0
        %v10568 = vmax.f32 %v10496, 0.0
        %v10569 = vmax.f32 %v10497, 0.0
        %v10570 = vmax.f32 %v10498, 0.0
        %v10571 = vmax.f32 %v10499, 0.0
        %v10572 = vmax.f32 %v10500, 0.0
        %v10573 = vmax.f32 %v10501, 0.0
        %v10574 = vmax.f32 %v10502, 0.0
        %v10575 = vmax.f32 %v10503, 0.0
        %v10576 = vmax.f32 %v10504, 0.0
        %v10577 = vmax.f32 %v10505, 0.0
        %v10578 = vmax.f32 %v10506, 0.0
        %v10579 = vmax.f32 %v10507, 0.0
        %v10580 = vmax.f32 %v10508, 0.0
        %v10581 = vmax.f32 %v10509, 0.0
        %v10582 = vmax.f32 %v10510, 0.0
        %v10583 = vmax.f32 %v10511, 0.0
        %v10584 = vmax.f32 %v10512, 0.0
        %v10585 = vmax.f32 %v10513, 0.0
        %v10586 = vmax.f32 %v10514, 0.0
        %v10587 = vmax.f32 %v10515, 0.0
        %v10588 = vmax.f32 %v10516, 0.0
        %v10589 = vmax.f32 %v10517, 0.0
        %v10590 = vmax.f32 %v10518, 0.0
        %v10591 = vmax.f32 %v10519, 0.0
        %v10592 = vmax.f32 %v10520, 0.0
        %v10593 = vmax.f32 %v10521, 0.0
        %v10594 = vmax.f32 %v10522, 0.0
        %v10595 = vmax.f32 %v10523, 0.0
        %v10596 = vmax.f32 %v10524, 0.0
        %v10597 = vmax.f32 %v10525, 0.0
        %v10598 = vmax.f32 %v10526, 0.0
        %v10599 = vmax.f32 %v10527, 0.0
        %v10600 = vmax.f32 %v10528, 0.0
        %v10601 = vmax.f32 %v10529, 0.0
        %v10602 = vmax.f32 %v10530, 0.0
        %v10603 = vmax.f32 %v10531, 0.0
        %v10604 = vmax.f32 %v10532, 0.0
        %v10605 = vmax.f32 %v10533, 0.0
        %v10606 = vmax.f32 %v10534, 0.0
        %v10607 = vmax.f32 %v10535, 0.0
        %v10608 = vmax.f32 %v10536, 0.0
        %v10609 = vmax.f32 %v10537, 0.0
        %v10610 = vmax.f32 %v10538, 0.0
        %v10611 = vmax.f32 %v10539, 0.0
        %v10612 = vmax.f32 %v10540, 0.0
        %v10613 = vmax.f32 %v10541, 0.0
        %v10614 = vmax.f32 %v10542, 0.0
        %v10615 = vmax.f32 %v10543, 0.0
        %v10616 = vmax.f32 %v10544, 0.0
        %v10617 = vmax.f32 %v10545, 0.0
        %v10618 = vmax.f32 %v10546, 0.0
        %v10619 = vmax.f32 %v10547, 0.0
        %v10620 = vmax.f32 %v10548, 0.0
        %v10621 = vmax.f32 %v10549, 0.0
        %v10622 = vmax.f32 %v10550, 0.0
        %v10623 = vmax.f32 %v10551, 0.0
        %v10624 = vmax.f32 %v10552, 0.0
        %v10625 = vmax.f32 %v10553, 0.0
        %v10626 = vmax.f32 %v10554, 0.0
        %v10627 = vmax.f32 %v10555, 0.0
        %v10628 = vmax.f32 %v10556, 0.0
        %v10629 = vmax.f32 %v10557, 0.0
        %v10630 = vmax.f32 %v10558, 0.0
        %v10631 = vmax.f32 %v10559, 0.0
        %v10632 = vmax.f32 %v10560, 0.0
        %v10633 = vmax.f32 %v10561, %v10564
        %v10634 = vmax.f32 %v10562, %v10565
        %v10635 = vmax.f32 %v10563, %v10566
        %v10636 = vmax.f32 %v10567, %v10570
        %v10637 = vmax.f32 %v10568, %v10571
        %v10638 = vmax.f32 %v10569, %v10572
        %v10639 = vmax.f32 %v10573, %v10576
        %v10640 = vmax.f32 %v10574, %v10577
        %v10641 = vmax.f32 %v10575, %v10578
        %v10642 = vmax.f32 %v10579, %v10582
        %v10643 = vmax.f32 %v10580, %v10583
        %v10644 = vmax.f32 %v10581, %v10584
        %v10645 = vmax.f32 %v10585, %v10588
        %v10646 = vmax.f32 %v10586, %v10589
        %v10647 = vmax.f32 %v10587, %v10590
        %v10648 = vmax.f32 %v10591, %v10594
        %v10649 = vmax.f32 %v10592, %v10595
        %v10650 = vmax.f32 %v10593, %v10596
        %v10651 = vmax.f32 %v10597, %v10600
        %v10652 = vmax.f32 %v10598, %v10601
        %v10653 = vmax.f32 %v10599, %v10602
        %v10654 = vmax.f32 %v10603, %v10606
        %v10655 = vmax.f32 %v10604, %v10607
        %v10656 = vmax.f32 %v10605, %v10608
        %v10657 = vmax.f32 %v10609, %v10612
        %v10658 = vmax.f32 %v10610, %v10613
        %v10659 = vmax.f32 %v10611, %v10614
        %v10660 = vmax.f32 %v10615, %v10618
        %v10661 = vmax.f32 %v10616, %v10619
        %v10662 = vmax.f32 %v10617, %v10620
        %v10663 = vmax.f32 %v10621, %v10624
        %v10664 = vmax.f32 %v10622, %v10625
        %v10665 = vmax.f32 %v10623, %v10626
        %v10666 = vmax.f32 %v10627, %v10630
        %v10667 = vmax.f32 %v10628, %v10631
        %v10668 = vmax.f32 %v10629, %v10632
        %v10681 = vrot.slane %v10633, 1
        %v10682 = vrot.slane %v10636, 1
        %v10683 = vrot.slane %v10639, 1
        %v10684 = vrot.slane %v10642, 1
        %v10685 = vrot.slane %v10645, 1
        %v10686 = vrot.slane %v10648, 1
        %v10687 = vrot.slane %v10651, 1
        %v10688 = vrot.slane %v10654, 1
        %v10689 = vrot.slane %v10657, 1
        %v10690 = vrot.slane %v10660, 1
        %v10691 = vrot.slane %v10663, 1
        %v10692 = vrot.slane %v10666, 1
        %v10705 = vmax.f32 %v10633, %v10681
        %v10706 = vmax.f32 %v10636, %v10682
        %v10707 = vmax.f32 %v10639, %v10683
        %v10708 = vmax.f32 %v10642, %v10684
        %v10709 = vmax.f32 %v10645, %v10685
        %v10710 = vmax.f32 %v10648, %v10686
        %v10711 = vmax.f32 %v10651, %v10687
        %v10712 = vmax.f32 %v10654, %v10688
        %v10713 = vmax.f32 %v10657, %v10689
        %v10714 = vmax.f32 %v10660, %v10690
        %v10715 = vmax.f32 %v10663, %v10691
        %v10716 = vmax.f32 %v10666, %v10692
        %v10729 = vrot.slane %v10634, 1
        %v10730 = vrot.slane %v10637, 1
        %v10731 = vrot.slane %v10640, 1
        %v10732 = vrot.slane %v10643, 1
        %v10733 = vrot.slane %v10646, 1
        %v10734 = vrot.slane %v10649, 1
        %v10735 = vrot.slane %v10652, 1
        %v10736 = vrot.slane %v10655, 1
        %v10737 = vrot.slane %v10658, 1
        %v10738 = vrot.slane %v10661, 1
        %v10739 = vrot.slane %v10664, 1
        %v10740 = vrot.slane %v10667, 1
        %v10753 = vmax.f32 %v10634, %v10729
        %v10754 = vmax.f32 %v10637, %v10730
        %v10755 = vmax.f32 %v10640, %v10731
        %v10756 = vmax.f32 %v10643, %v10732
        %v10757 = vmax.f32 %v10646, %v10733
        %v10758 = vmax.f32 %v10649, %v10734
        %v10759 = vmax.f32 %v10652, %v10735
        %v10760 = vmax.f32 %v10655, %v10736
        %v10761 = vmax.f32 %v10658, %v10737
        %v10762 = vmax.f32 %v10661, %v10738
        %v10763 = vmax.f32 %v10664, %v10739
        %v10764 = vmax.f32 %v10667, %v10740
        %v10777 = vrot.slane %v10635, 1
        %v10778 = vrot.slane %v10638, 1
        %v10779 = vrot.slane %v10641, 1
        %v10780 = vrot.slane %v10644, 1
        %v10781 = vrot.slane %v10647, 1
        %v10782 = vrot.slane %v10650, 1
        %v10783 = vrot.slane %v10653, 1
        %v10784 = vrot.slane %v10656, 1
        %v10785 = vrot.slane %v10659, 1
        %v10786 = vrot.slane %v10662, 1
        %v10787 = vrot.slane %v10665, 1
        %v10788 = vrot.slane %v10668, 1
        %v10801 = vmax.f32 %v10635, %v10777
        %v10802 = vmax.f32 %v10638, %v10778
        %v10803 = vmax.f32 %v10641, %v10779
        %v10804 = vmax.f32 %v10644, %v10780
        %v10805 = vmax.f32 %v10647, %v10781
        %v10806 = vmax.f32 %v10650, %v10782
        %v10807 = vmax.f32 %v10653, %v10783
        %v10808 = vmax.f32 %v10656, %v10784
        %v10809 = vmax.f32 %v10659, %v10785
        %v10810 = vmax.f32 %v10662, %v10786
        %v10811 = vmax.f32 %v10665, %v10787
        %v10812 = vmax.f32 %v10668, %v10788
        %v10825 = vrot.slane %v10706, 7
        %vm10826 = vcmask 1041409
        %v10827 = vsel %vm10826, %v10825, %v10705
        %v10828 = vrot.slane %v10707, 6
        %vm10829 = vcmask 1042434
        %v10830 = vsel %vm10829, %v10828, %v10827
        %v10831 = vrot.slane %v10708, 5
        %vm10832 = vcmask 1043459
        %v10833 = vsel %vm10832, %v10831, %v10830
        %v10834 = vrot.slane %v10709, 4
        %vm10835 = vcmask 1044484
        %v10836 = vsel %vm10835, %v10834, %v10833
        %v10837 = vrot.slane %v10710, 3
        %vm10838 = vcmask 1045509
        %v10839 = vsel %vm10838, %v10837, %v10836
        %v10840 = vrot.slane %v10711, 2
        %vm10841 = vcmask 1046534
        %v10842 = vsel %vm10841, %v10840, %v10839
        %v10843 = vrot.slane %v10712, 1
        %vm10844 = vcmask 1047559
        %v10845 = vsel %vm10844, %v10843, %v10842
        %v10846 = vrot.slane %v10714, 7
        %v10847 = vsel %vm10826, %v10846, %v10713
        %v10848 = vrot.slane %v10715, 6
        %v10849 = vsel %vm10829, %v10848, %v10847
        %v10850 = vrot.slane %v10716, 5
        %v10851 = vsel %vm10832, %v10850, %v10849
        %v10854 = vrot.slane %v10705, 2
        %v10855 = vrot.slane %v10706, 1
        %v10856 = vsel %vm10826, %v10855, %v10854
        %v10857 = vsel %vm10829, %v10707, %v10856
        %v10858 = vrot.slane %v10708, 7
        %v10859 = vsel %vm10832, %v10858, %v10857
        %v10860 = vrot.slane %v10709, 6
        %v10861 = vsel %vm10835, %v10860, %v10859
        %v10862 = vrot.slane %v10710, 5
        %v10863 = vsel %vm10838, %v10862, %v10861
        %v10864 = vrot.slane %v10711, 4
        %v10865 = vsel %vm10841, %v10864, %v10863
        %v10866 = vrot.slane %v10712, 3
        %v10867 = vsel %vm10844, %v10866, %v10865
        %v10868 = vrot.slane %v10713, 2
        %v10869 = vrot.slane %v10714, 1
        %v10870 = vsel %vm10826, %v10869, %v10868
        %v10871 = vsel %vm10829, %v10715, %v10870
        %v10872 = vrot.slane %v10716, 7
        %v10873 = vsel %vm10832, %v10872, %v10871
        %10874 = vrot.lane.b32.xlu0 %v10867, 64
        %v10875 = vpop.permute.xlu0 %10874
        %10876 = vrot.lane.b32.xlu0 %v10873, 64
        %v10877 = vpop.permute.xlu0 %10876
        %v10880 = vrot.slane %v10705, 4
        %v10881 = vrot.slane %v10706, 3
        %v10882 = vsel %vm10826, %v10881, %v10880
        %v10883 = vrot.slane %v10707, 2
        %v10884 = vsel %vm10829, %v10883, %v10882
        %v10885 = vrot.slane %v10708, 1
        %v10886 = vsel %vm10832, %v10885, %v10884
        %v10887 = vsel %vm10835, %v10709, %v10886
        %v10888 = vrot.slane %v10710, 7
        %v10889 = vsel %vm10838, %v10888, %v10887
        %v10890 = vrot.slane %v10711, 6
        %v10891 = vsel %vm10841, %v10890, %v10889
        %v10892 = vrot.slane %v10712, 5
        %v10893 = vsel %vm10844, %v10892, %v10891
        %v10894 = vrot.slane %v10713, 4
        %v10895 = vrot.slane %v10714, 3
        %v10896 = vsel %vm10826, %v10895, %v10894
        %v10897 = vrot.slane %v10715, 2
        %v10898 = vsel %vm10829, %v10897, %v10896
        %v10899 = vrot.slane %v10716, 1
        %v10900 = vsel %vm10832, %v10899, %v10898
        %v10903 = vrot.slane %v10705, 6
        %v10904 = vrot.slane %v10706, 5
        %v10905 = vsel %vm10826, %v10904, %v10903
        %v10906 = vrot.slane %v10707, 4
        %v10907 = vsel %vm10829, %v10906, %v10905
        %v10908 = vrot.slane %v10708, 3
        %v10909 = vsel %vm10832, %v10908, %v10907
        %v10910 = vrot.slane %v10709, 2
        %v10911 = vsel %vm10835, %v10910, %v10909
        %v10912 = vrot.slane %v10710, 1
        %v10913 = vsel %vm10838, %v10912, %v10911
        %v10914 = vsel %vm10841, %v10711, %v10913
        %v10915 = vrot.slane %v10712, 7
        %v10916 = vsel %vm10844, %v10915, %v10914
        %v10917 = vrot.slane %v10713, 6
        %v10918 = vrot.slane %v10714, 5
        %v10919 = vsel %vm10826, %v10918, %v10917
        %v10920 = vrot.slane %v10715, 4
        %v10921 = vsel %vm10829, %v10920, %v10919
        %v10922 = vrot.slane %v10716, 3
        %v10923 = vsel %vm10832, %v10922, %v10921
        %10924 = vrot.lane.b32.xlu0 %v10916, 64
        %v10925 = vpop.permute.xlu0 %10924
        %10926 = vrot.lane.b32.xlu0 %v10923, 64
        %v10927 = vpop.permute.xlu0 %10926
        %v10942 = vrot.slane %v10754, 7
        %v10943 = vsel %vm10826, %v10942, %v10753
        %v10944 = vrot.slane %v10755, 6
        %v10945 = vsel %vm10829, %v10944, %v10943
        %v10946 = vrot.slane %v10756, 5
        %v10947 = vsel %vm10832, %v10946, %v10945
        %v10948 = vrot.slane %v10757, 4
        %v10949 = vsel %vm10835, %v10948, %v10947
        %v10950 = vrot.slane %v10758, 3
        %v10951 = vsel %vm10838, %v10950, %v10949
        %v10952 = vrot.slane %v10759, 2
        %v10953 = vsel %vm10841, %v10952, %v10951
        %v10954 = vrot.slane %v10760, 1
        %v10955 = vsel %vm10844, %v10954, %v10953
        %v10956 = vrot.slane %v10762, 7
        %v10957 = vsel %vm10826, %v10956, %v10761
        %v10958 = vrot.slane %v10763, 6
        %v10959 = vsel %vm10829, %v10958, %v10957
        %v10960 = vrot.slane %v10764, 5
        %v10961 = vsel %vm10832, %v10960, %v10959
        %v10964 = vrot.slane %v10753, 2
        %v10965 = vrot.slane %v10754, 1
        %v10966 = vsel %vm10826, %v10965, %v10964
        %v10967 = vsel %vm10829, %v10755, %v10966
        %v10968 = vrot.slane %v10756, 7
        %v10969 = vsel %vm10832, %v10968, %v10967
        %v10970 = vrot.slane %v10757, 6
        %v10971 = vsel %vm10835, %v10970, %v10969
        %v10972 = vrot.slane %v10758, 5
        %v10973 = vsel %vm10838, %v10972, %v10971
        %v10974 = vrot.slane %v10759, 4
        %v10975 = vsel %vm10841, %v10974, %v10973
        %v10976 = vrot.slane %v10760, 3
        %v10977 = vsel %vm10844, %v10976, %v10975
        %v10978 = vrot.slane %v10761, 2
        %v10979 = vrot.slane %v10762, 1
        %v10980 = vsel %vm10826, %v10979, %v10978
        %v10981 = vsel %vm10829, %v10763, %v10980
        %v10982 = vrot.slane %v10764, 7
        %v10983 = vsel %vm10832, %v10982, %v10981
        %10984 = vrot.lane.b32.xlu0 %v10977, 64
        %v10985 = vpop.permute.xlu0 %10984
        %10986 = vrot.lane.b32.xlu0 %v10983, 64
        %v10987 = vpop.permute.xlu0 %10986
        %v10990 = vrot.slane %v10753, 4
        %v10991 = vrot.slane %v10754, 3
        %v10992 = vsel %vm10826, %v10991, %v10990
        %v10993 = vrot.slane %v10755, 2
        %v10994 = vsel %vm10829, %v10993, %v10992
        %v10995 = vrot.slane %v10756, 1
        %v10996 = vsel %vm10832, %v10995, %v10994
        %v10997 = vsel %vm10835, %v10757, %v10996
        %v10998 = vrot.slane %v10758, 7
        %v10999 = vsel %vm10838, %v10998, %v10997
        %v11000 = vrot.slane %v10759, 6
        %v11001 = vsel %vm10841, %v11000, %v10999
        %v11002 = vrot.slane %v10760, 5
        %v11003 = vsel %vm10844, %v11002, %v11001
        %v11004 = vrot.slane %v10761, 4
        %v11005 = vrot.slane %v10762, 3
        %v11006 = vsel %vm10826, %v11005, %v11004
        %v11007 = vrot.slane %v10763, 2
        %v11008 = vsel %vm10829, %v11007, %v11006
        %v11009 = vrot.slane %v10764, 1
        %v11010 = vsel %vm10832, %v11009, %v11008
        %v11013 = vrot.slane %v10753, 6
        %v11014 = vrot.slane %v10754, 5
        %v11015 = vsel %vm10826, %v11014, %v11013
        %v11016 = vrot.slane %v10755, 4
        %v11017 = vsel %vm10829, %v11016, %v11015
        %v11018 = vrot.slane %v10756, 3
        %v11019 = vsel %vm10832, %v11018, %v11017
        %v11020 = vrot.slane %v10757, 2
        %v11021 = vsel %vm10835, %v11020, %v11019
        %v11022 = vrot.slane %v10758, 1
        %v11023 = vsel %vm10838, %v11022, %v11021
        %v11024 = vsel %vm10841, %v10759, %v11023
        %v11025 = vrot.slane %v10760, 7
        %v11026 = vsel %vm10844, %v11025, %v11024
        %v11027 = vrot.slane %v10761, 6
        %v11028 = vrot.slane %v10762, 5
        %v11029 = vsel %vm10826, %v11028, %v11027
        %v11030 = vrot.slane %v10763, 4
        %v11031 = vsel %vm10829, %v11030, %v11029
        %v11032 = vrot.slane %v10764, 3
        %v11033 = vsel %vm10832, %v11032, %v11031
        %11034 = vrot.lane.b32.xlu0 %v11026, 64
        %v11035 = vpop.permute.xlu0 %11034
        %11036 = vrot.lane.b32.xlu0 %v11033, 64
        %v11037 = vpop.permute.xlu0 %11036
        %v11052 = vrot.slane %v10802, 7
        %v11053 = vsel %vm10826, %v11052, %v10801
        %v11054 = vrot.slane %v10803, 6
        %v11055 = vsel %vm10829, %v11054, %v11053
        %v11056 = vrot.slane %v10804, 5
        %v11057 = vsel %vm10832, %v11056, %v11055
        %v11058 = vrot.slane %v10805, 4
        %v11059 = vsel %vm10835, %v11058, %v11057
        %v11060 = vrot.slane %v10806, 3
        %v11061 = vsel %vm10838, %v11060, %v11059
        %v11062 = vrot.slane %v10807, 2
        %v11063 = vsel %vm10841, %v11062, %v11061
        %v11064 = vrot.slane %v10808, 1
        %v11065 = vsel %vm10844, %v11064, %v11063
        %v11066 = vrot.slane %v10810, 7
        %v11067 = vsel %vm10826, %v11066, %v10809
        %v11068 = vrot.slane %v10811, 6
        %v11069 = vsel %vm10829, %v11068, %v11067
        %v11070 = vrot.slane %v10812, 5
        %v11071 = vsel %vm10832, %v11070, %v11069
        %v11074 = vrot.slane %v10801, 2
        %v11075 = vrot.slane %v10802, 1
        %v11076 = vsel %vm10826, %v11075, %v11074
        %v11077 = vsel %vm10829, %v10803, %v11076
        %v11078 = vrot.slane %v10804, 7
        %v11079 = vsel %vm10832, %v11078, %v11077
        %v11080 = vrot.slane %v10805, 6
        %v11081 = vsel %vm10835, %v11080, %v11079
        %v11082 = vrot.slane %v10806, 5
        %v11083 = vsel %vm10838, %v11082, %v11081
        %v11084 = vrot.slane %v10807, 4
        %v11085 = vsel %vm10841, %v11084, %v11083
        %v11086 = vrot.slane %v10808, 3
        %v11087 = vsel %vm10844, %v11086, %v11085
        %v11088 = vrot.slane %v10809, 2
        %v11089 = vrot.slane %v10810, 1
        %v11090 = vsel %vm10826, %v11089, %v11088
        %v11091 = vsel %vm10829, %v10811, %v11090
        %v11092 = vrot.slane %v10812, 7
        %v11093 = vsel %vm10832, %v11092, %v11091
        %11094 = vrot.lane.b32.xlu0 %v11087, 64
        %v11095 = vpop.permute.xlu0 %11094
        %11096 = vrot.lane.b32.xlu0 %v11093, 64
        %v11097 = vpop.permute.xlu0 %11096
        %v11100 = vrot.slane %v10801, 4
        %v11101 = vrot.slane %v10802, 3
        %v11102 = vsel %vm10826, %v11101, %v11100
        %v11103 = vrot.slane %v10803, 2
        %v11104 = vsel %vm10829, %v11103, %v11102
        %v11105 = vrot.slane %v10804, 1
        %v11106 = vsel %vm10832, %v11105, %v11104
        %v11107 = vsel %vm10835, %v10805, %v11106
        %v11108 = vrot.slane %v10806, 7
        %v11109 = vsel %vm10838, %v11108, %v11107
        %v11110 = vrot.slane %v10807, 6
        %v11111 = vsel %vm10841, %v11110, %v11109
        %v11112 = vrot.slane %v10808, 5
        %v11113 = vsel %vm10844, %v11112, %v11111
        %v11114 = vrot.slane %v10809, 4
        %v11115 = vrot.slane %v10810, 3
        %v11116 = vsel %vm10826, %v11115, %v11114
        %v11117 = vrot.slane %v10811, 2
        %v11118 = vsel %vm10829, %v11117, %v11116
        %v11119 = vrot.slane %v10812, 1
        %v11120 = vsel %vm10832, %v11119, %v11118
        %v11123 = vrot.slane %v10801, 6
        %v11124 = vrot.slane %v10802, 5
        %v11125 = vsel %vm10826, %v11124, %v11123
        %v11126 = vrot.slane %v10803, 4
        %v11127 = vsel %vm10829, %v11126, %v11125
        %v11128 = vrot.slane %v10804, 3
        %v11129 = vsel %vm10832, %v11128, %v11127
        %v11130 = vrot.slane %v10805, 2
        %v11131 = vsel %vm10835, %v11130, %v11129
        %v11132 = vrot.slane %v10806, 1
        %v11133 = vsel %vm10838, %v11132, %v11131
        %v11134 = vsel %vm10841, %v10807, %v11133
        %v11135 = vrot.slane %v10808, 7
        %v11136 = vsel %vm10844, %v11135, %v11134
        %v11137 = vrot.slane %v10809, 6
        %v11138 = vrot.slane %v10810, 5
        %v11139 = vsel %vm10826, %v11138, %v11137
        %v11140 = vrot.slane %v10811, 4
        %v11141 = vsel %vm10829, %v11140, %v11139
        %v11142 = vrot.slane %v10812, 3
        %v11143 = vsel %vm10832, %v11142, %v11141
        %11144 = vrot.lane.b32.xlu0 %v11136, 64
        %v11145 = vpop.permute.xlu0 %11144
        %11146 = vrot.lane.b32.xlu0 %v11143, 64
        %v11147 = vpop.permute.xlu0 %11146
        %vm11150 = vcmask 523264
        %v11151 = vsel %vm11150, %v10845, %v10875
        %v11152 = vsel %vm11150, %v10851, %v10877
        %v11153 = vsel %vm11150, %v10893, %v10925
        %v11154 = vsel %vm11150, %v10900, %v10927
        %v11155 = vsel %vm11150, %v10955, %v10985
        %v11156 = vsel %vm11150, %v10961, %v10987
        %v11157 = vsel %vm11150, %v11003, %v11035
        %v11158 = vsel %vm11150, %v11010, %v11037
        %v11159 = vsel %vm11150, %v11065, %v11095
        %v11160 = vsel %vm11150, %v11071, %v11097
        %v11161 = vsel %vm11150, %v11113, %v11145
        %v11162 = vsel %vm11150, %v11120, %v11147
        %v11163 = vpack.c.bf16 %v11152, %v11151
        %v11164 = vpack.c.bf16 %v11154, %v11153
        %v11165 = vpack.c.bf16 %v11156, %v11155
        %v11166 = vpack.c.bf16 %v11158, %v11157
        %v11167 = vpack.c.bf16 %v11160, %v11159
        %v11168 = vpack.c.bf16 %v11162, %v11161
        %v11175 = vunpack.c.l.b16 %v11163
        %v11176 = vunpack.c.l.b16 %v11164
        %v11177 = vunpack.c.l.b16 %v11165
        %v11178 = vunpack.c.l.b16 %v11166
        %v11179 = vunpack.c.l.b16 %v11167
        %v11180 = vunpack.c.l.b16 %v11168
        %v11181 = vunpack.c.h.b16 %v11163
        %v11182 = vunpack.c.h.b16 %v11164
        %v11183 = vunpack.c.h.b16 %v11165
        %v11184 = vunpack.c.h.b16 %v11166
        %v11185 = vunpack.c.h.b16 %v11167
        %v11186 = vunpack.c.h.b16 %v11168
        %v11187 = vpack.c.b16 %v11176, %v11175
        %v11188 = vpack.c.b16 %v11178, %v11177
        %v11189 = vpack.c.b16 %v11180, %v11179
        %v11190 = vpack.c.b16 %v11182, %v11181
        %v11191 = vpack.c.b16 %v11184, %v11183
        %v11192 = vpack.c.b16 %v11186, %v11185
        %11199 = vst [vmem:[%s279] sm:$0xff] %v11187
        %11200 = vst [vmem:[%s279 + $0x8] sm:$0xff] %v11188
        %11201 = vst [vmem:[%s279 + $0x10] sm:$0xff] %v11189
        %11202 = vst [vmem:[%s279 + $0x18] sm:$0x33] %v11190
        %11203 = vst [vmem:[%s279 + $0x20] sm:$0x33] %v11191
        %11204 = vst [vmem:[%s279 + $0x28] sm:$0x33] %v11192
        %p11205 = scmp.lt.s32.totalorder %s19, 1
        %s11206 = scalar_select %p11205, %s19, 1
        %s11207 = smul.addr %s11206, 12
        %s11208 = smul.addr %s11207, 4
        %s11209 = scalar_lea.vmem %s5, %s11208
        // Predicated region
        $region57: #{cnn_forward.2} parent=39 // pred_check
          %p11210 = pneg %p147
        $region58: #{cnn_forward.2} parent=39 // pred_check_branch
          %11212 = sbr.rel (%p11210) target = $region60
        $region59: #{cnn_forward.2} parent=39 // pred_region
          _
        $region60: #{cnn_forward.2} parent=39 // pred_fallthru
          _
      $region40: #{cnn_forward.2} parent=5 // pred_fallthru
        _
      %p11213 = scmp.le.s32.totalorder 2, %s14
      // Predicated region
      $region61: #{cnn_forward.2} parent=5 // pred_check
        %p11214 = pneg %p11213
      $region62: #{cnn_forward.2} parent=5 // pred_check_branch
        %11216 = sbr.rel (%p11214) target = $region64
      $region63: #{cnn_forward.2} parent=5 // pred_region
        %s11217 = ssub.s32 %s14, 2
        // Predicated region
        $region65: #{cnn_forward.2} parent=63 // pred_check
          %p11218 = pneg %p153
        $region66: #{cnn_forward.2} parent=63 // pred_check_branch
          %11220 = sbr.rel (%p11218) target = $region68
        $region67: #{cnn_forward.2} parent=63 // pred_region
          %p11221 = scmp.lt.s32.totalorder %s20, 1
          %s11222 = scalar_select %p11221, %s20, 1
          %s11223 = smul.addr %s11222, 12
          %s11224 = smul.addr %s11223, 4
          %s11225 = scalar_lea.vmem %s5, %s11224
        $region68: #{cnn_forward.2} parent=63 // pred_fallthru
          _
      $region64: #{cnn_forward.2} parent=5 // pred_fallthru
        _
    $region6: #{cnn_forward.2} parent=1 // loop_footer
      %s18 = sadd.s32 1, %s14
    $region7: #{cnn_forward.2} parent=1 // loop_footer_branch
      %13 = sbr.rel target = $region3
    $region8: #{cnn_forward.2} parent=1 // loop_exit
      _
    %11226 = vsyncpa [#allocation3], 1
    %s11227 = scalar_lea.sflag [#allocation3], 1
    %11228 = vsyncpa %s11227, 1
    %11229 = vsyncpa [#allocation5], 1
    %11230 = vsyncpa [#allocation8], 1

</llo_original>
